<compile_context>
chip_gen: v5e
topology: v5e:2x2
jax: 0.10.0
libtpu: 0.0.40
codegen_flags: <defaults>
</compile_context>

<pallas_src>
import functools

import jax
import jax.numpy as jnp
import numpy as np
from jax.experimental import pallas as pl
from jax.experimental.pallas import tpu as pltpu


# ----------------------------------------------------------------------------
# In-kernel 3x3 "same" conv on a VMEM-resident activation (9 accumulating dots).
# ----------------------------------------------------------------------------
def _conv3x3_block(h_flat, w_ref, b_ref, pad_ref, *, H, W, relu):
    """h_flat: (H*W, Cin) f32 value (channels on lanes).
    w_ref:  (9*Cin, Cout) bf16 ref, taps folded row-major as (ky, kx, cin).
    b_ref:  (1, Cout) f32 ref.
    pad_ref:(H+2, W+2, Cin) bf16 VMEM scratch whose 1-pixel border is zero."""
    Cin = pad_ref.shape[-1]

    # Single f32->bf16 cast of the activation, written into the halo-buffer interior.
    pad_ref[pl.ds(1, H), pl.ds(1, W), :] = (
        h_flat.reshape(H, W, Cin).astype(pad_ref.dtype))

    # 9 accumulating K=Cin MXU dots; no (H*W, 9*Cin) patch is ever materialized.
    acc = None
    for ky in range(3):
        for kx in range(3):
            win = pad_ref[pl.ds(ky, H), pl.ds(kx, W), :].reshape(H * W, Cin)
            w_tap = w_ref[pl.ds((ky * 3 + kx) * Cin, Cin), :]        # static slice
            d = jnp.dot(win, w_tap, preferred_element_type=jnp.float32)
            acc = d if acc is None else acc + d
    acc = acc + b_ref[...]                                           # f32 epilogue
    if relu:
        acc = jnp.maximum(acc, 0.0)
    return acc


# ----------------------------------------------------------------------------
# Fused kernel: conv1 -> ReLU -> conv2 -> ReLU -> conv3, one batch element/step.
# ----------------------------------------------------------------------------
def _fused_upsampler_kernel(x_ref, w1_ref, w2_ref, w3_ref, b1_ref, b2_ref, b3_ref,
                            out_ref, pad_ref, *, H, W):
    C = pad_ref.shape[-1]
    zdt = pad_ref.dtype

    # Zero only the 1-pixel halo strips; the interior is fully rewritten by both convs
    # every step, so this is the only zeroing required (and it stays correct when the
    # parallel grid is sharded across TensorCores).
    pad_ref[pl.ds(0, 1), pl.ds(0, W + 2), :] = jnp.zeros((1, W + 2, C), zdt)
    pad_ref[pl.ds(H + 1, 1), pl.ds(0, W + 2), :] = jnp.zeros((1, W + 2, C), zdt)
    pad_ref[pl.ds(0, H + 2), pl.ds(0, 1), :] = jnp.zeros((H + 2, 1, C), zdt)
    pad_ref[pl.ds(0, H + 2), pl.ds(W + 1, 1), :] = jnp.zeros((H + 2, 1, C), zdt)

    # conv1 (im2col'ed + K padded to 128 in the wrapper): one lane-dense matmul + ReLU.
    h = jnp.dot(x_ref[0], w1_ref[...], preferred_element_type=jnp.float32)
    h = jnp.maximum(h + b1_ref[...], 0.0)                            # (H*W, 64) f32

    # conv2 + ReLU, conv3 — intermediates never leave VMEM.
    h = _conv3x3_block(h, w2_ref, b2_ref, pad_ref, H=H, W=W, relu=True)
    y = _conv3x3_block(h, w3_ref, b3_ref, pad_ref, H=H, W=W, relu=False)

    # Lane-dense (128-wide) f32 output slab; wrapper slices the real 12 channels.
    out_ref[...] = y.reshape(1, H * W, y.shape[-1])


# ----------------------------------------------------------------------------
# Wrapper
# ----------------------------------------------------------------------------
def _im2col_3x3(x_nhwc):
    """(N, H, W, C) -> (N, H, W, 9*C), channel index = (ky*3 + kx)*C + c."""
    N, H, W, C = x_nhwc.shape
    xp = jnp.pad(x_nhwc, ((0, 0), (1, 1), (1, 1), (0, 0)))
    cols = [xp[:, ky:ky + H, kx:kx + W, :] for ky in range(3) for kx in range(3)]
    return jnp.concatenate(cols, axis=-1)


def cnn_upsampler_forward(x_nchw, params, scale=2):
    """Exact forward semantics of CNNUpsampler: (N, 3, H, W) -> (N, 3, 2H, 2W)."""
    N, Cin, H, W = x_nchw.shape
    c_mid = params["w2"].shape[-1]             # 64
    c_out3 = params["w3"].shape[-1]            # 3 * scale * scale (= 12)
    K1 = 128                                   # conv1 contraction 27 -> 128 (lane-dense)
    C3 = 128                                   # conv3 output      12 -> 128 (lane-dense)

    # Cheap wrapper-side prep (these tensors are tiny: 3..27 channels).
    x_nhwc = jnp.transpose(x_nchw, (0, 2, 3, 1)).astype(jnp.float32)
    x27 = _im2col_3x3(x_nhwc).reshape(N, H * W, 9 * Cin)
    x1 = jnp.pad(x27, ((0, 0), (0, 0), (0, K1 - 9 * Cin))).astype(jnp.bfloat16)

    # Fold tap dims into the contraction dim; weights are (kh, kw, Cin, Cout).
    w1 = jnp.pad(params["w1"].reshape(9 * Cin, c_mid),
                 ((0, K1 - 9 * Cin), (0, 0))).astype(jnp.bfloat16)
    w2 = params["w2"].reshape(9 * c_mid, c_mid).astype(jnp.bfloat16)
    w3 = jnp.pad(params["w3"].reshape(9 * c_mid, c_out3),
                 ((0, 0), (0, C3 - c_out3))).astype(jnp.bfloat16)
    b1 = params["b1"].reshape(1, c_mid).astype(jnp.float32)
    b2 = params["b2"].reshape(1, c_mid).astype(jnp.float32)
    b3 = jnp.pad(params["b3"].astype(jnp.float32), (0, C3 - c_out3)).reshape(1, C3)

    kernel = functools.partial(_fused_upsampler_kernel, H=H, W=W)

    y = pl.pallas_call(
        kernel,
        out_shape=jax.ShapeDtypeStruct((N, H * W, C3), jnp.float32),
        grid_spec=pltpu.PrefetchScalarGridSpec(
            num_scalar_prefetch=0,
            grid=(N,),
            in_specs=[
                pl.BlockSpec((1, H * W, K1), lambda n: (n, 0, 0)),
                pl.BlockSpec((K1, c_mid), lambda n: (0, 0)),
                pl.BlockSpec((9 * c_mid, c_mid), lambda n: (0, 0)),
                pl.BlockSpec((9 * c_mid, C3), lambda n: (0, 0)),
                pl.BlockSpec((1, c_mid), lambda n: (0, 0)),
                pl.BlockSpec((1, c_mid), lambda n: (0, 0)),
                pl.BlockSpec((1, C3), lambda n: (0, 0)),
            ],
            out_specs=pl.BlockSpec((1, H * W, C3), lambda n: (n, 0, 0)),
            scratch_shapes=[pltpu.VMEM((H + 2, W + 2, c_mid), jnp.bfloat16)],
        ),
        compiler_params=pltpu.CompilerParams(
            dimension_semantics=("parallel",),
            vmem_limit_bytes=32 * 1024 * 1024,
        ),
    )(x1, w1, w2, w3, b1, b2, b3)

    # Drop the lane padding, then PixelShuffle(scale) + NHWC->NCHW:
    # one free reshape + one output-sized transpose.
    y = y[..., :c_out3]
    y = y.reshape(N, H, W, 3, scale, scale)       # (n, h, w, c, i, j)
    y = jnp.transpose(y, (0, 3, 1, 4, 2, 5))      # (n, c, h, i, w, j)
    return y.reshape(N, 3, H * scale, W * scale)


# ----------------------------------------------------------------------------
# Parameters + pure-JAX reference (for a correctness check)
# ----------------------------------------------------------------------------
def init_params(key, scale=2):
    """Deterministic synthetic parameters (shapes match the nn.Module).
    Stored as (kh, kw, Cin, Cout); real PyTorch weights need .transpose(2, 3, 1, 0)."""
    k1, k2, k3, k4, k5, k6 = jax.random.split(key, 6)

    def winit(k, shape, fan_in):
        return jax.random.normal(k, shape, jnp.float32) / jnp.sqrt(jnp.float32(fan_in))

    return {
        "w1": winit(k1, (3, 3, 3, 64), 3 * 9),
        "b1": 0.01 * jax.random.normal(k2, (64,), jnp.float32),
        "w2": winit(k3, (3, 3, 64, 64), 64 * 9),
        "b2": 0.01 * jax.random.normal(k4, (64,), jnp.float32),
        "w3": winit(k5, (3, 3, 64, 3 * scale * scale), 64 * 9),
        "b3": 0.01 * jax.random.normal(k6, (3 * scale * scale,), jnp.float32),
    }


def reference_forward(x_nchw, params, scale=2):
    dn = ("NHWC", "HWIO", "NHWC")

    def conv(h, w, b):
        return jax.lax.conv_general_dilated(
            h, w, (1, 1), "SAME", dimension_numbers=dn,
            precision=jax.lax.Precision.HIGHEST) + b

    x = jnp.transpose(x_nchw, (0, 2, 3, 1)).astype(jnp.float32)
    h = jax.nn.relu(conv(x, params["w1"], params["b1"]))
    h = jax.nn.relu(conv(h, params["w2"], params["b2"]))
    y = conv(h, params["w3"], params["b3"])
    N, H, W, _ = y.shape
    y = y.reshape(N, H, W, 3, scale, scale)
    y = jnp.transpose(y, (0, 3, 1, 4, 2, 5))
    return y.reshape(N, 3, H * scale, W * scale)


if __name__ == "__main__":
    scale = 2
    key = jax.random.PRNGKey(0)
    k_params, k_x = jax.random.split(key)

    params = init_params(k_params, scale=scale)
    x = jax.random.normal(k_x, (2, 3, 16, 16), jnp.float32)   # NCHW, like PyTorch

    fwd = jax.jit(functools.partial(cnn_upsampler_forward, scale=scale))
    out = fwd(x, params)
    jax.block_until_ready(out)

    assert out.shape == (2, 3, 32, 32), out.shape
    assert out.dtype == jnp.float32

    # Loose tolerance: kernel uses bf16 matmul operands (and a bf16 halo scratch) with
    # f32 accumulation and f32 epilogues.
    ref = reference_forward(x, params, scale=scale)
    np.testing.assert_allclose(np.asarray(out), np.asarray(ref), rtol=0.05, atol=0.1)

    print("KERNEL_OK")
</pallas_src>

<mosaic_0001>
module attributes {stable_mosaic.version = 11 : i64} {
  func.func @_fused_upsampler_kernel(%arg0: i32, %arg1: memref<1x256x128xbf16, #tpu.memory_space<vmem>>, %arg2: memref<128x64xbf16, #tpu.memory_space<vmem>>, %arg3: memref<576x64xbf16, #tpu.memory_space<vmem>>, %arg4: memref<576x128xbf16, #tpu.memory_space<vmem>>, %arg5: memref<1x64xf32, #tpu.memory_space<vmem>>, %arg6: memref<1x64xf32, #tpu.memory_space<vmem>>, %arg7: memref<1x128xf32, #tpu.memory_space<vmem>>, %arg8: memref<1x256x128xf32, #tpu.memory_space<vmem>>, %arg9: memref<18x18x64xbf16, #tpu.memory_space<vmem>>) attributes {dimension_semantics = [#tpu.dimension_semantics<parallel>], iteration_bounds = array<i64: 2>, scalar_prefetch = 0 : i64, scratch_operands = 1 : i64, tpu.core_type = #tpu.core_type<tc>, window_params = [{transform_indices = @transform_0, window_bounds = array<i64: 1, 256, 128>}, {pipeline_mode = #tpu.pipeline_mode<synchronous>, transform_indices = @transform_1, window_bounds = array<i64: 128, 64>}, {pipeline_mode = #tpu.pipeline_mode<synchronous>, transform_indices = @transform_2, window_bounds = array<i64: 576, 64>}, {pipeline_mode = #tpu.pipeline_mode<synchronous>, transform_indices = @transform_3, window_bounds = array<i64: 576, 128>}, {pipeline_mode = #tpu.pipeline_mode<synchronous>, transform_indices = @transform_4, window_bounds = array<i64: 1, 64>}, {pipeline_mode = #tpu.pipeline_mode<synchronous>, transform_indices = @transform_5, window_bounds = array<i64: 1, 64>}, {pipeline_mode = #tpu.pipeline_mode<synchronous>, transform_indices = @transform_6, window_bounds = array<i64: 1, 128>}, {transform_indices = @transform_7, window_bounds = array<i64: 1, 256, 128>}]} {
    %cst = arith.constant 0.000000e+00 : bf16
    %0 = vector.broadcast %cst : bf16 to vector<1x18x64xbf16>
    %c0 = arith.constant 0 : index
    %c0_0 = arith.constant 0 : index
    %c0_1 = arith.constant 0 : index
    %1 = vector.load %arg9[%c0, %c0_0, %c0_1] : memref<18x18x64xbf16, #tpu.memory_space<vmem>>, vector<1x18x64xbf16>
    tpu.vector_store %arg9[%c0, %c0_0, %c0_1], %0 {strides = array<i32>} : memref<18x18x64xbf16, #tpu.memory_space<vmem>>, vector<1x18x64xbf16>,
    %cst_2 = arith.constant 0.000000e+00 : bf16
    %2 = vector.broadcast %cst_2 : bf16 to vector<1x18x64xbf16>
    %c17 = arith.constant 17 : index
    %c0_3 = arith.constant 0 : index
    %c0_4 = arith.constant 0 : index
    %3 = vector.load %arg9[%c17, %c0_3, %c0_4] : memref<18x18x64xbf16, #tpu.memory_space<vmem>>, vector<1x18x64xbf16>
    tpu.vector_store %arg9[%c17, %c0_3, %c0_4], %2 {strides = array<i32>} : memref<18x18x64xbf16, #tpu.memory_space<vmem>>, vector<1x18x64xbf16>,
    %cst_5 = arith.constant 0.000000e+00 : bf16
    %4 = vector.broadcast %cst_5 : bf16 to vector<18x1x64xbf16>
    %c0_6 = arith.constant 0 : index
    %c0_7 = arith.constant 0 : index
    %c0_8 = arith.constant 0 : index
    %5 = vector.load %arg9[%c0_6, %c0_7, %c0_8] : memref<18x18x64xbf16, #tpu.memory_space<vmem>>, vector<18x1x64xbf16>
    tpu.vector_store %arg9[%c0_6, %c0_7, %c0_8], %4 {strides = array<i32>} : memref<18x18x64xbf16, #tpu.memory_space<vmem>>, vector<18x1x64xbf16>,
    %cst_9 = arith.constant 0.000000e+00 : bf16
    %6 = vector.broadcast %cst_9 : bf16 to vector<18x1x64xbf16>
    %c0_10 = arith.constant 0 : index
    %c17_11 = arith.constant 17 : index
    %c0_12 = arith.constant 0 : index
    %7 = vector.load %arg9[%c0_10, %c17_11, %c0_12] : memref<18x18x64xbf16, #tpu.memory_space<vmem>>, vector<18x1x64xbf16>
    tpu.vector_store %arg9[%c0_10, %c17_11, %c0_12], %6 {strides = array<i32>} : memref<18x18x64xbf16, #tpu.memory_space<vmem>>, vector<18x1x64xbf16>,
    %c0_13 = arith.constant 0 : index
    %c0_14 = arith.constant 0 : index
    %c0_15 = arith.constant 0 : index
    %8 = vector.load %arg1[%c0_13, %c0_14, %c0_15] : memref<1x256x128xbf16, #tpu.memory_space<vmem>>, vector<1x256x128xbf16>
    %9 = vector.shape_cast %8 : vector<1x256x128xbf16> to vector<256x128xbf16>
    %c0_16 = arith.constant 0 : index
    %c0_17 = arith.constant 0 : index
    %10 = vector.load %arg2[%c0_16, %c0_17] : memref<128x64xbf16, #tpu.memory_space<vmem>>, vector<128x64xbf16>
    %cst_18 = arith.constant dense<0.000000e+00> : vector<256x64xf32>
    %11 = tpu.matmul %9, %10, %cst_18 {dimension_numbers = #tpu.dot_dimension_numbers<[1], [0], [0], [1], [0, 0, 1, 1], [], []>} : vector<256x128xbf16>, vector<128x64xbf16>, vector<256x64xf32> -> vector<256x64xf32>
    %c0_19 = arith.constant 0 : index
    %c0_20 = arith.constant 0 : index
    %12 = vector.load %arg5[%c0_19, %c0_20] : memref<1x64xf32, #tpu.memory_space<vmem>>, vector<1x64xf32>
    %13 = vector.broadcast %12 : vector<1x64xf32> to vector<256x64xf32>
    %14 = arith.addf %11, %13 : vector<256x64xf32>
    %cst_21 = arith.constant 0.000000e+00 : f32
    %15 = vector.broadcast %cst_21 : f32 to vector<256x64xf32>
    %16 = arith.maximumf %14, %15 : vector<256x64xf32>
    %17 = vector.shape_cast %16 : vector<256x64xf32> to vector<16x16x64xf32>
    %18 = arith.truncf %17 : vector<16x16x64xf32> to vector<16x16x64xbf16>
    %c1 = arith.constant 1 : index
    %c1_22 = arith.constant 1 : index
    %c0_23 = arith.constant 0 : index
    %19 = vector.load %arg9[%c1, %c1_22, %c0_23] : memref<18x18x64xbf16, #tpu.memory_space<vmem>>, vector<16x16x64xbf16>
    tpu.vector_store %arg9[%c1, %c1_22, %c0_23], %18 {strides = array<i32>} : memref<18x18x64xbf16, #tpu.memory_space<vmem>>, vector<16x16x64xbf16>,
    %c0_24 = arith.constant 0 : index
    %c0_25 = arith.constant 0 : index
    %c0_26 = arith.constant 0 : index
    %20 = vector.load %arg9[%c0_24, %c0_25, %c0_26] : memref<18x18x64xbf16, #tpu.memory_space<vmem>>, vector<16x16x64xbf16>
    %21 = vector.shape_cast %20 : vector<16x16x64xbf16> to vector<256x64xbf16>
    %c0_27 = arith.constant 0 : index
    %c0_28 = arith.constant 0 : index
    %22 = vector.load %arg3[%c0_27, %c0_28] : memref<576x64xbf16, #tpu.memory_space<vmem>>, vector<64x64xbf16>
    %cst_29 = arith.constant dense<0.000000e+00> : vector<256x64xf32>
    %23 = tpu.matmul %21, %22, %cst_29 {dimension_numbers = #tpu.dot_dimension_numbers<[1], [0], [0], [1], [0, 0, 1, 1], [], []>} : vector<256x64xbf16>, vector<64x64xbf16>, vector<256x64xf32> -> vector<256x64xf32>
    %c0_30 = arith.constant 0 : index
    %c1_31 = arith.constant 1 : index
    %c0_32 = arith.constant 0 : index
    %24 = vector.load %arg9[%c0_30, %c1_31, %c0_32] : memref<18x18x64xbf16, #tpu.memory_space<vmem>>, vector<16x16x64xbf16>
    %25 = vector.shape_cast %24 : vector<16x16x64xbf16> to vector<256x64xbf16>
    %c64 = arith.constant 64 : index
    %c0_33 = arith.constant 0 : index
    %26 = vector.load %arg3[%c64, %c0_33] : memref<576x64xbf16, #tpu.memory_space<vmem>>, vector<64x64xbf16>
    %cst_34 = arith.constant dense<0.000000e+00> : vector<256x64xf32>
    %27 = tpu.matmul %25, %26, %cst_34 {dimension_numbers = #tpu.dot_dimension_numbers<[1], [0], [0], [1], [0, 0, 1, 1], [], []>} : vector<256x64xbf16>, vector<64x64xbf16>, vector<256x64xf32> -> vector<256x64xf32>
    %28 = arith.addf %23, %27 : vector<256x64xf32>
    %c0_35 = arith.constant 0 : index
    %c2 = arith.constant 2 : index
    %c0_36 = arith.constant 0 : index
    %29 = vector.load %arg9[%c0_35, %c2, %c0_36] : memref<18x18x64xbf16, #tpu.memory_space<vmem>>, vector<16x16x64xbf16>
    %30 = vector.shape_cast %29 : vector<16x16x64xbf16> to vector<256x64xbf16>
    %c128 = arith.constant 128 : index
    %c0_37 = arith.constant 0 : index
    %31 = vector.load %arg3[%c128, %c0_37] : memref<576x64xbf16, #tpu.memory_space<vmem>>, vector<64x64xbf16>
    %cst_38 = arith.constant dense<0.000000e+00> : vector<256x64xf32>
    %32 = tpu.matmul %30, %31, %cst_38 {dimension_numbers = #tpu.dot_dimension_numbers<[1], [0], [0], [1], [0, 0, 1, 1], [], []>} : vector<256x64xbf16>, vector<64x64xbf16>, vector<256x64xf32> -> vector<256x64xf32>
    %33 = arith.addf %28, %32 : vector<256x64xf32>
    %c1_39 = arith.constant 1 : index
    %c0_40 = arith.constant 0 : index
    %c0_41 = arith.constant 0 : index
    %34 = vector.load %arg9[%c1_39, %c0_40, %c0_41] : memref<18x18x64xbf16, #tpu.memory_space<vmem>>, vector<16x16x64xbf16>
    %35 = vector.shape_cast %34 : vector<16x16x64xbf16> to vector<256x64xbf16>
    %c192 = arith.constant 192 : index
    %c0_42 = arith.constant 0 : index
    %36 = vector.load %arg3[%c192, %c0_42] : memref<576x64xbf16, #tpu.memory_space<vmem>>, vector<64x64xbf16>
    %cst_43 = arith.constant dense<0.000000e+00> : vector<256x64xf32>
    %37 = tpu.matmul %35, %36, %cst_43 {dimension_numbers = #tpu.dot_dimension_numbers<[1], [0], [0], [1], [0, 0, 1, 1], [], []>} : vector<256x64xbf16>, vector<64x64xbf16>, vector<256x64xf32> -> vector<256x64xf32>
    %38 = arith.addf %33, %37 : vector<256x64xf32>
    %c1_44 = arith.constant 1 : index
    %c1_45 = arith.constant 1 : index
    %c0_46 = arith.constant 0 : index
    %39 = vector.load %arg9[%c1_44, %c1_45, %c0_46] : memref<18x18x64xbf16, #tpu.memory_space<vmem>>, vector<16x16x64xbf16>
    %40 = vector.shape_cast %39 : vector<16x16x64xbf16> to vector<256x64xbf16>
    %c256 = arith.constant 256 : index
    %c0_47 = arith.constant 0 : index
    %41 = vector.load %arg3[%c256, %c0_47] : memref<576x64xbf16, #tpu.memory_space<vmem>>, vector<64x64xbf16>
    %cst_48 = arith.constant dense<0.000000e+00> : vector<256x64xf32>
    %42 = tpu.matmul %40, %41, %cst_48 {dimension_numbers = #tpu.dot_dimension_numbers<[1], [0], [0], [1], [0, 0, 1, 1], [], []>} : vector<256x64xbf16>, vector<64x64xbf16>, vector<256x64xf32> -> vector<256x64xf32>
    %43 = arith.addf %38, %42 : vector<256x64xf32>
    %c1_49 = arith.constant 1 : index
    %c2_50 = arith.constant 2 : index
    %c0_51 = arith.constant 0 : index
    %44 = vector.load %arg9[%c1_49, %c2_50, %c0_51] : memref<18x18x64xbf16, #tpu.memory_space<vmem>>, vector<16x16x64xbf16>
    %45 = vector.shape_cast %44 : vector<16x16x64xbf16> to vector<256x64xbf16>
    %c320 = arith.constant 320 : index
    %c0_52 = arith.constant 0 : index
    %46 = vector.load %arg3[%c320, %c0_52] : memref<576x64xbf16, #tpu.memory_space<vmem>>, vector<64x64xbf16>
    %cst_53 = arith.constant dense<0.000000e+00> : vector<256x64xf32>
    %47 = tpu.matmul %45, %46, %cst_53 {dimension_numbers = #tpu.dot_dimension_numbers<[1], [0], [0], [1], [0, 0, 1, 1], [], []>} : vector<256x64xbf16>, vector<64x64xbf16>, vector<256x64xf32> -> vector<256x64xf32>
    %48 = arith.addf %43, %47 : vector<256x64xf32>
    %c2_54 = arith.constant 2 : index
    %c0_55 = arith.constant 0 : index
    %c0_56 = arith.constant 0 : index
    %49 = vector.load %arg9[%c2_54, %c0_55, %c0_56] : memref<18x18x64xbf16, #tpu.memory_space<vmem>>, vector<16x16x64xbf16>
    %50 = vector.shape_cast %49 : vector<16x16x64xbf16> to vector<256x64xbf16>
    %c384 = arith.constant 384 : index
    %c0_57 = arith.constant 0 : index
    %51 = vector.load %arg3[%c384, %c0_57] : memref<576x64xbf16, #tpu.memory_space<vmem>>, vector<64x64xbf16>
    %cst_58 = arith.constant dense<0.000000e+00> : vector<256x64xf32>
    %52 = tpu.matmul %50, %51, %cst_58 {dimension_numbers = #tpu.dot_dimension_numbers<[1], [0], [0], [1], [0, 0, 1, 1], [], []>} : vector<256x64xbf16>, vector<64x64xbf16>, vector<256x64xf32> -> vector<256x64xf32>
    %53 = arith.addf %48, %52 : vector<256x64xf32>
    %c2_59 = arith.constant 2 : index
    %c1_60 = arith.constant 1 : index
    %c0_61 = arith.constant 0 : index
    %54 = vector.load %arg9[%c2_59, %c1_60, %c0_61] : memref<18x18x64xbf16, #tpu.memory_space<vmem>>, vector<16x16x64xbf16>
    %55 = vector.shape_cast %54 : vector<16x16x64xbf16> to vector<256x64xbf16>
    %c448 = arith.constant 448 : index
    %c0_62 = arith.constant 0 : index
    %56 = vector.load %arg3[%c448, %c0_62] : memref<576x64xbf16, #tpu.memory_space<vmem>>, vector<64x64xbf16>
    %cst_63 = arith.constant dense<0.000000e+00> : vector<256x64xf32>
    %57 = tpu.matmul %55, %56, %cst_63 {dimension_numbers = #tpu.dot_dimension_numbers<[1], [0], [0], [1], [0, 0, 1, 1], [], []>} : vector<256x64xbf16>, vector<64x64xbf16>, vector<256x64xf32> -> vector<256x64xf32>
    %58 = arith.addf %53, %57 : vector<256x64xf32>
    %c2_64 = arith.constant 2 : index
    %c2_65 = arith.constant 2 : index
    %c0_66 = arith.constant 0 : index
    %59 = vector.load %arg9[%c2_64, %c2_65, %c0_66] : memref<18x18x64xbf16, #tpu.memory_space<vmem>>, vector<16x16x64xbf16>
    %60 = vector.shape_cast %59 : vector<16x16x64xbf16> to vector<256x64xbf16>
    %c512 = arith.constant 512 : index
    %c0_67 = arith.constant 0 : index
    %61 = vector.load %arg3[%c512, %c0_67] : memref<576x64xbf16, #tpu.memory_space<vmem>>, vector<64x64xbf16>
    %cst_68 = arith.constant dense<0.000000e+00> : vector<256x64xf32>
    %62 = tpu.matmul %60, %61, %cst_68 {dimension_numbers = #tpu.dot_dimension_numbers<[1], [0], [0], [1], [0, 0, 1, 1], [], []>} : vector<256x64xbf16>, vector<64x64xbf16>, vector<256x64xf32> -> vector<256x64xf32>
    %63 = arith.addf %58, %62 : vector<256x64xf32>
    %c0_69 = arith.constant 0 : index
    %c0_70 = arith.constant 0 : index
    %64 = vector.load %arg6[%c0_69, %c0_70] : memref<1x64xf32, #tpu.memory_space<vmem>>, vector<1x64xf32>
    %65 = vector.broadcast %64 : vector<1x64xf32> to vector<256x64xf32>
    %66 = arith.addf %63, %65 : vector<256x64xf32>
    %cst_71 = arith.constant 0.000000e+00 : f32
    %67 = vector.broadcast %cst_71 : f32 to vector<256x64xf32>
    %68 = arith.maximumf %66, %67 : vector<256x64xf32>
    %69 = vector.shape_cast %68 : vector<256x64xf32> to vector<16x16x64xf32>
    %70 = arith.truncf %69 : vector<16x16x64xf32> to vector<16x16x64xbf16>
    %c1_72 = arith.constant 1 : index
    %c1_73 = arith.constant 1 : index
    %c0_74 = arith.constant 0 : index
    %71 = vector.load %arg9[%c1_72, %c1_73, %c0_74] : memref<18x18x64xbf16, #tpu.memory_space<vmem>>, vector<16x16x64xbf16>
    tpu.vector_store %arg9[%c1_72, %c1_73, %c0_74], %70 {strides = array<i32>} : memref<18x18x64xbf16, #tpu.memory_space<vmem>>, vector<16x16x64xbf16>,
    %c0_75 = arith.constant 0 : index
    %c0_76 = arith.constant 0 : index
    %c0_77 = arith.constant 0 : index
    %72 = vector.load %arg9[%c0_75, %c0_76, %c0_77] : memref<18x18x64xbf16, #tpu.memory_space<vmem>>, vector<16x16x64xbf16>
    %73 = vector.shape_cast %72 : vector<16x16x64xbf16> to vector<256x64xbf16>
    %c0_78 = arith.constant 0 : index
    %c0_79 = arith.constant 0 : index
    %74 = vector.load %arg4[%c0_78, %c0_79] : memref<576x128xbf16, #tpu.memory_space<vmem>>, vector<64x128xbf16>
    %cst_80 = arith.constant dense<0.000000e+00> : vector<256x128xf32>
    %75 = tpu.matmul %73, %74, %cst_80 {dimension_numbers = #tpu.dot_dimension_numbers<[1], [0], [0], [1], [0, 0, 1, 1], [], []>} : vector<256x64xbf16>, vector<64x128xbf16>, vector<256x128xf32> -> vector<256x128xf32>
    %c0_81 = arith.constant 0 : index
    %c1_82 = arith.constant 1 : index
    %c0_83 = arith.constant 0 : index
    %76 = vector.load %arg9[%c0_81, %c1_82, %c0_83] : memref<18x18x64xbf16, #tpu.memory_space<vmem>>, vector<16x16x64xbf16>
    %77 = vector.shape_cast %76 : vector<16x16x64xbf16> to vector<256x64xbf16>
    %c64_84 = arith.constant 64 : index
    %c0_85 = arith.constant 0 : index
    %78 = vector.load %arg4[%c64_84, %c0_85] : memref<576x128xbf16, #tpu.memory_space<vmem>>, vector<64x128xbf16>
    %cst_86 = arith.constant dense<0.000000e+00> : vector<256x128xf32>
    %79 = tpu.matmul %77, %78, %cst_86 {dimension_numbers = #tpu.dot_dimension_numbers<[1], [0], [0], [1], [0, 0, 1, 1], [], []>} : vector<256x64xbf16>, vector<64x128xbf16>, vector<256x128xf32> -> vector<256x128xf32>
    %80 = arith.addf %75, %79 : vector<256x128xf32>
    %c0_87 = arith.constant 0 : index
    %c2_88 = arith.constant 2 : index
    %c0_89 = arith.constant 0 : index
    %81 = vector.load %arg9[%c0_87, %c2_88, %c0_89] : memref<18x18x64xbf16, #tpu.memory_space<vmem>>, vector<16x16x64xbf16>
    %82 = vector.shape_cast %81 : vector<16x16x64xbf16> to vector<256x64xbf16>
    %c128_90 = arith.constant 128 : index
    %c0_91 = arith.constant 0 : index
    %83 = vector.load %arg4[%c128_90, %c0_91] : memref<576x128xbf16, #tpu.memory_space<vmem>>, vector<64x128xbf16>
    %cst_92 = arith.constant dense<0.000000e+00> : vector<256x128xf32>
    %84 = tpu.matmul %82, %83, %cst_92 {dimension_numbers = #tpu.dot_dimension_numbers<[1], [0], [0], [1], [0, 0, 1, 1], [], []>} : vector<256x64xbf16>, vector<64x128xbf16>, vector<256x128xf32> -> vector<256x128xf32>
    %85 = arith.addf %80, %84 : vector<256x128xf32>
    %c1_93 = arith.constant 1 : index
    %c0_94 = arith.constant 0 : index
    %c0_95 = arith.constant 0 : index
    %86 = vector.load %arg9[%c1_93, %c0_94, %c0_95] : memref<18x18x64xbf16, #tpu.memory_space<vmem>>, vector<16x16x64xbf16>
    %87 = vector.shape_cast %86 : vector<16x16x64xbf16> to vector<256x64xbf16>
    %c192_96 = arith.constant 192 : index
    %c0_97 = arith.constant 0 : index
    %88 = vector.load %arg4[%c192_96, %c0_97] : memref<576x128xbf16, #tpu.memory_space<vmem>>, vector<64x128xbf16>
    %cst_98 = arith.constant dense<0.000000e+00> : vector<256x128xf32>
    %89 = tpu.matmul %87, %88, %cst_98 {dimension_numbers = #tpu.dot_dimension_numbers<[1], [0], [0], [1], [0, 0, 1, 1], [], []>} : vector<256x64xbf16>, vector<64x128xbf16>, vector<256x128xf32> -> vector<256x128xf32>
    %90 = arith.addf %85, %89 : vector<256x128xf32>
    %c1_99 = arith.constant 1 : index
    %c1_100 = arith.constant 1 : index
    %c0_101 = arith.constant 0 : index
    %91 = vector.load %arg9[%c1_99, %c1_100, %c0_101] : memref<18x18x64xbf16, #tpu.memory_space<vmem>>, vector<16x16x64xbf16>
    %92 = vector.shape_cast %91 : vector<16x16x64xbf16> to vector<256x64xbf16>
    %c256_102 = arith.constant 256 : index
    %c0_103 = arith.constant 0 : index
    %93 = vector.load %arg4[%c256_102, %c0_103] : memref<576x128xbf16, #tpu.memory_space<vmem>>, vector<64x128xbf16>
    %cst_104 = arith.constant dense<0.000000e+00> : vector<256x128xf32>
    %94 = tpu.matmul %92, %93, %cst_104 {dimension_numbers = #tpu.dot_dimension_numbers<[1], [0], [0], [1], [0, 0, 1, 1], [], []>} : vector<256x64xbf16>, vector<64x128xbf16>, vector<256x128xf32> -> vector<256x128xf32>
    %95 = arith.addf %90, %94 : vector<256x128xf32>
    %c1_105 = arith.constant 1 : index
    %c2_106 = arith.constant 2 : index
    %c0_107 = arith.constant 0 : index
    %96 = vector.load %arg9[%c1_105, %c2_106, %c0_107] : memref<18x18x64xbf16, #tpu.memory_space<vmem>>, vector<16x16x64xbf16>
    %97 = vector.shape_cast %96 : vector<16x16x64xbf16> to vector<256x64xbf16>
    %c320_108 = arith.constant 320 : index
    %c0_109 = arith.constant 0 : index
    %98 = vector.load %arg4[%c320_108, %c0_109] : memref<576x128xbf16, #tpu.memory_space<vmem>>, vector<64x128xbf16>
    %cst_110 = arith.constant dense<0.000000e+00> : vector<256x128xf32>
    %99 = tpu.matmul %97, %98, %cst_110 {dimension_numbers = #tpu.dot_dimension_numbers<[1], [0], [0], [1], [0, 0, 1, 1], [], []>} : vector<256x64xbf16>, vector<64x128xbf16>, vector<256x128xf32> -> vector<256x128xf32>
    %100 = arith.addf %95, %99 : vector<256x128xf32>
    %c2_111 = arith.constant 2 : index
    %c0_112 = arith.constant 0 : index
    %c0_113 = arith.constant 0 : index
    %101 = vector.load %arg9[%c2_111, %c0_112, %c0_113] : memref<18x18x64xbf16, #tpu.memory_space<vmem>>, vector<16x16x64xbf16>
    %102 = vector.shape_cast %101 : vector<16x16x64xbf16> to vector<256x64xbf16>
    %c384_114 = arith.constant 384 : index
    %c0_115 = arith.constant 0 : index
    %103 = vector.load %arg4[%c384_114, %c0_115] : memref<576x128xbf16, #tpu.memory_space<vmem>>, vector<64x128xbf16>
    %cst_116 = arith.constant dense<0.000000e+00> : vector<256x128xf32>
    %104 = tpu.matmul %102, %103, %cst_116 {dimension_numbers = #tpu.dot_dimension_numbers<[1], [0], [0], [1], [0, 0, 1, 1], [], []>} : vector<256x64xbf16>, vector<64x128xbf16>, vector<256x128xf32> -> vector<256x128xf32>
    %105 = arith.addf %100, %104 : vector<256x128xf32>
    %c2_117 = arith.constant 2 : index
    %c1_118 = arith.constant 1 : index
    %c0_119 = arith.constant 0 : index
    %106 = vector.load %arg9[%c2_117, %c1_118, %c0_119] : memref<18x18x64xbf16, #tpu.memory_space<vmem>>, vector<16x16x64xbf16>
    %107 = vector.shape_cast %106 : vector<16x16x64xbf16> to vector<256x64xbf16>
    %c448_120 = arith.constant 448 : index
    %c0_121 = arith.constant 0 : index
    %108 = vector.load %arg4[%c448_120, %c0_121] : memref<576x128xbf16, #tpu.memory_space<vmem>>, vector<64x128xbf16>
    %cst_122 = arith.constant dense<0.000000e+00> : vector<256x128xf32>
    %109 = tpu.matmul %107, %108, %cst_122 {dimension_numbers = #tpu.dot_dimension_numbers<[1], [0], [0], [1], [0, 0, 1, 1], [], []>} : vector<256x64xbf16>, vector<64x128xbf16>, vector<256x128xf32> -> vector<256x128xf32>
    %110 = arith.addf %105, %109 : vector<256x128xf32>
    %c2_123 = arith.constant 2 : index
    %c2_124 = arith.constant 2 : index
    %c0_125 = arith.constant 0 : index
    %111 = vector.load %arg9[%c2_123, %c2_124, %c0_125] : memref<18x18x64xbf16, #tpu.memory_space<vmem>>, vector<16x16x64xbf16>
    %112 = vector.shape_cast %111 : vector<16x16x64xbf16> to vector<256x64xbf16>
    %c512_126 = arith.constant 512 : index
    %c0_127 = arith.constant 0 : index
    %113 = vector.load %arg4[%c512_126, %c0_127] : memref<576x128xbf16, #tpu.memory_space<vmem>>, vector<64x128xbf16>
    %cst_128 = arith.constant dense<0.000000e+00> : vector<256x128xf32>
    %114 = tpu.matmul %112, %113, %cst_128 {dimension_numbers = #tpu.dot_dimension_numbers<[1], [0], [0], [1], [0, 0, 1, 1], [], []>} : vector<256x64xbf16>, vector<64x128xbf16>, vector<256x128xf32> -> vector<256x128xf32>
    %115 = arith.addf %110, %114 : vector<256x128xf32>
    %c0_129 = arith.constant 0 : index
    %c0_130 = arith.constant 0 : index
    %116 = vector.load %arg7[%c0_129, %c0_130] : memref<1x128xf32, #tpu.memory_space<vmem>>, vector<1x128xf32>
    %117 = vector.broadcast %116 : vector<1x128xf32> to vector<256x128xf32>
    %118 = arith.addf %115, %117 : vector<256x128xf32>
    %119 = vector.shape_cast %118 : vector<256x128xf32> to vector<1x256x128xf32>
    %c0_131 = arith.constant 0 : index
    %c0_132 = arith.constant 0 : index
    %c0_133 = arith.constant 0 : index
    %120 = vector.load %arg8[%c0_131, %c0_132, %c0_133] : memref<1x256x128xf32, #tpu.memory_space<vmem>>, vector<1x256x128xf32>
    tpu.vector_store %arg8[%c0_131, %c0_132, %c0_133], %119 {strides = array<i32>} : memref<1x256x128xf32, #tpu.memory_space<vmem>>, vector<1x256x128xf32>,
    return
  }
  func.func @transform_0(%arg0: i32) -> (i32, i32, i32) {
    %c0_i32 = arith.constant 0 : i32
    %c0_i32_0 = arith.constant 0 : i32
    %c0_i32_1 = arith.constant 0 : i32
    return %arg0, %c0_i32, %c0_i32_0 : i32, i32, i32
  }
  func.func @transform_1(%arg0: i32) -> (i32, i32) {
    %c0_i32 = arith.constant 0 : i32
    %c0_i32_0 = arith.constant 0 : i32
    %c0_i32_1 = arith.constant 0 : i32
    return %c0_i32, %c0_i32_0 : i32, i32
  }
  func.func @transform_2(%arg0: i32) -> (i32, i32) {
    %c0_i32 = arith.constant 0 : i32
    %c0_i32_0 = arith.constant 0 : i32
    %c0_i32_1 = arith.constant 0 : i32
    return %c0_i32, %c0_i32_0 : i32, i32
  }
  func.func @transform_3(%arg0: i32) -> (i32, i32) {
    %c0_i32 = arith.constant 0 : i32
    %c0_i32_0 = arith.constant 0 : i32
    %c0_i32_1 = arith.constant 0 : i32
    return %c0_i32, %c0_i32_0 : i32, i32
  }
  func.func @transform_4(%arg0: i32) -> (i32, i32) {
    %c0_i32 = arith.constant 0 : i32
    %c0_i32_0 = arith.constant 0 : i32
    %c0_i32_1 = arith.constant 0 : i32
    return %c0_i32, %c0_i32_0 : i32, i32
  }
  func.func @transform_5(%arg0: i32) -> (i32, i32) {
    %c0_i32 = arith.constant 0 : i32
    %c0_i32_0 = arith.constant 0 : i32
    %c0_i32_1 = arith.constant 0 : i32
    return %c0_i32, %c0_i32_0 : i32, i32
  }
  func.func @transform_6(%arg0: i32) -> (i32, i32) {
    %c0_i32 = arith.constant 0 : i32
    %c0_i32_0 = arith.constant 0 : i32
    %c0_i32_1 = arith.constant 0 : i32
    return %c0_i32, %c0_i32_0 : i32, i32
  }
  func.func @transform_7(%arg0: i32) -> (i32, i32, i32) {
    %c0_i32 = arith.constant 0 : i32
    %c0_i32_0 = arith.constant 0 : i32
    %c0_i32_1 = arith.constant 0 : i32
    return %arg0, %c0_i32, %c0_i32_0 : i32, i32, i32
  }
}

</mosaic_0001>

<llo_original>
// kernel: cnn_upsampler_forward.1
$region0: #{cnn_upsampler_forward.1}
  #allocation0 [shape = 'u32[]', space=smem, size = 0x4, offset = 0x4, fixed_abs, tag = 'smem constant byte address 0x4 - core index']
  #allocation1 [shape = 'u32[72,128]{1,0:T(1,128)}', space=vmem, size = 0x9000, scoped, tag = 'internal scratch']
  #allocation2 [shape = 'bf16[18,18,64]{2,1,0:T(8,128)(2,1)}', space=vmem, size = 0x1b000, scoped, tag = 'scratch operand']
  %s0 = inlined_call_operand.vmem [shape: bf16[2,256,128], index: 0, kind: input, shape index: {}]
  %s1 = inlined_call_operand.vmem [shape: bf16[128,64], index: 1, kind: input, shape index: {}]
  %s2 = inlined_call_operand.vmem [shape: bf16[576,64], index: 2, kind: input, shape index: {}]
  %s3 = inlined_call_operand.vmem [shape: bf16[576,128], index: 3, kind: input, shape index: {}]
  %s4 = inlined_call_operand.vmem [shape: f32[1,64], index: 4, kind: input, shape index: {}]
  %s5 = inlined_call_operand.vmem [shape: f32[1,64], index: 5, kind: input, shape index: {}]
  %s6 = inlined_call_operand.vmem [shape: f32[1,128], index: 6, kind: input, shape index: {}]
  %s7 = inlined_call_operand.vmem [shape: f32[2,256,128], index: 7, kind: output, shape index: {}]
  %s8 = sld [smem:[#allocation0]]
  $region61: #{cnn_upsampler_forward.1} parent=0
    _
  %s10 = ssub.s32 1, %s8
  %s11 = scalar_select 0, %s10, %s8
  loop: start=0, step=1, limit=4
  $region2: #{cnn_upsampler_forward.1} parent=0 // loop_pre_header
    _
  $region3: #{cnn_upsampler_forward.1} parent=0 // loop_header
    %s13 = sphi 0, %s17
    %p14 = scmp.ge.s32.totalorder %s13, 4
    %s23 = sphi 0, %s25
    %s26 = sphi 0, %s23
    %s27 = sphi 0, %s26
    %s43 = sphi 0, %s27
    %s47 = sphi 0, %s47
    %s49 = sphi 0, %s47
    %s50 = sphi 0, %s49
    %s64 = sphi 0, %s50
    %s68 = sphi 0, %s68
    %s70 = sphi 0, %s68
    %s71 = sphi 0, %s70
    %s85 = sphi 0, %s71
    %s89 = sphi 0, %s89
    %s91 = sphi 0, %s89
    %s92 = sphi 0, %s91
    %s106 = sphi 0, %s92
    %s110 = sphi 0, %s110
    %s112 = sphi 0, %s110
    %s113 = sphi 0, %s112
    %s127 = sphi 0, %s113
    %s131 = sphi 0, %s131
    %s133 = sphi 0, %s131
    %s134 = sphi 0, %s133
    %s148 = sphi 0, %s134
    %s152 = sphi 0, %s152
    %s154 = sphi 0, %s152
    %s155 = sphi 0, %s154
    %s169 = sphi 0, %s155
    %s175 = sphi 0, %s177
    %s178 = sphi 0, %s175
    %s179 = sphi 0, %s178
    %s195 = sphi 0, %s179
  $region4: #{cnn_upsampler_forward.1} parent=0 // loop_header_branch
    %16 = sbr.rel (%p14) target = $region8
  $region5: #{cnn_upsampler_forward.1} parent=0 // loop_body
    %s18 = ssub.s32 %s13, 1
    %s19 = ssub.s32 %s13, 2
    %s20 = sadd.s32 %s13, 1
    %s21 = ssub.s32 %s13, %s20
    %p22 = scmp.eq.s32.totalorder %s21, 0
    %s24 = sadd.s32 %s23, 1
    %s25 = scalar_select %p22, %s23, %s24
    %p28 = pneg %p22
    %p29 = scmp.eq.s32.totalorder %s13, 1
    %p30 = por %p28, %p29
    %p31 = scmp.ne.s32.totalorder %s23, %s26
    %p32 = scmp.eq.s32.totalorder %s13, 0
    %p33 = por %p31, %p32
    %p34 = scmp.ne.s32.totalorder %s23, %s26
    %p35 = scmp.eq.s32.totalorder %s18, 1
    %p36 = por %p34, %p35
    %p37 = scmp.ne.s32.totalorder %s26, %s27
    %p38 = scmp.eq.s32.totalorder %s18, 0
    %p39 = por %p37, %p38
    %p40 = scmp.ne.s32.totalorder %s26, %s27
    %p41 = scmp.eq.s32.totalorder %s19, 1
    %p42 = por %p40, %p41
    %p44 = scmp.ne.s32.totalorder %s27, %s43
    %p45 = scmp.eq.s32.totalorder %s19, 0
    %p46 = por %p44, %p45
    %s48 = sadd.s32 %s47, 1
    %p51 = scmp.eq.s32.totalorder %s13, 1
    %p52 = scmp.ne.s32.totalorder %s47, %s49
    %p53 = scmp.eq.s32.totalorder %s13, 0
    %p54 = por %p52, %p53
    %p55 = scmp.ne.s32.totalorder %s47, %s49
    %p56 = scmp.eq.s32.totalorder %s18, 1
    %p57 = por %p55, %p56
    %p58 = scmp.ne.s32.totalorder %s49, %s50
    %p59 = scmp.eq.s32.totalorder %s18, 0
    %p60 = por %p58, %p59
    %p61 = scmp.ne.s32.totalorder %s49, %s50
    %p62 = scmp.eq.s32.totalorder %s19, 1
    %p63 = por %p61, %p62
    %p65 = scmp.ne.s32.totalorder %s50, %s64
    %p66 = scmp.eq.s32.totalorder %s19, 0
    %p67 = por %p65, %p66
    %s69 = sadd.s32 %s68, 1
    %p72 = scmp.eq.s32.totalorder %s13, 1
    %p73 = scmp.ne.s32.totalorder %s68, %s70
    %p74 = scmp.eq.s32.totalorder %s13, 0
    %p75 = por %p73, %p74
    %p76 = scmp.ne.s32.totalorder %s68, %s70
    %p77 = scmp.eq.s32.totalorder %s18, 1
    %p78 = por %p76, %p77
    %p79 = scmp.ne.s32.totalorder %s70, %s71
    %p80 = scmp.eq.s32.totalorder %s18, 0
    %p81 = por %p79, %p80
    %p82 = scmp.ne.s32.totalorder %s70, %s71
    %p83 = scmp.eq.s32.totalorder %s19, 1
    %p84 = por %p82, %p83
    %p86 = scmp.ne.s32.totalorder %s71, %s85
    %p87 = scmp.eq.s32.totalorder %s19, 0
    %p88 = por %p86, %p87
    %s90 = sadd.s32 %s89, 1
    %p93 = scmp.eq.s32.totalorder %s13, 1
    %p94 = scmp.ne.s32.totalorder %s89, %s91
    %p95 = scmp.eq.s32.totalorder %s13, 0
    %p96 = por %p94, %p95
    %p97 = scmp.ne.s32.totalorder %s89, %s91
    %p98 = scmp.eq.s32.totalorder %s18, 1
    %p99 = por %p97, %p98
    %p100 = scmp.ne.s32.totalorder %s91, %s92
    %p101 = scmp.eq.s32.totalorder %s18, 0
    %p102 = por %p100, %p101
    %p103 = scmp.ne.s32.totalorder %s91, %s92
    %p104 = scmp.eq.s32.totalorder %s19, 1
    %p105 = por %p103, %p104
    %p107 = scmp.ne.s32.totalorder %s92, %s106
    %p108 = scmp.eq.s32.totalorder %s19, 0
    %p109 = por %p107, %p108
    %s111 = sadd.s32 %s110, 1
    %p114 = scmp.eq.s32.totalorder %s13, 1
    %p115 = scmp.ne.s32.totalorder %s110, %s112
    %p116 = scmp.eq.s32.totalorder %s13, 0
    %p117 = por %p115, %p116
    %p118 = scmp.ne.s32.totalorder %s110, %s112
    %p119 = scmp.eq.s32.totalorder %s18, 1
    %p120 = por %p118, %p119
    %p121 = scmp.ne.s32.totalorder %s112, %s113
    %p122 = scmp.eq.s32.totalorder %s18, 0
    %p123 = por %p121, %p122
    %p124 = scmp.ne.s32.totalorder %s112, %s113
    %p125 = scmp.eq.s32.totalorder %s19, 1
    %p126 = por %p124, %p125
    %p128 = scmp.ne.s32.totalorder %s113, %s127
    %p129 = scmp.eq.s32.totalorder %s19, 0
    %p130 = por %p128, %p129
    %s132 = sadd.s32 %s131, 1
    %p135 = scmp.eq.s32.totalorder %s13, 1
    %p136 = scmp.ne.s32.totalorder %s131, %s133
    %p137 = scmp.eq.s32.totalorder %s13, 0
    %p138 = por %p136, %p137
    %p139 = scmp.ne.s32.totalorder %s131, %s133
    %p140 = scmp.eq.s32.totalorder %s18, 1
    %p141 = por %p139, %p140
    %p142 = scmp.ne.s32.totalorder %s133, %s134
    %p143 = scmp.eq.s32.totalorder %s18, 0
    %p144 = por %p142, %p143
    %p145 = scmp.ne.s32.totalorder %s133, %s134
    %p146 = scmp.eq.s32.totalorder %s19, 1
    %p147 = por %p145, %p146
    %p149 = scmp.ne.s32.totalorder %s134, %s148
    %p150 = scmp.eq.s32.totalorder %s19, 0
    %p151 = por %p149, %p150
    %s153 = sadd.s32 %s152, 1
    %p156 = scmp.eq.s32.totalorder %s13, 1
    %p157 = scmp.ne.s32.totalorder %s152, %s154
    %p158 = scmp.eq.s32.totalorder %s13, 0
    %p159 = por %p157, %p158
    %p160 = scmp.ne.s32.totalorder %s152, %s154
    %p161 = scmp.eq.s32.totalorder %s18, 1
    %p162 = por %p160, %p161
    %p163 = scmp.ne.s32.totalorder %s154, %s155
    %p164 = scmp.eq.s32.totalorder %s18, 0
    %p165 = por %p163, %p164
    %p166 = scmp.ne.s32.totalorder %s154, %s155
    %p167 = scmp.eq.s32.totalorder %s19, 1
    %p168 = por %p166, %p167
    %p170 = scmp.ne.s32.totalorder %s155, %s169
    %p171 = scmp.eq.s32.totalorder %s19, 0
    %p172 = por %p170, %p171
    %s173 = ssub.s32 %s13, %s20
    %p174 = scmp.eq.s32.totalorder %s173, 0
    %s176 = sadd.s32 %s175, 1
    %s177 = scalar_select %p174, %s175, %s176
    %p180 = pneg %p174
    %p181 = scmp.eq.s32.totalorder %s13, 1
    %p182 = por %p180, %p181
    %p183 = scmp.ne.s32.totalorder %s175, %s178
    %p184 = scmp.eq.s32.totalorder %s13, 0
    %p185 = por %p183, %p184
    %p186 = scmp.ne.s32.totalorder %s175, %s178
    %p187 = scmp.eq.s32.totalorder %s18, 1
    %p188 = por %p186, %p187
    %p189 = scmp.ne.s32.totalorder %s178, %s179
    %p190 = scmp.eq.s32.totalorder %s18, 0
    %p191 = por %p189, %p190
    %p192 = scmp.ne.s32.totalorder %s178, %s179
    %p193 = scmp.eq.s32.totalorder %s19, 1
    %p194 = por %p192, %p193
    %p196 = scmp.ne.s32.totalorder %s179, %s195
    %p197 = scmp.eq.s32.totalorder %s19, 0
    %p198 = por %p196, %p197
    %p199 = scmp.le.s32.totalorder 1, %s13
    %p200 = scmp.lt.s32.totalorder %s13, 3
    %p201 = pnand %p199, %p200
    %p202 = pneg %p201
    // Predicated region
    $region9: #{cnn_upsampler_forward.1} parent=5 // pred_check
      _
    $region10: #{cnn_upsampler_forward.1} parent=5 // pred_check_branch
      %204 = sbr.rel (%p201) target = $region12
    $region11: #{cnn_upsampler_forward.1} parent=5 // pred_region
      %s205 = ssub.s32 %s13, 1
      // Predicated region
      $region13: #{cnn_upsampler_forward.1} parent=11 // pred_check
        %p206 = pneg %p60
      $region14: #{cnn_upsampler_forward.1} parent=11 // pred_check_branch
        %208 = sbr.rel (%p206) target = $region16
      $region15: #{cnn_upsampler_forward.1} parent=11 // pred_region
        _
      $region16: #{cnn_upsampler_forward.1} parent=11 // pred_fallthru
        _
      // Predicated region
      $region17: #{cnn_upsampler_forward.1} parent=11 // pred_check
        %p209 = pneg %p81
      $region18: #{cnn_upsampler_forward.1} parent=11 // pred_check_branch
        %211 = sbr.rel (%p209) target = $region20
      $region19: #{cnn_upsampler_forward.1} parent=11 // pred_region
        _
      $region20: #{cnn_upsampler_forward.1} parent=11 // pred_fallthru
        _
      // Predicated region
      $region21: #{cnn_upsampler_forward.1} parent=11 // pred_check
        %p212 = pneg %p102
      $region22: #{cnn_upsampler_forward.1} parent=11 // pred_check_branch
        %214 = sbr.rel (%p212) target = $region24
      $region23: #{cnn_upsampler_forward.1} parent=11 // pred_region
        _
      $region24: #{cnn_upsampler_forward.1} parent=11 // pred_fallthru
        _
      // Predicated region
      $region25: #{cnn_upsampler_forward.1} parent=11 // pred_check
        %p215 = pneg %p123
      $region26: #{cnn_upsampler_forward.1} parent=11 // pred_check_branch
        %217 = sbr.rel (%p215) target = $region28
      $region27: #{cnn_upsampler_forward.1} parent=11 // pred_region
        _
      $region28: #{cnn_upsampler_forward.1} parent=11 // pred_fallthru
        _
      // Predicated region
      $region29: #{cnn_upsampler_forward.1} parent=11 // pred_check
        %p218 = pneg %p144
      $region30: #{cnn_upsampler_forward.1} parent=11 // pred_check_branch
        %220 = sbr.rel (%p218) target = $region32
      $region31: #{cnn_upsampler_forward.1} parent=11 // pred_region
        _
      $region32: #{cnn_upsampler_forward.1} parent=11 // pred_fallthru
        _
      // Predicated region
      $region33: #{cnn_upsampler_forward.1} parent=11 // pred_check
        %p221 = pneg %p165
      $region34: #{cnn_upsampler_forward.1} parent=11 // pred_check_branch
        %223 = sbr.rel (%p221) target = $region36
      $region35: #{cnn_upsampler_forward.1} parent=11 // pred_region
        _
      $region36: #{cnn_upsampler_forward.1} parent=11 // pred_fallthru
        _
    $region12: #{cnn_upsampler_forward.1} parent=5 // pred_fallthru
      _
    %p224 = scmp.lt.s32.totalorder %s13, 2
    // Predicated region
    $region37: #{cnn_upsampler_forward.1} parent=5 // pred_check
      %p225 = pneg %p224
    $region38: #{cnn_upsampler_forward.1} parent=5 // pred_check_branch
      %227 = sbr.rel (%p225) target = $region40
    $region39: #{cnn_upsampler_forward.1} parent=5 // pred_region
      // Predicated region
      $region41: #{cnn_upsampler_forward.1} parent=39 // pred_check
        %p228 = pneg %p33
      $region42: #{cnn_upsampler_forward.1} parent=39 // pred_check_branch
        %230 = sbr.rel (%p228) target = $region44
      $region43: #{cnn_upsampler_forward.1} parent=39 // pred_region
        %p231 = scmp.lt.s32.totalorder %s13, 1
        %s232 = scalar_select %p231, %s13, 1
        %s233 = smul.addr %s232, 32
        %s234 = smul.addr %s233, 4
        %s235 = scalar_lea.vmem %s0, %s234
      $region44: #{cnn_upsampler_forward.1} parent=39 // pred_fallthru
        _
    $region40: #{cnn_upsampler_forward.1} parent=5 // pred_fallthru
      _
    %p236 = scmp.le.s32.totalorder 1, %s13
    %p237 = scmp.lt.s32.totalorder %s13, 3
    %p238 = pnand %p236, %p237
    %p239 = pneg %p238
    // Predicated region
    $region45: #{cnn_upsampler_forward.1} parent=5 // pred_check
      _
    $region46: #{cnn_upsampler_forward.1} parent=5 // pred_check_branch
      %241 = sbr.rel (%p238) target = $region48
    $region47: #{cnn_upsampler_forward.1} parent=5 // pred_region
      %s242 = ssub.s32 %s13, 1
      %p243 = scmp.lt.s32.totalorder %s18, 1
      %s244 = scalar_select %p243, %s18, 1
      %s245 = smul.addr %s244, 32
      %s246 = smul.addr %s245, 4
      %s247 = scalar_lea.vmem %s0, %s246
      %p248 = pneg %p39
      %p249 = pneg %p36
      %p250 = pneg %p60
      %p251 = pneg %p57
      %p252 = pneg %p81
      %p253 = pneg %p78
      %p254 = pneg %p102
      %p255 = pneg %p99
      %p256 = pneg %p123
      %p257 = pneg %p120
      %p258 = pneg %p144
      %p259 = pneg %p141
      %p260 = pneg %p165
      %p261 = pneg %p162
      %p262 = pneg %p191
      %p263 = pneg %p188
      %p264 = scmp.lt.s32.totalorder %s18, 1
      %s265 = scalar_select %p264, %s18, 1
      %s266 = smul.addr %s265, 32
      %s267 = smul.addr %s266, 8
      %s268 = scalar_lea.vmem %s7, %s267
      %p269 = scmp.lt.s32.totalorder %s18, 1
      %s270 = scalar_select %p269, %s18, 1
      %s271 = smul.addr %s270, 32
      %s272 = smul.addr %s271, 4
      %s273 = scalar_lea.vmem %s0, %s272
      %p274 = scmp.lt.s32.totalorder %s18, 1
      %s275 = scalar_select %p274, %s18, 1
      %s276 = smul.addr %s275, 32
      %s277 = smul.addr %s276, 8
      %s278 = scalar_lea.vmem %s7, %s277
      %vm280 = vcmask 519168
      %281 = vst.msk [vmem:[#allocation2] sm:$0xf] %vm280, 0
      %282 = vst.msk [vmem:[#allocation2 + $0x4] sm:$0xf] %vm280, 0
      %vm283 = vcmask 516096
      %284 = vst.msk [vmem:[#allocation2 + $0x8] sm:$0x1] %vm283, 0
      %s285 = scalar_lea.vmem [#allocation2], 204
      %286 = vst.msk [vmem:[%s285] sm:$0xf] %vm280, 0
      %287 = vst.msk [vmem:[%s285 + $0x4] sm:$0xf] %vm280, 0
      %288 = vst.msk [vmem:[%s285 + $0x8] sm:$0x1] %vm283, 0
      %vm289 = vcmask 516096
      %vm290 = vsmask.f32 256
      %vm291 = vmand %vm289, %vm290
      %v292 = vld [vmem:[#allocation2] sm:$0x1]
      %v293 = vsel %vm291, 0, %v292
      %294 = vst [vmem:[#allocation2] sm:$0x1] %v293
      %v295 = vld [vmem:[#allocation2 + $0xc] sm:$0x1]
      %v296 = vsel %vm291, 0, %v295
      %297 = vst [vmem:[#allocation2 + $0xc] sm:$0x1] %v296
      %v298 = vld [vmem:[#allocation2 + $0x18] sm:$0x1]
      %v299 = vsel %vm291, 0, %v298
      %300 = vst [vmem:[#allocation2 + $0x18] sm:$0x1] %v299
      %v301 = vld [vmem:[#allocation2 + $0x24] sm:$0x1]
      %v302 = vsel %vm291, 0, %v301
      %303 = vst [vmem:[#allocation2 + $0x24] sm:$0x1] %v302
      %v304 = vld [vmem:[#allocation2 + $0x30] sm:$0x1]
      %v305 = vsel %vm291, 0, %v304
      %306 = vst [vmem:[#allocation2 + $0x30] sm:$0x1] %v305
      %v307 = vld [vmem:[#allocation2 + $0x3c] sm:$0x1]
      %v308 = vsel %vm291, 0, %v307
      %309 = vst [vmem:[#allocation2 + $0x3c] sm:$0x1] %v308
      %v310 = vld [vmem:[#allocation2 + $0x48] sm:$0x1]
      %v311 = vsel %vm291, 0, %v310
      %312 = vst [vmem:[#allocation2 + $0x48] sm:$0x1] %v311
      %v313 = vld [vmem:[#allocation2 + $0x54] sm:$0x1]
      %v314 = vsel %vm291, 0, %v313
      %315 = vst [vmem:[#allocation2 + $0x54] sm:$0x1] %v314
      %v316 = vld [vmem:[#allocation2 + $0x60] sm:$0x1]
      %v317 = vsel %vm291, 0, %v316
      %318 = vst [vmem:[#allocation2 + $0x60] sm:$0x1] %v317
      %v319 = vld [vmem:[#allocation2 + $0x6c] sm:$0x1]
      %v320 = vsel %vm291, 0, %v319
      %321 = vst [vmem:[#allocation2 + $0x6c] sm:$0x1] %v320
      %v322 = vld [vmem:[#allocation2 + $0x78] sm:$0x1]
      %v323 = vsel %vm291, 0, %v322
      %324 = vst [vmem:[#allocation2 + $0x78] sm:$0x1] %v323
      %v325 = vld [vmem:[#allocation2 + $0x84] sm:$0x1]
      %v326 = vsel %vm291, 0, %v325
      %327 = vst [vmem:[#allocation2 + $0x84] sm:$0x1] %v326
      %v328 = vld [vmem:[#allocation2 + $0x90] sm:$0x1]
      %v329 = vsel %vm291, 0, %v328
      %330 = vst [vmem:[#allocation2 + $0x90] sm:$0x1] %v329
      %v331 = vld [vmem:[#allocation2 + $0x9c] sm:$0x1]
      %v332 = vsel %vm291, 0, %v331
      %333 = vst [vmem:[#allocation2 + $0x9c] sm:$0x1] %v332
      %v334 = vld [vmem:[#allocation2 + $0xa8] sm:$0x1]
      %v335 = vsel %vm291, 0, %v334
      %336 = vst [vmem:[#allocation2 + $0xa8] sm:$0x1] %v335
      %v337 = vld [vmem:[#allocation2 + $0xb4] sm:$0x1]
      %v338 = vsel %vm291, 0, %v337
      %339 = vst [vmem:[#allocation2 + $0xb4] sm:$0x1] %v338
      %v340 = vld [vmem:[#allocation2 + $0xc0] sm:$0x1]
      %v341 = vsel %vm291, 0, %v340
      %342 = vst [vmem:[#allocation2 + $0xc0] sm:$0x1] %v341
      %v343 = vld [vmem:[#allocation2 + $0xcc] sm:$0x1]
      %v344 = vsel %vm291, 0, %v343
      %345 = vst [vmem:[#allocation2 + $0xcc] sm:$0x1] %v344
      %vm346 = vsmask.f32 7938
      %vm347 = vmand %vm289, %vm346
      %v348 = vld [vmem:[#allocation2 + $0x8] sm:$0x1]
      %v349 = vsel %vm347, 0, %v348
      %350 = vst [vmem:[#allocation2 + $0x8] sm:$0x1] %v349
      %v351 = vld [vmem:[#allocation2 + $0x14] sm:$0x1]
      %v352 = vsel %vm347, 0, %v351
      %353 = vst [vmem:[#allocation2 + $0x14] sm:$0x1] %v352
      %v354 = vld [vmem:[#allocation2 + $0x20] sm:$0x1]
      %v355 = vsel %vm347, 0, %v354
      %356 = vst [vmem:[#allocation2 + $0x20] sm:$0x1] %v355
      %v357 = vld [vmem:[#allocation2 + $0x2c] sm:$0x1]
      %v358 = vsel %vm347, 0, %v357
      %359 = vst [vmem:[#allocation2 + $0x2c] sm:$0x1] %v358
      %v360 = vld [vmem:[#allocation2 + $0x38] sm:$0x1]
      %v361 = vsel %vm347, 0, %v360
      %362 = vst [vmem:[#allocation2 + $0x38] sm:$0x1] %v361
      %v363 = vld [vmem:[#allocation2 + $0x44] sm:$0x1]
      %v364 = vsel %vm347, 0, %v363
      %365 = vst [vmem:[#allocation2 + $0x44] sm:$0x1] %v364
      %v366 = vld [vmem:[#allocation2 + $0x50] sm:$0x1]
      %v367 = vsel %vm347, 0, %v366
      %368 = vst [vmem:[#allocation2 + $0x50] sm:$0x1] %v367
      %v369 = vld [vmem:[#allocation2 + $0x5c] sm:$0x1]
      %v370 = vsel %vm347, 0, %v369
      %371 = vst [vmem:[#allocation2 + $0x5c] sm:$0x1] %v370
      %v372 = vld [vmem:[#allocation2 + $0x68] sm:$0x1]
      %v373 = vsel %vm347, 0, %v372
      %374 = vst [vmem:[#allocation2 + $0x68] sm:$0x1] %v373
      %v375 = vld [vmem:[#allocation2 + $0x74] sm:$0x1]
      %v376 = vsel %vm347, 0, %v375
      %377 = vst [vmem:[#allocation2 + $0x74] sm:$0x1] %v376
      %v378 = vld [vmem:[#allocation2 + $0x80] sm:$0x1]
      %v379 = vsel %vm347, 0, %v378
      %380 = vst [vmem:[#allocation2 + $0x80] sm:$0x1] %v379
      %v381 = vld [vmem:[#allocation2 + $0x8c] sm:$0x1]
      %v382 = vsel %vm347, 0, %v381
      %383 = vst [vmem:[#allocation2 + $0x8c] sm:$0x1] %v382
      %v384 = vld [vmem:[#allocation2 + $0x98] sm:$0x1]
      %v385 = vsel %vm347, 0, %v384
      %386 = vst [vmem:[#allocation2 + $0x98] sm:$0x1] %v385
      %v387 = vld [vmem:[#allocation2 + $0xa4] sm:$0x1]
      %v388 = vsel %vm347, 0, %v387
      %389 = vst [vmem:[#allocation2 + $0xa4] sm:$0x1] %v388
      %v390 = vld [vmem:[#allocation2 + $0xb0] sm:$0x1]
      %v391 = vsel %vm347, 0, %v390
      %392 = vst [vmem:[#allocation2 + $0xb0] sm:$0x1] %v391
      %v393 = vld [vmem:[#allocation2 + $0xbc] sm:$0x1]
      %v394 = vsel %vm347, 0, %v393
      %395 = vst [vmem:[#allocation2 + $0xbc] sm:$0x1] %v394
      %v396 = vld [vmem:[#allocation2 + $0xc8] sm:$0x1]
      %v397 = vsel %vm347, 0, %v396
      %398 = vst [vmem:[#allocation2 + $0xc8] sm:$0x1] %v397
      %v399 = vld [vmem:[#allocation2 + $0xd4] sm:$0x1]
      %v400 = vsel %vm347, 0, %v399
      %401 = vst [vmem:[#allocation2 + $0xd4] sm:$0x1] %v400
      %v402 = vld [vmem:[%s273] sm:$0xf]
      %v403 = vld [vmem:[%s273 + $0x4] sm:$0xf]
      %v404 = vld [vmem:[%s273 + $0x8] sm:$0xf]
      %v405 = vld [vmem:[%s273 + $0xc] sm:$0xf]
      %v406 = vld [vmem:[%s273 + $0x10] sm:$0xf]
      %v407 = vld [vmem:[%s273 + $0x14] sm:$0xf]
      %v408 = vld [vmem:[%s273 + $0x18] sm:$0xf]
      %v409 = vld [vmem:[%s273 + $0x1c] sm:$0xf]
      %v410 = vld [vmem:[%s273 + $0x20] sm:$0xf]
      %v411 = vld [vmem:[%s273 + $0x24] sm:$0xf]
      %v412 = vld [vmem:[%s273 + $0x28] sm:$0xf]
      %v413 = vld [vmem:[%s273 + $0x2c] sm:$0xf]
      %v414 = vld [vmem:[%s273 + $0x30] sm:$0xf]
      %v415 = vld [vmem:[%s273 + $0x34] sm:$0xf]
      %v416 = vld [vmem:[%s273 + $0x38] sm:$0xf]
      %v417 = vld [vmem:[%s273 + $0x3c] sm:$0xf]
      %v418 = vld [vmem:[%s273 + $0x40] sm:$0xf]
      %v419 = vld [vmem:[%s273 + $0x44] sm:$0xf]
      %v420 = vld [vmem:[%s273 + $0x48] sm:$0xf]
      %v421 = vld [vmem:[%s273 + $0x4c] sm:$0xf]
      %v422 = vld [vmem:[%s273 + $0x50] sm:$0xf]
      %v423 = vld [vmem:[%s273 + $0x54] sm:$0xf]
      %v424 = vld [vmem:[%s273 + $0x58] sm:$0xf]
      %v425 = vld [vmem:[%s273 + $0x5c] sm:$0xf]
      %v426 = vld [vmem:[%s273 + $0x60] sm:$0xf]
      %v427 = vld [vmem:[%s273 + $0x64] sm:$0xf]
      %v428 = vld [vmem:[%s273 + $0x68] sm:$0xf]
      %v429 = vld [vmem:[%s273 + $0x6c] sm:$0xf]
      %v430 = vld [vmem:[%s273 + $0x70] sm:$0xf]
      %v431 = vld [vmem:[%s273 + $0x74] sm:$0xf]
      %v432 = vld [vmem:[%s273 + $0x78] sm:$0xf]
      %v433 = vld [vmem:[%s273 + $0x7c] sm:$0xf]
      %v434 = vld [vmem:[%s1] sm:$0xf]
      %v435 = vld [vmem:[%s1 + $0x4] sm:$0xf]
      %v436 = vld [vmem:[%s1 + $0x8] sm:$0xf]
      %v437 = vld [vmem:[%s1 + $0xc] sm:$0xf]
      %v438 = vld [vmem:[%s1 + $0x10] sm:$0xf]
      %v439 = vld [vmem:[%s1 + $0x14] sm:$0xf]
      %v440 = vld [vmem:[%s1 + $0x18] sm:$0xf]
      %v441 = vld [vmem:[%s1 + $0x1c] sm:$0xf]
      %v442 = vld [vmem:[%s1 + $0x20] sm:$0xf]
      %v443 = vld [vmem:[%s1 + $0x24] sm:$0xf]
      %v444 = vld [vmem:[%s1 + $0x28] sm:$0xf]
      %v445 = vld [vmem:[%s1 + $0x2c] sm:$0xf]
      %v446 = vld [vmem:[%s1 + $0x30] sm:$0xf]
      %v447 = vld [vmem:[%s1 + $0x34] sm:$0xf]
      %v448 = vld [vmem:[%s1 + $0x38] sm:$0xf]
      %v449 = vld [vmem:[%s1 + $0x3c] sm:$0xf]
      %v450 = vld [vmem:[%s4] sm:$0x1]
      %v452 = vperm.slane %v450, 0
      %v486 = vunpack.c.l.b16 %v402
      %v487 = vunpack.c.l.b16 %v403
      %v488 = vunpack.c.l.b16 %v404
      %v489 = vunpack.c.l.b16 %v405
      %v490 = vunpack.c.l.b16 %v406
      %v491 = vunpack.c.l.b16 %v407
      %v492 = vunpack.c.l.b16 %v408
      %v493 = vunpack.c.l.b16 %v409
      %v494 = vunpack.c.l.b16 %v410
      %v495 = vunpack.c.l.b16 %v411
      %v496 = vunpack.c.l.b16 %v412
      %v497 = vunpack.c.l.b16 %v413
      %v498 = vunpack.c.l.b16 %v414
      %v499 = vunpack.c.l.b16 %v415
      %v500 = vunpack.c.l.b16 %v416
      %v501 = vunpack.c.l.b16 %v417
      %v502 = vunpack.c.l.b16 %v418
      %v503 = vunpack.c.l.b16 %v419
      %v504 = vunpack.c.l.b16 %v420
      %v505 = vunpack.c.l.b16 %v421
      %v506 = vunpack.c.l.b16 %v422
      %v507 = vunpack.c.l.b16 %v423
      %v508 = vunpack.c.l.b16 %v424
      %v509 = vunpack.c.l.b16 %v425
      %v510 = vunpack.c.l.b16 %v426
      %v511 = vunpack.c.l.b16 %v427
      %v512 = vunpack.c.l.b16 %v428
      %v513 = vunpack.c.l.b16 %v429
      %v514 = vunpack.c.l.b16 %v430
      %v515 = vunpack.c.l.b16 %v431
      %v516 = vunpack.c.l.b16 %v432
      %v517 = vunpack.c.l.b16 %v433
      %v518 = vpack.c.b16 %v487, %v486
      %v519 = vpack.c.b16 %v489, %v488
      %v520 = vpack.c.b16 %v491, %v490
      %v521 = vpack.c.b16 %v493, %v492
      %v522 = vpack.c.b16 %v495, %v494
      %v523 = vpack.c.b16 %v497, %v496
      %v524 = vpack.c.b16 %v499, %v498
      %v525 = vpack.c.b16 %v501, %v500
      %v526 = vpack.c.b16 %v503, %v502
      %v527 = vpack.c.b16 %v505, %v504
      %v528 = vpack.c.b16 %v507, %v506
      %v529 = vpack.c.b16 %v509, %v508
      %v530 = vpack.c.b16 %v511, %v510
      %v531 = vpack.c.b16 %v513, %v512
      %v532 = vpack.c.b16 %v515, %v514
      %v533 = vpack.c.b16 %v517, %v516
      %v566 = vunpack.c.l.b16 %v434
      %v567 = vunpack.c.l.b16 %v435
      %v568 = vunpack.c.l.b16 %v436
      %v569 = vunpack.c.l.b16 %v437
      %v570 = vunpack.c.l.b16 %v438
      %v571 = vunpack.c.l.b16 %v439
      %v572 = vunpack.c.l.b16 %v440
      %v573 = vunpack.c.l.b16 %v441
      %v574 = vunpack.c.l.b16 %v442
      %v575 = vunpack.c.l.b16 %v443
      %v576 = vunpack.c.l.b16 %v444
      %v577 = vunpack.c.l.b16 %v445
      %v578 = vunpack.c.l.b16 %v446
      %v579 = vunpack.c.l.b16 %v447
      %v580 = vunpack.c.l.b16 %v448
      %v581 = vunpack.c.l.b16 %v449
      %v582 = vpack.c.b16 %v567, %v566
      %v583 = vpack.c.b16 %v569, %v568
      %v584 = vpack.c.b16 %v571, %v570
      %v585 = vpack.c.b16 %v573, %v572
      %v586 = vpack.c.b16 %v575, %v574
      %v587 = vpack.c.b16 %v577, %v576
      %v588 = vpack.c.b16 %v579, %v578
      %v589 = vpack.c.b16 %v581, %v580
      %598 = vmatpush.bf16.msra.mxu0 %v589
      %599 = vmatpush.bf16.msra.mxu0 %v588
      %600 = vmatpush.bf16.msra.mxu0 %v587
      %601 = vmatpush.bf16.msra.mxu0 %v586
      %602 = vmatpush.bf16.msra.mxu0 %v585
      %603 = vmatpush.bf16.msra.mxu0 %v584
      %604 = vmatpush.bf16.msra.mxu0 %v583
      %605 = vmatpush.bf16.msra.mxu0 %v582
      %606 = vmatmul.bf16.gmra.mxu0 %v518
      %v607 = vpop.f32.mrf.mxu0
      %v608 = vadd.f32 %v452, %v607
      %v609 = vpop.f32.mrf.mxu0
      %v610 = vadd.f32 %v452, %v609
      %611 = vmatmul.bf16.gmra.mxu0 %v519
      %v612 = vpop.f32.mrf.mxu0
      %v613 = vadd.f32 %v452, %v612
      %v614 = vpop.f32.mrf.mxu0
      %v615 = vadd.f32 %v452, %v614
      %616 = vmatmul.bf16.gmra.mxu0 %v520
      %v617 = vpop.f32.mrf.mxu0
      %v618 = vadd.f32 %v452, %v617
      %v619 = vpop.f32.mrf.mxu0
      %v620 = vadd.f32 %v452, %v619
      %621 = vmatmul.bf16.gmra.mxu0 %v521
      %v622 = vpop.f32.mrf.mxu0
      %v623 = vadd.f32 %v452, %v622
      %v624 = vpop.f32.mrf.mxu0
      %v625 = vadd.f32 %v452, %v624
      %626 = vmatmul.bf16.gmra.mxu0 %v522
      %v627 = vpop.f32.mrf.mxu0
      %v628 = vadd.f32 %v452, %v627
      %v629 = vpop.f32.mrf.mxu0
      %v630 = vadd.f32 %v452, %v629
      %631 = vmatmul.bf16.gmra.mxu0 %v523
      %v632 = vpop.f32.mrf.mxu0
      %v633 = vadd.f32 %v452, %v632
      %v634 = vpop.f32.mrf.mxu0
      %v635 = vadd.f32 %v452, %v634
      %636 = vmatmul.bf16.gmra.mxu0 %v524
      %v637 = vpop.f32.mrf.mxu0
      %v638 = vadd.f32 %v452, %v637
      %v639 = vpop.f32.mrf.mxu0
      %v640 = vadd.f32 %v452, %v639
      %641 = vmatmul.bf16.gmra.mxu0 %v525
      %v642 = vpop.f32.mrf.mxu0
      %v643 = vadd.f32 %v452, %v642
      %v644 = vpop.f32.mrf.mxu0
      %v645 = vadd.f32 %v452, %v644
      %646 = vmatmul.bf16.gmra.mxu0 %v526
      %v647 = vpop.f32.mrf.mxu0
      %v648 = vadd.f32 %v452, %v647
      %v649 = vpop.f32.mrf.mxu0
      %v650 = vadd.f32 %v452, %v649
      %651 = vmatmul.bf16.gmra.mxu0 %v527
      %v652 = vpop.f32.mrf.mxu0
      %v653 = vadd.f32 %v452, %v652
      %v654 = vpop.f32.mrf.mxu0
      %v655 = vadd.f32 %v452, %v654
      %656 = vmatmul.bf16.gmra.mxu0 %v528
      %v657 = vpop.f32.mrf.mxu0
      %v658 = vadd.f32 %v452, %v657
      %v659 = vpop.f32.mrf.mxu0
      %v660 = vadd.f32 %v452, %v659
      %661 = vmatmul.bf16.gmra.mxu0 %v529
      %v662 = vpop.f32.mrf.mxu0
      %v663 = vadd.f32 %v452, %v662
      %v664 = vpop.f32.mrf.mxu0
      %v665 = vadd.f32 %v452, %v664
      %666 = vmatmul.bf16.gmra.mxu0 %v530
      %v667 = vpop.f32.mrf.mxu0
      %v668 = vadd.f32 %v452, %v667
      %v669 = vpop.f32.mrf.mxu0
      %v670 = vadd.f32 %v452, %v669
      %671 = vmatmul.bf16.gmra.mxu0 %v531
      %v672 = vpop.f32.mrf.mxu0
      %v673 = vadd.f32 %v452, %v672
      %v674 = vpop.f32.mrf.mxu0
      %v675 = vadd.f32 %v452, %v674
      %676 = vmatmul.bf16.gmra.mxu0 %v532
      %v677 = vpop.f32.mrf.mxu0
      %v678 = vadd.f32 %v452, %v677
      %v679 = vpop.f32.mrf.mxu0
      %v680 = vadd.f32 %v452, %v679
      %681 = vmatmul.bf16.gmra.mxu0 %v533
      %v682 = vpop.f32.mrf.mxu0
      %v683 = vadd.f32 %v452, %v682
      %v684 = vpop.f32.mrf.mxu0
      %v685 = vadd.f32 %v452, %v684
      %686 = vdwg.mxu0
      %v687 = vmax.f32 %v608, 0.0
      %v688 = vmax.f32 %v610, 0.0
      %v689 = vmax.f32 %v613, 0.0
      %v690 = vmax.f32 %v615, 0.0
      %v691 = vmax.f32 %v618, 0.0
      %v692 = vmax.f32 %v620, 0.0
      %v693 = vmax.f32 %v623, 0.0
      %v694 = vmax.f32 %v625, 0.0
      %v695 = vmax.f32 %v628, 0.0
      %v696 = vmax.f32 %v630, 0.0
      %v697 = vmax.f32 %v633, 0.0
      %v698 = vmax.f32 %v635, 0.0
      %v699 = vmax.f32 %v638, 0.0
      %v700 = vmax.f32 %v640, 0.0
      %v701 = vmax.f32 %v643, 0.0
      %v702 = vmax.f32 %v645, 0.0
      %v703 = vmax.f32 %v648, 0.0
      %v704 = vmax.f32 %v650, 0.0
      %v705 = vmax.f32 %v653, 0.0
      %v706 = vmax.f32 %v655, 0.0
      %v707 = vmax.f32 %v658, 0.0
      %v708 = vmax.f32 %v660, 0.0
      %v709 = vmax.f32 %v663, 0.0
      %v710 = vmax.f32 %v665, 0.0
      %v711 = vmax.f32 %v668, 0.0
      %v712 = vmax.f32 %v670, 0.0
      %v713 = vmax.f32 %v673, 0.0
      %v714 = vmax.f32 %v675, 0.0
      %v715 = vmax.f32 %v678, 0.0
      %v716 = vmax.f32 %v680, 0.0
      %v717 = vmax.f32 %v683, 0.0
      %v718 = vmax.f32 %v685, 0.0
      %v719 = vpack.c.bf16 %v687, %v687
      %v720 = vpack.c.bf16 %v688, %v688
      %v721 = vpack.c.bf16 %v689, %v689
      %v722 = vpack.c.bf16 %v690, %v690
      %v723 = vpack.c.bf16 %v691, %v691
      %v724 = vpack.c.bf16 %v692, %v692
      %v725 = vpack.c.bf16 %v693, %v693
      %v726 = vpack.c.bf16 %v694, %v694
      %v727 = vpack.c.bf16 %v695, %v695
      %v728 = vpack.c.bf16 %v696, %v696
      %v729 = vpack.c.bf16 %v697, %v697
      %v730 = vpack.c.bf16 %v698, %v698
      %v731 = vpack.c.bf16 %v699, %v699
      %v732 = vpack.c.bf16 %v700, %v700
      %v733 = vpack.c.bf16 %v701, %v701
      %v734 = vpack.c.bf16 %v702, %v702
      %v735 = vpack.c.bf16 %v703, %v703
      %v736 = vpack.c.bf16 %v704, %v704
      %v737 = vpack.c.bf16 %v705, %v705
      %v738 = vpack.c.bf16 %v706, %v706
      %v739 = vpack.c.bf16 %v707, %v707
      %v740 = vpack.c.bf16 %v708, %v708
      %v741 = vpack.c.bf16 %v709, %v709
      %v742 = vpack.c.bf16 %v710, %v710
      %v743 = vpack.c.bf16 %v711, %v711
      %v744 = vpack.c.bf16 %v712, %v712
      %v745 = vpack.c.bf16 %v713, %v713
      %v746 = vpack.c.bf16 %v714, %v714
      %v747 = vpack.c.bf16 %v715, %v715
      %v748 = vpack.c.bf16 %v716, %v716
      %v749 = vpack.c.bf16 %v717, %v717
      %v750 = vpack.c.bf16 %v718, %v718
      %vm751 = vsmask.f32 4368
      %vm752 = vmor %vm290, %vm751
      %v754 = vshrl.u32 %v719, 16
      %v756 = vrot.slane %v754, 7
      %v757 = vshll.u32 %v719, 16
      %v759 = vor.u32 %v756, %v757
      %v760 = vrot.slane %v756, 4
      %v762 = vshrl.u32 %v720, 16
      %v764 = vrot.slane %v762, 7
      %v765 = vshll.u32 %v720, 16
      %v767 = vor.u32 %v764, %v765
      %v768 = vsel %vm752, %v760, %v767
      %v769 = vrot.slane %v764, 4
      %v771 = vshrl.u32 %v721, 16
      %v773 = vrot.slane %v771, 7
      %v774 = vshll.u32 %v721, 16
      %v776 = vor.u32 %v773, %v774
      %v777 = vrot.slane %v773, 4
      %v779 = vshrl.u32 %v722, 16
      %v781 = vrot.slane %v779, 7
      %v782 = vshll.u32 %v722, 16
      %v784 = vor.u32 %v781, %v782
      %v785 = vsel %vm752, %v777, %v784
      %v786 = vrot.slane %v781, 4
      %v788 = vshrl.u32 %v723, 16
      %v790 = vrot.slane %v788, 7
      %v791 = vshll.u32 %v723, 16
      %v793 = vor.u32 %v790, %v791
      %v794 = vrot.slane %v790, 4
      %v796 = vshrl.u32 %v724, 16
      %v798 = vrot.slane %v796, 7
      %v799 = vshll.u32 %v724, 16
      %v801 = vor.u32 %v798, %v799
      %v802 = vsel %vm752, %v794, %v801
      %v803 = vrot.slane %v798, 4
      %v805 = vshrl.u32 %v725, 16
      %v807 = vrot.slane %v805, 7
      %v808 = vshll.u32 %v725, 16
      %v810 = vor.u32 %v807, %v808
      %v811 = vrot.slane %v807, 4
      %v813 = vshrl.u32 %v726, 16
      %v815 = vrot.slane %v813, 7
      %v816 = vshll.u32 %v726, 16
      %v818 = vor.u32 %v815, %v816
      %v819 = vsel %vm752, %v811, %v818
      %v820 = vrot.slane %v815, 4
      %v822 = vshrl.u32 %v727, 16
      %v824 = vrot.slane %v822, 7
      %v825 = vshll.u32 %v727, 16
      %v827 = vor.u32 %v824, %v825
      %v828 = vrot.slane %v824, 4
      %v830 = vshrl.u32 %v728, 16
      %v832 = vrot.slane %v830, 7
      %v833 = vshll.u32 %v728, 16
      %v835 = vor.u32 %v832, %v833
      %v836 = vsel %vm752, %v828, %v835
      %v837 = vrot.slane %v832, 4
      %v839 = vshrl.u32 %v729, 16
      %v841 = vrot.slane %v839, 7
      %v842 = vshll.u32 %v729, 16
      %v844 = vor.u32 %v841, %v842
      %v845 = vrot.slane %v841, 4
      %v847 = vshrl.u32 %v730, 16
      %v849 = vrot.slane %v847, 7
      %v850 = vshll.u32 %v730, 16
      %v852 = vor.u32 %v849, %v850
      %v853 = vsel %vm752, %v845, %v852
      %v854 = vrot.slane %v849, 4
      %v856 = vshrl.u32 %v731, 16
      %v858 = vrot.slane %v856, 7
      %v859 = vshll.u32 %v731, 16
      %v861 = vor.u32 %v858, %v859
      %v862 = vrot.slane %v858, 4
      %v864 = vshrl.u32 %v732, 16
      %v866 = vrot.slane %v864, 7
      %v867 = vshll.u32 %v732, 16
      %v869 = vor.u32 %v866, %v867
      %v870 = vsel %vm752, %v862, %v869
      %v871 = vrot.slane %v866, 4
      %v873 = vshrl.u32 %v733, 16
      %v875 = vrot.slane %v873, 7
      %v876 = vshll.u32 %v733, 16
      %v878 = vor.u32 %v875, %v876
      %v879 = vrot.slane %v875, 4
      %v881 = vshrl.u32 %v734, 16
      %v883 = vrot.slane %v881, 7
      %v884 = vshll.u32 %v734, 16
      %v886 = vor.u32 %v883, %v884
      %v887 = vsel %vm752, %v879, %v886
      %v888 = vrot.slane %v883, 4
      %v890 = vshrl.u32 %v735, 16
      %v892 = vrot.slane %v890, 7
      %v893 = vshll.u32 %v735, 16
      %v895 = vor.u32 %v892, %v893
      %v896 = vrot.slane %v892, 4
      %v898 = vshrl.u32 %v736, 16
      %v900 = vrot.slane %v898, 7
      %v901 = vshll.u32 %v736, 16
      %v903 = vor.u32 %v900, %v901
      %v904 = vsel %vm752, %v896, %v903
      %v905 = vrot.slane %v900, 4
      %v907 = vshrl.u32 %v737, 16
      %v909 = vrot.slane %v907, 7
      %v910 = vshll.u32 %v737, 16
      %v912 = vor.u32 %v909, %v910
      %v913 = vrot.slane %v909, 4
      %v915 = vshrl.u32 %v738, 16
      %v917 = vrot.slane %v915, 7
      %v918 = vshll.u32 %v738, 16
      %v920 = vor.u32 %v917, %v918
      %v921 = vsel %vm752, %v913, %v920
      %v922 = vrot.slane %v917, 4
      %v924 = vshrl.u32 %v739, 16
      %v926 = vrot.slane %v924, 7
      %v927 = vshll.u32 %v739, 16
      %v929 = vor.u32 %v926, %v927
      %v930 = vrot.slane %v926, 4
      %v932 = vshrl.u32 %v740, 16
      %v934 = vrot.slane %v932, 7
      %v935 = vshll.u32 %v740, 16
      %v937 = vor.u32 %v934, %v935
      %v938 = vsel %vm752, %v930, %v937
      %v939 = vrot.slane %v934, 4
      %v941 = vshrl.u32 %v741, 16
      %v943 = vrot.slane %v941, 7
      %v944 = vshll.u32 %v741, 16
      %v946 = vor.u32 %v943, %v944
      %v947 = vrot.slane %v943, 4
      %v949 = vshrl.u32 %v742, 16
      %v951 = vrot.slane %v949, 7
      %v952 = vshll.u32 %v742, 16
      %v954 = vor.u32 %v951, %v952
      %v955 = vsel %vm752, %v947, %v954
      %v956 = vrot.slane %v951, 4
      %v958 = vshrl.u32 %v743, 16
      %v960 = vrot.slane %v958, 7
      %v961 = vshll.u32 %v743, 16
      %v963 = vor.u32 %v960, %v961
      %v964 = vrot.slane %v960, 4
      %v966 = vshrl.u32 %v744, 16
      %v968 = vrot.slane %v966, 7
      %v969 = vshll.u32 %v744, 16
      %v971 = vor.u32 %v968, %v969
      %v972 = vsel %vm752, %v964, %v971
      %v973 = vrot.slane %v968, 4
      %v975 = vshrl.u32 %v745, 16
      %v977 = vrot.slane %v975, 7
      %v978 = vshll.u32 %v745, 16
      %v980 = vor.u32 %v977, %v978
      %v981 = vrot.slane %v977, 4
      %v983 = vshrl.u32 %v746, 16
      %v985 = vrot.slane %v983, 7
      %v986 = vshll.u32 %v746, 16
      %v988 = vor.u32 %v985, %v986
      %v989 = vsel %vm752, %v981, %v988
      %v990 = vrot.slane %v985, 4
      %v992 = vshrl.u32 %v747, 16
      %v994 = vrot.slane %v992, 7
      %v995 = vshll.u32 %v747, 16
      %v997 = vor.u32 %v994, %v995
      %v998 = vrot.slane %v994, 4
      %v1000 = vshrl.u32 %v748, 16
      %v1002 = vrot.slane %v1000, 7
      %v1003 = vshll.u32 %v748, 16
      %v1005 = vor.u32 %v1002, %v1003
      %v1006 = vsel %vm752, %v998, %v1005
      %v1007 = vrot.slane %v1002, 4
      %v1009 = vshrl.u32 %v749, 16
      %v1011 = vrot.slane %v1009, 7
      %v1012 = vshll.u32 %v749, 16
      %v1014 = vor.u32 %v1011, %v1012
      %v1015 = vrot.slane %v1011, 4
      %v1017 = vshrl.u32 %v750, 16
      %v1019 = vrot.slane %v1017, 7
      %v1020 = vshll.u32 %v750, 16
      %v1022 = vor.u32 %v1019, %v1020
      %v1023 = vsel %vm752, %v1015, %v1022
      %v1024 = vrot.slane %v1019, 4
      %s1073 = scalar_lea.vmem [#allocation2], 12
      %vm1074 = vcmask 519168
      %vm1075 = vmand %vm1074, %vm346
      %v1076 = vld [vmem:[%s1073] sm:$0xf]
      %v1077 = vsel %vm1075, %v759, %v1076
      %1078 = vst [vmem:[%s1073] sm:$0xf] %v1077
      %1079 = vst.msk [vmem:[%s1073 + $0x4] sm:$0xf] %vm280, %v768
      %v1080 = vld [vmem:[%s1073 + $0x8] sm:$0x1]
      %v1081 = vsel %vm291, %v769, %v1080
      %1082 = vst [vmem:[%s1073 + $0x8] sm:$0x1] %v1081
      %v1083 = vld [vmem:[%s1073 + $0xc] sm:$0xf]
      %v1084 = vsel %vm1075, %v776, %v1083
      %1085 = vst [vmem:[%s1073 + $0xc] sm:$0xf] %v1084
      %1086 = vst.msk [vmem:[%s1073 + $0x10] sm:$0xf] %vm280, %v785
      %v1087 = vld [vmem:[%s1073 + $0x14] sm:$0x1]
      %v1088 = vsel %vm291, %v786, %v1087
      %1089 = vst [vmem:[%s1073 + $0x14] sm:$0x1] %v1088
      %v1090 = vld [vmem:[%s1073 + $0x18] sm:$0xf]
      %v1091 = vsel %vm1075, %v793, %v1090
      %1092 = vst [vmem:[%s1073 + $0x18] sm:$0xf] %v1091
      %1093 = vst.msk [vmem:[%s1073 + $0x1c] sm:$0xf] %vm280, %v802
      %v1094 = vld [vmem:[%s1073 + $0x20] sm:$0x1]
      %v1095 = vsel %vm291, %v803, %v1094
      %1096 = vst [vmem:[%s1073 + $0x20] sm:$0x1] %v1095
      %v1097 = vld [vmem:[%s1073 + $0x24] sm:$0xf]
      %v1098 = vsel %vm1075, %v810, %v1097
      %1099 = vst [vmem:[%s1073 + $0x24] sm:$0xf] %v1098
      %1100 = vst.msk [vmem:[%s1073 + $0x28] sm:$0xf] %vm280, %v819
      %v1101 = vld [vmem:[%s1073 + $0x2c] sm:$0x1]
      %v1102 = vsel %vm291, %v820, %v1101
      %1103 = vst [vmem:[%s1073 + $0x2c] sm:$0x1] %v1102
      %v1104 = vld [vmem:[%s1073 + $0x30] sm:$0xf]
      %v1105 = vsel %vm1075, %v827, %v1104
      %1106 = vst [vmem:[%s1073 + $0x30] sm:$0xf] %v1105
      %1107 = vst.msk [vmem:[%s1073 + $0x34] sm:$0xf] %vm280, %v836
      %v1108 = vld [vmem:[%s1073 + $0x38] sm:$0x1]
      %v1109 = vsel %vm291, %v837, %v1108
      %1110 = vst [vmem:[%s1073 + $0x38] sm:$0x1] %v1109
      %v1111 = vld [vmem:[%s1073 + $0x3c] sm:$0xf]
      %v1112 = vsel %vm1075, %v844, %v1111
      %1113 = vst [vmem:[%s1073 + $0x3c] sm:$0xf] %v1112
      %1114 = vst.msk [vmem:[%s1073 + $0x40] sm:$0xf] %vm280, %v853
      %v1115 = vld [vmem:[%s1073 + $0x44] sm:$0x1]
      %v1116 = vsel %vm291, %v854, %v1115
      %1117 = vst [vmem:[%s1073 + $0x44] sm:$0x1] %v1116
      %v1118 = vld [vmem:[%s1073 + $0x48] sm:$0xf]
      %v1119 = vsel %vm1075, %v861, %v1118
      %1120 = vst [vmem:[%s1073 + $0x48] sm:$0xf] %v1119
      %1121 = vst.msk [vmem:[%s1073 + $0x4c] sm:$0xf] %vm280, %v870
      %v1122 = vld [vmem:[%s1073 + $0x50] sm:$0x1]
      %v1123 = vsel %vm291, %v871, %v1122
      %1124 = vst [vmem:[%s1073 + $0x50] sm:$0x1] %v1123
      %v1125 = vld [vmem:[%s1073 + $0x54] sm:$0xf]
      %v1126 = vsel %vm1075, %v878, %v1125
      %1127 = vst [vmem:[%s1073 + $0x54] sm:$0xf] %v1126
      %1128 = vst.msk [vmem:[%s1073 + $0x58] sm:$0xf] %vm280, %v887
      %v1129 = vld [vmem:[%s1073 + $0x5c] sm:$0x1]
      %v1130 = vsel %vm291, %v888, %v1129
      %1131 = vst [vmem:[%s1073 + $0x5c] sm:$0x1] %v1130
      %v1132 = vld [vmem:[%s1073 + $0x60] sm:$0xf]
      %v1133 = vsel %vm1075, %v895, %v1132
      %1134 = vst [vmem:[%s1073 + $0x60] sm:$0xf] %v1133
      %1135 = vst.msk [vmem:[%s1073 + $0x64] sm:$0xf] %vm280, %v904
      %v1136 = vld [vmem:[%s1073 + $0x68] sm:$0x1]
      %v1137 = vsel %vm291, %v905, %v1136
      %1138 = vst [vmem:[%s1073 + $0x68] sm:$0x1] %v1137
      %v1139 = vld [vmem:[%s1073 + $0x6c] sm:$0xf]
      %v1140 = vsel %vm1075, %v912, %v1139
      %1141 = vst [vmem:[%s1073 + $0x6c] sm:$0xf] %v1140
      %1142 = vst.msk [vmem:[%s1073 + $0x70] sm:$0xf] %vm280, %v921
      %v1143 = vld [vmem:[%s1073 + $0x74] sm:$0x1]
      %v1144 = vsel %vm291, %v922, %v1143
      %1145 = vst [vmem:[%s1073 + $0x74] sm:$0x1] %v1144
      %v1146 = vld [vmem:[%s1073 + $0x78] sm:$0xf]
      %v1147 = vsel %vm1075, %v929, %v1146
      %1148 = vst [vmem:[%s1073 + $0x78] sm:$0xf] %v1147
      %1149 = vst.msk [vmem:[%s1073 + $0x7c] sm:$0xf] %vm280, %v938
      %v1150 = vld [vmem:[%s1073 + $0x80] sm:$0x1]
      %v1151 = vsel %vm291, %v939, %v1150
      %1152 = vst [vmem:[%s1073 + $0x80] sm:$0x1] %v1151
      %v1153 = vld [vmem:[%s1073 + $0x84] sm:$0xf]
      %v1154 = vsel %vm1075, %v946, %v1153
      %1155 = vst [vmem:[%s1073 + $0x84] sm:$0xf] %v1154
      %1156 = vst.msk [vmem:[%s1073 + $0x88] sm:$0xf] %vm280, %v955
      %v1157 = vld [vmem:[%s1073 + $0x8c] sm:$0x1]
      %v1158 = vsel %vm291, %v956, %v1157
      %1159 = vst [vmem:[%s1073 + $0x8c] sm:$0x1] %v1158
      %v1160 = vld [vmem:[%s1073 + $0x90] sm:$0xf]
      %v1161 = vsel %vm1075, %v963, %v1160
      %1162 = vst [vmem:[%s1073 + $0x90] sm:$0xf] %v1161
      %1163 = vst.msk [vmem:[%s1073 + $0x94] sm:$0xf] %vm280, %v972
      %v1164 = vld [vmem:[%s1073 + $0x98] sm:$0x1]
      %v1165 = vsel %vm291, %v973, %v1164
      %1166 = vst [vmem:[%s1073 + $0x98] sm:$0x1] %v1165
      %v1167 = vld [vmem:[%s1073 + $0x9c] sm:$0xf]
      %v1168 = vsel %vm1075, %v980, %v1167
      %1169 = vst [vmem:[%s1073 + $0x9c] sm:$0xf] %v1168
      %1170 = vst.msk [vmem:[%s1073 + $0xa0] sm:$0xf] %vm280, %v989
      %v1171 = vld [vmem:[%s1073 + $0xa4] sm:$0x1]
      %v1172 = vsel %vm291, %v990, %v1171
      %1173 = vst [vmem:[%s1073 + $0xa4] sm:$0x1] %v1172
      %v1174 = vld [vmem:[%s1073 + $0xa8] sm:$0xf]
      %v1175 = vsel %vm1075, %v997, %v1174
      %1176 = vst [vmem:[%s1073 + $0xa8] sm:$0xf] %v1175
      %1177 = vst.msk [vmem:[%s1073 + $0xac] sm:$0xf] %vm280, %v1006
      %v1178 = vld [vmem:[%s1073 + $0xb0] sm:$0x1]
      %v1179 = vsel %vm291, %v1007, %v1178
      %1180 = vst [vmem:[%s1073 + $0xb0] sm:$0x1] %v1179
      %v1181 = vld [vmem:[%s1073 + $0xb4] sm:$0xf]
      %v1182 = vsel %vm1075, %v1014, %v1181
      %1183 = vst [vmem:[%s1073 + $0xb4] sm:$0xf] %v1182
      %1184 = vst.msk [vmem:[%s1073 + $0xb8] sm:$0xf] %vm280, %v1023
      %v1185 = vld [vmem:[%s1073 + $0xbc] sm:$0x1]
      %v1186 = vsel %vm291, %v1024, %v1185
      %1187 = vst [vmem:[%s1073 + $0xbc] sm:$0x1] %v1186
      %v1188 = vld [vmem:[#allocation2] sm:$0xf]
      %v1189 = vld [vmem:[#allocation2 + $0x4] sm:$0xf]
      %v1190 = vld [vmem:[#allocation2 + $0xc] sm:$0xf]
      %v1191 = vld [vmem:[#allocation2 + $0x10] sm:$0xf]
      %v1192 = vld [vmem:[#allocation2 + $0x18] sm:$0xf]
      %v1193 = vld [vmem:[#allocation2 + $0x1c] sm:$0xf]
      %v1194 = vld [vmem:[#allocation2 + $0x24] sm:$0xf]
      %v1195 = vld [vmem:[#allocation2 + $0x28] sm:$0xf]
      %v1196 = vld [vmem:[#allocation2 + $0x30] sm:$0xf]
      %v1197 = vld [vmem:[#allocation2 + $0x34] sm:$0xf]
      %v1198 = vld [vmem:[#allocation2 + $0x3c] sm:$0xf]
      %v1199 = vld [vmem:[#allocation2 + $0x40] sm:$0xf]
      %v1200 = vld [vmem:[#allocation2 + $0x48] sm:$0xf]
      %v1201 = vld [vmem:[#allocation2 + $0x4c] sm:$0xf]
      %v1202 = vld [vmem:[#allocation2 + $0x54] sm:$0xf]
      %v1203 = vld [vmem:[#allocation2 + $0x58] sm:$0xf]
      %v1204 = vld [vmem:[#allocation2 + $0x60] sm:$0xf]
      %v1205 = vld [vmem:[#allocation2 + $0x64] sm:$0xf]
      %v1206 = vld [vmem:[#allocation2 + $0x6c] sm:$0xf]
      %v1207 = vld [vmem:[#allocation2 + $0x70] sm:$0xf]
      %v1208 = vld [vmem:[#allocation2 + $0x78] sm:$0xf]
      %v1209 = vld [vmem:[#allocation2 + $0x7c] sm:$0xf]
      %v1210 = vld [vmem:[#allocation2 + $0x84] sm:$0xf]
      %v1211 = vld [vmem:[#allocation2 + $0x88] sm:$0xf]
      %v1212 = vld [vmem:[#allocation2 + $0x90] sm:$0xf]
      %v1213 = vld [vmem:[#allocation2 + $0x94] sm:$0xf]
      %v1214 = vld [vmem:[#allocation2 + $0x9c] sm:$0xf]
      %v1215 = vld [vmem:[#allocation2 + $0xa0] sm:$0xf]
      %v1216 = vld [vmem:[#allocation2 + $0xa8] sm:$0xf]
      %v1217 = vld [vmem:[#allocation2 + $0xac] sm:$0xf]
      %v1218 = vld [vmem:[#allocation2 + $0xb4] sm:$0xf]
      %v1219 = vld [vmem:[#allocation2 + $0xb8] sm:$0xf]
      %v1220 = vld [vmem:[%s2] sm:$0xf]
      %v1221 = vld [vmem:[%s2 + $0x4] sm:$0xf]
      %v1222 = vld [vmem:[%s2 + $0x8] sm:$0xf]
      %v1223 = vld [vmem:[%s2 + $0xc] sm:$0xf]
      %v1224 = vld [vmem:[%s2 + $0x10] sm:$0xf]
      %v1225 = vld [vmem:[%s2 + $0x14] sm:$0xf]
      %v1226 = vld [vmem:[%s2 + $0x18] sm:$0xf]
      %v1227 = vld [vmem:[%s2 + $0x1c] sm:$0xf]
      %v1228 = vld [vmem:[#allocation2 + $0x8] sm:$0x1]
      %v1229 = vld [vmem:[#allocation2 + $0x14] sm:$0x1]
      %v1230 = vld [vmem:[#allocation2 + $0x20] sm:$0x1]
      %v1231 = vld [vmem:[#allocation2 + $0x2c] sm:$0x1]
      %v1232 = vld [vmem:[#allocation2 + $0x38] sm:$0x1]
      %v1233 = vld [vmem:[#allocation2 + $0x44] sm:$0x1]
      %v1234 = vld [vmem:[#allocation2 + $0x50] sm:$0x1]
      %v1235 = vld [vmem:[#allocation2 + $0x5c] sm:$0x1]
      %v1236 = vld [vmem:[#allocation2 + $0x68] sm:$0x1]
      %v1237 = vld [vmem:[#allocation2 + $0x74] sm:$0x1]
      %v1238 = vld [vmem:[#allocation2 + $0x80] sm:$0x1]
      %v1239 = vld [vmem:[#allocation2 + $0x8c] sm:$0x1]
      %v1240 = vld [vmem:[#allocation2 + $0x98] sm:$0x1]
      %v1241 = vld [vmem:[#allocation2 + $0xa4] sm:$0x1]
      %v1242 = vld [vmem:[#allocation2 + $0xb0] sm:$0x1]
      %v1243 = vld [vmem:[#allocation2 + $0xbc] sm:$0x1]
      %vm1244 = vsmask.f32 3328
      %vm1245 = vsmask.f32 7440
      %vm1246 = vmor %vm1244, %vm1245
      %v1248 = vshrl.u32 %v1188, 16
      %v1250 = vrot.slane %v1248, 4
      %v1251 = vshll.u32 %v1188, 16
      %v1253 = vrot.slane %v1251, 5
      %v1254 = vor.u32 %v1250, %v1253
      %v1255 = vrot.slane %v1254, 4
      %v1257 = vshll.u32 %v1189, 16
      %v1259 = vrot.slane %v1257, 5
      %v1260 = vsel %vm1246, %v1255, %v1259
      %v1261 = vshrl.u32 %v1189, 16
      %v1263 = vrot.slane %v1261, 4
      %v1264 = vor.u32 %v1263, %v1259
      %v1265 = vrot.slane %v1264, 4
      %v1267 = vshll.u32 %v1228, 16
      %v1269 = vrot.slane %v1267, 5
      %v1270 = vsel %vm1246, %v1265, %v1269
      %v1272 = vshrl.u32 %v1190, 16
      %v1274 = vrot.slane %v1272, 4
      %v1275 = vshll.u32 %v1190, 16
      %v1277 = vrot.slane %v1275, 5
      %v1278 = vor.u32 %v1274, %v1277
      %v1279 = vrot.slane %v1278, 4
      %v1281 = vshll.u32 %v1191, 16
      %v1283 = vrot.slane %v1281, 5
      %v1284 = vsel %vm1246, %v1279, %v1283
      %v1285 = vshrl.u32 %v1191, 16
      %v1287 = vrot.slane %v1285, 4
      %v1288 = vor.u32 %v1287, %v1283
      %v1289 = vrot.slane %v1288, 4
      %v1291 = vshll.u32 %v1229, 16
      %v1293 = vrot.slane %v1291, 5
      %v1294 = vsel %vm1246, %v1289, %v1293
      %v1296 = vshrl.u32 %v1192, 16
      %v1298 = vrot.slane %v1296, 4
      %v1299 = vshll.u32 %v1192, 16
      %v1301 = vrot.slane %v1299, 5
      %v1302 = vor.u32 %v1298, %v1301
      %v1303 = vrot.slane %v1302, 4
      %v1305 = vshll.u32 %v1193, 16
      %v1307 = vrot.slane %v1305, 5
      %v1308 = vsel %vm1246, %v1303, %v1307
      %v1309 = vshrl.u32 %v1193, 16
      %v1311 = vrot.slane %v1309, 4
      %v1312 = vor.u32 %v1311, %v1307
      %v1313 = vrot.slane %v1312, 4
      %v1315 = vshll.u32 %v1230, 16
      %v1317 = vrot.slane %v1315, 5
      %v1318 = vsel %vm1246, %v1313, %v1317
      %v1320 = vshrl.u32 %v1194, 16
      %v1322 = vrot.slane %v1320, 4
      %v1323 = vshll.u32 %v1194, 16
      %v1325 = vrot.slane %v1323, 5
      %v1326 = vor.u32 %v1322, %v1325
      %v1327 = vrot.slane %v1326, 4
      %v1329 = vshll.u32 %v1195, 16
      %v1331 = vrot.slane %v1329, 5
      %v1332 = vsel %vm1246, %v1327, %v1331
      %v1333 = vshrl.u32 %v1195, 16
      %v1335 = vrot.slane %v1333, 4
      %v1336 = vor.u32 %v1335, %v1331
      %v1337 = vrot.slane %v1336, 4
      %v1339 = vshll.u32 %v1231, 16
      %v1341 = vrot.slane %v1339, 5
      %v1342 = vsel %vm1246, %v1337, %v1341
      %v1344 = vshrl.u32 %v1196, 16
      %v1346 = vrot.slane %v1344, 4
      %v1347 = vshll.u32 %v1196, 16
      %v1349 = vrot.slane %v1347, 5
      %v1350 = vor.u32 %v1346, %v1349
      %v1351 = vrot.slane %v1350, 4
      %v1353 = vshll.u32 %v1197, 16
      %v1355 = vrot.slane %v1353, 5
      %v1356 = vsel %vm1246, %v1351, %v1355
      %v1357 = vshrl.u32 %v1197, 16
      %v1359 = vrot.slane %v1357, 4
      %v1360 = vor.u32 %v1359, %v1355
      %v1361 = vrot.slane %v1360, 4
      %v1363 = vshll.u32 %v1232, 16
      %v1365 = vrot.slane %v1363, 5
      %v1366 = vsel %vm1246, %v1361, %v1365
      %v1368 = vshrl.u32 %v1198, 16
      %v1370 = vrot.slane %v1368, 4
      %v1371 = vshll.u32 %v1198, 16
      %v1373 = vrot.slane %v1371, 5
      %v1374 = vor.u32 %v1370, %v1373
      %v1375 = vrot.slane %v1374, 4
      %v1377 = vshll.u32 %v1199, 16
      %v1379 = vrot.slane %v1377, 5
      %v1380 = vsel %vm1246, %v1375, %v1379
      %v1381 = vshrl.u32 %v1199, 16
      %v1383 = vrot.slane %v1381, 4
      %v1384 = vor.u32 %v1383, %v1379
      %v1385 = vrot.slane %v1384, 4
      %v1387 = vshll.u32 %v1233, 16
      %v1389 = vrot.slane %v1387, 5
      %v1390 = vsel %vm1246, %v1385, %v1389
      %v1392 = vshrl.u32 %v1200, 16
      %v1394 = vrot.slane %v1392, 4
      %v1395 = vshll.u32 %v1200, 16
      %v1397 = vrot.slane %v1395, 5
      %v1398 = vor.u32 %v1394, %v1397
      %v1399 = vrot.slane %v1398, 4
      %v1401 = vshll.u32 %v1201, 16
      %v1403 = vrot.slane %v1401, 5
      %v1404 = vsel %vm1246, %v1399, %v1403
      %v1405 = vshrl.u32 %v1201, 16
      %v1407 = vrot.slane %v1405, 4
      %v1408 = vor.u32 %v1407, %v1403
      %v1409 = vrot.slane %v1408, 4
      %v1411 = vshll.u32 %v1234, 16
      %v1413 = vrot.slane %v1411, 5
      %v1414 = vsel %vm1246, %v1409, %v1413
      %v1416 = vshrl.u32 %v1202, 16
      %v1418 = vrot.slane %v1416, 4
      %v1419 = vshll.u32 %v1202, 16
      %v1421 = vrot.slane %v1419, 5
      %v1422 = vor.u32 %v1418, %v1421
      %v1423 = vrot.slane %v1422, 4
      %v1425 = vshll.u32 %v1203, 16
      %v1427 = vrot.slane %v1425, 5
      %v1428 = vsel %vm1246, %v1423, %v1427
      %v1429 = vshrl.u32 %v1203, 16
      %v1431 = vrot.slane %v1429, 4
      %v1432 = vor.u32 %v1431, %v1427
      %v1433 = vrot.slane %v1432, 4
      %v1435 = vshll.u32 %v1235, 16
      %v1437 = vrot.slane %v1435, 5
      %v1438 = vsel %vm1246, %v1433, %v1437
      %v1440 = vshrl.u32 %v1204, 16
      %v1442 = vrot.slane %v1440, 4
      %v1443 = vshll.u32 %v1204, 16
      %v1445 = vrot.slane %v1443, 5
      %v1446 = vor.u32 %v1442, %v1445
      %v1447 = vrot.slane %v1446, 4
      %v1449 = vshll.u32 %v1205, 16
      %v1451 = vrot.slane %v1449, 5
      %v1452 = vsel %vm1246, %v1447, %v1451
      %v1453 = vshrl.u32 %v1205, 16
      %v1455 = vrot.slane %v1453, 4
      %v1456 = vor.u32 %v1455, %v1451
      %v1457 = vrot.slane %v1456, 4
      %v1459 = vshll.u32 %v1236, 16
      %v1461 = vrot.slane %v1459, 5
      %v1462 = vsel %vm1246, %v1457, %v1461
      %v1464 = vshrl.u32 %v1206, 16
      %v1466 = vrot.slane %v1464, 4
      %v1467 = vshll.u32 %v1206, 16
      %v1469 = vrot.slane %v1467, 5
      %v1470 = vor.u32 %v1466, %v1469
      %v1471 = vrot.slane %v1470, 4
      %v1473 = vshll.u32 %v1207, 16
      %v1475 = vrot.slane %v1473, 5
      %v1476 = vsel %vm1246, %v1471, %v1475
      %v1477 = vshrl.u32 %v1207, 16
      %v1479 = vrot.slane %v1477, 4
      %v1480 = vor.u32 %v1479, %v1475
      %v1481 = vrot.slane %v1480, 4
      %v1483 = vshll.u32 %v1237, 16
      %v1485 = vrot.slane %v1483, 5
      %v1486 = vsel %vm1246, %v1481, %v1485
      %v1488 = vshrl.u32 %v1208, 16
      %v1490 = vrot.slane %v1488, 4
      %v1491 = vshll.u32 %v1208, 16
      %v1493 = vrot.slane %v1491, 5
      %v1494 = vor.u32 %v1490, %v1493
      %v1495 = vrot.slane %v1494, 4
      %v1497 = vshll.u32 %v1209, 16
      %v1499 = vrot.slane %v1497, 5
      %v1500 = vsel %vm1246, %v1495, %v1499
      %v1501 = vshrl.u32 %v1209, 16
      %v1503 = vrot.slane %v1501, 4
      %v1504 = vor.u32 %v1503, %v1499
      %v1505 = vrot.slane %v1504, 4
      %v1507 = vshll.u32 %v1238, 16
      %v1509 = vrot.slane %v1507, 5
      %v1510 = vsel %vm1246, %v1505, %v1509
      %v1512 = vshrl.u32 %v1210, 16
      %v1514 = vrot.slane %v1512, 4
      %v1515 = vshll.u32 %v1210, 16
      %v1517 = vrot.slane %v1515, 5
      %v1518 = vor.u32 %v1514, %v1517
      %v1519 = vrot.slane %v1518, 4
      %v1521 = vshll.u32 %v1211, 16
      %v1523 = vrot.slane %v1521, 5
      %v1524 = vsel %vm1246, %v1519, %v1523
      %v1525 = vshrl.u32 %v1211, 16
      %v1527 = vrot.slane %v1525, 4
      %v1528 = vor.u32 %v1527, %v1523
      %v1529 = vrot.slane %v1528, 4
      %v1531 = vshll.u32 %v1239, 16
      %v1533 = vrot.slane %v1531, 5
      %v1534 = vsel %vm1246, %v1529, %v1533
      %v1536 = vshrl.u32 %v1212, 16
      %v1538 = vrot.slane %v1536, 4
      %v1539 = vshll.u32 %v1212, 16
      %v1541 = vrot.slane %v1539, 5
      %v1542 = vor.u32 %v1538, %v1541
      %v1543 = vrot.slane %v1542, 4
      %v1545 = vshll.u32 %v1213, 16
      %v1547 = vrot.slane %v1545, 5
      %v1548 = vsel %vm1246, %v1543, %v1547
      %v1549 = vshrl.u32 %v1213, 16
      %v1551 = vrot.slane %v1549, 4
      %v1552 = vor.u32 %v1551, %v1547
      %v1553 = vrot.slane %v1552, 4
      %v1555 = vshll.u32 %v1240, 16
      %v1557 = vrot.slane %v1555, 5
      %v1558 = vsel %vm1246, %v1553, %v1557
      %v1560 = vshrl.u32 %v1214, 16
      %v1562 = vrot.slane %v1560, 4
      %v1563 = vshll.u32 %v1214, 16
      %v1565 = vrot.slane %v1563, 5
      %v1566 = vor.u32 %v1562, %v1565
      %v1567 = vrot.slane %v1566, 4
      %v1569 = vshll.u32 %v1215, 16
      %v1571 = vrot.slane %v1569, 5
      %v1572 = vsel %vm1246, %v1567, %v1571
      %v1573 = vshrl.u32 %v1215, 16
      %v1575 = vrot.slane %v1573, 4
      %v1576 = vor.u32 %v1575, %v1571
      %v1577 = vrot.slane %v1576, 4
      %v1579 = vshll.u32 %v1241, 16
      %v1581 = vrot.slane %v1579, 5
      %v1582 = vsel %vm1246, %v1577, %v1581
      %v1584 = vshrl.u32 %v1216, 16
      %v1586 = vrot.slane %v1584, 4
      %v1587 = vshll.u32 %v1216, 16
      %v1589 = vrot.slane %v1587, 5
      %v1590 = vor.u32 %v1586, %v1589
      %v1591 = vrot.slane %v1590, 4
      %v1593 = vshll.u32 %v1217, 16
      %v1595 = vrot.slane %v1593, 5
      %v1596 = vsel %vm1246, %v1591, %v1595
      %v1597 = vshrl.u32 %v1217, 16
      %v1599 = vrot.slane %v1597, 4
      %v1600 = vor.u32 %v1599, %v1595
      %v1601 = vrot.slane %v1600, 4
      %v1603 = vshll.u32 %v1242, 16
      %v1605 = vrot.slane %v1603, 5
      %v1606 = vsel %vm1246, %v1601, %v1605
      %v1608 = vshrl.u32 %v1218, 16
      %v1610 = vrot.slane %v1608, 4
      %v1611 = vshll.u32 %v1218, 16
      %v1613 = vrot.slane %v1611, 5
      %v1614 = vor.u32 %v1610, %v1613
      %v1615 = vrot.slane %v1614, 4
      %v1617 = vshll.u32 %v1219, 16
      %v1619 = vrot.slane %v1617, 5
      %v1620 = vsel %vm1246, %v1615, %v1619
      %v1621 = vshrl.u32 %v1219, 16
      %v1623 = vrot.slane %v1621, 4
      %v1624 = vor.u32 %v1623, %v1619
      %v1625 = vrot.slane %v1624, 4
      %v1627 = vshll.u32 %v1243, 16
      %v1629 = vrot.slane %v1627, 5
      %v1630 = vsel %vm1246, %v1625, %v1629
      %v1631 = vld [vmem:[%s2 + $0x20] sm:$0xf]
      %v1632 = vld [vmem:[%s2 + $0x24] sm:$0xf]
      %v1633 = vld [vmem:[%s2 + $0x28] sm:$0xf]
      %v1634 = vld [vmem:[%s2 + $0x2c] sm:$0xf]
      %v1635 = vld [vmem:[%s2 + $0x30] sm:$0xf]
      %v1636 = vld [vmem:[%s2 + $0x34] sm:$0xf]
      %v1637 = vld [vmem:[%s2 + $0x38] sm:$0xf]
      %v1638 = vld [vmem:[%s2 + $0x3c] sm:$0xf]
      %v1639 = vunpack.c.l.b16 %v1260
      %v1640 = vunpack.c.l.b16 %v1270
      %v1641 = vunpack.c.l.b16 %v1284
      %v1642 = vunpack.c.l.b16 %v1294
      %v1643 = vunpack.c.l.b16 %v1308
      %v1644 = vunpack.c.l.b16 %v1318
      %v1645 = vunpack.c.l.b16 %v1332
      %v1646 = vunpack.c.l.b16 %v1342
      %v1647 = vunpack.c.l.b16 %v1356
      %v1648 = vunpack.c.l.b16 %v1366
      %v1649 = vunpack.c.l.b16 %v1380
      %v1650 = vunpack.c.l.b16 %v1390
      %v1651 = vunpack.c.l.b16 %v1404
      %v1652 = vunpack.c.l.b16 %v1414
      %v1653 = vunpack.c.l.b16 %v1428
      %v1654 = vunpack.c.l.b16 %v1438
      %v1655 = vunpack.c.l.b16 %v1452
      %v1656 = vunpack.c.l.b16 %v1462
      %v1657 = vunpack.c.l.b16 %v1476
      %v1658 = vunpack.c.l.b16 %v1486
      %v1659 = vunpack.c.l.b16 %v1500
      %v1660 = vunpack.c.l.b16 %v1510
      %v1661 = vunpack.c.l.b16 %v1524
      %v1662 = vunpack.c.l.b16 %v1534
      %v1663 = vunpack.c.l.b16 %v1548
      %v1664 = vunpack.c.l.b16 %v1558
      %v1665 = vunpack.c.l.b16 %v1572
      %v1666 = vunpack.c.l.b16 %v1582
      %v1667 = vunpack.c.l.b16 %v1596
      %v1668 = vunpack.c.l.b16 %v1606
      %v1669 = vunpack.c.l.b16 %v1620
      %v1670 = vunpack.c.l.b16 %v1630
      %v1671 = vpack.c.b16 %v1640, %v1639
      %v1672 = vpack.c.b16 %v1642, %v1641
      %v1673 = vpack.c.b16 %v1644, %v1643
      %v1674 = vpack.c.b16 %v1646, %v1645
      %v1675 = vpack.c.b16 %v1648, %v1647
      %v1676 = vpack.c.b16 %v1650, %v1649
      %v1677 = vpack.c.b16 %v1652, %v1651
      %v1678 = vpack.c.b16 %v1654, %v1653
      %v1679 = vpack.c.b16 %v1656, %v1655
      %v1680 = vpack.c.b16 %v1658, %v1657
      %v1681 = vpack.c.b16 %v1660, %v1659
      %v1682 = vpack.c.b16 %v1662, %v1661
      %v1683 = vpack.c.b16 %v1664, %v1663
      %v1684 = vpack.c.b16 %v1666, %v1665
      %v1685 = vpack.c.b16 %v1668, %v1667
      %v1686 = vpack.c.b16 %v1670, %v1669
      %v1695 = vunpack.c.l.b16 %v1631
      %v1696 = vunpack.c.l.b16 %v1632
      %v1697 = vunpack.c.l.b16 %v1633
      %v1698 = vunpack.c.l.b16 %v1634
      %v1699 = vunpack.c.l.b16 %v1635
      %v1700 = vunpack.c.l.b16 %v1636
      %v1701 = vunpack.c.l.b16 %v1637
      %v1702 = vunpack.c.l.b16 %v1638
      %v1703 = vpack.c.b16 %v1696, %v1695
      %v1704 = vpack.c.b16 %v1698, %v1697
      %v1705 = vpack.c.b16 %v1700, %v1699
      %v1706 = vpack.c.b16 %v1702, %v1701
      %vm1711 = vcmask 523264
      %v1713 = vsel %vm1711, %v1671, 0
      %v1716 = vsel %vm1711, %v1672, 0
      %v1719 = vsel %vm1711, %v1673, 0
      %v1722 = vsel %vm1711, %v1674, 0
      %v1725 = vsel %vm1711, %v1675, 0
      %v1728 = vsel %vm1711, %v1676, 0
      %v1731 = vsel %vm1711, %v1677, 0
      %v1734 = vsel %vm1711, %v1678, 0
      %v1737 = vsel %vm1711, %v1679, 0
      %v1740 = vsel %vm1711, %v1680, 0
      %v1743 = vsel %vm1711, %v1681, 0
      %v1746 = vsel %vm1711, %v1682, 0
      %v1749 = vsel %vm1711, %v1683, 0
      %v1752 = vsel %vm1711, %v1684, 0
      %v1755 = vsel %vm1711, %v1685, 0
      %v1758 = vsel %vm1711, %v1686, 0
      %1760 = vmatpush.bf16.msra.mxu0 0
      %1761 = vmatpush.bf16.msra.mxu0 0
      %1762 = vmatpush.bf16.msra.mxu0 0
      %1763 = vmatpush.bf16.msra.mxu0 0
      %1764 = vmatpush.bf16.msra.mxu0 %v1706
      %1765 = vmatpush.bf16.msra.mxu0 %v1705
      %1766 = vmatpush.bf16.msra.mxu0 %v1704
      %1767 = vmatpush.bf16.msra.mxu0 %v1703
      %1768 = vmatmul.bf16.gmra.mxu0 %v1713
      %v1769 = vpop.f32.mrf.mxu0
      %v1770 = vadd.f32 0.0, %v1769
      %v1771 = vpop.f32.mrf.mxu0
      %v1772 = vadd.f32 0.0, %v1771
      %1773 = vmatmul.bf16.gmra.mxu0 %v1716
      %v1774 = vpop.f32.mrf.mxu0
      %v1775 = vadd.f32 0.0, %v1774
      %v1776 = vpop.f32.mrf.mxu0
      %v1777 = vadd.f32 0.0, %v1776
      %1778 = vmatmul.bf16.gmra.mxu0 %v1719
      %v1779 = vpop.f32.mrf.mxu0
      %v1780 = vadd.f32 0.0, %v1779
      %v1781 = vpop.f32.mrf.mxu0
      %v1782 = vadd.f32 0.0, %v1781
      %1783 = vmatmul.bf16.gmra.mxu0 %v1722
      %v1784 = vpop.f32.mrf.mxu0
      %v1785 = vadd.f32 0.0, %v1784
      %v1786 = vpop.f32.mrf.mxu0
      %v1787 = vadd.f32 0.0, %v1786
      %1788 = vmatmul.bf16.gmra.mxu0 %v1725
      %v1789 = vpop.f32.mrf.mxu0
      %v1790 = vadd.f32 0.0, %v1789
      %v1791 = vpop.f32.mrf.mxu0
      %v1792 = vadd.f32 0.0, %v1791
      %1793 = vmatmul.bf16.gmra.mxu0 %v1728
      %v1794 = vpop.f32.mrf.mxu0
      %v1795 = vadd.f32 0.0, %v1794
      %v1796 = vpop.f32.mrf.mxu0
      %v1797 = vadd.f32 0.0, %v1796
      %1798 = vmatmul.bf16.gmra.mxu0 %v1731
      %v1799 = vpop.f32.mrf.mxu0
      %v1800 = vadd.f32 0.0, %v1799
      %v1801 = vpop.f32.mrf.mxu0
      %v1802 = vadd.f32 0.0, %v1801
      %1803 = vmatmul.bf16.gmra.mxu0 %v1734
      %v1804 = vpop.f32.mrf.mxu0
      %v1805 = vadd.f32 0.0, %v1804
      %v1806 = vpop.f32.mrf.mxu0
      %v1807 = vadd.f32 0.0, %v1806
      %1808 = vmatmul.bf16.gmra.mxu0 %v1737
      %v1809 = vpop.f32.mrf.mxu0
      %v1810 = vadd.f32 0.0, %v1809
      %v1811 = vpop.f32.mrf.mxu0
      %v1812 = vadd.f32 0.0, %v1811
      %1813 = vmatmul.bf16.gmra.mxu0 %v1740
      %v1814 = vpop.f32.mrf.mxu0
      %v1815 = vadd.f32 0.0, %v1814
      %v1816 = vpop.f32.mrf.mxu0
      %v1817 = vadd.f32 0.0, %v1816
      %1818 = vmatmul.bf16.gmra.mxu0 %v1743
      %v1819 = vpop.f32.mrf.mxu0
      %v1820 = vadd.f32 0.0, %v1819
      %v1821 = vpop.f32.mrf.mxu0
      %v1822 = vadd.f32 0.0, %v1821
      %1823 = vmatmul.bf16.gmra.mxu0 %v1746
      %v1824 = vpop.f32.mrf.mxu0
      %v1825 = vadd.f32 0.0, %v1824
      %v1826 = vpop.f32.mrf.mxu0
      %v1827 = vadd.f32 0.0, %v1826
      %1828 = vmatmul.bf16.gmra.mxu0 %v1749
      %v1829 = vpop.f32.mrf.mxu0
      %v1830 = vadd.f32 0.0, %v1829
      %v1831 = vpop.f32.mrf.mxu0
      %v1832 = vadd.f32 0.0, %v1831
      %1833 = vmatmul.bf16.gmra.mxu0 %v1752
      %v1834 = vpop.f32.mrf.mxu0
      %v1835 = vadd.f32 0.0, %v1834
      %v1836 = vpop.f32.mrf.mxu0
      %v1837 = vadd.f32 0.0, %v1836
      %1838 = vmatmul.bf16.gmra.mxu0 %v1755
      %v1839 = vpop.f32.mrf.mxu0
      %v1840 = vadd.f32 0.0, %v1839
      %v1841 = vpop.f32.mrf.mxu0
      %v1842 = vadd.f32 0.0, %v1841
      %1843 = vmatmul.bf16.gmra.mxu0 %v1758
      %v1844 = vpop.f32.mrf.mxu0
      %v1845 = vadd.f32 0.0, %v1844
      %v1846 = vpop.f32.mrf.mxu0
      %v1847 = vadd.f32 0.0, %v1846
      %1848 = vdwg.mxu0
      %v1881 = vunpack.c.l.b16 %v1188
      %v1882 = vunpack.c.l.b16 %v1189
      %v1883 = vunpack.c.l.b16 %v1190
      %v1884 = vunpack.c.l.b16 %v1191
      %v1885 = vunpack.c.l.b16 %v1192
      %v1886 = vunpack.c.l.b16 %v1193
      %v1887 = vunpack.c.l.b16 %v1194
      %v1888 = vunpack.c.l.b16 %v1195
      %v1889 = vunpack.c.l.b16 %v1196
      %v1890 = vunpack.c.l.b16 %v1197
      %v1891 = vunpack.c.l.b16 %v1198
      %v1892 = vunpack.c.l.b16 %v1199
      %v1893 = vunpack.c.l.b16 %v1200
      %v1894 = vunpack.c.l.b16 %v1201
      %v1895 = vunpack.c.l.b16 %v1202
      %v1896 = vunpack.c.l.b16 %v1203
      %v1897 = vunpack.c.l.b16 %v1204
      %v1898 = vunpack.c.l.b16 %v1205
      %v1899 = vunpack.c.l.b16 %v1206
      %v1900 = vunpack.c.l.b16 %v1207
      %v1901 = vunpack.c.l.b16 %v1208
      %v1902 = vunpack.c.l.b16 %v1209
      %v1903 = vunpack.c.l.b16 %v1210
      %v1904 = vunpack.c.l.b16 %v1211
      %v1905 = vunpack.c.l.b16 %v1212
      %v1906 = vunpack.c.l.b16 %v1213
      %v1907 = vunpack.c.l.b16 %v1214
      %v1908 = vunpack.c.l.b16 %v1215
      %v1909 = vunpack.c.l.b16 %v1216
      %v1910 = vunpack.c.l.b16 %v1217
      %v1911 = vunpack.c.l.b16 %v1218
      %v1912 = vunpack.c.l.b16 %v1219
      %v1913 = vpack.c.b16 %v1882, %v1881
      %v1914 = vpack.c.b16 %v1884, %v1883
      %v1915 = vpack.c.b16 %v1886, %v1885
      %v1916 = vpack.c.b16 %v1888, %v1887
      %v1917 = vpack.c.b16 %v1890, %v1889
      %v1918 = vpack.c.b16 %v1892, %v1891
      %v1919 = vpack.c.b16 %v1894, %v1893
      %v1920 = vpack.c.b16 %v1896, %v1895
      %v1921 = vpack.c.b16 %v1898, %v1897
      %v1922 = vpack.c.b16 %v1900, %v1899
      %v1923 = vpack.c.b16 %v1902, %v1901
      %v1924 = vpack.c.b16 %v1904, %v1903
      %v1925 = vpack.c.b16 %v1906, %v1905
      %v1926 = vpack.c.b16 %v1908, %v1907
      %v1927 = vpack.c.b16 %v1910, %v1909
      %v1928 = vpack.c.b16 %v1912, %v1911
      %v1937 = vunpack.c.l.b16 %v1220
      %v1938 = vunpack.c.l.b16 %v1221
      %v1939 = vunpack.c.l.b16 %v1222
      %v1940 = vunpack.c.l.b16 %v1223
      %v1941 = vunpack.c.l.b16 %v1224
      %v1942 = vunpack.c.l.b16 %v1225
      %v1943 = vunpack.c.l.b16 %v1226
      %v1944 = vunpack.c.l.b16 %v1227
      %v1945 = vpack.c.b16 %v1938, %v1937
      %v1946 = vpack.c.b16 %v1940, %v1939
      %v1947 = vpack.c.b16 %v1942, %v1941
      %v1948 = vpack.c.b16 %v1944, %v1943
      %v1954 = vsel %vm1711, %v1913, 0
      %v1957 = vsel %vm1711, %v1914, 0
      %v1960 = vsel %vm1711, %v1915, 0
      %v1963 = vsel %vm1711, %v1916, 0
      %v1966 = vsel %vm1711, %v1917, 0
      %v1969 = vsel %vm1711, %v1918, 0
      %v1972 = vsel %vm1711, %v1919, 0
      %v1975 = vsel %vm1711, %v1920, 0
      %v1978 = vsel %vm1711, %v1921, 0
      %v1981 = vsel %vm1711, %v1922, 0
      %v1984 = vsel %vm1711, %v1923, 0
      %v1987 = vsel %vm1711, %v1924, 0
      %v1990 = vsel %vm1711, %v1925, 0
      %v1993 = vsel %vm1711, %v1926, 0
      %v1996 = vsel %vm1711, %v1927, 0
      %v1999 = vsel %vm1711, %v1928, 0
      %2001 = vmatpush.bf16.msra.mxu0 0
      %2002 = vmatpush.bf16.msra.mxu0 0
      %2003 = vmatpush.bf16.msra.mxu0 0
      %2004 = vmatpush.bf16.msra.mxu0 0
      %2005 = vmatpush.bf16.msra.mxu0 %v1948
      %2006 = vmatpush.bf16.msra.mxu0 %v1947
      %2007 = vmatpush.bf16.msra.mxu0 %v1946
      %2008 = vmatpush.bf16.msra.mxu0 %v1945
      %2009 = vmatmul.bf16.gmra.mxu0 %v1954
      %v2010 = vpop.f32.mrf.mxu0
      %v2011 = vadd.f32 %v1770, %v2010
      %v2012 = vpop.f32.mrf.mxu0
      %v2013 = vadd.f32 %v1772, %v2012
      %2014 = vmatmul.bf16.gmra.mxu0 %v1957
      %v2015 = vpop.f32.mrf.mxu0
      %v2016 = vadd.f32 %v1775, %v2015
      %v2017 = vpop.f32.mrf.mxu0
      %v2018 = vadd.f32 %v1777, %v2017
      %2019 = vmatmul.bf16.gmra.mxu0 %v1960
      %v2020 = vpop.f32.mrf.mxu0
      %v2021 = vadd.f32 %v1780, %v2020
      %v2022 = vpop.f32.mrf.mxu0
      %v2023 = vadd.f32 %v1782, %v2022
      %2024 = vmatmul.bf16.gmra.mxu0 %v1963
      %v2025 = vpop.f32.mrf.mxu0
      %v2026 = vadd.f32 %v1785, %v2025
      %v2027 = vpop.f32.mrf.mxu0
      %v2028 = vadd.f32 %v1787, %v2027
      %2029 = vmatmul.bf16.gmra.mxu0 %v1966
      %v2030 = vpop.f32.mrf.mxu0
      %v2031 = vadd.f32 %v1790, %v2030
      %v2032 = vpop.f32.mrf.mxu0
      %v2033 = vadd.f32 %v1792, %v2032
      %2034 = vmatmul.bf16.gmra.mxu0 %v1969
      %v2035 = vpop.f32.mrf.mxu0
      %v2036 = vadd.f32 %v1795, %v2035
      %v2037 = vpop.f32.mrf.mxu0
      %v2038 = vadd.f32 %v1797, %v2037
      %2039 = vmatmul.bf16.gmra.mxu0 %v1972
      %v2040 = vpop.f32.mrf.mxu0
      %v2041 = vadd.f32 %v1800, %v2040
      %v2042 = vpop.f32.mrf.mxu0
      %v2043 = vadd.f32 %v1802, %v2042
      %2044 = vmatmul.bf16.gmra.mxu0 %v1975
      %v2045 = vpop.f32.mrf.mxu0
      %v2046 = vadd.f32 %v1805, %v2045
      %v2047 = vpop.f32.mrf.mxu0
      %v2048 = vadd.f32 %v1807, %v2047
      %2049 = vmatmul.bf16.gmra.mxu0 %v1978
      %v2050 = vpop.f32.mrf.mxu0
      %v2051 = vadd.f32 %v1810, %v2050
      %v2052 = vpop.f32.mrf.mxu0
      %v2053 = vadd.f32 %v1812, %v2052
      %2054 = vmatmul.bf16.gmra.mxu0 %v1981
      %v2055 = vpop.f32.mrf.mxu0
      %v2056 = vadd.f32 %v1815, %v2055
      %v2057 = vpop.f32.mrf.mxu0
      %v2058 = vadd.f32 %v1817, %v2057
      %2059 = vmatmul.bf16.gmra.mxu0 %v1984
      %v2060 = vpop.f32.mrf.mxu0
      %v2061 = vadd.f32 %v1820, %v2060
      %v2062 = vpop.f32.mrf.mxu0
      %v2063 = vadd.f32 %v1822, %v2062
      %2064 = vmatmul.bf16.gmra.mxu0 %v1987
      %v2065 = vpop.f32.mrf.mxu0
      %v2066 = vadd.f32 %v1825, %v2065
      %v2067 = vpop.f32.mrf.mxu0
      %v2068 = vadd.f32 %v1827, %v2067
      %2069 = vmatmul.bf16.gmra.mxu0 %v1990
      %v2070 = vpop.f32.mrf.mxu0
      %v2071 = vadd.f32 %v1830, %v2070
      %v2072 = vpop.f32.mrf.mxu0
      %v2073 = vadd.f32 %v1832, %v2072
      %2074 = vmatmul.bf16.gmra.mxu0 %v1993
      %v2075 = vpop.f32.mrf.mxu0
      %v2076 = vadd.f32 %v1835, %v2075
      %v2077 = vpop.f32.mrf.mxu0
      %v2078 = vadd.f32 %v1837, %v2077
      %2079 = vmatmul.bf16.gmra.mxu0 %v1996
      %v2080 = vpop.f32.mrf.mxu0
      %v2081 = vadd.f32 %v1840, %v2080
      %v2082 = vpop.f32.mrf.mxu0
      %v2083 = vadd.f32 %v1842, %v2082
      %2084 = vmatmul.bf16.gmra.mxu0 %v1999
      %v2085 = vpop.f32.mrf.mxu0
      %v2086 = vadd.f32 %v1845, %v2085
      %v2087 = vpop.f32.mrf.mxu0
      %v2088 = vadd.f32 %v1847, %v2087
      %2089 = vdwg.mxu0
      %v2090 = vld [vmem:[#allocation2] sm:$0xe]
      %v2091 = vld [vmem:[#allocation2 + $0xc] sm:$0xe]
      %v2092 = vld [vmem:[#allocation2 + $0x18] sm:$0xe]
      %v2093 = vld [vmem:[#allocation2 + $0x24] sm:$0xe]
      %v2094 = vld [vmem:[#allocation2 + $0x30] sm:$0xe]
      %v2095 = vld [vmem:[#allocation2 + $0x3c] sm:$0xe]
      %v2096 = vld [vmem:[#allocation2 + $0x48] sm:$0xe]
      %v2097 = vld [vmem:[#allocation2 + $0x54] sm:$0xe]
      %v2098 = vld [vmem:[#allocation2 + $0x60] sm:$0xe]
      %v2099 = vld [vmem:[#allocation2 + $0x6c] sm:$0xe]
      %v2100 = vld [vmem:[#allocation2 + $0x78] sm:$0xe]
      %v2101 = vld [vmem:[#allocation2 + $0x84] sm:$0xe]
      %v2102 = vld [vmem:[#allocation2 + $0x90] sm:$0xe]
      %v2103 = vld [vmem:[#allocation2 + $0x9c] sm:$0xe]
      %v2104 = vld [vmem:[#allocation2 + $0xa8] sm:$0xe]
      %v2105 = vld [vmem:[#allocation2 + $0xb4] sm:$0xe]
      %vm2138 = vcmask 1042432
      %vm2139 = vcmask 1046532
      %vm2140 = vmor %vm2138, %vm2139
      %v2141 = vrot.slane %v2090, 5
      %v2142 = vrot.slane %v2141, 4
      %v2143 = vrot.slane %v1189, 5
      %v2144 = vsel %vm2140, %v2142, %v2143
      %v2145 = vrot.slane %v2143, 4
      %v2146 = vrot.slane %v1228, 5
      %v2147 = vsel %vm2140, %v2145, %v2146
      %v2148 = vrot.slane %v2091, 5
      %v2149 = vrot.slane %v2148, 4
      %v2150 = vrot.slane %v1191, 5
      %v2151 = vsel %vm2140, %v2149, %v2150
      %v2152 = vrot.slane %v2150, 4
      %v2153 = vrot.slane %v1229, 5
      %v2154 = vsel %vm2140, %v2152, %v2153
      %v2155 = vrot.slane %v2092, 5
      %v2156 = vrot.slane %v2155, 4
      %v2157 = vrot.slane %v1193, 5
      %v2158 = vsel %vm2140, %v2156, %v2157
      %v2159 = vrot.slane %v2157, 4
      %v2160 = vrot.slane %v1230, 5
      %v2161 = vsel %vm2140, %v2159, %v2160
      %v2162 = vrot.slane %v2093, 5
      %v2163 = vrot.slane %v2162, 4
      %v2164 = vrot.slane %v1195, 5
      %v2165 = vsel %vm2140, %v2163, %v2164
      %v2166 = vrot.slane %v2164, 4
      %v2167 = vrot.slane %v1231, 5
      %v2168 = vsel %vm2140, %v2166, %v2167
      %v2169 = vrot.slane %v2094, 5
      %v2170 = vrot.slane %v2169, 4
      %v2171 = vrot.slane %v1197, 5
      %v2172 = vsel %vm2140, %v2170, %v2171
      %v2173 = vrot.slane %v2171, 4
      %v2174 = vrot.slane %v1232, 5
      %v2175 = vsel %vm2140, %v2173, %v2174
      %v2176 = vrot.slane %v2095, 5
      %v2177 = vrot.slane %v2176, 4
      %v2178 = vrot.slane %v1199, 5
      %v2179 = vsel %vm2140, %v2177, %v2178
      %v2180 = vrot.slane %v2178, 4
      %v2181 = vrot.slane %v1233, 5
      %v2182 = vsel %vm2140, %v2180, %v2181
      %v2183 = vrot.slane %v2096, 5
      %v2184 = vrot.slane %v2183, 4
      %v2185 = vrot.slane %v1201, 5
      %v2186 = vsel %vm2140, %v2184, %v2185
      %v2187 = vrot.slane %v2185, 4
      %v2188 = vrot.slane %v1234, 5
      %v2189 = vsel %vm2140, %v2187, %v2188
      %v2190 = vrot.slane %v2097, 5
      %v2191 = vrot.slane %v2190, 4
      %v2192 = vrot.slane %v1203, 5
      %v2193 = vsel %vm2140, %v2191, %v2192
      %v2194 = vrot.slane %v2192, 4
      %v2195 = vrot.slane %v1235, 5
      %v2196 = vsel %vm2140, %v2194, %v2195
      %v2197 = vrot.slane %v2098, 5
      %v2198 = vrot.slane %v2197, 4
      %v2199 = vrot.slane %v1205, 5
      %v2200 = vsel %vm2140, %v2198, %v2199
      %v2201 = vrot.slane %v2199, 4
      %v2202 = vrot.slane %v1236, 5
      %v2203 = vsel %vm2140, %v2201, %v2202
      %v2204 = vrot.slane %v2099, 5
      %v2205 = vrot.slane %v2204, 4
      %v2206 = vrot.slane %v1207, 5
      %v2207 = vsel %vm2140, %v2205, %v2206
      %v2208 = vrot.slane %v2206, 4
      %v2209 = vrot.slane %v1237, 5
      %v2210 = vsel %vm2140, %v2208, %v2209
      %v2211 = vrot.slane %v2100, 5
      %v2212 = vrot.slane %v2211, 4
      %v2213 = vrot.slane %v1209, 5
      %v2214 = vsel %vm2140, %v2212, %v2213
      %v2215 = vrot.slane %v2213, 4
      %v2216 = vrot.slane %v1238, 5
      %v2217 = vsel %vm2140, %v2215, %v2216
      %v2218 = vrot.slane %v2101, 5
      %v2219 = vrot.slane %v2218, 4
      %v2220 = vrot.slane %v1211, 5
      %v2221 = vsel %vm2140, %v2219, %v2220
      %v2222 = vrot.slane %v2220, 4
      %v2223 = vrot.slane %v1239, 5
      %v2224 = vsel %vm2140, %v2222, %v2223
      %v2225 = vrot.slane %v2102, 5
      %v2226 = vrot.slane %v2225, 4
      %v2227 = vrot.slane %v1213, 5
      %v2228 = vsel %vm2140, %v2226, %v2227
      %v2229 = vrot.slane %v2227, 4
      %v2230 = vrot.slane %v1240, 5
      %v2231 = vsel %vm2140, %v2229, %v2230
      %v2232 = vrot.slane %v2103, 5
      %v2233 = vrot.slane %v2232, 4
      %v2234 = vrot.slane %v1215, 5
      %v2235 = vsel %vm2140, %v2233, %v2234
      %v2236 = vrot.slane %v2234, 4
      %v2237 = vrot.slane %v1241, 5
      %v2238 = vsel %vm2140, %v2236, %v2237
      %v2239 = vrot.slane %v2104, 5
      %v2240 = vrot.slane %v2239, 4
      %v2241 = vrot.slane %v1217, 5
      %v2242 = vsel %vm2140, %v2240, %v2241
      %v2243 = vrot.slane %v2241, 4
      %v2244 = vrot.slane %v1242, 5
      %v2245 = vsel %vm2140, %v2243, %v2244
      %v2246 = vrot.slane %v2105, 5
      %v2247 = vrot.slane %v2246, 4
      %v2248 = vrot.slane %v1219, 5
      %v2249 = vsel %vm2140, %v2247, %v2248
      %v2250 = vrot.slane %v2248, 4
      %v2251 = vrot.slane %v1243, 5
      %v2252 = vsel %vm2140, %v2250, %v2251
      %v2253 = vld [vmem:[%s2 + $0x40] sm:$0xf]
      %v2254 = vld [vmem:[%s2 + $0x44] sm:$0xf]
      %v2255 = vld [vmem:[%s2 + $0x48] sm:$0xf]
      %v2256 = vld [vmem:[%s2 + $0x4c] sm:$0xf]
      %v2257 = vld [vmem:[%s2 + $0x50] sm:$0xf]
      %v2258 = vld [vmem:[%s2 + $0x54] sm:$0xf]
      %v2259 = vld [vmem:[%s2 + $0x58] sm:$0xf]
      %v2260 = vld [vmem:[%s2 + $0x5c] sm:$0xf]
      %v2261 = vunpack.c.l.b16 %v2144
      %v2262 = vunpack.c.l.b16 %v2147
      %v2263 = vunpack.c.l.b16 %v2151
      %v2264 = vunpack.c.l.b16 %v2154
      %v2265 = vunpack.c.l.b16 %v2158
      %v2266 = vunpack.c.l.b16 %v2161
      %v2267 = vunpack.c.l.b16 %v2165
      %v2268 = vunpack.c.l.b16 %v2168
      %v2269 = vunpack.c.l.b16 %v2172
      %v2270 = vunpack.c.l.b16 %v2175
      %v2271 = vunpack.c.l.b16 %v2179
      %v2272 = vunpack.c.l.b16 %v2182
      %v2273 = vunpack.c.l.b16 %v2186
      %v2274 = vunpack.c.l.b16 %v2189
      %v2275 = vunpack.c.l.b16 %v2193
      %v2276 = vunpack.c.l.b16 %v2196
      %v2277 = vunpack.c.l.b16 %v2200
      %v2278 = vunpack.c.l.b16 %v2203
      %v2279 = vunpack.c.l.b16 %v2207
      %v2280 = vunpack.c.l.b16 %v2210
      %v2281 = vunpack.c.l.b16 %v2214
      %v2282 = vunpack.c.l.b16 %v2217
      %v2283 = vunpack.c.l.b16 %v2221
      %v2284 = vunpack.c.l.b16 %v2224
      %v2285 = vunpack.c.l.b16 %v2228
      %v2286 = vunpack.c.l.b16 %v2231
      %v2287 = vunpack.c.l.b16 %v2235
      %v2288 = vunpack.c.l.b16 %v2238
      %v2289 = vunpack.c.l.b16 %v2242
      %v2290 = vunpack.c.l.b16 %v2245
      %v2291 = vunpack.c.l.b16 %v2249
      %v2292 = vunpack.c.l.b16 %v2252
      %v2293 = vpack.c.b16 %v2262, %v2261
      %v2294 = vpack.c.b16 %v2264, %v2263
      %v2295 = vpack.c.b16 %v2266, %v2265
      %v2296 = vpack.c.b16 %v2268, %v2267
      %v2297 = vpack.c.b16 %v2270, %v2269
      %v2298 = vpack.c.b16 %v2272, %v2271
      %v2299 = vpack.c.b16 %v2274, %v2273
      %v2300 = vpack.c.b16 %v2276, %v2275
      %v2301 = vpack.c.b16 %v2278, %v2277
      %v2302 = vpack.c.b16 %v2280, %v2279
      %v2303 = vpack.c.b16 %v2282, %v2281
      %v2304 = vpack.c.b16 %v2284, %v2283
      %v2305 = vpack.c.b16 %v2286, %v2285
      %v2306 = vpack.c.b16 %v2288, %v2287
      %v2307 = vpack.c.b16 %v2290, %v2289
      %v2308 = vpack.c.b16 %v2292, %v2291
      %v2317 = vunpack.c.l.b16 %v2253
      %v2318 = vunpack.c.l.b16 %v2254
      %v2319 = vunpack.c.l.b16 %v2255
      %v2320 = vunpack.c.l.b16 %v2256
      %v2321 = vunpack.c.l.b16 %v2257
      %v2322 = vunpack.c.l.b16 %v2258
      %v2323 = vunpack.c.l.b16 %v2259
      %v2324 = vunpack.c.l.b16 %v2260
      %v2325 = vpack.c.b16 %v2318, %v2317
      %v2326 = vpack.c.b16 %v2320, %v2319
      %v2327 = vpack.c.b16 %v2322, %v2321
      %v2328 = vpack.c.b16 %v2324, %v2323
      %v2334 = vsel %vm1711, %v2293, 0
      %v2337 = vsel %vm1711, %v2294, 0
      %v2340 = vsel %vm1711, %v2295, 0
      %v2343 = vsel %vm1711, %v2296, 0
      %v2346 = vsel %vm1711, %v2297, 0
      %v2349 = vsel %vm1711, %v2298, 0
      %v2352 = vsel %vm1711, %v2299, 0
      %v2355 = vsel %vm1711, %v2300, 0
      %v2358 = vsel %vm1711, %v2301, 0
      %v2361 = vsel %vm1711, %v2302, 0
      %v2364 = vsel %vm1711, %v2303, 0
      %v2367 = vsel %vm1711, %v2304, 0
      %v2370 = vsel %vm1711, %v2305, 0
      %v2373 = vsel %vm1711, %v2306, 0
      %v2376 = vsel %vm1711, %v2307, 0
      %v2379 = vsel %vm1711, %v2308, 0
      %2381 = vmatpush.bf16.msra.mxu0 0
      %2382 = vmatpush.bf16.msra.mxu0 0
      %2383 = vmatpush.bf16.msra.mxu0 0
      %2384 = vmatpush.bf16.msra.mxu0 0
      %2385 = vmatpush.bf16.msra.mxu0 %v2328
      %2386 = vmatpush.bf16.msra.mxu0 %v2327
      %2387 = vmatpush.bf16.msra.mxu0 %v2326
      %2388 = vmatpush.bf16.msra.mxu0 %v2325
      %2389 = vmatmul.bf16.gmra.mxu0 %v2334
      %v2390 = vpop.f32.mrf.mxu0
      %v2391 = vadd.f32 0.0, %v2390
      %v2392 = vpop.f32.mrf.mxu0
      %v2393 = vadd.f32 0.0, %v2392
      %2394 = vmatmul.bf16.gmra.mxu0 %v2337
      %v2395 = vpop.f32.mrf.mxu0
      %v2396 = vadd.f32 0.0, %v2395
      %v2397 = vpop.f32.mrf.mxu0
      %v2398 = vadd.f32 0.0, %v2397
      %2399 = vmatmul.bf16.gmra.mxu0 %v2340
      %v2400 = vpop.f32.mrf.mxu0
      %v2401 = vadd.f32 0.0, %v2400
      %v2402 = vpop.f32.mrf.mxu0
      %v2403 = vadd.f32 0.0, %v2402
      %2404 = vmatmul.bf16.gmra.mxu0 %v2343
      %v2405 = vpop.f32.mrf.mxu0
      %v2406 = vadd.f32 0.0, %v2405
      %v2407 = vpop.f32.mrf.mxu0
      %v2408 = vadd.f32 0.0, %v2407
      %2409 = vmatmul.bf16.gmra.mxu0 %v2346
      %v2410 = vpop.f32.mrf.mxu0
      %v2411 = vadd.f32 0.0, %v2410
      %v2412 = vpop.f32.mrf.mxu0
      %v2413 = vadd.f32 0.0, %v2412
      %2414 = vmatmul.bf16.gmra.mxu0 %v2349
      %v2415 = vpop.f32.mrf.mxu0
      %v2416 = vadd.f32 0.0, %v2415
      %v2417 = vpop.f32.mrf.mxu0
      %v2418 = vadd.f32 0.0, %v2417
      %2419 = vmatmul.bf16.gmra.mxu0 %v2352
      %v2420 = vpop.f32.mrf.mxu0
      %v2421 = vadd.f32 0.0, %v2420
      %v2422 = vpop.f32.mrf.mxu0
      %v2423 = vadd.f32 0.0, %v2422
      %2424 = vmatmul.bf16.gmra.mxu0 %v2355
      %v2425 = vpop.f32.mrf.mxu0
      %v2426 = vadd.f32 0.0, %v2425
      %v2427 = vpop.f32.mrf.mxu0
      %v2428 = vadd.f32 0.0, %v2427
      %2429 = vmatmul.bf16.gmra.mxu0 %v2358
      %v2430 = vpop.f32.mrf.mxu0
      %v2431 = vadd.f32 0.0, %v2430
      %v2432 = vpop.f32.mrf.mxu0
      %v2433 = vadd.f32 0.0, %v2432
      %2434 = vmatmul.bf16.gmra.mxu0 %v2361
      %v2435 = vpop.f32.mrf.mxu0
      %v2436 = vadd.f32 0.0, %v2435
      %v2437 = vpop.f32.mrf.mxu0
      %v2438 = vadd.f32 0.0, %v2437
      %2439 = vmatmul.bf16.gmra.mxu0 %v2364
      %v2440 = vpop.f32.mrf.mxu0
      %v2441 = vadd.f32 0.0, %v2440
      %v2442 = vpop.f32.mrf.mxu0
      %v2443 = vadd.f32 0.0, %v2442
      %2444 = vmatmul.bf16.gmra.mxu0 %v2367
      %v2445 = vpop.f32.mrf.mxu0
      %v2446 = vadd.f32 0.0, %v2445
      %v2447 = vpop.f32.mrf.mxu0
      %v2448 = vadd.f32 0.0, %v2447
      %2449 = vmatmul.bf16.gmra.mxu0 %v2370
      %v2450 = vpop.f32.mrf.mxu0
      %v2451 = vadd.f32 0.0, %v2450
      %v2452 = vpop.f32.mrf.mxu0
      %v2453 = vadd.f32 0.0, %v2452
      %2454 = vmatmul.bf16.gmra.mxu0 %v2373
      %v2455 = vpop.f32.mrf.mxu0
      %v2456 = vadd.f32 0.0, %v2455
      %v2457 = vpop.f32.mrf.mxu0
      %v2458 = vadd.f32 0.0, %v2457
      %2459 = vmatmul.bf16.gmra.mxu0 %v2376
      %v2460 = vpop.f32.mrf.mxu0
      %v2461 = vadd.f32 0.0, %v2460
      %v2462 = vpop.f32.mrf.mxu0
      %v2463 = vadd.f32 0.0, %v2462
      %2464 = vmatmul.bf16.gmra.mxu0 %v2379
      %v2465 = vpop.f32.mrf.mxu0
      %v2466 = vadd.f32 0.0, %v2465
      %v2467 = vpop.f32.mrf.mxu0
      %v2468 = vadd.f32 0.0, %v2467
      %2469 = vdwg.mxu0
      %v2470 = vadd.f32 %v2011, %v2391
      %v2471 = vadd.f32 %v2013, %v2393
      %v2472 = vadd.f32 %v2016, %v2396
      %v2473 = vadd.f32 %v2018, %v2398
      %v2474 = vadd.f32 %v2021, %v2401
      %v2475 = vadd.f32 %v2023, %v2403
      %v2476 = vadd.f32 %v2026, %v2406
      %v2477 = vadd.f32 %v2028, %v2408
      %v2478 = vadd.f32 %v2031, %v2411
      %v2479 = vadd.f32 %v2033, %v2413
      %v2480 = vadd.f32 %v2036, %v2416
      %v2481 = vadd.f32 %v2038, %v2418
      %v2482 = vadd.f32 %v2041, %v2421
      %v2483 = vadd.f32 %v2043, %v2423
      %v2484 = vadd.f32 %v2046, %v2426
      %v2485 = vadd.f32 %v2048, %v2428
      %v2486 = vadd.f32 %v2051, %v2431
      %v2487 = vadd.f32 %v2053, %v2433
      %v2488 = vadd.f32 %v2056, %v2436
      %v2489 = vadd.f32 %v2058, %v2438
      %v2490 = vadd.f32 %v2061, %v2441
      %v2491 = vadd.f32 %v2063, %v2443
      %v2492 = vadd.f32 %v2066, %v2446
      %v2493 = vadd.f32 %v2068, %v2448
      %v2494 = vadd.f32 %v2071, %v2451
      %v2495 = vadd.f32 %v2073, %v2453
      %v2496 = vadd.f32 %v2076, %v2456
      %v2497 = vadd.f32 %v2078, %v2458
      %v2498 = vadd.f32 %v2081, %v2461
      %v2499 = vadd.f32 %v2083, %v2463
      %v2500 = vadd.f32 %v2086, %v2466
      %v2501 = vadd.f32 %v2088, %v2468
      %v2502 = vld [vmem:[%s1073] sm:$0xf]
      %v2503 = vld [vmem:[%s1073 + $0x4] sm:$0xf]
      %v2504 = vld [vmem:[%s1073 + $0xc] sm:$0xf]
      %v2505 = vld [vmem:[%s1073 + $0x10] sm:$0xf]
      %v2506 = vld [vmem:[%s1073 + $0x18] sm:$0xf]
      %v2507 = vld [vmem:[%s1073 + $0x1c] sm:$0xf]
      %v2508 = vld [vmem:[%s1073 + $0x24] sm:$0xf]
      %v2509 = vld [vmem:[%s1073 + $0x28] sm:$0xf]
      %v2510 = vld [vmem:[%s1073 + $0x30] sm:$0xf]
      %v2511 = vld [vmem:[%s1073 + $0x34] sm:$0xf]
      %v2512 = vld [vmem:[%s1073 + $0x3c] sm:$0xf]
      %v2513 = vld [vmem:[%s1073 + $0x40] sm:$0xf]
      %v2514 = vld [vmem:[%s1073 + $0x48] sm:$0xf]
      %v2515 = vld [vmem:[%s1073 + $0x4c] sm:$0xf]
      %v2516 = vld [vmem:[%s1073 + $0x54] sm:$0xf]
      %v2517 = vld [vmem:[%s1073 + $0x58] sm:$0xf]
      %v2518 = vld [vmem:[%s1073 + $0x60] sm:$0xf]
      %v2519 = vld [vmem:[%s1073 + $0x64] sm:$0xf]
      %v2520 = vld [vmem:[%s1073 + $0x6c] sm:$0xf]
      %v2521 = vld [vmem:[%s1073 + $0x70] sm:$0xf]
      %v2522 = vld [vmem:[%s1073 + $0x78] sm:$0xf]
      %v2523 = vld [vmem:[%s1073 + $0x7c] sm:$0xf]
      %v2524 = vld [vmem:[%s1073 + $0x84] sm:$0xf]
      %v2525 = vld [vmem:[%s1073 + $0x88] sm:$0xf]
      %v2526 = vld [vmem:[%s1073 + $0x90] sm:$0xf]
      %v2527 = vld [vmem:[%s1073 + $0x94] sm:$0xf]
      %v2528 = vld [vmem:[%s1073 + $0x9c] sm:$0xf]
      %v2529 = vld [vmem:[%s1073 + $0xa0] sm:$0xf]
      %v2530 = vld [vmem:[%s1073 + $0xa8] sm:$0xf]
      %v2531 = vld [vmem:[%s1073 + $0xac] sm:$0xf]
      %v2532 = vld [vmem:[%s1073 + $0xb4] sm:$0xf]
      %v2533 = vld [vmem:[%s1073 + $0xb8] sm:$0xf]
      %v2534 = vld [vmem:[%s2 + $0x60] sm:$0xf]
      %v2535 = vld [vmem:[%s2 + $0x64] sm:$0xf]
      %v2536 = vld [vmem:[%s2 + $0x68] sm:$0xf]
      %v2537 = vld [vmem:[%s2 + $0x6c] sm:$0xf]
      %v2538 = vld [vmem:[%s2 + $0x70] sm:$0xf]
      %v2539 = vld [vmem:[%s2 + $0x74] sm:$0xf]
      %v2540 = vld [vmem:[%s2 + $0x78] sm:$0xf]
      %v2541 = vld [vmem:[%s2 + $0x7c] sm:$0xf]
      %v2574 = vunpack.c.l.b16 %v2502
      %v2575 = vunpack.c.l.b16 %v2503
      %v2576 = vunpack.c.l.b16 %v2504
      %v2577 = vunpack.c.l.b16 %v2505
      %v2578 = vunpack.c.l.b16 %v2506
      %v2579 = vunpack.c.l.b16 %v2507
      %v2580 = vunpack.c.l.b16 %v2508
      %v2581 = vunpack.c.l.b16 %v2509
      %v2582 = vunpack.c.l.b16 %v2510
      %v2583 = vunpack.c.l.b16 %v2511
      %v2584 = vunpack.c.l.b16 %v2512
      %v2585 = vunpack.c.l.b16 %v2513
      %v2586 = vunpack.c.l.b16 %v2514
      %v2587 = vunpack.c.l.b16 %v2515
      %v2588 = vunpack.c.l.b16 %v2516
      %v2589 = vunpack.c.l.b16 %v2517
      %v2590 = vunpack.c.l.b16 %v2518
      %v2591 = vunpack.c.l.b16 %v2519
      %v2592 = vunpack.c.l.b16 %v2520
      %v2593 = vunpack.c.l.b16 %v2521
      %v2594 = vunpack.c.l.b16 %v2522
      %v2595 = vunpack.c.l.b16 %v2523
      %v2596 = vunpack.c.l.b16 %v2524
      %v2597 = vunpack.c.l.b16 %v2525
      %v2598 = vunpack.c.l.b16 %v2526
      %v2599 = vunpack.c.l.b16 %v2527
      %v2600 = vunpack.c.l.b16 %v2528
      %v2601 = vunpack.c.l.b16 %v2529
      %v2602 = vunpack.c.l.b16 %v2530
      %v2603 = vunpack.c.l.b16 %v2531
      %v2604 = vunpack.c.l.b16 %v2532
      %v2605 = vunpack.c.l.b16 %v2533
      %v2606 = vpack.c.b16 %v2575, %v2574
      %v2607 = vpack.c.b16 %v2577, %v2576
      %v2608 = vpack.c.b16 %v2579, %v2578
      %v2609 = vpack.c.b16 %v2581, %v2580
      %v2610 = vpack.c.b16 %v2583, %v2582
      %v2611 = vpack.c.b16 %v2585, %v2584
      %v2612 = vpack.c.b16 %v2587, %v2586
      %v2613 = vpack.c.b16 %v2589, %v2588
      %v2614 = vpack.c.b16 %v2591, %v2590
      %v2615 = vpack.c.b16 %v2593, %v2592
      %v2616 = vpack.c.b16 %v2595, %v2594
      %v2617 = vpack.c.b16 %v2597, %v2596
      %v2618 = vpack.c.b16 %v2599, %v2598
      %v2619 = vpack.c.b16 %v2601, %v2600
      %v2620 = vpack.c.b16 %v2603, %v2602
      %v2621 = vpack.c.b16 %v2605, %v2604
      %v2630 = vunpack.c.l.b16 %v2534
      %v2631 = vunpack.c.l.b16 %v2535
      %v2632 = vunpack.c.l.b16 %v2536
      %v2633 = vunpack.c.l.b16 %v2537
      %v2634 = vunpack.c.l.b16 %v2538
      %v2635 = vunpack.c.l.b16 %v2539
      %v2636 = vunpack.c.l.b16 %v2540
      %v2637 = vunpack.c.l.b16 %v2541
      %v2638 = vpack.c.b16 %v2631, %v2630
      %v2639 = vpack.c.b16 %v2633, %v2632
      %v2640 = vpack.c.b16 %v2635, %v2634
      %v2641 = vpack.c.b16 %v2637, %v2636
      %v2647 = vsel %vm1711, %v2606, 0
      %v2650 = vsel %vm1711, %v2607, 0
      %v2653 = vsel %vm1711, %v2608, 0
      %v2656 = vsel %vm1711, %v2609, 0
      %v2659 = vsel %vm1711, %v2610, 0
      %v2662 = vsel %vm1711, %v2611, 0
      %v2665 = vsel %vm1711, %v2612, 0
      %v2668 = vsel %vm1711, %v2613, 0
      %v2671 = vsel %vm1711, %v2614, 0
      %v2674 = vsel %vm1711, %v2615, 0
      %v2677 = vsel %vm1711, %v2616, 0
      %v2680 = vsel %vm1711, %v2617, 0
      %v2683 = vsel %vm1711, %v2618, 0
      %v2686 = vsel %vm1711, %v2619, 0
      %v2689 = vsel %vm1711, %v2620, 0
      %v2692 = vsel %vm1711, %v2621, 0
      %2694 = vmatpush.bf16.msra.mxu0 0
      %2695 = vmatpush.bf16.msra.mxu0 0
      %2696 = vmatpush.bf16.msra.mxu0 0
      %2697 = vmatpush.bf16.msra.mxu0 0
      %2698 = vmatpush.bf16.msra.mxu0 %v2641
      %2699 = vmatpush.bf16.msra.mxu0 %v2640
      %2700 = vmatpush.bf16.msra.mxu0 %v2639
      %2701 = vmatpush.bf16.msra.mxu0 %v2638
      %2702 = vmatmul.bf16.gmra.mxu0 %v2647
      %v2703 = vpop.f32.mrf.mxu0
      %v2704 = vadd.f32 0.0, %v2703
      %v2705 = vpop.f32.mrf.mxu0
      %v2706 = vadd.f32 0.0, %v2705
      %2707 = vmatmul.bf16.gmra.mxu0 %v2650
      %v2708 = vpop.f32.mrf.mxu0
      %v2709 = vadd.f32 0.0, %v2708
      %v2710 = vpop.f32.mrf.mxu0
      %v2711 = vadd.f32 0.0, %v2710
      %2712 = vmatmul.bf16.gmra.mxu0 %v2653
      %v2713 = vpop.f32.mrf.mxu0
      %v2714 = vadd.f32 0.0, %v2713
      %v2715 = vpop.f32.mrf.mxu0
      %v2716 = vadd.f32 0.0, %v2715
      %2717 = vmatmul.bf16.gmra.mxu0 %v2656
      %v2718 = vpop.f32.mrf.mxu0
      %v2719 = vadd.f32 0.0, %v2718
      %v2720 = vpop.f32.mrf.mxu0
      %v2721 = vadd.f32 0.0, %v2720
      %2722 = vmatmul.bf16.gmra.mxu0 %v2659
      %v2723 = vpop.f32.mrf.mxu0
      %v2724 = vadd.f32 0.0, %v2723
      %v2725 = vpop.f32.mrf.mxu0
      %v2726 = vadd.f32 0.0, %v2725
      %2727 = vmatmul.bf16.gmra.mxu0 %v2662
      %v2728 = vpop.f32.mrf.mxu0
      %v2729 = vadd.f32 0.0, %v2728
      %v2730 = vpop.f32.mrf.mxu0
      %v2731 = vadd.f32 0.0, %v2730
      %2732 = vmatmul.bf16.gmra.mxu0 %v2665
      %v2733 = vpop.f32.mrf.mxu0
      %v2734 = vadd.f32 0.0, %v2733
      %v2735 = vpop.f32.mrf.mxu0
      %v2736 = vadd.f32 0.0, %v2735
      %2737 = vmatmul.bf16.gmra.mxu0 %v2668
      %v2738 = vpop.f32.mrf.mxu0
      %v2739 = vadd.f32 0.0, %v2738
      %v2740 = vpop.f32.mrf.mxu0
      %v2741 = vadd.f32 0.0, %v2740
      %2742 = vmatmul.bf16.gmra.mxu0 %v2671
      %v2743 = vpop.f32.mrf.mxu0
      %v2744 = vadd.f32 0.0, %v2743
      %v2745 = vpop.f32.mrf.mxu0
      %v2746 = vadd.f32 0.0, %v2745
      %2747 = vmatmul.bf16.gmra.mxu0 %v2674
      %v2748 = vpop.f32.mrf.mxu0
      %v2749 = vadd.f32 0.0, %v2748
      %v2750 = vpop.f32.mrf.mxu0
      %v2751 = vadd.f32 0.0, %v2750
      %2752 = vmatmul.bf16.gmra.mxu0 %v2677
      %v2753 = vpop.f32.mrf.mxu0
      %v2754 = vadd.f32 0.0, %v2753
      %v2755 = vpop.f32.mrf.mxu0
      %v2756 = vadd.f32 0.0, %v2755
      %2757 = vmatmul.bf16.gmra.mxu0 %v2680
      %v2758 = vpop.f32.mrf.mxu0
      %v2759 = vadd.f32 0.0, %v2758
      %v2760 = vpop.f32.mrf.mxu0
      %v2761 = vadd.f32 0.0, %v2760
      %2762 = vmatmul.bf16.gmra.mxu0 %v2683
      %v2763 = vpop.f32.mrf.mxu0
      %v2764 = vadd.f32 0.0, %v2763
      %v2765 = vpop.f32.mrf.mxu0
      %v2766 = vadd.f32 0.0, %v2765
      %2767 = vmatmul.bf16.gmra.mxu0 %v2686
      %v2768 = vpop.f32.mrf.mxu0
      %v2769 = vadd.f32 0.0, %v2768
      %v2770 = vpop.f32.mrf.mxu0
      %v2771 = vadd.f32 0.0, %v2770
      %2772 = vmatmul.bf16.gmra.mxu0 %v2689
      %v2773 = vpop.f32.mrf.mxu0
      %v2774 = vadd.f32 0.0, %v2773
      %v2775 = vpop.f32.mrf.mxu0
      %v2776 = vadd.f32 0.0, %v2775
      %2777 = vmatmul.bf16.gmra.mxu0 %v2692
      %v2778 = vpop.f32.mrf.mxu0
      %v2779 = vadd.f32 0.0, %v2778
      %v2780 = vpop.f32.mrf.mxu0
      %v2781 = vadd.f32 0.0, %v2780
      %2782 = vdwg.mxu0
      %v2783 = vadd.f32 %v2470, %v2704
      %v2784 = vadd.f32 %v2471, %v2706
      %v2785 = vadd.f32 %v2472, %v2709
      %v2786 = vadd.f32 %v2473, %v2711
      %v2787 = vadd.f32 %v2474, %v2714
      %v2788 = vadd.f32 %v2475, %v2716
      %v2789 = vadd.f32 %v2476, %v2719
      %v2790 = vadd.f32 %v2477, %v2721
      %v2791 = vadd.f32 %v2478, %v2724
      %v2792 = vadd.f32 %v2479, %v2726
      %v2793 = vadd.f32 %v2480, %v2729
      %v2794 = vadd.f32 %v2481, %v2731
      %v2795 = vadd.f32 %v2482, %v2734
      %v2796 = vadd.f32 %v2483, %v2736
      %v2797 = vadd.f32 %v2484, %v2739
      %v2798 = vadd.f32 %v2485, %v2741
      %v2799 = vadd.f32 %v2486, %v2744
      %v2800 = vadd.f32 %v2487, %v2746
      %v2801 = vadd.f32 %v2488, %v2749
      %v2802 = vadd.f32 %v2489, %v2751
      %v2803 = vadd.f32 %v2490, %v2754
      %v2804 = vadd.f32 %v2491, %v2756
      %v2805 = vadd.f32 %v2492, %v2759
      %v2806 = vadd.f32 %v2493, %v2761
      %v2807 = vadd.f32 %v2494, %v2764
      %v2808 = vadd.f32 %v2495, %v2766
      %v2809 = vadd.f32 %v2496, %v2769
      %v2810 = vadd.f32 %v2497, %v2771
      %v2811 = vadd.f32 %v2498, %v2774
      %v2812 = vadd.f32 %v2499, %v2776
      %v2813 = vadd.f32 %v2500, %v2779
      %v2814 = vadd.f32 %v2501, %v2781
      %v2815 = vld [vmem:[%s1073] sm:$0xf]
      %v2816 = vld [vmem:[%s1073 + $0x4] sm:$0xf]
      %v2817 = vld [vmem:[%s1073 + $0x8] sm:$0x1]
      %v2818 = vld [vmem:[%s1073 + $0xc] sm:$0xf]
      %v2819 = vld [vmem:[%s1073 + $0x10] sm:$0xf]
      %v2820 = vld [vmem:[%s1073 + $0x14] sm:$0x1]
      %v2821 = vld [vmem:[%s1073 + $0x18] sm:$0xf]
      %v2822 = vld [vmem:[%s1073 + $0x1c] sm:$0xf]
      %v2823 = vld [vmem:[%s1073 + $0x20] sm:$0x1]
      %v2824 = vld [vmem:[%s1073 + $0x24] sm:$0xf]
      %v2825 = vld [vmem:[%s1073 + $0x28] sm:$0xf]
      %v2826 = vld [vmem:[%s1073 + $0x2c] sm:$0x1]
      %v2827 = vld [vmem:[%s1073 + $0x30] sm:$0xf]
      %v2828 = vld [vmem:[%s1073 + $0x34] sm:$0xf]
      %v2829 = vld [vmem:[%s1073 + $0x38] sm:$0x1]
      %v2830 = vld [vmem:[%s1073 + $0x3c] sm:$0xf]
      %v2831 = vld [vmem:[%s1073 + $0x40] sm:$0xf]
      %v2832 = vld [vmem:[%s1073 + $0x44] sm:$0x1]
      %v2833 = vld [vmem:[%s1073 + $0x48] sm:$0xf]
      %v2834 = vld [vmem:[%s1073 + $0x4c] sm:$0xf]
      %v2835 = vld [vmem:[%s1073 + $0x50] sm:$0x1]
      %v2836 = vld [vmem:[%s1073 + $0x54] sm:$0xf]
      %v2837 = vld [vmem:[%s1073 + $0x58] sm:$0xf]
      %v2838 = vld [vmem:[%s1073 + $0x5c] sm:$0x1]
      %v2839 = vld [vmem:[%s1073 + $0x60] sm:$0xf]
      %v2840 = vld [vmem:[%s1073 + $0x64] sm:$0xf]
      %v2841 = vld [vmem:[%s1073 + $0x68] sm:$0x1]
      %v2842 = vld [vmem:[%s1073 + $0x6c] sm:$0xf]
      %v2843 = vld [vmem:[%s1073 + $0x70] sm:$0xf]
      %v2844 = vld [vmem:[%s1073 + $0x74] sm:$0x1]
      %v2845 = vld [vmem:[%s1073 + $0x78] sm:$0xf]
      %v2846 = vld [vmem:[%s1073 + $0x7c] sm:$0xf]
      %v2847 = vld [vmem:[%s1073 + $0x80] sm:$0x1]
      %v2848 = vld [vmem:[%s1073 + $0x84] sm:$0xf]
      %v2849 = vld [vmem:[%s1073 + $0x88] sm:$0xf]
      %v2850 = vld [vmem:[%s1073 + $0x8c] sm:$0x1]
      %v2851 = vld [vmem:[%s1073 + $0x90] sm:$0xf]
      %v2852 = vld [vmem:[%s1073 + $0x94] sm:$0xf]
      %v2853 = vld [vmem:[%s1073 + $0x98] sm:$0x1]
      %v2854 = vld [vmem:[%s1073 + $0x9c] sm:$0xf]
      %v2855 = vld [vmem:[%s1073 + $0xa0] sm:$0xf]
      %v2856 = vld [vmem:[%s1073 + $0xa4] sm:$0x1]
      %v2857 = vld [vmem:[%s1073 + $0xa8] sm:$0xf]
      %v2858 = vld [vmem:[%s1073 + $0xac] sm:$0xf]
      %v2859 = vld [vmem:[%s1073 + $0xb0] sm:$0x1]
      %v2860 = vld [vmem:[%s1073 + $0xb4] sm:$0xf]
      %v2861 = vld [vmem:[%s1073 + $0xb8] sm:$0xf]
      %v2862 = vld [vmem:[%s1073 + $0xbc] sm:$0x1]
      %v2864 = vshrl.u32 %v2815, 16
      %v2866 = vrot.slane %v2864, 4
      %v2867 = vshll.u32 %v2815, 16
      %v2869 = vrot.slane %v2867, 5
      %v2870 = vor.u32 %v2866, %v2869
      %v2871 = vrot.slane %v2870, 4
      %v2873 = vshll.u32 %v2816, 16
      %v2875 = vrot.slane %v2873, 5
      %v2876 = vsel %vm1246, %v2871, %v2875
      %v2877 = vshrl.u32 %v2816, 16
      %v2879 = vrot.slane %v2877, 4
      %v2880 = vor.u32 %v2879, %v2875
      %v2881 = vrot.slane %v2880, 4
      %v2883 = vshll.u32 %v2817, 16
      %v2885 = vrot.slane %v2883, 5
      %v2886 = vsel %vm1246, %v2881, %v2885
      %v2888 = vshrl.u32 %v2818, 16
      %v2890 = vrot.slane %v2888, 4
      %v2891 = vshll.u32 %v2818, 16
      %v2893 = vrot.slane %v2891, 5
      %v2894 = vor.u32 %v2890, %v2893
      %v2895 = vrot.slane %v2894, 4
      %v2897 = vshll.u32 %v2819, 16
      %v2899 = vrot.slane %v2897, 5
      %v2900 = vsel %vm1246, %v2895, %v2899
      %v2901 = vshrl.u32 %v2819, 16
      %v2903 = vrot.slane %v2901, 4
      %v2904 = vor.u32 %v2903, %v2899
      %v2905 = vrot.slane %v2904, 4
      %v2907 = vshll.u32 %v2820, 16
      %v2909 = vrot.slane %v2907, 5
      %v2910 = vsel %vm1246, %v2905, %v2909
      %v2912 = vshrl.u32 %v2821, 16
      %v2914 = vrot.slane %v2912, 4
      %v2915 = vshll.u32 %v2821, 16
      %v2917 = vrot.slane %v2915, 5
      %v2918 = vor.u32 %v2914, %v2917
      %v2919 = vrot.slane %v2918, 4
      %v2921 = vshll.u32 %v2822, 16
      %v2923 = vrot.slane %v2921, 5
      %v2924 = vsel %vm1246, %v2919, %v2923
      %v2925 = vshrl.u32 %v2822, 16
      %v2927 = vrot.slane %v2925, 4
      %v2928 = vor.u32 %v2927, %v2923
      %v2929 = vrot.slane %v2928, 4
      %v2931 = vshll.u32 %v2823, 16
      %v2933 = vrot.slane %v2931, 5
      %v2934 = vsel %vm1246, %v2929, %v2933
      %v2936 = vshrl.u32 %v2824, 16
      %v2938 = vrot.slane %v2936, 4
      %v2939 = vshll.u32 %v2824, 16
      %v2941 = vrot.slane %v2939, 5
      %v2942 = vor.u32 %v2938, %v2941
      %v2943 = vrot.slane %v2942, 4
      %v2945 = vshll.u32 %v2825, 16
      %v2947 = vrot.slane %v2945, 5
      %v2948 = vsel %vm1246, %v2943, %v2947
      %v2949 = vshrl.u32 %v2825, 16
      %v2951 = vrot.slane %v2949, 4
      %v2952 = vor.u32 %v2951, %v2947
      %v2953 = vrot.slane %v2952, 4
      %v2955 = vshll.u32 %v2826, 16
      %v2957 = vrot.slane %v2955, 5
      %v2958 = vsel %vm1246, %v2953, %v2957
      %v2960 = vshrl.u32 %v2827, 16
      %v2962 = vrot.slane %v2960, 4
      %v2963 = vshll.u32 %v2827, 16
      %v2965 = vrot.slane %v2963, 5
      %v2966 = vor.u32 %v2962, %v2965
      %v2967 = vrot.slane %v2966, 4
      %v2969 = vshll.u32 %v2828, 16
      %v2971 = vrot.slane %v2969, 5
      %v2972 = vsel %vm1246, %v2967, %v2971
      %v2973 = vshrl.u32 %v2828, 16
      %v2975 = vrot.slane %v2973, 4
      %v2976 = vor.u32 %v2975, %v2971
      %v2977 = vrot.slane %v2976, 4
      %v2979 = vshll.u32 %v2829, 16
      %v2981 = vrot.slane %v2979, 5
      %v2982 = vsel %vm1246, %v2977, %v2981
      %v2984 = vshrl.u32 %v2830, 16
      %v2986 = vrot.slane %v2984, 4
      %v2987 = vshll.u32 %v2830, 16
      %v2989 = vrot.slane %v2987, 5
      %v2990 = vor.u32 %v2986, %v2989
      %v2991 = vrot.slane %v2990, 4
      %v2993 = vshll.u32 %v2831, 16
      %v2995 = vrot.slane %v2993, 5
      %v2996 = vsel %vm1246, %v2991, %v2995
      %v2997 = vshrl.u32 %v2831, 16
      %v2999 = vrot.slane %v2997, 4
      %v3000 = vor.u32 %v2999, %v2995
      %v3001 = vrot.slane %v3000, 4
      %v3003 = vshll.u32 %v2832, 16
      %v3005 = vrot.slane %v3003, 5
      %v3006 = vsel %vm1246, %v3001, %v3005
      %v3008 = vshrl.u32 %v2833, 16
      %v3010 = vrot.slane %v3008, 4
      %v3011 = vshll.u32 %v2833, 16
      %v3013 = vrot.slane %v3011, 5
      %v3014 = vor.u32 %v3010, %v3013
      %v3015 = vrot.slane %v3014, 4
      %v3017 = vshll.u32 %v2834, 16
      %v3019 = vrot.slane %v3017, 5
      %v3020 = vsel %vm1246, %v3015, %v3019
      %v3021 = vshrl.u32 %v2834, 16
      %v3023 = vrot.slane %v3021, 4
      %v3024 = vor.u32 %v3023, %v3019
      %v3025 = vrot.slane %v3024, 4
      %v3027 = vshll.u32 %v2835, 16
      %v3029 = vrot.slane %v3027, 5
      %v3030 = vsel %vm1246, %v3025, %v3029
      %v3032 = vshrl.u32 %v2836, 16
      %v3034 = vrot.slane %v3032, 4
      %v3035 = vshll.u32 %v2836, 16
      %v3037 = vrot.slane %v3035, 5
      %v3038 = vor.u32 %v3034, %v3037
      %v3039 = vrot.slane %v3038, 4
      %v3041 = vshll.u32 %v2837, 16
      %v3043 = vrot.slane %v3041, 5
      %v3044 = vsel %vm1246, %v3039, %v3043
      %v3045 = vshrl.u32 %v2837, 16
      %v3047 = vrot.slane %v3045, 4
      %v3048 = vor.u32 %v3047, %v3043
      %v3049 = vrot.slane %v3048, 4
      %v3051 = vshll.u32 %v2838, 16
      %v3053 = vrot.slane %v3051, 5
      %v3054 = vsel %vm1246, %v3049, %v3053
      %v3056 = vshrl.u32 %v2839, 16
      %v3058 = vrot.slane %v3056, 4
      %v3059 = vshll.u32 %v2839, 16
      %v3061 = vrot.slane %v3059, 5
      %v3062 = vor.u32 %v3058, %v3061
      %v3063 = vrot.slane %v3062, 4
      %v3065 = vshll.u32 %v2840, 16
      %v3067 = vrot.slane %v3065, 5
      %v3068 = vsel %vm1246, %v3063, %v3067
      %v3069 = vshrl.u32 %v2840, 16
      %v3071 = vrot.slane %v3069, 4
      %v3072 = vor.u32 %v3071, %v3067
      %v3073 = vrot.slane %v3072, 4
      %v3075 = vshll.u32 %v2841, 16
      %v3077 = vrot.slane %v3075, 5
      %v3078 = vsel %vm1246, %v3073, %v3077
      %v3080 = vshrl.u32 %v2842, 16
      %v3082 = vrot.slane %v3080, 4
      %v3083 = vshll.u32 %v2842, 16
      %v3085 = vrot.slane %v3083, 5
      %v3086 = vor.u32 %v3082, %v3085
      %v3087 = vrot.slane %v3086, 4
      %v3089 = vshll.u32 %v2843, 16
      %v3091 = vrot.slane %v3089, 5
      %v3092 = vsel %vm1246, %v3087, %v3091
      %v3093 = vshrl.u32 %v2843, 16
      %v3095 = vrot.slane %v3093, 4
      %v3096 = vor.u32 %v3095, %v3091
      %v3097 = vrot.slane %v3096, 4
      %v3099 = vshll.u32 %v2844, 16
      %v3101 = vrot.slane %v3099, 5
      %v3102 = vsel %vm1246, %v3097, %v3101
      %v3104 = vshrl.u32 %v2845, 16
      %v3106 = vrot.slane %v3104, 4
      %v3107 = vshll.u32 %v2845, 16
      %v3109 = vrot.slane %v3107, 5
      %v3110 = vor.u32 %v3106, %v3109
      %v3111 = vrot.slane %v3110, 4
      %v3113 = vshll.u32 %v2846, 16
      %v3115 = vrot.slane %v3113, 5
      %v3116 = vsel %vm1246, %v3111, %v3115
      %v3117 = vshrl.u32 %v2846, 16
      %v3119 = vrot.slane %v3117, 4
      %v3120 = vor.u32 %v3119, %v3115
      %v3121 = vrot.slane %v3120, 4
      %v3123 = vshll.u32 %v2847, 16
      %v3125 = vrot.slane %v3123, 5
      %v3126 = vsel %vm1246, %v3121, %v3125
      %v3128 = vshrl.u32 %v2848, 16
      %v3130 = vrot.slane %v3128, 4
      %v3131 = vshll.u32 %v2848, 16
      %v3133 = vrot.slane %v3131, 5
      %v3134 = vor.u32 %v3130, %v3133
      %v3135 = vrot.slane %v3134, 4
      %v3137 = vshll.u32 %v2849, 16
      %v3139 = vrot.slane %v3137, 5
      %v3140 = vsel %vm1246, %v3135, %v3139
      %v3141 = vshrl.u32 %v2849, 16
      %v3143 = vrot.slane %v3141, 4
      %v3144 = vor.u32 %v3143, %v3139
      %v3145 = vrot.slane %v3144, 4
      %v3147 = vshll.u32 %v2850, 16
      %v3149 = vrot.slane %v3147, 5
      %v3150 = vsel %vm1246, %v3145, %v3149
      %v3152 = vshrl.u32 %v2851, 16
      %v3154 = vrot.slane %v3152, 4
      %v3155 = vshll.u32 %v2851, 16
      %v3157 = vrot.slane %v3155, 5
      %v3158 = vor.u32 %v3154, %v3157
      %v3159 = vrot.slane %v3158, 4
      %v3161 = vshll.u32 %v2852, 16
      %v3163 = vrot.slane %v3161, 5
      %v3164 = vsel %vm1246, %v3159, %v3163
      %v3165 = vshrl.u32 %v2852, 16
      %v3167 = vrot.slane %v3165, 4
      %v3168 = vor.u32 %v3167, %v3163
      %v3169 = vrot.slane %v3168, 4
      %v3171 = vshll.u32 %v2853, 16
      %v3173 = vrot.slane %v3171, 5
      %v3174 = vsel %vm1246, %v3169, %v3173
      %v3176 = vshrl.u32 %v2854, 16
      %v3178 = vrot.slane %v3176, 4
      %v3179 = vshll.u32 %v2854, 16
      %v3181 = vrot.slane %v3179, 5
      %v3182 = vor.u32 %v3178, %v3181
      %v3183 = vrot.slane %v3182, 4
      %v3185 = vshll.u32 %v2855, 16
      %v3187 = vrot.slane %v3185, 5
      %v3188 = vsel %vm1246, %v3183, %v3187
      %v3189 = vshrl.u32 %v2855, 16
      %v3191 = vrot.slane %v3189, 4
      %v3192 = vor.u32 %v3191, %v3187
      %v3193 = vrot.slane %v3192, 4
      %v3195 = vshll.u32 %v2856, 16
      %v3197 = vrot.slane %v3195, 5
      %v3198 = vsel %vm1246, %v3193, %v3197
      %v3200 = vshrl.u32 %v2857, 16
      %v3202 = vrot.slane %v3200, 4
      %v3203 = vshll.u32 %v2857, 16
      %v3205 = vrot.slane %v3203, 5
      %v3206 = vor.u32 %v3202, %v3205
      %v3207 = vrot.slane %v3206, 4
      %v3209 = vshll.u32 %v2858, 16
      %v3211 = vrot.slane %v3209, 5
      %v3212 = vsel %vm1246, %v3207, %v3211
      %v3213 = vshrl.u32 %v2858, 16
      %v3215 = vrot.slane %v3213, 4
      %v3216 = vor.u32 %v3215, %v3211
      %v3217 = vrot.slane %v3216, 4
      %v3219 = vshll.u32 %v2859, 16
      %v3221 = vrot.slane %v3219, 5
      %v3222 = vsel %vm1246, %v3217, %v3221
      %v3224 = vshrl.u32 %v2860, 16
      %v3226 = vrot.slane %v3224, 4
      %v3227 = vshll.u32 %v2860, 16
      %v3229 = vrot.slane %v3227, 5
      %v3230 = vor.u32 %v3226, %v3229
      %v3231 = vrot.slane %v3230, 4
      %v3233 = vshll.u32 %v2861, 16
      %v3235 = vrot.slane %v3233, 5
      %v3236 = vsel %vm1246, %v3231, %v3235
      %v3237 = vshrl.u32 %v2861, 16
      %v3239 = vrot.slane %v3237, 4
      %v3240 = vor.u32 %v3239, %v3235
      %v3241 = vrot.slane %v3240, 4
      %v3243 = vshll.u32 %v2862, 16
      %v3245 = vrot.slane %v3243, 5
      %v3246 = vsel %vm1246, %v3241, %v3245
      %v3247 = vld [vmem:[%s2 + $0x80] sm:$0xf]
      %v3248 = vld [vmem:[%s2 + $0x84] sm:$0xf]
      %v3249 = vld [vmem:[%s2 + $0x88] sm:$0xf]
      %v3250 = vld [vmem:[%s2 + $0x8c] sm:$0xf]
      %v3251 = vld [vmem:[%s2 + $0x90] sm:$0xf]
      %v3252 = vld [vmem:[%s2 + $0x94] sm:$0xf]
      %v3253 = vld [vmem:[%s2 + $0x98] sm:$0xf]
      %v3254 = vld [vmem:[%s2 + $0x9c] sm:$0xf]
      %v3255 = vunpack.c.l.b16 %v2876
      %v3256 = vunpack.c.l.b16 %v2886
      %v3257 = vunpack.c.l.b16 %v2900
      %v3258 = vunpack.c.l.b16 %v2910
      %v3259 = vunpack.c.l.b16 %v2924
      %v3260 = vunpack.c.l.b16 %v2934
      %v3261 = vunpack.c.l.b16 %v2948
      %v3262 = vunpack.c.l.b16 %v2958
      %v3263 = vunpack.c.l.b16 %v2972
      %v3264 = vunpack.c.l.b16 %v2982
      %v3265 = vunpack.c.l.b16 %v2996
      %v3266 = vunpack.c.l.b16 %v3006
      %v3267 = vunpack.c.l.b16 %v3020
      %v3268 = vunpack.c.l.b16 %v3030
      %v3269 = vunpack.c.l.b16 %v3044
      %v3270 = vunpack.c.l.b16 %v3054
      %v3271 = vunpack.c.l.b16 %v3068
      %v3272 = vunpack.c.l.b16 %v3078
      %v3273 = vunpack.c.l.b16 %v3092
      %v3274 = vunpack.c.l.b16 %v3102
      %v3275 = vunpack.c.l.b16 %v3116
      %v3276 = vunpack.c.l.b16 %v3126
      %v3277 = vunpack.c.l.b16 %v3140
      %v3278 = vunpack.c.l.b16 %v3150
      %v3279 = vunpack.c.l.b16 %v3164
      %v3280 = vunpack.c.l.b16 %v3174
      %v3281 = vunpack.c.l.b16 %v3188
      %v3282 = vunpack.c.l.b16 %v3198
      %v3283 = vunpack.c.l.b16 %v3212
      %v3284 = vunpack.c.l.b16 %v3222
      %v3285 = vunpack.c.l.b16 %v3236
      %v3286 = vunpack.c.l.b16 %v3246
      %v3287 = vpack.c.b16 %v3256, %v3255
      %v3288 = vpack.c.b16 %v3258, %v3257
      %v3289 = vpack.c.b16 %v3260, %v3259
      %v3290 = vpack.c.b16 %v3262, %v3261
      %v3291 = vpack.c.b16 %v3264, %v3263
      %v3292 = vpack.c.b16 %v3266, %v3265
      %v3293 = vpack.c.b16 %v3268, %v3267
      %v3294 = vpack.c.b16 %v3270, %v3269
      %v3295 = vpack.c.b16 %v3272, %v3271
      %v3296 = vpack.c.b16 %v3274, %v3273
      %v3297 = vpack.c.b16 %v3276, %v3275
      %v3298 = vpack.c.b16 %v3278, %v3277
      %v3299 = vpack.c.b16 %v3280, %v3279
      %v3300 = vpack.c.b16 %v3282, %v3281
      %v3301 = vpack.c.b16 %v3284, %v3283
      %v3302 = vpack.c.b16 %v3286, %v3285
      %v3311 = vunpack.c.l.b16 %v3247
      %v3312 = vunpack.c.l.b16 %v3248
      %v3313 = vunpack.c.l.b16 %v3249
      %v3314 = vunpack.c.l.b16 %v3250
      %v3315 = vunpack.c.l.b16 %v3251
      %v3316 = vunpack.c.l.b16 %v3252
      %v3317 = vunpack.c.l.b16 %v3253
      %v3318 = vunpack.c.l.b16 %v3254
      %v3319 = vpack.c.b16 %v3312, %v3311
      %v3320 = vpack.c.b16 %v3314, %v3313
      %v3321 = vpack.c.b16 %v3316, %v3315
      %v3322 = vpack.c.b16 %v3318, %v3317
      %v3328 = vsel %vm1711, %v3287, 0
      %v3331 = vsel %vm1711, %v3288, 0
      %v3334 = vsel %vm1711, %v3289, 0
      %v3337 = vsel %vm1711, %v3290, 0
      %v3340 = vsel %vm1711, %v3291, 0
      %v3343 = vsel %vm1711, %v3292, 0
      %v3346 = vsel %vm1711, %v3293, 0
      %v3349 = vsel %vm1711, %v3294, 0
      %v3352 = vsel %vm1711, %v3295, 0
      %v3355 = vsel %vm1711, %v3296, 0
      %v3358 = vsel %vm1711, %v3297, 0
      %v3361 = vsel %vm1711, %v3298, 0
      %v3364 = vsel %vm1711, %v3299, 0
      %v3367 = vsel %vm1711, %v3300, 0
      %v3370 = vsel %vm1711, %v3301, 0
      %v3373 = vsel %vm1711, %v3302, 0
      %3375 = vmatpush.bf16.msra.mxu0 0
      %3376 = vmatpush.bf16.msra.mxu0 0
      %3377 = vmatpush.bf16.msra.mxu0 0
      %3378 = vmatpush.bf16.msra.mxu0 0
      %3379 = vmatpush.bf16.msra.mxu0 %v3322
      %3380 = vmatpush.bf16.msra.mxu0 %v3321
      %3381 = vmatpush.bf16.msra.mxu0 %v3320
      %3382 = vmatpush.bf16.msra.mxu0 %v3319
      %3383 = vmatmul.bf16.gmra.mxu0 %v3328
      %v3384 = vpop.f32.mrf.mxu0
      %v3385 = vadd.f32 0.0, %v3384
      %v3386 = vpop.f32.mrf.mxu0
      %v3387 = vadd.f32 0.0, %v3386
      %3388 = vmatmul.bf16.gmra.mxu0 %v3331
      %v3389 = vpop.f32.mrf.mxu0
      %v3390 = vadd.f32 0.0, %v3389
      %v3391 = vpop.f32.mrf.mxu0
      %v3392 = vadd.f32 0.0, %v3391
      %3393 = vmatmul.bf16.gmra.mxu0 %v3334
      %v3394 = vpop.f32.mrf.mxu0
      %v3395 = vadd.f32 0.0, %v3394
      %v3396 = vpop.f32.mrf.mxu0
      %v3397 = vadd.f32 0.0, %v3396
      %3398 = vmatmul.bf16.gmra.mxu0 %v3337
      %v3399 = vpop.f32.mrf.mxu0
      %v3400 = vadd.f32 0.0, %v3399
      %v3401 = vpop.f32.mrf.mxu0
      %v3402 = vadd.f32 0.0, %v3401
      %3403 = vmatmul.bf16.gmra.mxu0 %v3340
      %v3404 = vpop.f32.mrf.mxu0
      %v3405 = vadd.f32 0.0, %v3404
      %v3406 = vpop.f32.mrf.mxu0
      %v3407 = vadd.f32 0.0, %v3406
      %3408 = vmatmul.bf16.gmra.mxu0 %v3343
      %v3409 = vpop.f32.mrf.mxu0
      %v3410 = vadd.f32 0.0, %v3409
      %v3411 = vpop.f32.mrf.mxu0
      %v3412 = vadd.f32 0.0, %v3411
      %3413 = vmatmul.bf16.gmra.mxu0 %v3346
      %v3414 = vpop.f32.mrf.mxu0
      %v3415 = vadd.f32 0.0, %v3414
      %v3416 = vpop.f32.mrf.mxu0
      %v3417 = vadd.f32 0.0, %v3416
      %3418 = vmatmul.bf16.gmra.mxu0 %v3349
      %v3419 = vpop.f32.mrf.mxu0
      %v3420 = vadd.f32 0.0, %v3419
      %v3421 = vpop.f32.mrf.mxu0
      %v3422 = vadd.f32 0.0, %v3421
      %3423 = vmatmul.bf16.gmra.mxu0 %v3352
      %v3424 = vpop.f32.mrf.mxu0
      %v3425 = vadd.f32 0.0, %v3424
      %v3426 = vpop.f32.mrf.mxu0
      %v3427 = vadd.f32 0.0, %v3426
      %3428 = vmatmul.bf16.gmra.mxu0 %v3355
      %v3429 = vpop.f32.mrf.mxu0
      %v3430 = vadd.f32 0.0, %v3429
      %v3431 = vpop.f32.mrf.mxu0
      %v3432 = vadd.f32 0.0, %v3431
      %3433 = vmatmul.bf16.gmra.mxu0 %v3358
      %v3434 = vpop.f32.mrf.mxu0
      %v3435 = vadd.f32 0.0, %v3434
      %v3436 = vpop.f32.mrf.mxu0
      %v3437 = vadd.f32 0.0, %v3436
      %3438 = vmatmul.bf16.gmra.mxu0 %v3361
      %v3439 = vpop.f32.mrf.mxu0
      %v3440 = vadd.f32 0.0, %v3439
      %v3441 = vpop.f32.mrf.mxu0
      %v3442 = vadd.f32 0.0, %v3441
      %3443 = vmatmul.bf16.gmra.mxu0 %v3364
      %v3444 = vpop.f32.mrf.mxu0
      %v3445 = vadd.f32 0.0, %v3444
      %v3446 = vpop.f32.mrf.mxu0
      %v3447 = vadd.f32 0.0, %v3446
      %3448 = vmatmul.bf16.gmra.mxu0 %v3367
      %v3449 = vpop.f32.mrf.mxu0
      %v3450 = vadd.f32 0.0, %v3449
      %v3451 = vpop.f32.mrf.mxu0
      %v3452 = vadd.f32 0.0, %v3451
      %3453 = vmatmul.bf16.gmra.mxu0 %v3370
      %v3454 = vpop.f32.mrf.mxu0
      %v3455 = vadd.f32 0.0, %v3454
      %v3456 = vpop.f32.mrf.mxu0
      %v3457 = vadd.f32 0.0, %v3456
      %3458 = vmatmul.bf16.gmra.mxu0 %v3373
      %v3459 = vpop.f32.mrf.mxu0
      %v3460 = vadd.f32 0.0, %v3459
      %v3461 = vpop.f32.mrf.mxu0
      %v3462 = vadd.f32 0.0, %v3461
      %3463 = vdwg.mxu0
      %v3464 = vadd.f32 %v2783, %v3385
      %v3465 = vadd.f32 %v2784, %v3387
      %v3466 = vadd.f32 %v2785, %v3390
      %v3467 = vadd.f32 %v2786, %v3392
      %v3468 = vadd.f32 %v2787, %v3395
      %v3469 = vadd.f32 %v2788, %v3397
      %v3470 = vadd.f32 %v2789, %v3400
      %v3471 = vadd.f32 %v2790, %v3402
      %v3472 = vadd.f32 %v2791, %v3405
      %v3473 = vadd.f32 %v2792, %v3407
      %v3474 = vadd.f32 %v2793, %v3410
      %v3475 = vadd.f32 %v2794, %v3412
      %v3476 = vadd.f32 %v2795, %v3415
      %v3477 = vadd.f32 %v2796, %v3417
      %v3478 = vadd.f32 %v2797, %v3420
      %v3479 = vadd.f32 %v2798, %v3422
      %v3480 = vadd.f32 %v2799, %v3425
      %v3481 = vadd.f32 %v2800, %v3427
      %v3482 = vadd.f32 %v2801, %v3430
      %v3483 = vadd.f32 %v2802, %v3432
      %v3484 = vadd.f32 %v2803, %v3435
      %v3485 = vadd.f32 %v2804, %v3437
      %v3486 = vadd.f32 %v2805, %v3440
      %v3487 = vadd.f32 %v2806, %v3442
      %v3488 = vadd.f32 %v2807, %v3445
      %v3489 = vadd.f32 %v2808, %v3447
      %v3490 = vadd.f32 %v2809, %v3450
      %v3491 = vadd.f32 %v2810, %v3452
      %v3492 = vadd.f32 %v2811, %v3455
      %v3493 = vadd.f32 %v2812, %v3457
      %v3494 = vadd.f32 %v2813, %v3460
      %v3495 = vadd.f32 %v2814, %v3462
      %v3496 = vld [vmem:[%s1073] sm:$0xe]
      %v3497 = vld [vmem:[%s1073 + $0xc] sm:$0xe]
      %v3498 = vld [vmem:[%s1073 + $0x18] sm:$0xe]
      %v3499 = vld [vmem:[%s1073 + $0x24] sm:$0xe]
      %v3500 = vld [vmem:[%s1073 + $0x30] sm:$0xe]
      %v3501 = vld [vmem:[%s1073 + $0x3c] sm:$0xe]
      %v3502 = vld [vmem:[%s1073 + $0x48] sm:$0xe]
      %v3503 = vld [vmem:[%s1073 + $0x54] sm:$0xe]
      %v3504 = vld [vmem:[%s1073 + $0x60] sm:$0xe]
      %v3505 = vld [vmem:[%s1073 + $0x6c] sm:$0xe]
      %v3506 = vld [vmem:[%s1073 + $0x78] sm:$0xe]
      %v3507 = vld [vmem:[%s1073 + $0x84] sm:$0xe]
      %v3508 = vld [vmem:[%s1073 + $0x90] sm:$0xe]
      %v3509 = vld [vmem:[%s1073 + $0x9c] sm:$0xe]
      %v3510 = vld [vmem:[%s1073 + $0xa8] sm:$0xe]
      %v3511 = vld [vmem:[%s1073 + $0xb4] sm:$0xe]
      %v3560 = vrot.slane %v3496, 5
      %v3561 = vrot.slane %v3560, 4
      %v3562 = vrot.slane %v2816, 5
      %v3563 = vsel %vm2140, %v3561, %v3562
      %v3564 = vrot.slane %v3562, 4
      %v3565 = vrot.slane %v2817, 5
      %v3566 = vsel %vm2140, %v3564, %v3565
      %v3567 = vrot.slane %v3497, 5
      %v3568 = vrot.slane %v3567, 4
      %v3569 = vrot.slane %v2819, 5
      %v3570 = vsel %vm2140, %v3568, %v3569
      %v3571 = vrot.slane %v3569, 4
      %v3572 = vrot.slane %v2820, 5
      %v3573 = vsel %vm2140, %v3571, %v3572
      %v3574 = vrot.slane %v3498, 5
      %v3575 = vrot.slane %v3574, 4
      %v3576 = vrot.slane %v2822, 5
      %v3577 = vsel %vm2140, %v3575, %v3576
      %v3578 = vrot.slane %v3576, 4
      %v3579 = vrot.slane %v2823, 5
      %v3580 = vsel %vm2140, %v3578, %v3579
      %v3581 = vrot.slane %v3499, 5
      %v3582 = vrot.slane %v3581, 4
      %v3583 = vrot.slane %v2825, 5
      %v3584 = vsel %vm2140, %v3582, %v3583
      %v3585 = vrot.slane %v3583, 4
      %v3586 = vrot.slane %v2826, 5
      %v3587 = vsel %vm2140, %v3585, %v3586
      %v3588 = vrot.slane %v3500, 5
      %v3589 = vrot.slane %v3588, 4
      %v3590 = vrot.slane %v2828, 5
      %v3591 = vsel %vm2140, %v3589, %v3590
      %v3592 = vrot.slane %v3590, 4
      %v3593 = vrot.slane %v2829, 5
      %v3594 = vsel %vm2140, %v3592, %v3593
      %v3595 = vrot.slane %v3501, 5
      %v3596 = vrot.slane %v3595, 4
      %v3597 = vrot.slane %v2831, 5
      %v3598 = vsel %vm2140, %v3596, %v3597
      %v3599 = vrot.slane %v3597, 4
      %v3600 = vrot.slane %v2832, 5
      %v3601 = vsel %vm2140, %v3599, %v3600
      %v3602 = vrot.slane %v3502, 5
      %v3603 = vrot.slane %v3602, 4
      %v3604 = vrot.slane %v2834, 5
      %v3605 = vsel %vm2140, %v3603, %v3604
      %v3606 = vrot.slane %v3604, 4
      %v3607 = vrot.slane %v2835, 5
      %v3608 = vsel %vm2140, %v3606, %v3607
      %v3609 = vrot.slane %v3503, 5
      %v3610 = vrot.slane %v3609, 4
      %v3611 = vrot.slane %v2837, 5
      %v3612 = vsel %vm2140, %v3610, %v3611
      %v3613 = vrot.slane %v3611, 4
      %v3614 = vrot.slane %v2838, 5
      %v3615 = vsel %vm2140, %v3613, %v3614
      %v3616 = vrot.slane %v3504, 5
      %v3617 = vrot.slane %v3616, 4
      %v3618 = vrot.slane %v2840, 5
      %v3619 = vsel %vm2140, %v3617, %v3618
      %v3620 = vrot.slane %v3618, 4
      %v3621 = vrot.slane %v2841, 5
      %v3622 = vsel %vm2140, %v3620, %v3621
      %v3623 = vrot.slane %v3505, 5
      %v3624 = vrot.slane %v3623, 4
      %v3625 = vrot.slane %v2843, 5
      %v3626 = vsel %vm2140, %v3624, %v3625
      %v3627 = vrot.slane %v3625, 4
      %v3628 = vrot.slane %v2844, 5
      %v3629 = vsel %vm2140, %v3627, %v3628
      %v3630 = vrot.slane %v3506, 5
      %v3631 = vrot.slane %v3630, 4
      %v3632 = vrot.slane %v2846, 5
      %v3633 = vsel %vm2140, %v3631, %v3632
      %v3634 = vrot.slane %v3632, 4
      %v3635 = vrot.slane %v2847, 5
      %v3636 = vsel %vm2140, %v3634, %v3635
      %v3637 = vrot.slane %v3507, 5
      %v3638 = vrot.slane %v3637, 4
      %v3639 = vrot.slane %v2849, 5
      %v3640 = vsel %vm2140, %v3638, %v3639
      %v3641 = vrot.slane %v3639, 4
      %v3642 = vrot.slane %v2850, 5
      %v3643 = vsel %vm2140, %v3641, %v3642
      %v3644 = vrot.slane %v3508, 5
      %v3645 = vrot.slane %v3644, 4
      %v3646 = vrot.slane %v2852, 5
      %v3647 = vsel %vm2140, %v3645, %v3646
      %v3648 = vrot.slane %v3646, 4
      %v3649 = vrot.slane %v2853, 5
      %v3650 = vsel %vm2140, %v3648, %v3649
      %v3651 = vrot.slane %v3509, 5
      %v3652 = vrot.slane %v3651, 4
      %v3653 = vrot.slane %v2855, 5
      %v3654 = vsel %vm2140, %v3652, %v3653
      %v3655 = vrot.slane %v3653, 4
      %v3656 = vrot.slane %v2856, 5
      %v3657 = vsel %vm2140, %v3655, %v3656
      %v3658 = vrot.slane %v3510, 5
      %v3659 = vrot.slane %v3658, 4
      %v3660 = vrot.slane %v2858, 5
      %v3661 = vsel %vm2140, %v3659, %v3660
      %v3662 = vrot.slane %v3660, 4
      %v3663 = vrot.slane %v2859, 5
      %v3664 = vsel %vm2140, %v3662, %v3663
      %v3665 = vrot.slane %v3511, 5
      %v3666 = vrot.slane %v3665, 4
      %v3667 = vrot.slane %v2861, 5
      %v3668 = vsel %vm2140, %v3666, %v3667
      %v3669 = vrot.slane %v3667, 4
      %v3670 = vrot.slane %v2862, 5
      %v3671 = vsel %vm2140, %v3669, %v3670
      %v3672 = vld [vmem:[%s2 + $0xa0] sm:$0xf]
      %v3673 = vld [vmem:[%s2 + $0xa4] sm:$0xf]
      %v3674 = vld [vmem:[%s2 + $0xa8] sm:$0xf]
      %v3675 = vld [vmem:[%s2 + $0xac] sm:$0xf]
      %v3676 = vld [vmem:[%s2 + $0xb0] sm:$0xf]
      %v3677 = vld [vmem:[%s2 + $0xb4] sm:$0xf]
      %v3678 = vld [vmem:[%s2 + $0xb8] sm:$0xf]
      %v3679 = vld [vmem:[%s2 + $0xbc] sm:$0xf]
      %v3680 = vunpack.c.l.b16 %v3563
      %v3681 = vunpack.c.l.b16 %v3566
      %v3682 = vunpack.c.l.b16 %v3570
      %v3683 = vunpack.c.l.b16 %v3573
      %v3684 = vunpack.c.l.b16 %v3577
      %v3685 = vunpack.c.l.b16 %v3580
      %v3686 = vunpack.c.l.b16 %v3584
      %v3687 = vunpack.c.l.b16 %v3587
      %v3688 = vunpack.c.l.b16 %v3591
      %v3689 = vunpack.c.l.b16 %v3594
      %v3690 = vunpack.c.l.b16 %v3598
      %v3691 = vunpack.c.l.b16 %v3601
      %v3692 = vunpack.c.l.b16 %v3605
      %v3693 = vunpack.c.l.b16 %v3608
      %v3694 = vunpack.c.l.b16 %v3612
      %v3695 = vunpack.c.l.b16 %v3615
      %v3696 = vunpack.c.l.b16 %v3619
      %v3697 = vunpack.c.l.b16 %v3622
      %v3698 = vunpack.c.l.b16 %v3626
      %v3699 = vunpack.c.l.b16 %v3629
      %v3700 = vunpack.c.l.b16 %v3633
      %v3701 = vunpack.c.l.b16 %v3636
      %v3702 = vunpack.c.l.b16 %v3640
      %v3703 = vunpack.c.l.b16 %v3643
      %v3704 = vunpack.c.l.b16 %v3647
      %v3705 = vunpack.c.l.b16 %v3650
      %v3706 = vunpack.c.l.b16 %v3654
      %v3707 = vunpack.c.l.b16 %v3657
      %v3708 = vunpack.c.l.b16 %v3661
      %v3709 = vunpack.c.l.b16 %v3664
      %v3710 = vunpack.c.l.b16 %v3668
      %v3711 = vunpack.c.l.b16 %v3671
      %v3712 = vpack.c.b16 %v3681, %v3680
      %v3713 = vpack.c.b16 %v3683, %v3682
      %v3714 = vpack.c.b16 %v3685, %v3684
      %v3715 = vpack.c.b16 %v3687, %v3686
      %v3716 = vpack.c.b16 %v3689, %v3688
      %v3717 = vpack.c.b16 %v3691, %v3690
      %v3718 = vpack.c.b16 %v3693, %v3692
      %v3719 = vpack.c.b16 %v3695, %v3694
      %v3720 = vpack.c.b16 %v3697, %v3696
      %v3721 = vpack.c.b16 %v3699, %v3698
      %v3722 = vpack.c.b16 %v3701, %v3700
      %v3723 = vpack.c.b16 %v3703, %v3702
      %v3724 = vpack.c.b16 %v3705, %v3704
      %v3725 = vpack.c.b16 %v3707, %v3706
      %v3726 = vpack.c.b16 %v3709, %v3708
      %v3727 = vpack.c.b16 %v3711, %v3710
      %v3736 = vunpack.c.l.b16 %v3672
      %v3737 = vunpack.c.l.b16 %v3673
      %v3738 = vunpack.c.l.b16 %v3674
      %v3739 = vunpack.c.l.b16 %v3675
      %v3740 = vunpack.c.l.b16 %v3676
      %v3741 = vunpack.c.l.b16 %v3677
      %v3742 = vunpack.c.l.b16 %v3678
      %v3743 = vunpack.c.l.b16 %v3679
      %v3744 = vpack.c.b16 %v3737, %v3736
      %v3745 = vpack.c.b16 %v3739, %v3738
      %v3746 = vpack.c.b16 %v3741, %v3740
      %v3747 = vpack.c.b16 %v3743, %v3742
      %v3753 = vsel %vm1711, %v3712, 0
      %v3756 = vsel %vm1711, %v3713, 0
      %v3759 = vsel %vm1711, %v3714, 0
      %v3762 = vsel %vm1711, %v3715, 0
      %v3765 = vsel %vm1711, %v3716, 0
      %v3768 = vsel %vm1711, %v3717, 0
      %v3771 = vsel %vm1711, %v3718, 0
      %v3774 = vsel %vm1711, %v3719, 0
      %v3777 = vsel %vm1711, %v3720, 0
      %v3780 = vsel %vm1711, %v3721, 0
      %v3783 = vsel %vm1711, %v3722, 0
      %v3786 = vsel %vm1711, %v3723, 0
      %v3789 = vsel %vm1711, %v3724, 0
      %v3792 = vsel %vm1711, %v3725, 0
      %v3795 = vsel %vm1711, %v3726, 0
      %v3798 = vsel %vm1711, %v3727, 0
      %3800 = vmatpush.bf16.msra.mxu0 0
      %3801 = vmatpush.bf16.msra.mxu0 0
      %3802 = vmatpush.bf16.msra.mxu0 0
      %3803 = vmatpush.bf16.msra.mxu0 0
      %3804 = vmatpush.bf16.msra.mxu0 %v3747
      %3805 = vmatpush.bf16.msra.mxu0 %v3746
      %3806 = vmatpush.bf16.msra.mxu0 %v3745
      %3807 = vmatpush.bf16.msra.mxu0 %v3744
      %3808 = vmatmul.bf16.gmra.mxu0 %v3753
      %v3809 = vpop.f32.mrf.mxu0
      %v3810 = vadd.f32 0.0, %v3809
      %v3811 = vpop.f32.mrf.mxu0
      %v3812 = vadd.f32 0.0, %v3811
      %3813 = vmatmul.bf16.gmra.mxu0 %v3756
      %v3814 = vpop.f32.mrf.mxu0
      %v3815 = vadd.f32 0.0, %v3814
      %v3816 = vpop.f32.mrf.mxu0
      %v3817 = vadd.f32 0.0, %v3816
      %3818 = vmatmul.bf16.gmra.mxu0 %v3759
      %v3819 = vpop.f32.mrf.mxu0
      %v3820 = vadd.f32 0.0, %v3819
      %v3821 = vpop.f32.mrf.mxu0
      %v3822 = vadd.f32 0.0, %v3821
      %3823 = vmatmul.bf16.gmra.mxu0 %v3762
      %v3824 = vpop.f32.mrf.mxu0
      %v3825 = vadd.f32 0.0, %v3824
      %v3826 = vpop.f32.mrf.mxu0
      %v3827 = vadd.f32 0.0, %v3826
      %3828 = vmatmul.bf16.gmra.mxu0 %v3765
      %v3829 = vpop.f32.mrf.mxu0
      %v3830 = vadd.f32 0.0, %v3829
      %v3831 = vpop.f32.mrf.mxu0
      %v3832 = vadd.f32 0.0, %v3831
      %3833 = vmatmul.bf16.gmra.mxu0 %v3768
      %v3834 = vpop.f32.mrf.mxu0
      %v3835 = vadd.f32 0.0, %v3834
      %v3836 = vpop.f32.mrf.mxu0
      %v3837 = vadd.f32 0.0, %v3836
      %3838 = vmatmul.bf16.gmra.mxu0 %v3771
      %v3839 = vpop.f32.mrf.mxu0
      %v3840 = vadd.f32 0.0, %v3839
      %v3841 = vpop.f32.mrf.mxu0
      %v3842 = vadd.f32 0.0, %v3841
      %3843 = vmatmul.bf16.gmra.mxu0 %v3774
      %v3844 = vpop.f32.mrf.mxu0
      %v3845 = vadd.f32 0.0, %v3844
      %v3846 = vpop.f32.mrf.mxu0
      %v3847 = vadd.f32 0.0, %v3846
      %3848 = vmatmul.bf16.gmra.mxu0 %v3777
      %v3849 = vpop.f32.mrf.mxu0
      %v3850 = vadd.f32 0.0, %v3849
      %v3851 = vpop.f32.mrf.mxu0
      %v3852 = vadd.f32 0.0, %v3851
      %3853 = vmatmul.bf16.gmra.mxu0 %v3780
      %v3854 = vpop.f32.mrf.mxu0
      %v3855 = vadd.f32 0.0, %v3854
      %v3856 = vpop.f32.mrf.mxu0
      %v3857 = vadd.f32 0.0, %v3856
      %3858 = vmatmul.bf16.gmra.mxu0 %v3783
      %v3859 = vpop.f32.mrf.mxu0
      %v3860 = vadd.f32 0.0, %v3859
      %v3861 = vpop.f32.mrf.mxu0
      %v3862 = vadd.f32 0.0, %v3861
      %3863 = vmatmul.bf16.gmra.mxu0 %v3786
      %v3864 = vpop.f32.mrf.mxu0
      %v3865 = vadd.f32 0.0, %v3864
      %v3866 = vpop.f32.mrf.mxu0
      %v3867 = vadd.f32 0.0, %v3866
      %3868 = vmatmul.bf16.gmra.mxu0 %v3789
      %v3869 = vpop.f32.mrf.mxu0
      %v3870 = vadd.f32 0.0, %v3869
      %v3871 = vpop.f32.mrf.mxu0
      %v3872 = vadd.f32 0.0, %v3871
      %3873 = vmatmul.bf16.gmra.mxu0 %v3792
      %v3874 = vpop.f32.mrf.mxu0
      %v3875 = vadd.f32 0.0, %v3874
      %v3876 = vpop.f32.mrf.mxu0
      %v3877 = vadd.f32 0.0, %v3876
      %3878 = vmatmul.bf16.gmra.mxu0 %v3795
      %v3879 = vpop.f32.mrf.mxu0
      %v3880 = vadd.f32 0.0, %v3879
      %v3881 = vpop.f32.mrf.mxu0
      %v3882 = vadd.f32 0.0, %v3881
      %3883 = vmatmul.bf16.gmra.mxu0 %v3798
      %v3884 = vpop.f32.mrf.mxu0
      %v3885 = vadd.f32 0.0, %v3884
      %v3886 = vpop.f32.mrf.mxu0
      %v3887 = vadd.f32 0.0, %v3886
      %3888 = vdwg.mxu0
      %v3889 = vadd.f32 %v3464, %v3810
      %v3890 = vadd.f32 %v3465, %v3812
      %v3891 = vadd.f32 %v3466, %v3815
      %v3892 = vadd.f32 %v3467, %v3817
      %v3893 = vadd.f32 %v3468, %v3820
      %v3894 = vadd.f32 %v3469, %v3822
      %v3895 = vadd.f32 %v3470, %v3825
      %v3896 = vadd.f32 %v3471, %v3827
      %v3897 = vadd.f32 %v3472, %v3830
      %v3898 = vadd.f32 %v3473, %v3832
      %v3899 = vadd.f32 %v3474, %v3835
      %v3900 = vadd.f32 %v3475, %v3837
      %v3901 = vadd.f32 %v3476, %v3840
      %v3902 = vadd.f32 %v3477, %v3842
      %v3903 = vadd.f32 %v3478, %v3845
      %v3904 = vadd.f32 %v3479, %v3847
      %v3905 = vadd.f32 %v3480, %v3850
      %v3906 = vadd.f32 %v3481, %v3852
      %v3907 = vadd.f32 %v3482, %v3855
      %v3908 = vadd.f32 %v3483, %v3857
      %v3909 = vadd.f32 %v3484, %v3860
      %v3910 = vadd.f32 %v3485, %v3862
      %v3911 = vadd.f32 %v3486, %v3865
      %v3912 = vadd.f32 %v3487, %v3867
      %v3913 = vadd.f32 %v3488, %v3870
      %v3914 = vadd.f32 %v3489, %v3872
      %v3915 = vadd.f32 %v3490, %v3875
      %v3916 = vadd.f32 %v3491, %v3877
      %v3917 = vadd.f32 %v3492, %v3880
      %v3918 = vadd.f32 %v3493, %v3882
      %v3919 = vadd.f32 %v3494, %v3885
      %v3920 = vadd.f32 %v3495, %v3887
      %s3921 = scalar_lea.vmem [#allocation2], 24
      %v3922 = vld [vmem:[%s3921] sm:$0xf]
      %v3923 = vld [vmem:[%s3921 + $0x4] sm:$0xf]
      %v3924 = vld [vmem:[%s3921 + $0xc] sm:$0xf]
      %v3925 = vld [vmem:[%s3921 + $0x10] sm:$0xf]
      %v3926 = vld [vmem:[%s3921 + $0x18] sm:$0xf]
      %v3927 = vld [vmem:[%s3921 + $0x1c] sm:$0xf]
      %v3928 = vld [vmem:[%s3921 + $0x24] sm:$0xf]
      %v3929 = vld [vmem:[%s3921 + $0x28] sm:$0xf]
      %v3930 = vld [vmem:[%s3921 + $0x30] sm:$0xf]
      %v3931 = vld [vmem:[%s3921 + $0x34] sm:$0xf]
      %v3932 = vld [vmem:[%s3921 + $0x3c] sm:$0xf]
      %v3933 = vld [vmem:[%s3921 + $0x40] sm:$0xf]
      %v3934 = vld [vmem:[%s3921 + $0x48] sm:$0xf]
      %v3935 = vld [vmem:[%s3921 + $0x4c] sm:$0xf]
      %v3936 = vld [vmem:[%s3921 + $0x54] sm:$0xf]
      %v3937 = vld [vmem:[%s3921 + $0x58] sm:$0xf]
      %v3938 = vld [vmem:[%s3921 + $0x60] sm:$0xf]
      %v3939 = vld [vmem:[%s3921 + $0x64] sm:$0xf]
      %v3940 = vld [vmem:[%s3921 + $0x6c] sm:$0xf]
      %v3941 = vld [vmem:[%s3921 + $0x70] sm:$0xf]
      %v3942 = vld [vmem:[%s3921 + $0x78] sm:$0xf]
      %v3943 = vld [vmem:[%s3921 + $0x7c] sm:$0xf]
      %v3944 = vld [vmem:[%s3921 + $0x84] sm:$0xf]
      %v3945 = vld [vmem:[%s3921 + $0x88] sm:$0xf]
      %v3946 = vld [vmem:[%s3921 + $0x90] sm:$0xf]
      %v3947 = vld [vmem:[%s3921 + $0x94] sm:$0xf]
      %v3948 = vld [vmem:[%s3921 + $0x9c] sm:$0xf]
      %v3949 = vld [vmem:[%s3921 + $0xa0] sm:$0xf]
      %v3950 = vld [vmem:[%s3921 + $0xa8] sm:$0xf]
      %v3951 = vld [vmem:[%s3921 + $0xac] sm:$0xf]
      %v3952 = vld [vmem:[%s3921 + $0xb4] sm:$0xf]
      %v3953 = vld [vmem:[%s3921 + $0xb8] sm:$0xf]
      %v3954 = vld [vmem:[%s2 + $0xc0] sm:$0xf]
      %v3955 = vld [vmem:[%s2 + $0xc4] sm:$0xf]
      %v3956 = vld [vmem:[%s2 + $0xc8] sm:$0xf]
      %v3957 = vld [vmem:[%s2 + $0xcc] sm:$0xf]
      %v3958 = vld [vmem:[%s2 + $0xd0] sm:$0xf]
      %v3959 = vld [vmem:[%s2 + $0xd4] sm:$0xf]
      %v3960 = vld [vmem:[%s2 + $0xd8] sm:$0xf]
      %v3961 = vld [vmem:[%s2 + $0xdc] sm:$0xf]
      %v3994 = vunpack.c.l.b16 %v3922
      %v3995 = vunpack.c.l.b16 %v3923
      %v3996 = vunpack.c.l.b16 %v3924
      %v3997 = vunpack.c.l.b16 %v3925
      %v3998 = vunpack.c.l.b16 %v3926
      %v3999 = vunpack.c.l.b16 %v3927
      %v4000 = vunpack.c.l.b16 %v3928
      %v4001 = vunpack.c.l.b16 %v3929
      %v4002 = vunpack.c.l.b16 %v3930
      %v4003 = vunpack.c.l.b16 %v3931
      %v4004 = vunpack.c.l.b16 %v3932
      %v4005 = vunpack.c.l.b16 %v3933
      %v4006 = vunpack.c.l.b16 %v3934
      %v4007 = vunpack.c.l.b16 %v3935
      %v4008 = vunpack.c.l.b16 %v3936
      %v4009 = vunpack.c.l.b16 %v3937
      %v4010 = vunpack.c.l.b16 %v3938
      %v4011 = vunpack.c.l.b16 %v3939
      %v4012 = vunpack.c.l.b16 %v3940
      %v4013 = vunpack.c.l.b16 %v3941
      %v4014 = vunpack.c.l.b16 %v3942
      %v4015 = vunpack.c.l.b16 %v3943
      %v4016 = vunpack.c.l.b16 %v3944
      %v4017 = vunpack.c.l.b16 %v3945
      %v4018 = vunpack.c.l.b16 %v3946
      %v4019 = vunpack.c.l.b16 %v3947
      %v4020 = vunpack.c.l.b16 %v3948
      %v4021 = vunpack.c.l.b16 %v3949
      %v4022 = vunpack.c.l.b16 %v3950
      %v4023 = vunpack.c.l.b16 %v3951
      %v4024 = vunpack.c.l.b16 %v3952
      %v4025 = vunpack.c.l.b16 %v3953
      %v4026 = vpack.c.b16 %v3995, %v3994
      %v4027 = vpack.c.b16 %v3997, %v3996
      %v4028 = vpack.c.b16 %v3999, %v3998
      %v4029 = vpack.c.b16 %v4001, %v4000
      %v4030 = vpack.c.b16 %v4003, %v4002
      %v4031 = vpack.c.b16 %v4005, %v4004
      %v4032 = vpack.c.b16 %v4007, %v4006
      %v4033 = vpack.c.b16 %v4009, %v4008
      %v4034 = vpack.c.b16 %v4011, %v4010
      %v4035 = vpack.c.b16 %v4013, %v4012
      %v4036 = vpack.c.b16 %v4015, %v4014
      %v4037 = vpack.c.b16 %v4017, %v4016
      %v4038 = vpack.c.b16 %v4019, %v4018
      %v4039 = vpack.c.b16 %v4021, %v4020
      %v4040 = vpack.c.b16 %v4023, %v4022
      %v4041 = vpack.c.b16 %v4025, %v4024
      %v4050 = vunpack.c.l.b16 %v3954
      %v4051 = vunpack.c.l.b16 %v3955
      %v4052 = vunpack.c.l.b16 %v3956
      %v4053 = vunpack.c.l.b16 %v3957
      %v4054 = vunpack.c.l.b16 %v3958
      %v4055 = vunpack.c.l.b16 %v3959
      %v4056 = vunpack.c.l.b16 %v3960
      %v4057 = vunpack.c.l.b16 %v3961
      %v4058 = vpack.c.b16 %v4051, %v4050
      %v4059 = vpack.c.b16 %v4053, %v4052
      %v4060 = vpack.c.b16 %v4055, %v4054
      %v4061 = vpack.c.b16 %v4057, %v4056
      %v4067 = vsel %vm1711, %v4026, 0
      %v4070 = vsel %vm1711, %v4027, 0
      %v4073 = vsel %vm1711, %v4028, 0
      %v4076 = vsel %vm1711, %v4029, 0
      %v4079 = vsel %vm1711, %v4030, 0
      %v4082 = vsel %vm1711, %v4031, 0
      %v4085 = vsel %vm1711, %v4032, 0
      %v4088 = vsel %vm1711, %v4033, 0
      %v4091 = vsel %vm1711, %v4034, 0
      %v4094 = vsel %vm1711, %v4035, 0
      %v4097 = vsel %vm1711, %v4036, 0
      %v4100 = vsel %vm1711, %v4037, 0
      %v4103 = vsel %vm1711, %v4038, 0
      %v4106 = vsel %vm1711, %v4039, 0
      %v4109 = vsel %vm1711, %v4040, 0
      %v4112 = vsel %vm1711, %v4041, 0
      %4114 = vmatpush.bf16.msra.mxu0 0
      %4115 = vmatpush.bf16.msra.mxu0 0
      %4116 = vmatpush.bf16.msra.mxu0 0
      %4117 = vmatpush.bf16.msra.mxu0 0
      %4118 = vmatpush.bf16.msra.mxu0 %v4061
      %4119 = vmatpush.bf16.msra.mxu0 %v4060
      %4120 = vmatpush.bf16.msra.mxu0 %v4059
      %4121 = vmatpush.bf16.msra.mxu0 %v4058
      %4122 = vmatmul.bf16.gmra.mxu0 %v4067
      %v4123 = vpop.f32.mrf.mxu0
      %v4124 = vadd.f32 0.0, %v4123
      %v4125 = vpop.f32.mrf.mxu0
      %v4126 = vadd.f32 0.0, %v4125
      %4127 = vmatmul.bf16.gmra.mxu0 %v4070
      %v4128 = vpop.f32.mrf.mxu0
      %v4129 = vadd.f32 0.0, %v4128
      %v4130 = vpop.f32.mrf.mxu0
      %v4131 = vadd.f32 0.0, %v4130
      %4132 = vmatmul.bf16.gmra.mxu0 %v4073
      %v4133 = vpop.f32.mrf.mxu0
      %v4134 = vadd.f32 0.0, %v4133
      %v4135 = vpop.f32.mrf.mxu0
      %v4136 = vadd.f32 0.0, %v4135
      %4137 = vmatmul.bf16.gmra.mxu0 %v4076
      %v4138 = vpop.f32.mrf.mxu0
      %v4139 = vadd.f32 0.0, %v4138
      %v4140 = vpop.f32.mrf.mxu0
      %v4141 = vadd.f32 0.0, %v4140
      %4142 = vmatmul.bf16.gmra.mxu0 %v4079
      %v4143 = vpop.f32.mrf.mxu0
      %v4144 = vadd.f32 0.0, %v4143
      %v4145 = vpop.f32.mrf.mxu0
      %v4146 = vadd.f32 0.0, %v4145
      %4147 = vmatmul.bf16.gmra.mxu0 %v4082
      %v4148 = vpop.f32.mrf.mxu0
      %v4149 = vadd.f32 0.0, %v4148
      %v4150 = vpop.f32.mrf.mxu0
      %v4151 = vadd.f32 0.0, %v4150
      %4152 = vmatmul.bf16.gmra.mxu0 %v4085
      %v4153 = vpop.f32.mrf.mxu0
      %v4154 = vadd.f32 0.0, %v4153
      %v4155 = vpop.f32.mrf.mxu0
      %v4156 = vadd.f32 0.0, %v4155
      %4157 = vmatmul.bf16.gmra.mxu0 %v4088
      %v4158 = vpop.f32.mrf.mxu0
      %v4159 = vadd.f32 0.0, %v4158
      %v4160 = vpop.f32.mrf.mxu0
      %v4161 = vadd.f32 0.0, %v4160
      %4162 = vmatmul.bf16.gmra.mxu0 %v4091
      %v4163 = vpop.f32.mrf.mxu0
      %v4164 = vadd.f32 0.0, %v4163
      %v4165 = vpop.f32.mrf.mxu0
      %v4166 = vadd.f32 0.0, %v4165
      %4167 = vmatmul.bf16.gmra.mxu0 %v4094
      %v4168 = vpop.f32.mrf.mxu0
      %v4169 = vadd.f32 0.0, %v4168
      %v4170 = vpop.f32.mrf.mxu0
      %v4171 = vadd.f32 0.0, %v4170
      %4172 = vmatmul.bf16.gmra.mxu0 %v4097
      %v4173 = vpop.f32.mrf.mxu0
      %v4174 = vadd.f32 0.0, %v4173
      %v4175 = vpop.f32.mrf.mxu0
      %v4176 = vadd.f32 0.0, %v4175
      %4177 = vmatmul.bf16.gmra.mxu0 %v4100
      %v4178 = vpop.f32.mrf.mxu0
      %v4179 = vadd.f32 0.0, %v4178
      %v4180 = vpop.f32.mrf.mxu0
      %v4181 = vadd.f32 0.0, %v4180
      %4182 = vmatmul.bf16.gmra.mxu0 %v4103
      %v4183 = vpop.f32.mrf.mxu0
      %v4184 = vadd.f32 0.0, %v4183
      %v4185 = vpop.f32.mrf.mxu0
      %v4186 = vadd.f32 0.0, %v4185
      %4187 = vmatmul.bf16.gmra.mxu0 %v4106
      %v4188 = vpop.f32.mrf.mxu0
      %v4189 = vadd.f32 0.0, %v4188
      %v4190 = vpop.f32.mrf.mxu0
      %v4191 = vadd.f32 0.0, %v4190
      %4192 = vmatmul.bf16.gmra.mxu0 %v4109
      %v4193 = vpop.f32.mrf.mxu0
      %v4194 = vadd.f32 0.0, %v4193
      %v4195 = vpop.f32.mrf.mxu0
      %v4196 = vadd.f32 0.0, %v4195
      %4197 = vmatmul.bf16.gmra.mxu0 %v4112
      %v4198 = vpop.f32.mrf.mxu0
      %v4199 = vadd.f32 0.0, %v4198
      %v4200 = vpop.f32.mrf.mxu0
      %v4201 = vadd.f32 0.0, %v4200
      %4202 = vdwg.mxu0
      %v4203 = vadd.f32 %v3889, %v4124
      %v4204 = vadd.f32 %v3890, %v4126
      %v4205 = vadd.f32 %v3891, %v4129
      %v4206 = vadd.f32 %v3892, %v4131
      %v4207 = vadd.f32 %v3893, %v4134
      %v4208 = vadd.f32 %v3894, %v4136
      %v4209 = vadd.f32 %v3895, %v4139
      %v4210 = vadd.f32 %v3896, %v4141
      %v4211 = vadd.f32 %v3897, %v4144
      %v4212 = vadd.f32 %v3898, %v4146
      %v4213 = vadd.f32 %v3899, %v4149
      %v4214 = vadd.f32 %v3900, %v4151
      %v4215 = vadd.f32 %v3901, %v4154
      %v4216 = vadd.f32 %v3902, %v4156
      %v4217 = vadd.f32 %v3903, %v4159
      %v4218 = vadd.f32 %v3904, %v4161
      %v4219 = vadd.f32 %v3905, %v4164
      %v4220 = vadd.f32 %v3906, %v4166
      %v4221 = vadd.f32 %v3907, %v4169
      %v4222 = vadd.f32 %v3908, %v4171
      %v4223 = vadd.f32 %v3909, %v4174
      %v4224 = vadd.f32 %v3910, %v4176
      %v4225 = vadd.f32 %v3911, %v4179
      %v4226 = vadd.f32 %v3912, %v4181
      %v4227 = vadd.f32 %v3913, %v4184
      %v4228 = vadd.f32 %v3914, %v4186
      %v4229 = vadd.f32 %v3915, %v4189
      %v4230 = vadd.f32 %v3916, %v4191
      %v4231 = vadd.f32 %v3917, %v4194
      %v4232 = vadd.f32 %v3918, %v4196
      %v4233 = vadd.f32 %v3919, %v4199
      %v4234 = vadd.f32 %v3920, %v4201
      %v4235 = vld [vmem:[%s3921] sm:$0xf]
      %v4236 = vld [vmem:[%s3921 + $0x4] sm:$0xf]
      %v4237 = vld [vmem:[%s3921 + $0x8] sm:$0x1]
      %v4238 = vld [vmem:[%s3921 + $0xc] sm:$0xf]
      %v4239 = vld [vmem:[%s3921 + $0x10] sm:$0xf]
      %v4240 = vld [vmem:[%s3921 + $0x14] sm:$0x1]
      %v4241 = vld [vmem:[%s3921 + $0x18] sm:$0xf]
      %v4242 = vld [vmem:[%s3921 + $0x1c] sm:$0xf]
      %v4243 = vld [vmem:[%s3921 + $0x20] sm:$0x1]
      %v4244 = vld [vmem:[%s3921 + $0x24] sm:$0xf]
      %v4245 = vld [vmem:[%s3921 + $0x28] sm:$0xf]
      %v4246 = vld [vmem:[%s3921 + $0x2c] sm:$0x1]
      %v4247 = vld [vmem:[%s3921 + $0x30] sm:$0xf]
      %v4248 = vld [vmem:[%s3921 + $0x34] sm:$0xf]
      %v4249 = vld [vmem:[%s3921 + $0x38] sm:$0x1]
      %v4250 = vld [vmem:[%s3921 + $0x3c] sm:$0xf]
      %v4251 = vld [vmem:[%s3921 + $0x40] sm:$0xf]
      %v4252 = vld [vmem:[%s3921 + $0x44] sm:$0x1]
      %v4253 = vld [vmem:[%s3921 + $0x48] sm:$0xf]
      %v4254 = vld [vmem:[%s3921 + $0x4c] sm:$0xf]
      %v4255 = vld [vmem:[%s3921 + $0x50] sm:$0x1]
      %v4256 = vld [vmem:[%s3921 + $0x54] sm:$0xf]
      %v4257 = vld [vmem:[%s3921 + $0x58] sm:$0xf]
      %v4258 = vld [vmem:[%s3921 + $0x5c] sm:$0x1]
      %v4259 = vld [vmem:[%s3921 + $0x60] sm:$0xf]
      %v4260 = vld [vmem:[%s3921 + $0x64] sm:$0xf]
      %v4261 = vld [vmem:[%s3921 + $0x68] sm:$0x1]
      %v4262 = vld [vmem:[%s3921 + $0x6c] sm:$0xf]
      %v4263 = vld [vmem:[%s3921 + $0x70] sm:$0xf]
      %v4264 = vld [vmem:[%s3921 + $0x74] sm:$0x1]
      %v4265 = vld [vmem:[%s3921 + $0x78] sm:$0xf]
      %v4266 = vld [vmem:[%s3921 + $0x7c] sm:$0xf]
      %v4267 = vld [vmem:[%s3921 + $0x80] sm:$0x1]
      %v4268 = vld [vmem:[%s3921 + $0x84] sm:$0xf]
      %v4269 = vld [vmem:[%s3921 + $0x88] sm:$0xf]
      %v4270 = vld [vmem:[%s3921 + $0x8c] sm:$0x1]
      %v4271 = vld [vmem:[%s3921 + $0x90] sm:$0xf]
      %v4272 = vld [vmem:[%s3921 + $0x94] sm:$0xf]
      %v4273 = vld [vmem:[%s3921 + $0x98] sm:$0x1]
      %v4274 = vld [vmem:[%s3921 + $0x9c] sm:$0xf]
      %v4275 = vld [vmem:[%s3921 + $0xa0] sm:$0xf]
      %v4276 = vld [vmem:[%s3921 + $0xa4] sm:$0x1]
      %v4277 = vld [vmem:[%s3921 + $0xa8] sm:$0xf]
      %v4278 = vld [vmem:[%s3921 + $0xac] sm:$0xf]
      %v4279 = vld [vmem:[%s3921 + $0xb0] sm:$0x1]
      %v4280 = vld [vmem:[%s3921 + $0xb4] sm:$0xf]
      %v4281 = vld [vmem:[%s3921 + $0xb8] sm:$0xf]
      %v4282 = vld [vmem:[%s3921 + $0xbc] sm:$0x1]
      %v4284 = vshrl.u32 %v4235, 16
      %v4286 = vrot.slane %v4284, 4
      %v4287 = vshll.u32 %v4235, 16
      %v4289 = vrot.slane %v4287, 5
      %v4290 = vor.u32 %v4286, %v4289
      %v4291 = vrot.slane %v4290, 4
      %v4293 = vshll.u32 %v4236, 16
      %v4295 = vrot.slane %v4293, 5
      %v4296 = vsel %vm1246, %v4291, %v4295
      %v4297 = vshrl.u32 %v4236, 16
      %v4299 = vrot.slane %v4297, 4
      %v4300 = vor.u32 %v4299, %v4295
      %v4301 = vrot.slane %v4300, 4
      %v4303 = vshll.u32 %v4237, 16
      %v4305 = vrot.slane %v4303, 5
      %v4306 = vsel %vm1246, %v4301, %v4305
      %v4308 = vshrl.u32 %v4238, 16
      %v4310 = vrot.slane %v4308, 4
      %v4311 = vshll.u32 %v4238, 16
      %v4313 = vrot.slane %v4311, 5
      %v4314 = vor.u32 %v4310, %v4313
      %v4315 = vrot.slane %v4314, 4
      %v4317 = vshll.u32 %v4239, 16
      %v4319 = vrot.slane %v4317, 5
      %v4320 = vsel %vm1246, %v4315, %v4319
      %v4321 = vshrl.u32 %v4239, 16
      %v4323 = vrot.slane %v4321, 4
      %v4324 = vor.u32 %v4323, %v4319
      %v4325 = vrot.slane %v4324, 4
      %v4327 = vshll.u32 %v4240, 16
      %v4329 = vrot.slane %v4327, 5
      %v4330 = vsel %vm1246, %v4325, %v4329
      %v4332 = vshrl.u32 %v4241, 16
      %v4334 = vrot.slane %v4332, 4
      %v4335 = vshll.u32 %v4241, 16
      %v4337 = vrot.slane %v4335, 5
      %v4338 = vor.u32 %v4334, %v4337
      %v4339 = vrot.slane %v4338, 4
      %v4341 = vshll.u32 %v4242, 16
      %v4343 = vrot.slane %v4341, 5
      %v4344 = vsel %vm1246, %v4339, %v4343
      %v4345 = vshrl.u32 %v4242, 16
      %v4347 = vrot.slane %v4345, 4
      %v4348 = vor.u32 %v4347, %v4343
      %v4349 = vrot.slane %v4348, 4
      %v4351 = vshll.u32 %v4243, 16
      %v4353 = vrot.slane %v4351, 5
      %v4354 = vsel %vm1246, %v4349, %v4353
      %v4356 = vshrl.u32 %v4244, 16
      %v4358 = vrot.slane %v4356, 4
      %v4359 = vshll.u32 %v4244, 16
      %v4361 = vrot.slane %v4359, 5
      %v4362 = vor.u32 %v4358, %v4361
      %v4363 = vrot.slane %v4362, 4
      %v4365 = vshll.u32 %v4245, 16
      %v4367 = vrot.slane %v4365, 5
      %v4368 = vsel %vm1246, %v4363, %v4367
      %v4369 = vshrl.u32 %v4245, 16
      %v4371 = vrot.slane %v4369, 4
      %v4372 = vor.u32 %v4371, %v4367
      %v4373 = vrot.slane %v4372, 4
      %v4375 = vshll.u32 %v4246, 16
      %v4377 = vrot.slane %v4375, 5
      %v4378 = vsel %vm1246, %v4373, %v4377
      %v4380 = vshrl.u32 %v4247, 16
      %v4382 = vrot.slane %v4380, 4
      %v4383 = vshll.u32 %v4247, 16
      %v4385 = vrot.slane %v4383, 5
      %v4386 = vor.u32 %v4382, %v4385
      %v4387 = vrot.slane %v4386, 4
      %v4389 = vshll.u32 %v4248, 16
      %v4391 = vrot.slane %v4389, 5
      %v4392 = vsel %vm1246, %v4387, %v4391
      %v4393 = vshrl.u32 %v4248, 16
      %v4395 = vrot.slane %v4393, 4
      %v4396 = vor.u32 %v4395, %v4391
      %v4397 = vrot.slane %v4396, 4
      %v4399 = vshll.u32 %v4249, 16
      %v4401 = vrot.slane %v4399, 5
      %v4402 = vsel %vm1246, %v4397, %v4401
      %v4404 = vshrl.u32 %v4250, 16
      %v4406 = vrot.slane %v4404, 4
      %v4407 = vshll.u32 %v4250, 16
      %v4409 = vrot.slane %v4407, 5
      %v4410 = vor.u32 %v4406, %v4409
      %v4411 = vrot.slane %v4410, 4
      %v4413 = vshll.u32 %v4251, 16
      %v4415 = vrot.slane %v4413, 5
      %v4416 = vsel %vm1246, %v4411, %v4415
      %v4417 = vshrl.u32 %v4251, 16
      %v4419 = vrot.slane %v4417, 4
      %v4420 = vor.u32 %v4419, %v4415
      %v4421 = vrot.slane %v4420, 4
      %v4423 = vshll.u32 %v4252, 16
      %v4425 = vrot.slane %v4423, 5
      %v4426 = vsel %vm1246, %v4421, %v4425
      %v4428 = vshrl.u32 %v4253, 16
      %v4430 = vrot.slane %v4428, 4
      %v4431 = vshll.u32 %v4253, 16
      %v4433 = vrot.slane %v4431, 5
      %v4434 = vor.u32 %v4430, %v4433
      %v4435 = vrot.slane %v4434, 4
      %v4437 = vshll.u32 %v4254, 16
      %v4439 = vrot.slane %v4437, 5
      %v4440 = vsel %vm1246, %v4435, %v4439
      %v4441 = vshrl.u32 %v4254, 16
      %v4443 = vrot.slane %v4441, 4
      %v4444 = vor.u32 %v4443, %v4439
      %v4445 = vrot.slane %v4444, 4
      %v4447 = vshll.u32 %v4255, 16
      %v4449 = vrot.slane %v4447, 5
      %v4450 = vsel %vm1246, %v4445, %v4449
      %v4452 = vshrl.u32 %v4256, 16
      %v4454 = vrot.slane %v4452, 4
      %v4455 = vshll.u32 %v4256, 16
      %v4457 = vrot.slane %v4455, 5
      %v4458 = vor.u32 %v4454, %v4457
      %v4459 = vrot.slane %v4458, 4
      %v4461 = vshll.u32 %v4257, 16
      %v4463 = vrot.slane %v4461, 5
      %v4464 = vsel %vm1246, %v4459, %v4463
      %v4465 = vshrl.u32 %v4257, 16
      %v4467 = vrot.slane %v4465, 4
      %v4468 = vor.u32 %v4467, %v4463
      %v4469 = vrot.slane %v4468, 4
      %v4471 = vshll.u32 %v4258, 16
      %v4473 = vrot.slane %v4471, 5
      %v4474 = vsel %vm1246, %v4469, %v4473
      %v4476 = vshrl.u32 %v4259, 16
      %v4478 = vrot.slane %v4476, 4
      %v4479 = vshll.u32 %v4259, 16
      %v4481 = vrot.slane %v4479, 5
      %v4482 = vor.u32 %v4478, %v4481
      %v4483 = vrot.slane %v4482, 4
      %v4485 = vshll.u32 %v4260, 16
      %v4487 = vrot.slane %v4485, 5
      %v4488 = vsel %vm1246, %v4483, %v4487
      %v4489 = vshrl.u32 %v4260, 16
      %v4491 = vrot.slane %v4489, 4
      %v4492 = vor.u32 %v4491, %v4487
      %v4493 = vrot.slane %v4492, 4
      %v4495 = vshll.u32 %v4261, 16
      %v4497 = vrot.slane %v4495, 5
      %v4498 = vsel %vm1246, %v4493, %v4497
      %v4500 = vshrl.u32 %v4262, 16
      %v4502 = vrot.slane %v4500, 4
      %v4503 = vshll.u32 %v4262, 16
      %v4505 = vrot.slane %v4503, 5
      %v4506 = vor.u32 %v4502, %v4505
      %v4507 = vrot.slane %v4506, 4
      %v4509 = vshll.u32 %v4263, 16
      %v4511 = vrot.slane %v4509, 5
      %v4512 = vsel %vm1246, %v4507, %v4511
      %v4513 = vshrl.u32 %v4263, 16
      %v4515 = vrot.slane %v4513, 4
      %v4516 = vor.u32 %v4515, %v4511
      %v4517 = vrot.slane %v4516, 4
      %v4519 = vshll.u32 %v4264, 16
      %v4521 = vrot.slane %v4519, 5
      %v4522 = vsel %vm1246, %v4517, %v4521
      %v4524 = vshrl.u32 %v4265, 16
      %v4526 = vrot.slane %v4524, 4
      %v4527 = vshll.u32 %v4265, 16
      %v4529 = vrot.slane %v4527, 5
      %v4530 = vor.u32 %v4526, %v4529
      %v4531 = vrot.slane %v4530, 4
      %v4533 = vshll.u32 %v4266, 16
      %v4535 = vrot.slane %v4533, 5
      %v4536 = vsel %vm1246, %v4531, %v4535
      %v4537 = vshrl.u32 %v4266, 16
      %v4539 = vrot.slane %v4537, 4
      %v4540 = vor.u32 %v4539, %v4535
      %v4541 = vrot.slane %v4540, 4
      %v4543 = vshll.u32 %v4267, 16
      %v4545 = vrot.slane %v4543, 5
      %v4546 = vsel %vm1246, %v4541, %v4545
      %v4548 = vshrl.u32 %v4268, 16
      %v4550 = vrot.slane %v4548, 4
      %v4551 = vshll.u32 %v4268, 16
      %v4553 = vrot.slane %v4551, 5
      %v4554 = vor.u32 %v4550, %v4553
      %v4555 = vrot.slane %v4554, 4
      %v4557 = vshll.u32 %v4269, 16
      %v4559 = vrot.slane %v4557, 5
      %v4560 = vsel %vm1246, %v4555, %v4559
      %v4561 = vshrl.u32 %v4269, 16
      %v4563 = vrot.slane %v4561, 4
      %v4564 = vor.u32 %v4563, %v4559
      %v4565 = vrot.slane %v4564, 4
      %v4567 = vshll.u32 %v4270, 16
      %v4569 = vrot.slane %v4567, 5
      %v4570 = vsel %vm1246, %v4565, %v4569
      %v4572 = vshrl.u32 %v4271, 16
      %v4574 = vrot.slane %v4572, 4
      %v4575 = vshll.u32 %v4271, 16
      %v4577 = vrot.slane %v4575, 5
      %v4578 = vor.u32 %v4574, %v4577
      %v4579 = vrot.slane %v4578, 4
      %v4581 = vshll.u32 %v4272, 16
      %v4583 = vrot.slane %v4581, 5
      %v4584 = vsel %vm1246, %v4579, %v4583
      %v4585 = vshrl.u32 %v4272, 16
      %v4587 = vrot.slane %v4585, 4
      %v4588 = vor.u32 %v4587, %v4583
      %v4589 = vrot.slane %v4588, 4
      %v4591 = vshll.u32 %v4273, 16
      %v4593 = vrot.slane %v4591, 5
      %v4594 = vsel %vm1246, %v4589, %v4593
      %v4596 = vshrl.u32 %v4274, 16
      %v4598 = vrot.slane %v4596, 4
      %v4599 = vshll.u32 %v4274, 16
      %v4601 = vrot.slane %v4599, 5
      %v4602 = vor.u32 %v4598, %v4601
      %v4603 = vrot.slane %v4602, 4
      %v4605 = vshll.u32 %v4275, 16
      %v4607 = vrot.slane %v4605, 5
      %v4608 = vsel %vm1246, %v4603, %v4607
      %v4609 = vshrl.u32 %v4275, 16
      %v4611 = vrot.slane %v4609, 4
      %v4612 = vor.u32 %v4611, %v4607
      %v4613 = vrot.slane %v4612, 4
      %v4615 = vshll.u32 %v4276, 16
      %v4617 = vrot.slane %v4615, 5
      %v4618 = vsel %vm1246, %v4613, %v4617
      %v4620 = vshrl.u32 %v4277, 16
      %v4622 = vrot.slane %v4620, 4
      %v4623 = vshll.u32 %v4277, 16
      %v4625 = vrot.slane %v4623, 5
      %v4626 = vor.u32 %v4622, %v4625
      %v4627 = vrot.slane %v4626, 4
      %v4629 = vshll.u32 %v4278, 16
      %v4631 = vrot.slane %v4629, 5
      %v4632 = vsel %vm1246, %v4627, %v4631
      %v4633 = vshrl.u32 %v4278, 16
      %v4635 = vrot.slane %v4633, 4
      %v4636 = vor.u32 %v4635, %v4631
      %v4637 = vrot.slane %v4636, 4
      %v4639 = vshll.u32 %v4279, 16
      %v4641 = vrot.slane %v4639, 5
      %v4642 = vsel %vm1246, %v4637, %v4641
      %v4644 = vshrl.u32 %v4280, 16
      %v4646 = vrot.slane %v4644, 4
      %v4647 = vshll.u32 %v4280, 16
      %v4649 = vrot.slane %v4647, 5
      %v4650 = vor.u32 %v4646, %v4649
      %v4651 = vrot.slane %v4650, 4
      %v4653 = vshll.u32 %v4281, 16
      %v4655 = vrot.slane %v4653, 5
      %v4656 = vsel %vm1246, %v4651, %v4655
      %v4657 = vshrl.u32 %v4281, 16
      %v4659 = vrot.slane %v4657, 4
      %v4660 = vor.u32 %v4659, %v4655
      %v4661 = vrot.slane %v4660, 4
      %v4663 = vshll.u32 %v4282, 16
      %v4665 = vrot.slane %v4663, 5
      %v4666 = vsel %vm1246, %v4661, %v4665
      %v4667 = vld [vmem:[%s2 + $0xe0] sm:$0xf]
      %v4668 = vld [vmem:[%s2 + $0xe4] sm:$0xf]
      %v4669 = vld [vmem:[%s2 + $0xe8] sm:$0xf]
      %v4670 = vld [vmem:[%s2 + $0xec] sm:$0xf]
      %v4671 = vld [vmem:[%s2 + $0xf0] sm:$0xf]
      %v4672 = vld [vmem:[%s2 + $0xf4] sm:$0xf]
      %v4673 = vld [vmem:[%s2 + $0xf8] sm:$0xf]
      %v4674 = vld [vmem:[%s2 + $0xfc] sm:$0xf]
      %v4675 = vunpack.c.l.b16 %v4296
      %v4676 = vunpack.c.l.b16 %v4306
      %v4677 = vunpack.c.l.b16 %v4320
      %v4678 = vunpack.c.l.b16 %v4330
      %v4679 = vunpack.c.l.b16 %v4344
      %v4680 = vunpack.c.l.b16 %v4354
      %v4681 = vunpack.c.l.b16 %v4368
      %v4682 = vunpack.c.l.b16 %v4378
      %v4683 = vunpack.c.l.b16 %v4392
      %v4684 = vunpack.c.l.b16 %v4402
      %v4685 = vunpack.c.l.b16 %v4416
      %v4686 = vunpack.c.l.b16 %v4426
      %v4687 = vunpack.c.l.b16 %v4440
      %v4688 = vunpack.c.l.b16 %v4450
      %v4689 = vunpack.c.l.b16 %v4464
      %v4690 = vunpack.c.l.b16 %v4474
      %v4691 = vunpack.c.l.b16 %v4488
      %v4692 = vunpack.c.l.b16 %v4498
      %v4693 = vunpack.c.l.b16 %v4512
      %v4694 = vunpack.c.l.b16 %v4522
      %v4695 = vunpack.c.l.b16 %v4536
      %v4696 = vunpack.c.l.b16 %v4546
      %v4697 = vunpack.c.l.b16 %v4560
      %v4698 = vunpack.c.l.b16 %v4570
      %v4699 = vunpack.c.l.b16 %v4584
      %v4700 = vunpack.c.l.b16 %v4594
      %v4701 = vunpack.c.l.b16 %v4608
      %v4702 = vunpack.c.l.b16 %v4618
      %v4703 = vunpack.c.l.b16 %v4632
      %v4704 = vunpack.c.l.b16 %v4642
      %v4705 = vunpack.c.l.b16 %v4656
      %v4706 = vunpack.c.l.b16 %v4666
      %v4707 = vpack.c.b16 %v4676, %v4675
      %v4708 = vpack.c.b16 %v4678, %v4677
      %v4709 = vpack.c.b16 %v4680, %v4679
      %v4710 = vpack.c.b16 %v4682, %v4681
      %v4711 = vpack.c.b16 %v4684, %v4683
      %v4712 = vpack.c.b16 %v4686, %v4685
      %v4713 = vpack.c.b16 %v4688, %v4687
      %v4714 = vpack.c.b16 %v4690, %v4689
      %v4715 = vpack.c.b16 %v4692, %v4691
      %v4716 = vpack.c.b16 %v4694, %v4693
      %v4717 = vpack.c.b16 %v4696, %v4695
      %v4718 = vpack.c.b16 %v4698, %v4697
      %v4719 = vpack.c.b16 %v4700, %v4699
      %v4720 = vpack.c.b16 %v4702, %v4701
      %v4721 = vpack.c.b16 %v4704, %v4703
      %v4722 = vpack.c.b16 %v4706, %v4705
      %v4731 = vunpack.c.l.b16 %v4667
      %v4732 = vunpack.c.l.b16 %v4668
      %v4733 = vunpack.c.l.b16 %v4669
      %v4734 = vunpack.c.l.b16 %v4670
      %v4735 = vunpack.c.l.b16 %v4671
      %v4736 = vunpack.c.l.b16 %v4672
      %v4737 = vunpack.c.l.b16 %v4673
      %v4738 = vunpack.c.l.b16 %v4674
      %v4739 = vpack.c.b16 %v4732, %v4731
      %v4740 = vpack.c.b16 %v4734, %v4733
      %v4741 = vpack.c.b16 %v4736, %v4735
      %v4742 = vpack.c.b16 %v4738, %v4737
      %v4748 = vsel %vm1711, %v4707, 0
      %v4751 = vsel %vm1711, %v4708, 0
      %v4754 = vsel %vm1711, %v4709, 0
      %v4757 = vsel %vm1711, %v4710, 0
      %v4760 = vsel %vm1711, %v4711, 0
      %v4763 = vsel %vm1711, %v4712, 0
      %v4766 = vsel %vm1711, %v4713, 0
      %v4769 = vsel %vm1711, %v4714, 0
      %v4772 = vsel %vm1711, %v4715, 0
      %v4775 = vsel %vm1711, %v4716, 0
      %v4778 = vsel %vm1711, %v4717, 0
      %v4781 = vsel %vm1711, %v4718, 0
      %v4784 = vsel %vm1711, %v4719, 0
      %v4787 = vsel %vm1711, %v4720, 0
      %v4790 = vsel %vm1711, %v4721, 0
      %v4793 = vsel %vm1711, %v4722, 0
      %4795 = vmatpush.bf16.msra.mxu0 0
      %4796 = vmatpush.bf16.msra.mxu0 0
      %4797 = vmatpush.bf16.msra.mxu0 0
      %4798 = vmatpush.bf16.msra.mxu0 0
      %4799 = vmatpush.bf16.msra.mxu0 %v4742
      %4800 = vmatpush.bf16.msra.mxu0 %v4741
      %4801 = vmatpush.bf16.msra.mxu0 %v4740
      %4802 = vmatpush.bf16.msra.mxu0 %v4739
      %4803 = vmatmul.bf16.gmra.mxu0 %v4748
      %v4804 = vpop.f32.mrf.mxu0
      %v4805 = vadd.f32 0.0, %v4804
      %v4806 = vpop.f32.mrf.mxu0
      %v4807 = vadd.f32 0.0, %v4806
      %4808 = vmatmul.bf16.gmra.mxu0 %v4751
      %v4809 = vpop.f32.mrf.mxu0
      %v4810 = vadd.f32 0.0, %v4809
      %v4811 = vpop.f32.mrf.mxu0
      %v4812 = vadd.f32 0.0, %v4811
      %4813 = vmatmul.bf16.gmra.mxu0 %v4754
      %v4814 = vpop.f32.mrf.mxu0
      %v4815 = vadd.f32 0.0, %v4814
      %v4816 = vpop.f32.mrf.mxu0
      %v4817 = vadd.f32 0.0, %v4816
      %4818 = vmatmul.bf16.gmra.mxu0 %v4757
      %v4819 = vpop.f32.mrf.mxu0
      %v4820 = vadd.f32 0.0, %v4819
      %v4821 = vpop.f32.mrf.mxu0
      %v4822 = vadd.f32 0.0, %v4821
      %4823 = vmatmul.bf16.gmra.mxu0 %v4760
      %v4824 = vpop.f32.mrf.mxu0
      %v4825 = vadd.f32 0.0, %v4824
      %v4826 = vpop.f32.mrf.mxu0
      %v4827 = vadd.f32 0.0, %v4826
      %4828 = vmatmul.bf16.gmra.mxu0 %v4763
      %v4829 = vpop.f32.mrf.mxu0
      %v4830 = vadd.f32 0.0, %v4829
      %v4831 = vpop.f32.mrf.mxu0
      %v4832 = vadd.f32 0.0, %v4831
      %4833 = vmatmul.bf16.gmra.mxu0 %v4766
      %v4834 = vpop.f32.mrf.mxu0
      %v4835 = vadd.f32 0.0, %v4834
      %v4836 = vpop.f32.mrf.mxu0
      %v4837 = vadd.f32 0.0, %v4836
      %4838 = vmatmul.bf16.gmra.mxu0 %v4769
      %v4839 = vpop.f32.mrf.mxu0
      %v4840 = vadd.f32 0.0, %v4839
      %v4841 = vpop.f32.mrf.mxu0
      %v4842 = vadd.f32 0.0, %v4841
      %4843 = vmatmul.bf16.gmra.mxu0 %v4772
      %v4844 = vpop.f32.mrf.mxu0
      %v4845 = vadd.f32 0.0, %v4844
      %v4846 = vpop.f32.mrf.mxu0
      %v4847 = vadd.f32 0.0, %v4846
      %4848 = vmatmul.bf16.gmra.mxu0 %v4775
      %v4849 = vpop.f32.mrf.mxu0
      %v4850 = vadd.f32 0.0, %v4849
      %v4851 = vpop.f32.mrf.mxu0
      %v4852 = vadd.f32 0.0, %v4851
      %4853 = vmatmul.bf16.gmra.mxu0 %v4778
      %v4854 = vpop.f32.mrf.mxu0
      %v4855 = vadd.f32 0.0, %v4854
      %v4856 = vpop.f32.mrf.mxu0
      %v4857 = vadd.f32 0.0, %v4856
      %4858 = vmatmul.bf16.gmra.mxu0 %v4781
      %v4859 = vpop.f32.mrf.mxu0
      %v4860 = vadd.f32 0.0, %v4859
      %v4861 = vpop.f32.mrf.mxu0
      %v4862 = vadd.f32 0.0, %v4861
      %4863 = vmatmul.bf16.gmra.mxu0 %v4784
      %v4864 = vpop.f32.mrf.mxu0
      %v4865 = vadd.f32 0.0, %v4864
      %v4866 = vpop.f32.mrf.mxu0
      %v4867 = vadd.f32 0.0, %v4866
      %4868 = vmatmul.bf16.gmra.mxu0 %v4787
      %v4869 = vpop.f32.mrf.mxu0
      %v4870 = vadd.f32 0.0, %v4869
      %v4871 = vpop.f32.mrf.mxu0
      %v4872 = vadd.f32 0.0, %v4871
      %4873 = vmatmul.bf16.gmra.mxu0 %v4790
      %v4874 = vpop.f32.mrf.mxu0
      %v4875 = vadd.f32 0.0, %v4874
      %v4876 = vpop.f32.mrf.mxu0
      %v4877 = vadd.f32 0.0, %v4876
      %4878 = vmatmul.bf16.gmra.mxu0 %v4793
      %v4879 = vpop.f32.mrf.mxu0
      %v4880 = vadd.f32 0.0, %v4879
      %v4881 = vpop.f32.mrf.mxu0
      %v4882 = vadd.f32 0.0, %v4881
      %4883 = vdwg.mxu0
      %v4884 = vadd.f32 %v4203, %v4805
      %v4885 = vadd.f32 %v4204, %v4807
      %v4886 = vadd.f32 %v4205, %v4810
      %v4887 = vadd.f32 %v4206, %v4812
      %v4888 = vadd.f32 %v4207, %v4815
      %v4889 = vadd.f32 %v4208, %v4817
      %v4890 = vadd.f32 %v4209, %v4820
      %v4891 = vadd.f32 %v4210, %v4822
      %v4892 = vadd.f32 %v4211, %v4825
      %v4893 = vadd.f32 %v4212, %v4827
      %v4894 = vadd.f32 %v4213, %v4830
      %v4895 = vadd.f32 %v4214, %v4832
      %v4896 = vadd.f32 %v4215, %v4835
      %v4897 = vadd.f32 %v4216, %v4837
      %v4898 = vadd.f32 %v4217, %v4840
      %v4899 = vadd.f32 %v4218, %v4842
      %v4900 = vadd.f32 %v4219, %v4845
      %v4901 = vadd.f32 %v4220, %v4847
      %v4902 = vadd.f32 %v4221, %v4850
      %v4903 = vadd.f32 %v4222, %v4852
      %v4904 = vadd.f32 %v4223, %v4855
      %v4905 = vadd.f32 %v4224, %v4857
      %v4906 = vadd.f32 %v4225, %v4860
      %v4907 = vadd.f32 %v4226, %v4862
      %v4908 = vadd.f32 %v4227, %v4865
      %v4909 = vadd.f32 %v4228, %v4867
      %v4910 = vadd.f32 %v4229, %v4870
      %v4911 = vadd.f32 %v4230, %v4872
      %v4912 = vadd.f32 %v4231, %v4875
      %v4913 = vadd.f32 %v4232, %v4877
      %v4914 = vadd.f32 %v4233, %v4880
      %v4915 = vadd.f32 %v4234, %v4882
      %v4916 = vld [vmem:[%s3921] sm:$0xe]
      %v4917 = vld [vmem:[%s3921 + $0xc] sm:$0xe]
      %v4918 = vld [vmem:[%s3921 + $0x18] sm:$0xe]
      %v4919 = vld [vmem:[%s3921 + $0x24] sm:$0xe]
      %v4920 = vld [vmem:[%s3921 + $0x30] sm:$0xe]
      %v4921 = vld [vmem:[%s3921 + $0x3c] sm:$0xe]
      %v4922 = vld [vmem:[%s3921 + $0x48] sm:$0xe]
      %v4923 = vld [vmem:[%s3921 + $0x54] sm:$0xe]
      %v4924 = vld [vmem:[%s3921 + $0x60] sm:$0xe]
      %v4925 = vld [vmem:[%s3921 + $0x6c] sm:$0xe]
      %v4926 = vld [vmem:[%s3921 + $0x78] sm:$0xe]
      %v4927 = vld [vmem:[%s3921 + $0x84] sm:$0xe]
      %v4928 = vld [vmem:[%s3921 + $0x90] sm:$0xe]
      %v4929 = vld [vmem:[%s3921 + $0x9c] sm:$0xe]
      %v4930 = vld [vmem:[%s3921 + $0xa8] sm:$0xe]
      %v4931 = vld [vmem:[%s3921 + $0xb4] sm:$0xe]
      %v4980 = vrot.slane %v4916, 5
      %v4981 = vrot.slane %v4980, 4
      %v4982 = vrot.slane %v4236, 5
      %v4983 = vsel %vm2140, %v4981, %v4982
      %v4984 = vrot.slane %v4982, 4
      %v4985 = vrot.slane %v4237, 5
      %v4986 = vsel %vm2140, %v4984, %v4985
      %v4987 = vrot.slane %v4917, 5
      %v4988 = vrot.slane %v4987, 4
      %v4989 = vrot.slane %v4239, 5
      %v4990 = vsel %vm2140, %v4988, %v4989
      %v4991 = vrot.slane %v4989, 4
      %v4992 = vrot.slane %v4240, 5
      %v4993 = vsel %vm2140, %v4991, %v4992
      %v4994 = vrot.slane %v4918, 5
      %v4995 = vrot.slane %v4994, 4
      %v4996 = vrot.slane %v4242, 5
      %v4997 = vsel %vm2140, %v4995, %v4996
      %v4998 = vrot.slane %v4996, 4
      %v4999 = vrot.slane %v4243, 5
      %v5000 = vsel %vm2140, %v4998, %v4999
      %v5001 = vrot.slane %v4919, 5
      %v5002 = vrot.slane %v5001, 4
      %v5003 = vrot.slane %v4245, 5
      %v5004 = vsel %vm2140, %v5002, %v5003
      %v5005 = vrot.slane %v5003, 4
      %v5006 = vrot.slane %v4246, 5
      %v5007 = vsel %vm2140, %v5005, %v5006
      %v5008 = vrot.slane %v4920, 5
      %v5009 = vrot.slane %v5008, 4
      %v5010 = vrot.slane %v4248, 5
      %v5011 = vsel %vm2140, %v5009, %v5010
      %v5012 = vrot.slane %v5010, 4
      %v5013 = vrot.slane %v4249, 5
      %v5014 = vsel %vm2140, %v5012, %v5013
      %v5015 = vrot.slane %v4921, 5
      %v5016 = vrot.slane %v5015, 4
      %v5017 = vrot.slane %v4251, 5
      %v5018 = vsel %vm2140, %v5016, %v5017
      %v5019 = vrot.slane %v5017, 4
      %v5020 = vrot.slane %v4252, 5
      %v5021 = vsel %vm2140, %v5019, %v5020
      %v5022 = vrot.slane %v4922, 5
      %v5023 = vrot.slane %v5022, 4
      %v5024 = vrot.slane %v4254, 5
      %v5025 = vsel %vm2140, %v5023, %v5024
      %v5026 = vrot.slane %v5024, 4
      %v5027 = vrot.slane %v4255, 5
      %v5028 = vsel %vm2140, %v5026, %v5027
      %v5029 = vrot.slane %v4923, 5
      %v5030 = vrot.slane %v5029, 4
      %v5031 = vrot.slane %v4257, 5
      %v5032 = vsel %vm2140, %v5030, %v5031
      %v5033 = vrot.slane %v5031, 4
      %v5034 = vrot.slane %v4258, 5
      %v5035 = vsel %vm2140, %v5033, %v5034
      %v5036 = vrot.slane %v4924, 5
      %v5037 = vrot.slane %v5036, 4
      %v5038 = vrot.slane %v4260, 5
      %v5039 = vsel %vm2140, %v5037, %v5038
      %v5040 = vrot.slane %v5038, 4
      %v5041 = vrot.slane %v4261, 5
      %v5042 = vsel %vm2140, %v5040, %v5041
      %v5043 = vrot.slane %v4925, 5
      %v5044 = vrot.slane %v5043, 4
      %v5045 = vrot.slane %v4263, 5
      %v5046 = vsel %vm2140, %v5044, %v5045
      %v5047 = vrot.slane %v5045, 4
      %v5048 = vrot.slane %v4264, 5
      %v5049 = vsel %vm2140, %v5047, %v5048
      %v5050 = vrot.slane %v4926, 5
      %v5051 = vrot.slane %v5050, 4
      %v5052 = vrot.slane %v4266, 5
      %v5053 = vsel %vm2140, %v5051, %v5052
      %v5054 = vrot.slane %v5052, 4
      %v5055 = vrot.slane %v4267, 5
      %v5056 = vsel %vm2140, %v5054, %v5055
      %v5057 = vrot.slane %v4927, 5
      %v5058 = vrot.slane %v5057, 4
      %v5059 = vrot.slane %v4269, 5
      %v5060 = vsel %vm2140, %v5058, %v5059
      %v5061 = vrot.slane %v5059, 4
      %v5062 = vrot.slane %v4270, 5
      %v5063 = vsel %vm2140, %v5061, %v5062
      %v5064 = vrot.slane %v4928, 5
      %v5065 = vrot.slane %v5064, 4
      %v5066 = vrot.slane %v4272, 5
      %v5067 = vsel %vm2140, %v5065, %v5066
      %v5068 = vrot.slane %v5066, 4
      %v5069 = vrot.slane %v4273, 5
      %v5070 = vsel %vm2140, %v5068, %v5069
      %v5071 = vrot.slane %v4929, 5
      %v5072 = vrot.slane %v5071, 4
      %v5073 = vrot.slane %v4275, 5
      %v5074 = vsel %vm2140, %v5072, %v5073
      %v5075 = vrot.slane %v5073, 4
      %v5076 = vrot.slane %v4276, 5
      %v5077 = vsel %vm2140, %v5075, %v5076
      %v5078 = vrot.slane %v4930, 5
      %v5079 = vrot.slane %v5078, 4
      %v5080 = vrot.slane %v4278, 5
      %v5081 = vsel %vm2140, %v5079, %v5080
      %v5082 = vrot.slane %v5080, 4
      %v5083 = vrot.slane %v4279, 5
      %v5084 = vsel %vm2140, %v5082, %v5083
      %v5085 = vrot.slane %v4931, 5
      %v5086 = vrot.slane %v5085, 4
      %v5087 = vrot.slane %v4281, 5
      %v5088 = vsel %vm2140, %v5086, %v5087
      %v5089 = vrot.slane %v5087, 4
      %v5090 = vrot.slane %v4282, 5
      %v5091 = vsel %vm2140, %v5089, %v5090
      %v5092 = vld [vmem:[%s2 + $0x100] sm:$0xf]
      %v5093 = vld [vmem:[%s2 + $0x104] sm:$0xf]
      %v5094 = vld [vmem:[%s2 + $0x108] sm:$0xf]
      %v5095 = vld [vmem:[%s2 + $0x10c] sm:$0xf]
      %v5096 = vld [vmem:[%s2 + $0x110] sm:$0xf]
      %v5097 = vld [vmem:[%s2 + $0x114] sm:$0xf]
      %v5098 = vld [vmem:[%s2 + $0x118] sm:$0xf]
      %v5099 = vld [vmem:[%s2 + $0x11c] sm:$0xf]
      %v5100 = vunpack.c.l.b16 %v4983
      %v5101 = vunpack.c.l.b16 %v4986
      %v5102 = vunpack.c.l.b16 %v4990
      %v5103 = vunpack.c.l.b16 %v4993
      %v5104 = vunpack.c.l.b16 %v4997
      %v5105 = vunpack.c.l.b16 %v5000
      %v5106 = vunpack.c.l.b16 %v5004
      %v5107 = vunpack.c.l.b16 %v5007
      %v5108 = vunpack.c.l.b16 %v5011
      %v5109 = vunpack.c.l.b16 %v5014
      %v5110 = vunpack.c.l.b16 %v5018
      %v5111 = vunpack.c.l.b16 %v5021
      %v5112 = vunpack.c.l.b16 %v5025
      %v5113 = vunpack.c.l.b16 %v5028
      %v5114 = vunpack.c.l.b16 %v5032
      %v5115 = vunpack.c.l.b16 %v5035
      %v5116 = vunpack.c.l.b16 %v5039
      %v5117 = vunpack.c.l.b16 %v5042
      %v5118 = vunpack.c.l.b16 %v5046
      %v5119 = vunpack.c.l.b16 %v5049
      %v5120 = vunpack.c.l.b16 %v5053
      %v5121 = vunpack.c.l.b16 %v5056
      %v5122 = vunpack.c.l.b16 %v5060
      %v5123 = vunpack.c.l.b16 %v5063
      %v5124 = vunpack.c.l.b16 %v5067
      %v5125 = vunpack.c.l.b16 %v5070
      %v5126 = vunpack.c.l.b16 %v5074
      %v5127 = vunpack.c.l.b16 %v5077
      %v5128 = vunpack.c.l.b16 %v5081
      %v5129 = vunpack.c.l.b16 %v5084
      %v5130 = vunpack.c.l.b16 %v5088
      %v5131 = vunpack.c.l.b16 %v5091
      %v5132 = vpack.c.b16 %v5101, %v5100
      %v5133 = vpack.c.b16 %v5103, %v5102
      %v5134 = vpack.c.b16 %v5105, %v5104
      %v5135 = vpack.c.b16 %v5107, %v5106
      %v5136 = vpack.c.b16 %v5109, %v5108
      %v5137 = vpack.c.b16 %v5111, %v5110
      %v5138 = vpack.c.b16 %v5113, %v5112
      %v5139 = vpack.c.b16 %v5115, %v5114
      %v5140 = vpack.c.b16 %v5117, %v5116
      %v5141 = vpack.c.b16 %v5119, %v5118
      %v5142 = vpack.c.b16 %v5121, %v5120
      %v5143 = vpack.c.b16 %v5123, %v5122
      %v5144 = vpack.c.b16 %v5125, %v5124
      %v5145 = vpack.c.b16 %v5127, %v5126
      %v5146 = vpack.c.b16 %v5129, %v5128
      %v5147 = vpack.c.b16 %v5131, %v5130
      %v5156 = vunpack.c.l.b16 %v5092
      %v5157 = vunpack.c.l.b16 %v5093
      %v5158 = vunpack.c.l.b16 %v5094
      %v5159 = vunpack.c.l.b16 %v5095
      %v5160 = vunpack.c.l.b16 %v5096
      %v5161 = vunpack.c.l.b16 %v5097
      %v5162 = vunpack.c.l.b16 %v5098
      %v5163 = vunpack.c.l.b16 %v5099
      %v5164 = vpack.c.b16 %v5157, %v5156
      %v5165 = vpack.c.b16 %v5159, %v5158
      %v5166 = vpack.c.b16 %v5161, %v5160
      %v5167 = vpack.c.b16 %v5163, %v5162
      %v5173 = vsel %vm1711, %v5132, 0
      %v5176 = vsel %vm1711, %v5133, 0
      %v5179 = vsel %vm1711, %v5134, 0
      %v5182 = vsel %vm1711, %v5135, 0
      %v5185 = vsel %vm1711, %v5136, 0
      %v5188 = vsel %vm1711, %v5137, 0
      %v5191 = vsel %vm1711, %v5138, 0
      %v5194 = vsel %vm1711, %v5139, 0
      %v5197 = vsel %vm1711, %v5140, 0
      %v5200 = vsel %vm1711, %v5141, 0
      %v5203 = vsel %vm1711, %v5142, 0
      %v5206 = vsel %vm1711, %v5143, 0
      %v5209 = vsel %vm1711, %v5144, 0
      %v5212 = vsel %vm1711, %v5145, 0
      %v5215 = vsel %vm1711, %v5146, 0
      %v5218 = vsel %vm1711, %v5147, 0
      %5220 = vmatpush.bf16.msra.mxu0 0
      %5221 = vmatpush.bf16.msra.mxu0 0
      %5222 = vmatpush.bf16.msra.mxu0 0
      %5223 = vmatpush.bf16.msra.mxu0 0
      %5224 = vmatpush.bf16.msra.mxu0 %v5167
      %5225 = vmatpush.bf16.msra.mxu0 %v5166
      %5226 = vmatpush.bf16.msra.mxu0 %v5165
      %5227 = vmatpush.bf16.msra.mxu0 %v5164
      %5228 = vmatmul.bf16.gmra.mxu0 %v5173
      %v5229 = vpop.f32.mrf.mxu0
      %v5230 = vadd.f32 0.0, %v5229
      %v5231 = vpop.f32.mrf.mxu0
      %v5232 = vadd.f32 0.0, %v5231
      %5233 = vmatmul.bf16.gmra.mxu0 %v5176
      %v5234 = vpop.f32.mrf.mxu0
      %v5235 = vadd.f32 0.0, %v5234
      %v5236 = vpop.f32.mrf.mxu0
      %v5237 = vadd.f32 0.0, %v5236
      %5238 = vmatmul.bf16.gmra.mxu0 %v5179
      %v5239 = vpop.f32.mrf.mxu0
      %v5240 = vadd.f32 0.0, %v5239
      %v5241 = vpop.f32.mrf.mxu0
      %v5242 = vadd.f32 0.0, %v5241
      %5243 = vmatmul.bf16.gmra.mxu0 %v5182
      %v5244 = vpop.f32.mrf.mxu0
      %v5245 = vadd.f32 0.0, %v5244
      %v5246 = vpop.f32.mrf.mxu0
      %v5247 = vadd.f32 0.0, %v5246
      %5248 = vmatmul.bf16.gmra.mxu0 %v5185
      %v5249 = vpop.f32.mrf.mxu0
      %v5250 = vadd.f32 0.0, %v5249
      %v5251 = vpop.f32.mrf.mxu0
      %v5252 = vadd.f32 0.0, %v5251
      %5253 = vmatmul.bf16.gmra.mxu0 %v5188
      %v5254 = vpop.f32.mrf.mxu0
      %v5255 = vadd.f32 0.0, %v5254
      %v5256 = vpop.f32.mrf.mxu0
      %v5257 = vadd.f32 0.0, %v5256
      %5258 = vmatmul.bf16.gmra.mxu0 %v5191
      %v5259 = vpop.f32.mrf.mxu0
      %v5260 = vadd.f32 0.0, %v5259
      %v5261 = vpop.f32.mrf.mxu0
      %v5262 = vadd.f32 0.0, %v5261
      %5263 = vmatmul.bf16.gmra.mxu0 %v5194
      %v5264 = vpop.f32.mrf.mxu0
      %v5265 = vadd.f32 0.0, %v5264
      %v5266 = vpop.f32.mrf.mxu0
      %v5267 = vadd.f32 0.0, %v5266
      %5268 = vmatmul.bf16.gmra.mxu0 %v5197
      %v5269 = vpop.f32.mrf.mxu0
      %v5270 = vadd.f32 0.0, %v5269
      %v5271 = vpop.f32.mrf.mxu0
      %v5272 = vadd.f32 0.0, %v5271
      %5273 = vmatmul.bf16.gmra.mxu0 %v5200
      %v5274 = vpop.f32.mrf.mxu0
      %v5275 = vadd.f32 0.0, %v5274
      %v5276 = vpop.f32.mrf.mxu0
      %v5277 = vadd.f32 0.0, %v5276
      %5278 = vmatmul.bf16.gmra.mxu0 %v5203
      %v5279 = vpop.f32.mrf.mxu0
      %v5280 = vadd.f32 0.0, %v5279
      %v5281 = vpop.f32.mrf.mxu0
      %v5282 = vadd.f32 0.0, %v5281
      %5283 = vmatmul.bf16.gmra.mxu0 %v5206
      %v5284 = vpop.f32.mrf.mxu0
      %v5285 = vadd.f32 0.0, %v5284
      %v5286 = vpop.f32.mrf.mxu0
      %v5287 = vadd.f32 0.0, %v5286
      %5288 = vmatmul.bf16.gmra.mxu0 %v5209
      %v5289 = vpop.f32.mrf.mxu0
      %v5290 = vadd.f32 0.0, %v5289
      %v5291 = vpop.f32.mrf.mxu0
      %v5292 = vadd.f32 0.0, %v5291
      %5293 = vmatmul.bf16.gmra.mxu0 %v5212
      %v5294 = vpop.f32.mrf.mxu0
      %v5295 = vadd.f32 0.0, %v5294
      %v5296 = vpop.f32.mrf.mxu0
      %v5297 = vadd.f32 0.0, %v5296
      %5298 = vmatmul.bf16.gmra.mxu0 %v5215
      %v5299 = vpop.f32.mrf.mxu0
      %v5300 = vadd.f32 0.0, %v5299
      %v5301 = vpop.f32.mrf.mxu0
      %v5302 = vadd.f32 0.0, %v5301
      %5303 = vmatmul.bf16.gmra.mxu0 %v5218
      %v5304 = vpop.f32.mrf.mxu0
      %v5305 = vadd.f32 0.0, %v5304
      %v5306 = vpop.f32.mrf.mxu0
      %v5307 = vadd.f32 0.0, %v5306
      %5308 = vdwg.mxu0
      %v5309 = vadd.f32 %v4884, %v5230
      %v5310 = vadd.f32 %v4885, %v5232
      %v5311 = vadd.f32 %v4886, %v5235
      %v5312 = vadd.f32 %v4887, %v5237
      %v5313 = vadd.f32 %v4888, %v5240
      %v5314 = vadd.f32 %v4889, %v5242
      %v5315 = vadd.f32 %v4890, %v5245
      %v5316 = vadd.f32 %v4891, %v5247
      %v5317 = vadd.f32 %v4892, %v5250
      %v5318 = vadd.f32 %v4893, %v5252
      %v5319 = vadd.f32 %v4894, %v5255
      %v5320 = vadd.f32 %v4895, %v5257
      %v5321 = vadd.f32 %v4896, %v5260
      %v5322 = vadd.f32 %v4897, %v5262
      %v5323 = vadd.f32 %v4898, %v5265
      %v5324 = vadd.f32 %v4899, %v5267
      %v5325 = vadd.f32 %v4900, %v5270
      %v5326 = vadd.f32 %v4901, %v5272
      %v5327 = vadd.f32 %v4902, %v5275
      %v5328 = vadd.f32 %v4903, %v5277
      %v5329 = vadd.f32 %v4904, %v5280
      %v5330 = vadd.f32 %v4905, %v5282
      %v5331 = vadd.f32 %v4906, %v5285
      %v5332 = vadd.f32 %v4907, %v5287
      %v5333 = vadd.f32 %v4908, %v5290
      %v5334 = vadd.f32 %v4909, %v5292
      %v5335 = vadd.f32 %v4910, %v5295
      %v5336 = vadd.f32 %v4911, %v5297
      %v5337 = vadd.f32 %v4912, %v5300
      %v5338 = vadd.f32 %v4913, %v5302
      %v5339 = vadd.f32 %v4914, %v5305
      %v5340 = vadd.f32 %v4915, %v5307
      %v5341 = vld [vmem:[%s5] sm:$0x1]
      %v5343 = vperm.slane %v5341, 0
      %v5345 = vadd.f32 %v5309, %v5343
      %v5346 = vadd.f32 %v5310, %v5343
      %v5347 = vadd.f32 %v5311, %v5343
      %v5348 = vadd.f32 %v5312, %v5343
      %v5349 = vadd.f32 %v5313, %v5343
      %v5350 = vadd.f32 %v5314, %v5343
      %v5351 = vadd.f32 %v5315, %v5343
      %v5352 = vadd.f32 %v5316, %v5343
      %v5353 = vadd.f32 %v5317, %v5343
      %v5354 = vadd.f32 %v5318, %v5343
      %v5355 = vadd.f32 %v5319, %v5343
      %v5356 = vadd.f32 %v5320, %v5343
      %v5357 = vadd.f32 %v5321, %v5343
      %v5358 = vadd.f32 %v5322, %v5343
      %v5359 = vadd.f32 %v5323, %v5343
      %v5360 = vadd.f32 %v5324, %v5343
      %v5361 = vadd.f32 %v5325, %v5343
      %v5362 = vadd.f32 %v5326, %v5343
      %v5363 = vadd.f32 %v5327, %v5343
      %v5364 = vadd.f32 %v5328, %v5343
      %v5365 = vadd.f32 %v5329, %v5343
      %v5366 = vadd.f32 %v5330, %v5343
      %v5367 = vadd.f32 %v5331, %v5343
      %v5368 = vadd.f32 %v5332, %v5343
      %v5369 = vadd.f32 %v5333, %v5343
      %v5370 = vadd.f32 %v5334, %v5343
      %v5371 = vadd.f32 %v5335, %v5343
      %v5372 = vadd.f32 %v5336, %v5343
      %v5373 = vadd.f32 %v5337, %v5343
      %v5374 = vadd.f32 %v5338, %v5343
      %v5375 = vadd.f32 %v5339, %v5343
      %v5376 = vadd.f32 %v5340, %v5343
      %v5377 = vmax.f32 %v5345, 0.0
      %v5378 = vmax.f32 %v5346, 0.0
      %v5379 = vmax.f32 %v5347, 0.0
      %v5380 = vmax.f32 %v5348, 0.0
      %v5381 = vmax.f32 %v5349, 0.0
      %v5382 = vmax.f32 %v5350, 0.0
      %v5383 = vmax.f32 %v5351, 0.0
      %v5384 = vmax.f32 %v5352, 0.0
      %v5385 = vmax.f32 %v5353, 0.0
      %v5386 = vmax.f32 %v5354, 0.0
      %v5387 = vmax.f32 %v5355, 0.0
      %v5388 = vmax.f32 %v5356, 0.0
      %v5389 = vmax.f32 %v5357, 0.0
      %v5390 = vmax.f32 %v5358, 0.0
      %v5391 = vmax.f32 %v5359, 0.0
      %v5392 = vmax.f32 %v5360, 0.0
      %v5393 = vmax.f32 %v5361, 0.0
      %v5394 = vmax.f32 %v5362, 0.0
      %v5395 = vmax.f32 %v5363, 0.0
      %v5396 = vmax.f32 %v5364, 0.0
      %v5397 = vmax.f32 %v5365, 0.0
      %v5398 = vmax.f32 %v5366, 0.0
      %v5399 = vmax.f32 %v5367, 0.0
      %v5400 = vmax.f32 %v5368, 0.0
      %v5401 = vmax.f32 %v5369, 0.0
      %v5402 = vmax.f32 %v5370, 0.0
      %v5403 = vmax.f32 %v5371, 0.0
      %v5404 = vmax.f32 %v5372, 0.0
      %v5405 = vmax.f32 %v5373, 0.0
      %v5406 = vmax.f32 %v5374, 0.0
      %v5407 = vmax.f32 %v5375, 0.0
      %v5408 = vmax.f32 %v5376, 0.0
      %v5409 = vpack.c.bf16 %v5377, %v5377
      %v5410 = vpack.c.bf16 %v5378, %v5378
      %v5411 = vpack.c.bf16 %v5379, %v5379
      %v5412 = vpack.c.bf16 %v5380, %v5380
      %v5413 = vpack.c.bf16 %v5381, %v5381
      %v5414 = vpack.c.bf16 %v5382, %v5382
      %v5415 = vpack.c.bf16 %v5383, %v5383
      %v5416 = vpack.c.bf16 %v5384, %v5384
      %v5417 = vpack.c.bf16 %v5385, %v5385
      %v5418 = vpack.c.bf16 %v5386, %v5386
      %v5419 = vpack.c.bf16 %v5387, %v5387
      %v5420 = vpack.c.bf16 %v5388, %v5388
      %v5421 = vpack.c.bf16 %v5389, %v5389
      %v5422 = vpack.c.bf16 %v5390, %v5390
      %v5423 = vpack.c.bf16 %v5391, %v5391
      %v5424 = vpack.c.bf16 %v5392, %v5392
      %v5425 = vpack.c.bf16 %v5393, %v5393
      %v5426 = vpack.c.bf16 %v5394, %v5394
      %v5427 = vpack.c.bf16 %v5395, %v5395
      %v5428 = vpack.c.bf16 %v5396, %v5396
      %v5429 = vpack.c.bf16 %v5397, %v5397
      %v5430 = vpack.c.bf16 %v5398, %v5398
      %v5431 = vpack.c.bf16 %v5399, %v5399
      %v5432 = vpack.c.bf16 %v5400, %v5400
      %v5433 = vpack.c.bf16 %v5401, %v5401
      %v5434 = vpack.c.bf16 %v5402, %v5402
      %v5435 = vpack.c.bf16 %v5403, %v5403
      %v5436 = vpack.c.bf16 %v5404, %v5404
      %v5437 = vpack.c.bf16 %v5405, %v5405
      %v5438 = vpack.c.bf16 %v5406, %v5406
      %v5439 = vpack.c.bf16 %v5407, %v5407
      %v5440 = vpack.c.bf16 %v5408, %v5408
      %v5442 = vshrl.u32 %v5409, 16
      %v5444 = vrot.slane %v5442, 7
      %v5445 = vshll.u32 %v5409, 16
      %v5447 = vor.u32 %v5444, %v5445
      %v5448 = vrot.slane %v5444, 4
      %v5450 = vshrl.u32 %v5410, 16
      %v5452 = vrot.slane %v5450, 7
      %v5453 = vshll.u32 %v5410, 16
      %v5455 = vor.u32 %v5452, %v5453
      %v5456 = vsel %vm752, %v5448, %v5455
      %v5457 = vrot.slane %v5452, 4
      %v5459 = vshrl.u32 %v5411, 16
      %v5461 = vrot.slane %v5459, 7
      %v5462 = vshll.u32 %v5411, 16
      %v5464 = vor.u32 %v5461, %v5462
      %v5465 = vrot.slane %v5461, 4
      %v5467 = vshrl.u32 %v5412, 16
      %v5469 = vrot.slane %v5467, 7
      %v5470 = vshll.u32 %v5412, 16
      %v5472 = vor.u32 %v5469, %v5470
      %v5473 = vsel %vm752, %v5465, %v5472
      %v5474 = vrot.slane %v5469, 4
      %v5476 = vshrl.u32 %v5413, 16
      %v5478 = vrot.slane %v5476, 7
      %v5479 = vshll.u32 %v5413, 16
      %v5481 = vor.u32 %v5478, %v5479
      %v5482 = vrot.slane %v5478, 4
      %v5484 = vshrl.u32 %v5414, 16
      %v5486 = vrot.slane %v5484, 7
      %v5487 = vshll.u32 %v5414, 16
      %v5489 = vor.u32 %v5486, %v5487
      %v5490 = vsel %vm752, %v5482, %v5489
      %v5491 = vrot.slane %v5486, 4
      %v5493 = vshrl.u32 %v5415, 16
      %v5495 = vrot.slane %v5493, 7
      %v5496 = vshll.u32 %v5415, 16
      %v5498 = vor.u32 %v5495, %v5496
      %v5499 = vrot.slane %v5495, 4
      %v5501 = vshrl.u32 %v5416, 16
      %v5503 = vrot.slane %v5501, 7
      %v5504 = vshll.u32 %v5416, 16
      %v5506 = vor.u32 %v5503, %v5504
      %v5507 = vsel %vm752, %v5499, %v5506
      %v5508 = vrot.slane %v5503, 4
      %v5510 = vshrl.u32 %v5417, 16
      %v5512 = vrot.slane %v5510, 7
      %v5513 = vshll.u32 %v5417, 16
      %v5515 = vor.u32 %v5512, %v5513
      %v5516 = vrot.slane %v5512, 4
      %v5518 = vshrl.u32 %v5418, 16
      %v5520 = vrot.slane %v5518, 7
      %v5521 = vshll.u32 %v5418, 16
      %v5523 = vor.u32 %v5520, %v5521
      %v5524 = vsel %vm752, %v5516, %v5523
      %v5525 = vrot.slane %v5520, 4
      %v5527 = vshrl.u32 %v5419, 16
      %v5529 = vrot.slane %v5527, 7
      %v5530 = vshll.u32 %v5419, 16
      %v5532 = vor.u32 %v5529, %v5530
      %v5533 = vrot.slane %v5529, 4
      %v5535 = vshrl.u32 %v5420, 16
      %v5537 = vrot.slane %v5535, 7
      %v5538 = vshll.u32 %v5420, 16
      %v5540 = vor.u32 %v5537, %v5538
      %v5541 = vsel %vm752, %v5533, %v5540
      %v5542 = vrot.slane %v5537, 4
      %v5544 = vshrl.u32 %v5421, 16
      %v5546 = vrot.slane %v5544, 7
      %v5547 = vshll.u32 %v5421, 16
      %v5549 = vor.u32 %v5546, %v5547
      %v5550 = vrot.slane %v5546, 4
      %v5552 = vshrl.u32 %v5422, 16
      %v5554 = vrot.slane %v5552, 7
      %v5555 = vshll.u32 %v5422, 16
      %v5557 = vor.u32 %v5554, %v5555
      %v5558 = vsel %vm752, %v5550, %v5557
      %v5559 = vrot.slane %v5554, 4
      %v5561 = vshrl.u32 %v5423, 16
      %v5563 = vrot.slane %v5561, 7
      %v5564 = vshll.u32 %v5423, 16
      %v5566 = vor.u32 %v5563, %v5564
      %v5567 = vrot.slane %v5563, 4
      %v5569 = vshrl.u32 %v5424, 16
      %v5571 = vrot.slane %v5569, 7
      %v5572 = vshll.u32 %v5424, 16
      %v5574 = vor.u32 %v5571, %v5572
      %v5575 = vsel %vm752, %v5567, %v5574
      %v5576 = vrot.slane %v5571, 4
      %v5578 = vshrl.u32 %v5425, 16
      %v5580 = vrot.slane %v5578, 7
      %v5581 = vshll.u32 %v5425, 16
      %v5583 = vor.u32 %v5580, %v5581
      %v5584 = vrot.slane %v5580, 4
      %v5586 = vshrl.u32 %v5426, 16
      %v5588 = vrot.slane %v5586, 7
      %v5589 = vshll.u32 %v5426, 16
      %v5591 = vor.u32 %v5588, %v5589
      %v5592 = vsel %vm752, %v5584, %v5591
      %v5593 = vrot.slane %v5588, 4
      %v5595 = vshrl.u32 %v5427, 16
      %v5597 = vrot.slane %v5595, 7
      %v5598 = vshll.u32 %v5427, 16
      %v5600 = vor.u32 %v5597, %v5598
      %v5601 = vrot.slane %v5597, 4
      %v5603 = vshrl.u32 %v5428, 16
      %v5605 = vrot.slane %v5603, 7
      %v5606 = vshll.u32 %v5428, 16
      %v5608 = vor.u32 %v5605, %v5606
      %v5609 = vsel %vm752, %v5601, %v5608
      %v5610 = vrot.slane %v5605, 4
      %v5612 = vshrl.u32 %v5429, 16
      %v5614 = vrot.slane %v5612, 7
      %v5615 = vshll.u32 %v5429, 16
      %v5617 = vor.u32 %v5614, %v5615
      %v5618 = vrot.slane %v5614, 4
      %v5620 = vshrl.u32 %v5430, 16
      %v5622 = vrot.slane %v5620, 7
      %v5623 = vshll.u32 %v5430, 16
      %v5625 = vor.u32 %v5622, %v5623
      %v5626 = vsel %vm752, %v5618, %v5625
      %v5627 = vrot.slane %v5622, 4
      %v5629 = vshrl.u32 %v5431, 16
      %v5631 = vrot.slane %v5629, 7
      %v5632 = vshll.u32 %v5431, 16
      %v5634 = vor.u32 %v5631, %v5632
      %v5635 = vrot.slane %v5631, 4
      %v5637 = vshrl.u32 %v5432, 16
      %v5639 = vrot.slane %v5637, 7
      %v5640 = vshll.u32 %v5432, 16
      %v5642 = vor.u32 %v5639, %v5640
      %v5643 = vsel %vm752, %v5635, %v5642
      %v5644 = vrot.slane %v5639, 4
      %v5646 = vshrl.u32 %v5433, 16
      %v5648 = vrot.slane %v5646, 7
      %v5649 = vshll.u32 %v5433, 16
      %v5651 = vor.u32 %v5648, %v5649
      %v5652 = vrot.slane %v5648, 4
      %v5654 = vshrl.u32 %v5434, 16
      %v5656 = vrot.slane %v5654, 7
      %v5657 = vshll.u32 %v5434, 16
      %v5659 = vor.u32 %v5656, %v5657
      %v5660 = vsel %vm752, %v5652, %v5659
      %v5661 = vrot.slane %v5656, 4
      %v5663 = vshrl.u32 %v5435, 16
      %v5665 = vrot.slane %v5663, 7
      %v5666 = vshll.u32 %v5435, 16
      %v5668 = vor.u32 %v5665, %v5666
      %v5669 = vrot.slane %v5665, 4
      %v5671 = vshrl.u32 %v5436, 16
      %v5673 = vrot.slane %v5671, 7
      %v5674 = vshll.u32 %v5436, 16
      %v5676 = vor.u32 %v5673, %v5674
      %v5677 = vsel %vm752, %v5669, %v5676
      %v5678 = vrot.slane %v5673, 4
      %v5680 = vshrl.u32 %v5437, 16
      %v5682 = vrot.slane %v5680, 7
      %v5683 = vshll.u32 %v5437, 16
      %v5685 = vor.u32 %v5682, %v5683
      %v5686 = vrot.slane %v5682, 4
      %v5688 = vshrl.u32 %v5438, 16
      %v5690 = vrot.slane %v5688, 7
      %v5691 = vshll.u32 %v5438, 16
      %v5693 = vor.u32 %v5690, %v5691
      %v5694 = vsel %vm752, %v5686, %v5693
      %v5695 = vrot.slane %v5690, 4
      %v5697 = vshrl.u32 %v5439, 16
      %v5699 = vrot.slane %v5697, 7
      %v5700 = vshll.u32 %v5439, 16
      %v5702 = vor.u32 %v5699, %v5700
      %v5703 = vrot.slane %v5699, 4
      %v5705 = vshrl.u32 %v5440, 16
      %v5707 = vrot.slane %v5705, 7
      %v5708 = vshll.u32 %v5440, 16
      %v5710 = vor.u32 %v5707, %v5708
      %v5711 = vsel %vm752, %v5703, %v5710
      %v5712 = vrot.slane %v5707, 4
      %v5761 = vsel %vm1075, %v5447, %v2815
      %5762 = vst [vmem:[%s1073] sm:$0xf] %v5761
      %5763 = vst.msk [vmem:[%s1073 + $0x4] sm:$0xf] %vm280, %v5456
      %v5764 = vld [vmem:[%s1073 + $0x8] sm:$0x1]
      %v5765 = vsel %vm291, %v5457, %v5764
      %5766 = vst [vmem:[%s1073 + $0x8] sm:$0x1] %v5765
      %v5767 = vld [vmem:[%s1073 + $0xc] sm:$0xf]
      %v5768 = vsel %vm1075, %v5464, %v5767
      %5769 = vst [vmem:[%s1073 + $0xc] sm:$0xf] %v5768
      %5770 = vst.msk [vmem:[%s1073 + $0x10] sm:$0xf] %vm280, %v5473
      %v5771 = vld [vmem:[%s1073 + $0x14] sm:$0x1]
      %v5772 = vsel %vm291, %v5474, %v5771
      %5773 = vst [vmem:[%s1073 + $0x14] sm:$0x1] %v5772
      %v5774 = vld [vmem:[%s1073 + $0x18] sm:$0xf]
      %v5775 = vsel %vm1075, %v5481, %v5774
      %5776 = vst [vmem:[%s1073 + $0x18] sm:$0xf] %v5775
      %5777 = vst.msk [vmem:[%s1073 + $0x1c] sm:$0xf] %vm280, %v5490
      %v5778 = vld [vmem:[%s1073 + $0x20] sm:$0x1]
      %v5779 = vsel %vm291, %v5491, %v5778
      %5780 = vst [vmem:[%s1073 + $0x20] sm:$0x1] %v5779
      %v5781 = vld [vmem:[%s1073 + $0x24] sm:$0xf]
      %v5782 = vsel %vm1075, %v5498, %v5781
      %5783 = vst [vmem:[%s1073 + $0x24] sm:$0xf] %v5782
      %5784 = vst.msk [vmem:[%s1073 + $0x28] sm:$0xf] %vm280, %v5507
      %v5785 = vld [vmem:[%s1073 + $0x2c] sm:$0x1]
      %v5786 = vsel %vm291, %v5508, %v5785
      %5787 = vst [vmem:[%s1073 + $0x2c] sm:$0x1] %v5786
      %v5788 = vld [vmem:[%s1073 + $0x30] sm:$0xf]
      %v5789 = vsel %vm1075, %v5515, %v5788
      %5790 = vst [vmem:[%s1073 + $0x30] sm:$0xf] %v5789
      %5791 = vst.msk [vmem:[%s1073 + $0x34] sm:$0xf] %vm280, %v5524
      %v5792 = vld [vmem:[%s1073 + $0x38] sm:$0x1]
      %v5793 = vsel %vm291, %v5525, %v5792
      %5794 = vst [vmem:[%s1073 + $0x38] sm:$0x1] %v5793
      %v5795 = vld [vmem:[%s1073 + $0x3c] sm:$0xf]
      %v5796 = vsel %vm1075, %v5532, %v5795
      %5797 = vst [vmem:[%s1073 + $0x3c] sm:$0xf] %v5796
      %5798 = vst.msk [vmem:[%s1073 + $0x40] sm:$0xf] %vm280, %v5541
      %v5799 = vld [vmem:[%s1073 + $0x44] sm:$0x1]
      %v5800 = vsel %vm291, %v5542, %v5799
      %5801 = vst [vmem:[%s1073 + $0x44] sm:$0x1] %v5800
      %v5802 = vld [vmem:[%s1073 + $0x48] sm:$0xf]
      %v5803 = vsel %vm1075, %v5549, %v5802
      %5804 = vst [vmem:[%s1073 + $0x48] sm:$0xf] %v5803
      %5805 = vst.msk [vmem:[%s1073 + $0x4c] sm:$0xf] %vm280, %v5558
      %v5806 = vld [vmem:[%s1073 + $0x50] sm:$0x1]
      %v5807 = vsel %vm291, %v5559, %v5806
      %5808 = vst [vmem:[%s1073 + $0x50] sm:$0x1] %v5807
      %v5809 = vld [vmem:[%s1073 + $0x54] sm:$0xf]
      %v5810 = vsel %vm1075, %v5566, %v5809
      %5811 = vst [vmem:[%s1073 + $0x54] sm:$0xf] %v5810
      %5812 = vst.msk [vmem:[%s1073 + $0x58] sm:$0xf] %vm280, %v5575
      %v5813 = vld [vmem:[%s1073 + $0x5c] sm:$0x1]
      %v5814 = vsel %vm291, %v5576, %v5813
      %5815 = vst [vmem:[%s1073 + $0x5c] sm:$0x1] %v5814
      %v5816 = vld [vmem:[%s1073 + $0x60] sm:$0xf]
      %v5817 = vsel %vm1075, %v5583, %v5816
      %5818 = vst [vmem:[%s1073 + $0x60] sm:$0xf] %v5817
      %5819 = vst.msk [vmem:[%s1073 + $0x64] sm:$0xf] %vm280, %v5592
      %v5820 = vld [vmem:[%s1073 + $0x68] sm:$0x1]
      %v5821 = vsel %vm291, %v5593, %v5820
      %5822 = vst [vmem:[%s1073 + $0x68] sm:$0x1] %v5821
      %v5823 = vld [vmem:[%s1073 + $0x6c] sm:$0xf]
      %v5824 = vsel %vm1075, %v5600, %v5823
      %5825 = vst [vmem:[%s1073 + $0x6c] sm:$0xf] %v5824
      %5826 = vst.msk [vmem:[%s1073 + $0x70] sm:$0xf] %vm280, %v5609
      %v5827 = vld [vmem:[%s1073 + $0x74] sm:$0x1]
      %v5828 = vsel %vm291, %v5610, %v5827
      %5829 = vst [vmem:[%s1073 + $0x74] sm:$0x1] %v5828
      %v5830 = vld [vmem:[%s1073 + $0x78] sm:$0xf]
      %v5831 = vsel %vm1075, %v5617, %v5830
      %5832 = vst [vmem:[%s1073 + $0x78] sm:$0xf] %v5831
      %5833 = vst.msk [vmem:[%s1073 + $0x7c] sm:$0xf] %vm280, %v5626
      %v5834 = vld [vmem:[%s1073 + $0x80] sm:$0x1]
      %v5835 = vsel %vm291, %v5627, %v5834
      %5836 = vst [vmem:[%s1073 + $0x80] sm:$0x1] %v5835
      %v5837 = vld [vmem:[%s1073 + $0x84] sm:$0xf]
      %v5838 = vsel %vm1075, %v5634, %v5837
      %5839 = vst [vmem:[%s1073 + $0x84] sm:$0xf] %v5838
      %5840 = vst.msk [vmem:[%s1073 + $0x88] sm:$0xf] %vm280, %v5643
      %v5841 = vld [vmem:[%s1073 + $0x8c] sm:$0x1]
      %v5842 = vsel %vm291, %v5644, %v5841
      %5843 = vst [vmem:[%s1073 + $0x8c] sm:$0x1] %v5842
      %v5844 = vld [vmem:[%s1073 + $0x90] sm:$0xf]
      %v5845 = vsel %vm1075, %v5651, %v5844
      %5846 = vst [vmem:[%s1073 + $0x90] sm:$0xf] %v5845
      %5847 = vst.msk [vmem:[%s1073 + $0x94] sm:$0xf] %vm280, %v5660
      %v5848 = vld [vmem:[%s1073 + $0x98] sm:$0x1]
      %v5849 = vsel %vm291, %v5661, %v5848
      %5850 = vst [vmem:[%s1073 + $0x98] sm:$0x1] %v5849
      %v5851 = vld [vmem:[%s1073 + $0x9c] sm:$0xf]
      %v5852 = vsel %vm1075, %v5668, %v5851
      %5853 = vst [vmem:[%s1073 + $0x9c] sm:$0xf] %v5852
      %5854 = vst.msk [vmem:[%s1073 + $0xa0] sm:$0xf] %vm280, %v5677
      %v5855 = vld [vmem:[%s1073 + $0xa4] sm:$0x1]
      %v5856 = vsel %vm291, %v5678, %v5855
      %5857 = vst [vmem:[%s1073 + $0xa4] sm:$0x1] %v5856
      %v5858 = vld [vmem:[%s1073 + $0xa8] sm:$0xf]
      %v5859 = vsel %vm1075, %v5685, %v5858
      %5860 = vst [vmem:[%s1073 + $0xa8] sm:$0xf] %v5859
      %5861 = vst.msk [vmem:[%s1073 + $0xac] sm:$0xf] %vm280, %v5694
      %v5862 = vld [vmem:[%s1073 + $0xb0] sm:$0x1]
      %v5863 = vsel %vm291, %v5695, %v5862
      %5864 = vst [vmem:[%s1073 + $0xb0] sm:$0x1] %v5863
      %v5865 = vld [vmem:[%s1073 + $0xb4] sm:$0xf]
      %v5866 = vsel %vm1075, %v5702, %v5865
      %5867 = vst [vmem:[%s1073 + $0xb4] sm:$0xf] %v5866
      %5868 = vst.msk [vmem:[%s1073 + $0xb8] sm:$0xf] %vm280, %v5711
      %v5869 = vld [vmem:[%s1073 + $0xbc] sm:$0x1]
      %v5870 = vsel %vm291, %v5712, %v5869
      %5871 = vst [vmem:[%s1073 + $0xbc] sm:$0x1] %v5870
      %v5872 = vld [vmem:[#allocation2] sm:$0xf]
      %v5873 = vld [vmem:[#allocation2 + $0x4] sm:$0xf]
      %v5874 = vld [vmem:[#allocation2 + $0xc] sm:$0xf]
      %v5875 = vld [vmem:[#allocation2 + $0x10] sm:$0xf]
      %v5876 = vld [vmem:[#allocation2 + $0x18] sm:$0xf]
      %v5877 = vld [vmem:[#allocation2 + $0x1c] sm:$0xf]
      %v5878 = vld [vmem:[#allocation2 + $0x24] sm:$0xf]
      %v5879 = vld [vmem:[#allocation2 + $0x28] sm:$0xf]
      %v5880 = vld [vmem:[#allocation2 + $0x30] sm:$0xf]
      %v5881 = vld [vmem:[#allocation2 + $0x34] sm:$0xf]
      %v5882 = vld [vmem:[#allocation2 + $0x3c] sm:$0xf]
      %v5883 = vld [vmem:[#allocation2 + $0x40] sm:$0xf]
      %v5884 = vld [vmem:[#allocation2 + $0x48] sm:$0xf]
      %v5885 = vld [vmem:[#allocation2 + $0x4c] sm:$0xf]
      %v5886 = vld [vmem:[#allocation2 + $0x54] sm:$0xf]
      %v5887 = vld [vmem:[#allocation2 + $0x58] sm:$0xf]
      %v5888 = vld [vmem:[#allocation2 + $0x60] sm:$0xf]
      %v5889 = vld [vmem:[#allocation2 + $0x64] sm:$0xf]
      %v5890 = vld [vmem:[#allocation2 + $0x6c] sm:$0xf]
      %v5891 = vld [vmem:[#allocation2 + $0x70] sm:$0xf]
      %v5892 = vld [vmem:[#allocation2 + $0x78] sm:$0xf]
      %v5893 = vld [vmem:[#allocation2 + $0x7c] sm:$0xf]
      %v5894 = vld [vmem:[#allocation2 + $0x84] sm:$0xf]
      %v5895 = vld [vmem:[#allocation2 + $0x88] sm:$0xf]
      %v5896 = vld [vmem:[#allocation2 + $0x90] sm:$0xf]
      %v5897 = vld [vmem:[#allocation2 + $0x94] sm:$0xf]
      %v5898 = vld [vmem:[#allocation2 + $0x9c] sm:$0xf]
      %v5899 = vld [vmem:[#allocation2 + $0xa0] sm:$0xf]
      %v5900 = vld [vmem:[#allocation2 + $0xa8] sm:$0xf]
      %v5901 = vld [vmem:[#allocation2 + $0xac] sm:$0xf]
      %v5902 = vld [vmem:[#allocation2 + $0xb4] sm:$0xf]
      %v5903 = vld [vmem:[#allocation2 + $0xb8] sm:$0xf]
      %v5904 = vld [vmem:[%s3] sm:$0xf]
      %v5905 = vld [vmem:[%s3 + $0x4] sm:$0xf]
      %v5906 = vld [vmem:[%s3 + $0x8] sm:$0xf]
      %v5907 = vld [vmem:[%s3 + $0xc] sm:$0xf]
      %v5908 = vld [vmem:[%s3 + $0x10] sm:$0xf]
      %v5909 = vld [vmem:[%s3 + $0x14] sm:$0xf]
      %v5910 = vld [vmem:[%s3 + $0x18] sm:$0xf]
      %v5911 = vld [vmem:[%s3 + $0x1c] sm:$0xf]
      %v5912 = vld [vmem:[#allocation2 + $0x8] sm:$0x1]
      %v5913 = vld [vmem:[#allocation2 + $0x14] sm:$0x1]
      %v5914 = vld [vmem:[#allocation2 + $0x20] sm:$0x1]
      %v5915 = vld [vmem:[#allocation2 + $0x2c] sm:$0x1]
      %v5916 = vld [vmem:[#allocation2 + $0x38] sm:$0x1]
      %v5917 = vld [vmem:[#allocation2 + $0x44] sm:$0x1]
      %v5918 = vld [vmem:[#allocation2 + $0x50] sm:$0x1]
      %v5919 = vld [vmem:[#allocation2 + $0x5c] sm:$0x1]
      %v5920 = vld [vmem:[#allocation2 + $0x68] sm:$0x1]
      %v5921 = vld [vmem:[#allocation2 + $0x74] sm:$0x1]
      %v5922 = vld [vmem:[#allocation2 + $0x80] sm:$0x1]
      %v5923 = vld [vmem:[#allocation2 + $0x8c] sm:$0x1]
      %v5924 = vld [vmem:[#allocation2 + $0x98] sm:$0x1]
      %v5925 = vld [vmem:[#allocation2 + $0xa4] sm:$0x1]
      %v5926 = vld [vmem:[#allocation2 + $0xb0] sm:$0x1]
      %v5927 = vld [vmem:[#allocation2 + $0xbc] sm:$0x1]
      %v5929 = vshrl.u32 %v5872, 16
      %v5931 = vrot.slane %v5929, 4
      %v5932 = vshll.u32 %v5872, 16
      %v5934 = vrot.slane %v5932, 5
      %v5935 = vor.u32 %v5931, %v5934
      %v5936 = vrot.slane %v5935, 4
      %v5938 = vshll.u32 %v5873, 16
      %v5940 = vrot.slane %v5938, 5
      %v5941 = vsel %vm1246, %v5936, %v5940
      %v5942 = vshrl.u32 %v5873, 16
      %v5944 = vrot.slane %v5942, 4
      %v5945 = vor.u32 %v5944, %v5940
      %v5946 = vrot.slane %v5945, 4
      %v5948 = vshll.u32 %v5912, 16
      %v5950 = vrot.slane %v5948, 5
      %v5951 = vsel %vm1246, %v5946, %v5950
      %v5953 = vshrl.u32 %v5874, 16
      %v5955 = vrot.slane %v5953, 4
      %v5956 = vshll.u32 %v5874, 16
      %v5958 = vrot.slane %v5956, 5
      %v5959 = vor.u32 %v5955, %v5958
      %v5960 = vrot.slane %v5959, 4
      %v5962 = vshll.u32 %v5875, 16
      %v5964 = vrot.slane %v5962, 5
      %v5965 = vsel %vm1246, %v5960, %v5964
      %v5966 = vshrl.u32 %v5875, 16
      %v5968 = vrot.slane %v5966, 4
      %v5969 = vor.u32 %v5968, %v5964
      %v5970 = vrot.slane %v5969, 4
      %v5972 = vshll.u32 %v5913, 16
      %v5974 = vrot.slane %v5972, 5
      %v5975 = vsel %vm1246, %v5970, %v5974
      %v5977 = vshrl.u32 %v5876, 16
      %v5979 = vrot.slane %v5977, 4
      %v5980 = vshll.u32 %v5876, 16
      %v5982 = vrot.slane %v5980, 5
      %v5983 = vor.u32 %v5979, %v5982
      %v5984 = vrot.slane %v5983, 4
      %v5986 = vshll.u32 %v5877, 16
      %v5988 = vrot.slane %v5986, 5
      %v5989 = vsel %vm1246, %v5984, %v5988
      %v5990 = vshrl.u32 %v5877, 16
      %v5992 = vrot.slane %v5990, 4
      %v5993 = vor.u32 %v5992, %v5988
      %v5994 = vrot.slane %v5993, 4
      %v5996 = vshll.u32 %v5914, 16
      %v5998 = vrot.slane %v5996, 5
      %v5999 = vsel %vm1246, %v5994, %v5998
      %v6001 = vshrl.u32 %v5878, 16
      %v6003 = vrot.slane %v6001, 4
      %v6004 = vshll.u32 %v5878, 16
      %v6006 = vrot.slane %v6004, 5
      %v6007 = vor.u32 %v6003, %v6006
      %v6008 = vrot.slane %v6007, 4
      %v6010 = vshll.u32 %v5879, 16
      %v6012 = vrot.slane %v6010, 5
      %v6013 = vsel %vm1246, %v6008, %v6012
      %v6014 = vshrl.u32 %v5879, 16
      %v6016 = vrot.slane %v6014, 4
      %v6017 = vor.u32 %v6016, %v6012
      %v6018 = vrot.slane %v6017, 4
      %v6020 = vshll.u32 %v5915, 16
      %v6022 = vrot.slane %v6020, 5
      %v6023 = vsel %vm1246, %v6018, %v6022
      %v6025 = vshrl.u32 %v5880, 16
      %v6027 = vrot.slane %v6025, 4
      %v6028 = vshll.u32 %v5880, 16
      %v6030 = vrot.slane %v6028, 5
      %v6031 = vor.u32 %v6027, %v6030
      %v6032 = vrot.slane %v6031, 4
      %v6034 = vshll.u32 %v5881, 16
      %v6036 = vrot.slane %v6034, 5
      %v6037 = vsel %vm1246, %v6032, %v6036
      %v6038 = vshrl.u32 %v5881, 16
      %v6040 = vrot.slane %v6038, 4
      %v6041 = vor.u32 %v6040, %v6036
      %v6042 = vrot.slane %v6041, 4
      %v6044 = vshll.u32 %v5916, 16
      %v6046 = vrot.slane %v6044, 5
      %v6047 = vsel %vm1246, %v6042, %v6046
      %v6049 = vshrl.u32 %v5882, 16
      %v6051 = vrot.slane %v6049, 4
      %v6052 = vshll.u32 %v5882, 16
      %v6054 = vrot.slane %v6052, 5
      %v6055 = vor.u32 %v6051, %v6054
      %v6056 = vrot.slane %v6055, 4
      %v6058 = vshll.u32 %v5883, 16
      %v6060 = vrot.slane %v6058, 5
      %v6061 = vsel %vm1246, %v6056, %v6060
      %v6062 = vshrl.u32 %v5883, 16
      %v6064 = vrot.slane %v6062, 4
      %v6065 = vor.u32 %v6064, %v6060
      %v6066 = vrot.slane %v6065, 4
      %v6068 = vshll.u32 %v5917, 16
      %v6070 = vrot.slane %v6068, 5
      %v6071 = vsel %vm1246, %v6066, %v6070
      %v6073 = vshrl.u32 %v5884, 16
      %v6075 = vrot.slane %v6073, 4
      %v6076 = vshll.u32 %v5884, 16
      %v6078 = vrot.slane %v6076, 5
      %v6079 = vor.u32 %v6075, %v6078
      %v6080 = vrot.slane %v6079, 4
      %v6082 = vshll.u32 %v5885, 16
      %v6084 = vrot.slane %v6082, 5
      %v6085 = vsel %vm1246, %v6080, %v6084
      %v6086 = vshrl.u32 %v5885, 16
      %v6088 = vrot.slane %v6086, 4
      %v6089 = vor.u32 %v6088, %v6084
      %v6090 = vrot.slane %v6089, 4
      %v6092 = vshll.u32 %v5918, 16
      %v6094 = vrot.slane %v6092, 5
      %v6095 = vsel %vm1246, %v6090, %v6094
      %v6097 = vshrl.u32 %v5886, 16
      %v6099 = vrot.slane %v6097, 4
      %v6100 = vshll.u32 %v5886, 16
      %v6102 = vrot.slane %v6100, 5
      %v6103 = vor.u32 %v6099, %v6102
      %v6104 = vrot.slane %v6103, 4
      %v6106 = vshll.u32 %v5887, 16
      %v6108 = vrot.slane %v6106, 5
      %v6109 = vsel %vm1246, %v6104, %v6108
      %v6110 = vshrl.u32 %v5887, 16
      %v6112 = vrot.slane %v6110, 4
      %v6113 = vor.u32 %v6112, %v6108
      %v6114 = vrot.slane %v6113, 4
      %v6116 = vshll.u32 %v5919, 16
      %v6118 = vrot.slane %v6116, 5
      %v6119 = vsel %vm1246, %v6114, %v6118
      %v6121 = vshrl.u32 %v5888, 16
      %v6123 = vrot.slane %v6121, 4
      %v6124 = vshll.u32 %v5888, 16
      %v6126 = vrot.slane %v6124, 5
      %v6127 = vor.u32 %v6123, %v6126
      %v6128 = vrot.slane %v6127, 4
      %v6130 = vshll.u32 %v5889, 16
      %v6132 = vrot.slane %v6130, 5
      %v6133 = vsel %vm1246, %v6128, %v6132
      %v6134 = vshrl.u32 %v5889, 16
      %v6136 = vrot.slane %v6134, 4
      %v6137 = vor.u32 %v6136, %v6132
      %v6138 = vrot.slane %v6137, 4
      %v6140 = vshll.u32 %v5920, 16
      %v6142 = vrot.slane %v6140, 5
      %v6143 = vsel %vm1246, %v6138, %v6142
      %v6145 = vshrl.u32 %v5890, 16
      %v6147 = vrot.slane %v6145, 4
      %v6148 = vshll.u32 %v5890, 16
      %v6150 = vrot.slane %v6148, 5
      %v6151 = vor.u32 %v6147, %v6150
      %v6152 = vrot.slane %v6151, 4
      %v6154 = vshll.u32 %v5891, 16
      %v6156 = vrot.slane %v6154, 5
      %v6157 = vsel %vm1246, %v6152, %v6156
      %v6158 = vshrl.u32 %v5891, 16
      %v6160 = vrot.slane %v6158, 4
      %v6161 = vor.u32 %v6160, %v6156
      %v6162 = vrot.slane %v6161, 4
      %v6164 = vshll.u32 %v5921, 16
      %v6166 = vrot.slane %v6164, 5
      %v6167 = vsel %vm1246, %v6162, %v6166
      %v6169 = vshrl.u32 %v5892, 16
      %v6171 = vrot.slane %v6169, 4
      %v6172 = vshll.u32 %v5892, 16
      %v6174 = vrot.slane %v6172, 5
      %v6175 = vor.u32 %v6171, %v6174
      %v6176 = vrot.slane %v6175, 4
      %v6178 = vshll.u32 %v5893, 16
      %v6180 = vrot.slane %v6178, 5
      %v6181 = vsel %vm1246, %v6176, %v6180
      %v6182 = vshrl.u32 %v5893, 16
      %v6184 = vrot.slane %v6182, 4
      %v6185 = vor.u32 %v6184, %v6180
      %v6186 = vrot.slane %v6185, 4
      %v6188 = vshll.u32 %v5922, 16
      %v6190 = vrot.slane %v6188, 5
      %v6191 = vsel %vm1246, %v6186, %v6190
      %v6193 = vshrl.u32 %v5894, 16
      %v6195 = vrot.slane %v6193, 4
      %v6196 = vshll.u32 %v5894, 16
      %v6198 = vrot.slane %v6196, 5
      %v6199 = vor.u32 %v6195, %v6198
      %v6200 = vrot.slane %v6199, 4
      %v6202 = vshll.u32 %v5895, 16
      %v6204 = vrot.slane %v6202, 5
      %v6205 = vsel %vm1246, %v6200, %v6204
      %v6206 = vshrl.u32 %v5895, 16
      %v6208 = vrot.slane %v6206, 4
      %v6209 = vor.u32 %v6208, %v6204
      %v6210 = vrot.slane %v6209, 4
      %v6212 = vshll.u32 %v5923, 16
      %v6214 = vrot.slane %v6212, 5
      %v6215 = vsel %vm1246, %v6210, %v6214
      %v6217 = vshrl.u32 %v5896, 16
      %v6219 = vrot.slane %v6217, 4
      %v6220 = vshll.u32 %v5896, 16
      %v6222 = vrot.slane %v6220, 5
      %v6223 = vor.u32 %v6219, %v6222
      %v6224 = vrot.slane %v6223, 4
      %v6226 = vshll.u32 %v5897, 16
      %v6228 = vrot.slane %v6226, 5
      %v6229 = vsel %vm1246, %v6224, %v6228
      %v6230 = vshrl.u32 %v5897, 16
      %v6232 = vrot.slane %v6230, 4
      %v6233 = vor.u32 %v6232, %v6228
      %v6234 = vrot.slane %v6233, 4
      %v6236 = vshll.u32 %v5924, 16
      %v6238 = vrot.slane %v6236, 5
      %v6239 = vsel %vm1246, %v6234, %v6238
      %v6241 = vshrl.u32 %v5898, 16
      %v6243 = vrot.slane %v6241, 4
      %v6244 = vshll.u32 %v5898, 16
      %v6246 = vrot.slane %v6244, 5
      %v6247 = vor.u32 %v6243, %v6246
      %v6248 = vrot.slane %v6247, 4
      %v6250 = vshll.u32 %v5899, 16
      %v6252 = vrot.slane %v6250, 5
      %v6253 = vsel %vm1246, %v6248, %v6252
      %v6254 = vshrl.u32 %v5899, 16
      %v6256 = vrot.slane %v6254, 4
      %v6257 = vor.u32 %v6256, %v6252
      %v6258 = vrot.slane %v6257, 4
      %v6260 = vshll.u32 %v5925, 16
      %v6262 = vrot.slane %v6260, 5
      %v6263 = vsel %vm1246, %v6258, %v6262
      %v6265 = vshrl.u32 %v5900, 16
      %v6267 = vrot.slane %v6265, 4
      %v6268 = vshll.u32 %v5900, 16
      %v6270 = vrot.slane %v6268, 5
      %v6271 = vor.u32 %v6267, %v6270
      %v6272 = vrot.slane %v6271, 4
      %v6274 = vshll.u32 %v5901, 16
      %v6276 = vrot.slane %v6274, 5
      %v6277 = vsel %vm1246, %v6272, %v6276
      %v6278 = vshrl.u32 %v5901, 16
      %v6280 = vrot.slane %v6278, 4
      %v6281 = vor.u32 %v6280, %v6276
      %v6282 = vrot.slane %v6281, 4
      %v6284 = vshll.u32 %v5926, 16
      %v6286 = vrot.slane %v6284, 5
      %v6287 = vsel %vm1246, %v6282, %v6286
      %v6289 = vshrl.u32 %v5902, 16
      %v6291 = vrot.slane %v6289, 4
      %v6292 = vshll.u32 %v5902, 16
      %v6294 = vrot.slane %v6292, 5
      %v6295 = vor.u32 %v6291, %v6294
      %v6296 = vrot.slane %v6295, 4
      %v6298 = vshll.u32 %v5903, 16
      %v6300 = vrot.slane %v6298, 5
      %v6301 = vsel %vm1246, %v6296, %v6300
      %v6302 = vshrl.u32 %v5903, 16
      %v6304 = vrot.slane %v6302, 4
      %v6305 = vor.u32 %v6304, %v6300
      %v6306 = vrot.slane %v6305, 4
      %v6308 = vshll.u32 %v5927, 16
      %v6310 = vrot.slane %v6308, 5
      %v6311 = vsel %vm1246, %v6306, %v6310
      %v6312 = vld [vmem:[%s3 + $0x20] sm:$0xf]
      %v6313 = vld [vmem:[%s3 + $0x24] sm:$0xf]
      %v6314 = vld [vmem:[%s3 + $0x28] sm:$0xf]
      %v6315 = vld [vmem:[%s3 + $0x2c] sm:$0xf]
      %v6316 = vld [vmem:[%s3 + $0x30] sm:$0xf]
      %v6317 = vld [vmem:[%s3 + $0x34] sm:$0xf]
      %v6318 = vld [vmem:[%s3 + $0x38] sm:$0xf]
      %v6319 = vld [vmem:[%s3 + $0x3c] sm:$0xf]
      %v6320 = vunpack.c.l.b16 %v5941
      %v6321 = vunpack.c.l.b16 %v5951
      %v6322 = vunpack.c.l.b16 %v5965
      %v6323 = vunpack.c.l.b16 %v5975
      %v6324 = vunpack.c.l.b16 %v5989
      %v6325 = vunpack.c.l.b16 %v5999
      %v6326 = vunpack.c.l.b16 %v6013
      %v6327 = vunpack.c.l.b16 %v6023
      %v6328 = vunpack.c.l.b16 %v6037
      %v6329 = vunpack.c.l.b16 %v6047
      %v6330 = vunpack.c.l.b16 %v6061
      %v6331 = vunpack.c.l.b16 %v6071
      %v6332 = vunpack.c.l.b16 %v6085
      %v6333 = vunpack.c.l.b16 %v6095
      %v6334 = vunpack.c.l.b16 %v6109
      %v6335 = vunpack.c.l.b16 %v6119
      %v6336 = vunpack.c.l.b16 %v6133
      %v6337 = vunpack.c.l.b16 %v6143
      %v6338 = vunpack.c.l.b16 %v6157
      %v6339 = vunpack.c.l.b16 %v6167
      %v6340 = vunpack.c.l.b16 %v6181
      %v6341 = vunpack.c.l.b16 %v6191
      %v6342 = vunpack.c.l.b16 %v6205
      %v6343 = vunpack.c.l.b16 %v6215
      %v6344 = vunpack.c.l.b16 %v6229
      %v6345 = vunpack.c.l.b16 %v6239
      %v6346 = vunpack.c.l.b16 %v6253
      %v6347 = vunpack.c.l.b16 %v6263
      %v6348 = vunpack.c.l.b16 %v6277
      %v6349 = vunpack.c.l.b16 %v6287
      %v6350 = vunpack.c.l.b16 %v6301
      %v6351 = vunpack.c.l.b16 %v6311
      %v6352 = vpack.c.b16 %v6321, %v6320
      %v6353 = vpack.c.b16 %v6323, %v6322
      %v6354 = vpack.c.b16 %v6325, %v6324
      %v6355 = vpack.c.b16 %v6327, %v6326
      %v6356 = vpack.c.b16 %v6329, %v6328
      %v6357 = vpack.c.b16 %v6331, %v6330
      %v6358 = vpack.c.b16 %v6333, %v6332
      %v6359 = vpack.c.b16 %v6335, %v6334
      %v6360 = vpack.c.b16 %v6337, %v6336
      %v6361 = vpack.c.b16 %v6339, %v6338
      %v6362 = vpack.c.b16 %v6341, %v6340
      %v6363 = vpack.c.b16 %v6343, %v6342
      %v6364 = vpack.c.b16 %v6345, %v6344
      %v6365 = vpack.c.b16 %v6347, %v6346
      %v6366 = vpack.c.b16 %v6349, %v6348
      %v6367 = vpack.c.b16 %v6351, %v6350
      %v6376 = vunpack.c.l.b16 %v6312
      %v6377 = vunpack.c.l.b16 %v6313
      %v6378 = vunpack.c.l.b16 %v6314
      %v6379 = vunpack.c.l.b16 %v6315
      %v6380 = vunpack.c.l.b16 %v6316
      %v6381 = vunpack.c.l.b16 %v6317
      %v6382 = vunpack.c.l.b16 %v6318
      %v6383 = vunpack.c.l.b16 %v6319
      %v6384 = vpack.c.b16 %v6377, %v6376
      %v6385 = vpack.c.b16 %v6379, %v6378
      %v6386 = vpack.c.b16 %v6381, %v6380
      %v6387 = vpack.c.b16 %v6383, %v6382
      %v6393 = vsel %vm1711, %v6352, 0
      %v6396 = vsel %vm1711, %v6353, 0
      %v6399 = vsel %vm1711, %v6354, 0
      %v6402 = vsel %vm1711, %v6355, 0
      %v6405 = vsel %vm1711, %v6356, 0
      %v6408 = vsel %vm1711, %v6357, 0
      %v6411 = vsel %vm1711, %v6358, 0
      %v6414 = vsel %vm1711, %v6359, 0
      %v6417 = vsel %vm1711, %v6360, 0
      %v6420 = vsel %vm1711, %v6361, 0
      %v6423 = vsel %vm1711, %v6362, 0
      %v6426 = vsel %vm1711, %v6363, 0
      %v6429 = vsel %vm1711, %v6364, 0
      %v6432 = vsel %vm1711, %v6365, 0
      %v6435 = vsel %vm1711, %v6366, 0
      %v6438 = vsel %vm1711, %v6367, 0
      %6440 = vmatpush.bf16.msra.mxu0 0
      %6441 = vmatpush.bf16.msra.mxu0 0
      %6442 = vmatpush.bf16.msra.mxu0 0
      %6443 = vmatpush.bf16.msra.mxu0 0
      %6444 = vmatpush.bf16.msra.mxu0 %v6387
      %6445 = vmatpush.bf16.msra.mxu0 %v6386
      %6446 = vmatpush.bf16.msra.mxu0 %v6385
      %6447 = vmatpush.bf16.msra.mxu0 %v6384
      %6448 = vmatmul.bf16.gmra.mxu0 %v6393
      %v6449 = vpop.f32.mrf.mxu0
      %v6450 = vadd.f32 0.0, %v6449
      %v6451 = vpop.f32.mrf.mxu0
      %v6452 = vadd.f32 0.0, %v6451
      %6453 = vmatmul.bf16.gmra.mxu0 %v6396
      %v6454 = vpop.f32.mrf.mxu0
      %v6455 = vadd.f32 0.0, %v6454
      %v6456 = vpop.f32.mrf.mxu0
      %v6457 = vadd.f32 0.0, %v6456
      %6458 = vmatmul.bf16.gmra.mxu0 %v6399
      %v6459 = vpop.f32.mrf.mxu0
      %v6460 = vadd.f32 0.0, %v6459
      %v6461 = vpop.f32.mrf.mxu0
      %v6462 = vadd.f32 0.0, %v6461
      %6463 = vmatmul.bf16.gmra.mxu0 %v6402
      %v6464 = vpop.f32.mrf.mxu0
      %v6465 = vadd.f32 0.0, %v6464
      %v6466 = vpop.f32.mrf.mxu0
      %v6467 = vadd.f32 0.0, %v6466
      %6468 = vmatmul.bf16.gmra.mxu0 %v6405
      %v6469 = vpop.f32.mrf.mxu0
      %v6470 = vadd.f32 0.0, %v6469
      %v6471 = vpop.f32.mrf.mxu0
      %v6472 = vadd.f32 0.0, %v6471
      %6473 = vmatmul.bf16.gmra.mxu0 %v6408
      %v6474 = vpop.f32.mrf.mxu0
      %v6475 = vadd.f32 0.0, %v6474
      %v6476 = vpop.f32.mrf.mxu0
      %v6477 = vadd.f32 0.0, %v6476
      %6478 = vmatmul.bf16.gmra.mxu0 %v6411
      %v6479 = vpop.f32.mrf.mxu0
      %v6480 = vadd.f32 0.0, %v6479
      %v6481 = vpop.f32.mrf.mxu0
      %v6482 = vadd.f32 0.0, %v6481
      %6483 = vmatmul.bf16.gmra.mxu0 %v6414
      %v6484 = vpop.f32.mrf.mxu0
      %v6485 = vadd.f32 0.0, %v6484
      %v6486 = vpop.f32.mrf.mxu0
      %v6487 = vadd.f32 0.0, %v6486
      %6488 = vmatmul.bf16.gmra.mxu0 %v6417
      %v6489 = vpop.f32.mrf.mxu0
      %v6490 = vadd.f32 0.0, %v6489
      %v6491 = vpop.f32.mrf.mxu0
      %v6492 = vadd.f32 0.0, %v6491
      %6493 = vmatmul.bf16.gmra.mxu0 %v6420
      %v6494 = vpop.f32.mrf.mxu0
      %v6495 = vadd.f32 0.0, %v6494
      %v6496 = vpop.f32.mrf.mxu0
      %v6497 = vadd.f32 0.0, %v6496
      %6498 = vmatmul.bf16.gmra.mxu0 %v6423
      %v6499 = vpop.f32.mrf.mxu0
      %v6500 = vadd.f32 0.0, %v6499
      %v6501 = vpop.f32.mrf.mxu0
      %v6502 = vadd.f32 0.0, %v6501
      %6503 = vmatmul.bf16.gmra.mxu0 %v6426
      %v6504 = vpop.f32.mrf.mxu0
      %v6505 = vadd.f32 0.0, %v6504
      %v6506 = vpop.f32.mrf.mxu0
      %v6507 = vadd.f32 0.0, %v6506
      %6508 = vmatmul.bf16.gmra.mxu0 %v6429
      %v6509 = vpop.f32.mrf.mxu0
      %v6510 = vadd.f32 0.0, %v6509
      %v6511 = vpop.f32.mrf.mxu0
      %v6512 = vadd.f32 0.0, %v6511
      %6513 = vmatmul.bf16.gmra.mxu0 %v6432
      %v6514 = vpop.f32.mrf.mxu0
      %v6515 = vadd.f32 0.0, %v6514
      %v6516 = vpop.f32.mrf.mxu0
      %v6517 = vadd.f32 0.0, %v6516
      %6518 = vmatmul.bf16.gmra.mxu0 %v6435
      %v6519 = vpop.f32.mrf.mxu0
      %v6520 = vadd.f32 0.0, %v6519
      %v6521 = vpop.f32.mrf.mxu0
      %v6522 = vadd.f32 0.0, %v6521
      %6523 = vmatmul.bf16.gmra.mxu0 %v6438
      %v6524 = vpop.f32.mrf.mxu0
      %v6525 = vadd.f32 0.0, %v6524
      %v6526 = vpop.f32.mrf.mxu0
      %v6527 = vadd.f32 0.0, %v6526
      %6528 = vdwg.mxu0
      %v6561 = vunpack.c.l.b16 %v5872
      %v6562 = vunpack.c.l.b16 %v5873
      %v6563 = vunpack.c.l.b16 %v5874
      %v6564 = vunpack.c.l.b16 %v5875
      %v6565 = vunpack.c.l.b16 %v5876
      %v6566 = vunpack.c.l.b16 %v5877
      %v6567 = vunpack.c.l.b16 %v5878
      %v6568 = vunpack.c.l.b16 %v5879
      %v6569 = vunpack.c.l.b16 %v5880
      %v6570 = vunpack.c.l.b16 %v5881
      %v6571 = vunpack.c.l.b16 %v5882
      %v6572 = vunpack.c.l.b16 %v5883
      %v6573 = vunpack.c.l.b16 %v5884
      %v6574 = vunpack.c.l.b16 %v5885
      %v6575 = vunpack.c.l.b16 %v5886
      %v6576 = vunpack.c.l.b16 %v5887
      %v6577 = vunpack.c.l.b16 %v5888
      %v6578 = vunpack.c.l.b16 %v5889
      %v6579 = vunpack.c.l.b16 %v5890
      %v6580 = vunpack.c.l.b16 %v5891
      %v6581 = vunpack.c.l.b16 %v5892
      %v6582 = vunpack.c.l.b16 %v5893
      %v6583 = vunpack.c.l.b16 %v5894
      %v6584 = vunpack.c.l.b16 %v5895
      %v6585 = vunpack.c.l.b16 %v5896
      %v6586 = vunpack.c.l.b16 %v5897
      %v6587 = vunpack.c.l.b16 %v5898
      %v6588 = vunpack.c.l.b16 %v5899
      %v6589 = vunpack.c.l.b16 %v5900
      %v6590 = vunpack.c.l.b16 %v5901
      %v6591 = vunpack.c.l.b16 %v5902
      %v6592 = vunpack.c.l.b16 %v5903
      %v6593 = vpack.c.b16 %v6562, %v6561
      %v6594 = vpack.c.b16 %v6564, %v6563
      %v6595 = vpack.c.b16 %v6566, %v6565
      %v6596 = vpack.c.b16 %v6568, %v6567
      %v6597 = vpack.c.b16 %v6570, %v6569
      %v6598 = vpack.c.b16 %v6572, %v6571
      %v6599 = vpack.c.b16 %v6574, %v6573
      %v6600 = vpack.c.b16 %v6576, %v6575
      %v6601 = vpack.c.b16 %v6578, %v6577
      %v6602 = vpack.c.b16 %v6580, %v6579
      %v6603 = vpack.c.b16 %v6582, %v6581
      %v6604 = vpack.c.b16 %v6584, %v6583
      %v6605 = vpack.c.b16 %v6586, %v6585
      %v6606 = vpack.c.b16 %v6588, %v6587
      %v6607 = vpack.c.b16 %v6590, %v6589
      %v6608 = vpack.c.b16 %v6592, %v6591
      %v6617 = vunpack.c.l.b16 %v5904
      %v6618 = vunpack.c.l.b16 %v5905
      %v6619 = vunpack.c.l.b16 %v5906
      %v6620 = vunpack.c.l.b16 %v5907
      %v6621 = vunpack.c.l.b16 %v5908
      %v6622 = vunpack.c.l.b16 %v5909
      %v6623 = vunpack.c.l.b16 %v5910
      %v6624 = vunpack.c.l.b16 %v5911
      %v6625 = vpack.c.b16 %v6618, %v6617
      %v6626 = vpack.c.b16 %v6620, %v6619
      %v6627 = vpack.c.b16 %v6622, %v6621
      %v6628 = vpack.c.b16 %v6624, %v6623
      %v6634 = vsel %vm1711, %v6593, 0
      %v6637 = vsel %vm1711, %v6594, 0
      %v6640 = vsel %vm1711, %v6595, 0
      %v6643 = vsel %vm1711, %v6596, 0
      %v6646 = vsel %vm1711, %v6597, 0
      %v6649 = vsel %vm1711, %v6598, 0
      %v6652 = vsel %vm1711, %v6599, 0
      %v6655 = vsel %vm1711, %v6600, 0
      %v6658 = vsel %vm1711, %v6601, 0
      %v6661 = vsel %vm1711, %v6602, 0
      %v6664 = vsel %vm1711, %v6603, 0
      %v6667 = vsel %vm1711, %v6604, 0
      %v6670 = vsel %vm1711, %v6605, 0
      %v6673 = vsel %vm1711, %v6606, 0
      %v6676 = vsel %vm1711, %v6607, 0
      %v6679 = vsel %vm1711, %v6608, 0
      %6681 = vmatpush.bf16.msra.mxu0 0
      %6682 = vmatpush.bf16.msra.mxu0 0
      %6683 = vmatpush.bf16.msra.mxu0 0
      %6684 = vmatpush.bf16.msra.mxu0 0
      %6685 = vmatpush.bf16.msra.mxu0 %v6628
      %6686 = vmatpush.bf16.msra.mxu0 %v6627
      %6687 = vmatpush.bf16.msra.mxu0 %v6626
      %6688 = vmatpush.bf16.msra.mxu0 %v6625
      %6689 = vmatmul.bf16.gmra.mxu0 %v6634
      %v6690 = vpop.f32.mrf.mxu0
      %v6691 = vadd.f32 %v6450, %v6690
      %v6692 = vpop.f32.mrf.mxu0
      %v6693 = vadd.f32 %v6452, %v6692
      %6694 = vmatmul.bf16.gmra.mxu0 %v6637
      %v6695 = vpop.f32.mrf.mxu0
      %v6696 = vadd.f32 %v6455, %v6695
      %v6697 = vpop.f32.mrf.mxu0
      %v6698 = vadd.f32 %v6457, %v6697
      %6699 = vmatmul.bf16.gmra.mxu0 %v6640
      %v6700 = vpop.f32.mrf.mxu0
      %v6701 = vadd.f32 %v6460, %v6700
      %v6702 = vpop.f32.mrf.mxu0
      %v6703 = vadd.f32 %v6462, %v6702
      %6704 = vmatmul.bf16.gmra.mxu0 %v6643
      %v6705 = vpop.f32.mrf.mxu0
      %v6706 = vadd.f32 %v6465, %v6705
      %v6707 = vpop.f32.mrf.mxu0
      %v6708 = vadd.f32 %v6467, %v6707
      %6709 = vmatmul.bf16.gmra.mxu0 %v6646
      %v6710 = vpop.f32.mrf.mxu0
      %v6711 = vadd.f32 %v6470, %v6710
      %v6712 = vpop.f32.mrf.mxu0
      %v6713 = vadd.f32 %v6472, %v6712
      %6714 = vmatmul.bf16.gmra.mxu0 %v6649
      %v6715 = vpop.f32.mrf.mxu0
      %v6716 = vadd.f32 %v6475, %v6715
      %v6717 = vpop.f32.mrf.mxu0
      %v6718 = vadd.f32 %v6477, %v6717
      %6719 = vmatmul.bf16.gmra.mxu0 %v6652
      %v6720 = vpop.f32.mrf.mxu0
      %v6721 = vadd.f32 %v6480, %v6720
      %v6722 = vpop.f32.mrf.mxu0
      %v6723 = vadd.f32 %v6482, %v6722
      %6724 = vmatmul.bf16.gmra.mxu0 %v6655
      %v6725 = vpop.f32.mrf.mxu0
      %v6726 = vadd.f32 %v6485, %v6725
      %v6727 = vpop.f32.mrf.mxu0
      %v6728 = vadd.f32 %v6487, %v6727
      %6729 = vmatmul.bf16.gmra.mxu0 %v6658
      %v6730 = vpop.f32.mrf.mxu0
      %v6731 = vadd.f32 %v6490, %v6730
      %v6732 = vpop.f32.mrf.mxu0
      %v6733 = vadd.f32 %v6492, %v6732
      %6734 = vmatmul.bf16.gmra.mxu0 %v6661
      %v6735 = vpop.f32.mrf.mxu0
      %v6736 = vadd.f32 %v6495, %v6735
      %v6737 = vpop.f32.mrf.mxu0
      %v6738 = vadd.f32 %v6497, %v6737
      %6739 = vmatmul.bf16.gmra.mxu0 %v6664
      %v6740 = vpop.f32.mrf.mxu0
      %v6741 = vadd.f32 %v6500, %v6740
      %v6742 = vpop.f32.mrf.mxu0
      %v6743 = vadd.f32 %v6502, %v6742
      %6744 = vmatmul.bf16.gmra.mxu0 %v6667
      %v6745 = vpop.f32.mrf.mxu0
      %v6746 = vadd.f32 %v6505, %v6745
      %v6747 = vpop.f32.mrf.mxu0
      %v6748 = vadd.f32 %v6507, %v6747
      %6749 = vmatmul.bf16.gmra.mxu0 %v6670
      %v6750 = vpop.f32.mrf.mxu0
      %v6751 = vadd.f32 %v6510, %v6750
      %v6752 = vpop.f32.mrf.mxu0
      %v6753 = vadd.f32 %v6512, %v6752
      %6754 = vmatmul.bf16.gmra.mxu0 %v6673
      %v6755 = vpop.f32.mrf.mxu0
      %v6756 = vadd.f32 %v6515, %v6755
      %v6757 = vpop.f32.mrf.mxu0
      %v6758 = vadd.f32 %v6517, %v6757
      %6759 = vmatmul.bf16.gmra.mxu0 %v6676
      %v6760 = vpop.f32.mrf.mxu0
      %v6761 = vadd.f32 %v6520, %v6760
      %v6762 = vpop.f32.mrf.mxu0
      %v6763 = vadd.f32 %v6522, %v6762
      %6764 = vmatmul.bf16.gmra.mxu0 %v6679
      %v6765 = vpop.f32.mrf.mxu0
      %v6766 = vadd.f32 %v6525, %v6765
      %v6767 = vpop.f32.mrf.mxu0
      %v6768 = vadd.f32 %v6527, %v6767
      %6769 = vdwg.mxu0
      %v6770 = vld [vmem:[#allocation2] sm:$0xe]
      %v6771 = vld [vmem:[#allocation2 + $0xc] sm:$0xe]
      %v6772 = vld [vmem:[#allocation2 + $0x18] sm:$0xe]
      %v6773 = vld [vmem:[#allocation2 + $0x24] sm:$0xe]
      %v6774 = vld [vmem:[#allocation2 + $0x30] sm:$0xe]
      %v6775 = vld [vmem:[#allocation2 + $0x3c] sm:$0xe]
      %v6776 = vld [vmem:[#allocation2 + $0x48] sm:$0xe]
      %v6777 = vld [vmem:[#allocation2 + $0x54] sm:$0xe]
      %v6778 = vld [vmem:[#allocation2 + $0x60] sm:$0xe]
      %v6779 = vld [vmem:[#allocation2 + $0x6c] sm:$0xe]
      %v6780 = vld [vmem:[#allocation2 + $0x78] sm:$0xe]
      %v6781 = vld [vmem:[#allocation2 + $0x84] sm:$0xe]
      %v6782 = vld [vmem:[#allocation2 + $0x90] sm:$0xe]
      %v6783 = vld [vmem:[#allocation2 + $0x9c] sm:$0xe]
      %v6784 = vld [vmem:[#allocation2 + $0xa8] sm:$0xe]
      %v6785 = vld [vmem:[#allocation2 + $0xb4] sm:$0xe]
      %v6818 = vrot.slane %v6770, 5
      %v6819 = vrot.slane %v6818, 4
      %v6820 = vrot.slane %v5873, 5
      %v6821 = vsel %vm2140, %v6819, %v6820
      %v6822 = vrot.slane %v6820, 4
      %v6823 = vrot.slane %v5912, 5
      %v6824 = vsel %vm2140, %v6822, %v6823
      %v6825 = vrot.slane %v6771, 5
      %v6826 = vrot.slane %v6825, 4
      %v6827 = vrot.slane %v5875, 5
      %v6828 = vsel %vm2140, %v6826, %v6827
      %v6829 = vrot.slane %v6827, 4
      %v6830 = vrot.slane %v5913, 5
      %v6831 = vsel %vm2140, %v6829, %v6830
      %v6832 = vrot.slane %v6772, 5
      %v6833 = vrot.slane %v6832, 4
      %v6834 = vrot.slane %v5877, 5
      %v6835 = vsel %vm2140, %v6833, %v6834
      %v6836 = vrot.slane %v6834, 4
      %v6837 = vrot.slane %v5914, 5
      %v6838 = vsel %vm2140, %v6836, %v6837
      %v6839 = vrot.slane %v6773, 5
      %v6840 = vrot.slane %v6839, 4
      %v6841 = vrot.slane %v5879, 5
      %v6842 = vsel %vm2140, %v6840, %v6841
      %v6843 = vrot.slane %v6841, 4
      %v6844 = vrot.slane %v5915, 5
      %v6845 = vsel %vm2140, %v6843, %v6844
      %v6846 = vrot.slane %v6774, 5
      %v6847 = vrot.slane %v6846, 4
      %v6848 = vrot.slane %v5881, 5
      %v6849 = vsel %vm2140, %v6847, %v6848
      %v6850 = vrot.slane %v6848, 4
      %v6851 = vrot.slane %v5916, 5
      %v6852 = vsel %vm2140, %v6850, %v6851
      %v6853 = vrot.slane %v6775, 5
      %v6854 = vrot.slane %v6853, 4
      %v6855 = vrot.slane %v5883, 5
      %v6856 = vsel %vm2140, %v6854, %v6855
      %v6857 = vrot.slane %v6855, 4
      %v6858 = vrot.slane %v5917, 5
      %v6859 = vsel %vm2140, %v6857, %v6858
      %v6860 = vrot.slane %v6776, 5
      %v6861 = vrot.slane %v6860, 4
      %v6862 = vrot.slane %v5885, 5
      %v6863 = vsel %vm2140, %v6861, %v6862
      %v6864 = vrot.slane %v6862, 4
      %v6865 = vrot.slane %v5918, 5
      %v6866 = vsel %vm2140, %v6864, %v6865
      %v6867 = vrot.slane %v6777, 5
      %v6868 = vrot.slane %v6867, 4
      %v6869 = vrot.slane %v5887, 5
      %v6870 = vsel %vm2140, %v6868, %v6869
      %v6871 = vrot.slane %v6869, 4
      %v6872 = vrot.slane %v5919, 5
      %v6873 = vsel %vm2140, %v6871, %v6872
      %v6874 = vrot.slane %v6778, 5
      %v6875 = vrot.slane %v6874, 4
      %v6876 = vrot.slane %v5889, 5
      %v6877 = vsel %vm2140, %v6875, %v6876
      %v6878 = vrot.slane %v6876, 4
      %v6879 = vrot.slane %v5920, 5
      %v6880 = vsel %vm2140, %v6878, %v6879
      %v6881 = vrot.slane %v6779, 5
      %v6882 = vrot.slane %v6881, 4
      %v6883 = vrot.slane %v5891, 5
      %v6884 = vsel %vm2140, %v6882, %v6883
      %v6885 = vrot.slane %v6883, 4
      %v6886 = vrot.slane %v5921, 5
      %v6887 = vsel %vm2140, %v6885, %v6886
      %v6888 = vrot.slane %v6780, 5
      %v6889 = vrot.slane %v6888, 4
      %v6890 = vrot.slane %v5893, 5
      %v6891 = vsel %vm2140, %v6889, %v6890
      %v6892 = vrot.slane %v6890, 4
      %v6893 = vrot.slane %v5922, 5
      %v6894 = vsel %vm2140, %v6892, %v6893
      %v6895 = vrot.slane %v6781, 5
      %v6896 = vrot.slane %v6895, 4
      %v6897 = vrot.slane %v5895, 5
      %v6898 = vsel %vm2140, %v6896, %v6897
      %v6899 = vrot.slane %v6897, 4
      %v6900 = vrot.slane %v5923, 5
      %v6901 = vsel %vm2140, %v6899, %v6900
      %v6902 = vrot.slane %v6782, 5
      %v6903 = vrot.slane %v6902, 4
      %v6904 = vrot.slane %v5897, 5
      %v6905 = vsel %vm2140, %v6903, %v6904
      %v6906 = vrot.slane %v6904, 4
      %v6907 = vrot.slane %v5924, 5
      %v6908 = vsel %vm2140, %v6906, %v6907
      %v6909 = vrot.slane %v6783, 5
      %v6910 = vrot.slane %v6909, 4
      %v6911 = vrot.slane %v5899, 5
      %v6912 = vsel %vm2140, %v6910, %v6911
      %v6913 = vrot.slane %v6911, 4
      %v6914 = vrot.slane %v5925, 5
      %v6915 = vsel %vm2140, %v6913, %v6914
      %v6916 = vrot.slane %v6784, 5
      %v6917 = vrot.slane %v6916, 4
      %v6918 = vrot.slane %v5901, 5
      %v6919 = vsel %vm2140, %v6917, %v6918
      %v6920 = vrot.slane %v6918, 4
      %v6921 = vrot.slane %v5926, 5
      %v6922 = vsel %vm2140, %v6920, %v6921
      %v6923 = vrot.slane %v6785, 5
      %v6924 = vrot.slane %v6923, 4
      %v6925 = vrot.slane %v5903, 5
      %v6926 = vsel %vm2140, %v6924, %v6925
      %v6927 = vrot.slane %v6925, 4
      %v6928 = vrot.slane %v5927, 5
      %v6929 = vsel %vm2140, %v6927, %v6928
      %v6930 = vld [vmem:[%s3 + $0x40] sm:$0xf]
      %v6931 = vld [vmem:[%s3 + $0x44] sm:$0xf]
      %v6932 = vld [vmem:[%s3 + $0x48] sm:$0xf]
      %v6933 = vld [vmem:[%s3 + $0x4c] sm:$0xf]
      %v6934 = vld [vmem:[%s3 + $0x50] sm:$0xf]
      %v6935 = vld [vmem:[%s3 + $0x54] sm:$0xf]
      %v6936 = vld [vmem:[%s3 + $0x58] sm:$0xf]
      %v6937 = vld [vmem:[%s3 + $0x5c] sm:$0xf]
      %v6938 = vunpack.c.l.b16 %v6821
      %v6939 = vunpack.c.l.b16 %v6824
      %v6940 = vunpack.c.l.b16 %v6828
      %v6941 = vunpack.c.l.b16 %v6831
      %v6942 = vunpack.c.l.b16 %v6835
      %v6943 = vunpack.c.l.b16 %v6838
      %v6944 = vunpack.c.l.b16 %v6842
      %v6945 = vunpack.c.l.b16 %v6845
      %v6946 = vunpack.c.l.b16 %v6849
      %v6947 = vunpack.c.l.b16 %v6852
      %v6948 = vunpack.c.l.b16 %v6856
      %v6949 = vunpack.c.l.b16 %v6859
      %v6950 = vunpack.c.l.b16 %v6863
      %v6951 = vunpack.c.l.b16 %v6866
      %v6952 = vunpack.c.l.b16 %v6870
      %v6953 = vunpack.c.l.b16 %v6873
      %v6954 = vunpack.c.l.b16 %v6877
      %v6955 = vunpack.c.l.b16 %v6880
      %v6956 = vunpack.c.l.b16 %v6884
      %v6957 = vunpack.c.l.b16 %v6887
      %v6958 = vunpack.c.l.b16 %v6891
      %v6959 = vunpack.c.l.b16 %v6894
      %v6960 = vunpack.c.l.b16 %v6898
      %v6961 = vunpack.c.l.b16 %v6901
      %v6962 = vunpack.c.l.b16 %v6905
      %v6963 = vunpack.c.l.b16 %v6908
      %v6964 = vunpack.c.l.b16 %v6912
      %v6965 = vunpack.c.l.b16 %v6915
      %v6966 = vunpack.c.l.b16 %v6919
      %v6967 = vunpack.c.l.b16 %v6922
      %v6968 = vunpack.c.l.b16 %v6926
      %v6969 = vunpack.c.l.b16 %v6929
      %v6970 = vpack.c.b16 %v6939, %v6938
      %v6971 = vpack.c.b16 %v6941, %v6940
      %v6972 = vpack.c.b16 %v6943, %v6942
      %v6973 = vpack.c.b16 %v6945, %v6944
      %v6974 = vpack.c.b16 %v6947, %v6946
      %v6975 = vpack.c.b16 %v6949, %v6948
      %v6976 = vpack.c.b16 %v6951, %v6950
      %v6977 = vpack.c.b16 %v6953, %v6952
      %v6978 = vpack.c.b16 %v6955, %v6954
      %v6979 = vpack.c.b16 %v6957, %v6956
      %v6980 = vpack.c.b16 %v6959, %v6958
      %v6981 = vpack.c.b16 %v6961, %v6960
      %v6982 = vpack.c.b16 %v6963, %v6962
      %v6983 = vpack.c.b16 %v6965, %v6964
      %v6984 = vpack.c.b16 %v6967, %v6966
      %v6985 = vpack.c.b16 %v6969, %v6968
      %v6994 = vunpack.c.l.b16 %v6930
      %v6995 = vunpack.c.l.b16 %v6931
      %v6996 = vunpack.c.l.b16 %v6932
      %v6997 = vunpack.c.l.b16 %v6933
      %v6998 = vunpack.c.l.b16 %v6934
      %v6999 = vunpack.c.l.b16 %v6935
      %v7000 = vunpack.c.l.b16 %v6936
      %v7001 = vunpack.c.l.b16 %v6937
      %v7002 = vpack.c.b16 %v6995, %v6994
      %v7003 = vpack.c.b16 %v6997, %v6996
      %v7004 = vpack.c.b16 %v6999, %v6998
      %v7005 = vpack.c.b16 %v7001, %v7000
      %v7011 = vsel %vm1711, %v6970, 0
      %v7014 = vsel %vm1711, %v6971, 0
      %v7017 = vsel %vm1711, %v6972, 0
      %v7020 = vsel %vm1711, %v6973, 0
      %v7023 = vsel %vm1711, %v6974, 0
      %v7026 = vsel %vm1711, %v6975, 0
      %v7029 = vsel %vm1711, %v6976, 0
      %v7032 = vsel %vm1711, %v6977, 0
      %v7035 = vsel %vm1711, %v6978, 0
      %v7038 = vsel %vm1711, %v6979, 0
      %v7041 = vsel %vm1711, %v6980, 0
      %v7044 = vsel %vm1711, %v6981, 0
      %v7047 = vsel %vm1711, %v6982, 0
      %v7050 = vsel %vm1711, %v6983, 0
      %v7053 = vsel %vm1711, %v6984, 0
      %v7056 = vsel %vm1711, %v6985, 0
      %7058 = vmatpush.bf16.msra.mxu0 0
      %7059 = vmatpush.bf16.msra.mxu0 0
      %7060 = vmatpush.bf16.msra.mxu0 0
      %7061 = vmatpush.bf16.msra.mxu0 0
      %7062 = vmatpush.bf16.msra.mxu0 %v7005
      %7063 = vmatpush.bf16.msra.mxu0 %v7004
      %7064 = vmatpush.bf16.msra.mxu0 %v7003
      %7065 = vmatpush.bf16.msra.mxu0 %v7002
      %7066 = vmatmul.bf16.gmra.mxu0 %v7011
      %v7067 = vpop.f32.mrf.mxu0
      %v7068 = vadd.f32 0.0, %v7067
      %v7069 = vpop.f32.mrf.mxu0
      %v7070 = vadd.f32 0.0, %v7069
      %7071 = vmatmul.bf16.gmra.mxu0 %v7014
      %v7072 = vpop.f32.mrf.mxu0
      %v7073 = vadd.f32 0.0, %v7072
      %v7074 = vpop.f32.mrf.mxu0
      %v7075 = vadd.f32 0.0, %v7074
      %7076 = vmatmul.bf16.gmra.mxu0 %v7017
      %v7077 = vpop.f32.mrf.mxu0
      %v7078 = vadd.f32 0.0, %v7077
      %v7079 = vpop.f32.mrf.mxu0
      %v7080 = vadd.f32 0.0, %v7079
      %7081 = vmatmul.bf16.gmra.mxu0 %v7020
      %v7082 = vpop.f32.mrf.mxu0
      %v7083 = vadd.f32 0.0, %v7082
      %v7084 = vpop.f32.mrf.mxu0
      %v7085 = vadd.f32 0.0, %v7084
      %7086 = vmatmul.bf16.gmra.mxu0 %v7023
      %v7087 = vpop.f32.mrf.mxu0
      %v7088 = vadd.f32 0.0, %v7087
      %v7089 = vpop.f32.mrf.mxu0
      %v7090 = vadd.f32 0.0, %v7089
      %7091 = vmatmul.bf16.gmra.mxu0 %v7026
      %v7092 = vpop.f32.mrf.mxu0
      %v7093 = vadd.f32 0.0, %v7092
      %v7094 = vpop.f32.mrf.mxu0
      %v7095 = vadd.f32 0.0, %v7094
      %7096 = vmatmul.bf16.gmra.mxu0 %v7029
      %v7097 = vpop.f32.mrf.mxu0
      %v7098 = vadd.f32 0.0, %v7097
      %v7099 = vpop.f32.mrf.mxu0
      %v7100 = vadd.f32 0.0, %v7099
      %7101 = vmatmul.bf16.gmra.mxu0 %v7032
      %v7102 = vpop.f32.mrf.mxu0
      %v7103 = vadd.f32 0.0, %v7102
      %v7104 = vpop.f32.mrf.mxu0
      %v7105 = vadd.f32 0.0, %v7104
      %7106 = vmatmul.bf16.gmra.mxu0 %v7035
      %v7107 = vpop.f32.mrf.mxu0
      %v7108 = vadd.f32 0.0, %v7107
      %v7109 = vpop.f32.mrf.mxu0
      %v7110 = vadd.f32 0.0, %v7109
      %7111 = vmatmul.bf16.gmra.mxu0 %v7038
      %v7112 = vpop.f32.mrf.mxu0
      %v7113 = vadd.f32 0.0, %v7112
      %v7114 = vpop.f32.mrf.mxu0
      %v7115 = vadd.f32 0.0, %v7114
      %7116 = vmatmul.bf16.gmra.mxu0 %v7041
      %v7117 = vpop.f32.mrf.mxu0
      %v7118 = vadd.f32 0.0, %v7117
      %v7119 = vpop.f32.mrf.mxu0
      %v7120 = vadd.f32 0.0, %v7119
      %7121 = vmatmul.bf16.gmra.mxu0 %v7044
      %v7122 = vpop.f32.mrf.mxu0
      %v7123 = vadd.f32 0.0, %v7122
      %v7124 = vpop.f32.mrf.mxu0
      %v7125 = vadd.f32 0.0, %v7124
      %7126 = vmatmul.bf16.gmra.mxu0 %v7047
      %v7127 = vpop.f32.mrf.mxu0
      %v7128 = vadd.f32 0.0, %v7127
      %v7129 = vpop.f32.mrf.mxu0
      %v7130 = vadd.f32 0.0, %v7129
      %7131 = vmatmul.bf16.gmra.mxu0 %v7050
      %v7132 = vpop.f32.mrf.mxu0
      %v7133 = vadd.f32 0.0, %v7132
      %v7134 = vpop.f32.mrf.mxu0
      %v7135 = vadd.f32 0.0, %v7134
      %7136 = vmatmul.bf16.gmra.mxu0 %v7053
      %v7137 = vpop.f32.mrf.mxu0
      %v7138 = vadd.f32 0.0, %v7137
      %v7139 = vpop.f32.mrf.mxu0
      %v7140 = vadd.f32 0.0, %v7139
      %7141 = vmatmul.bf16.gmra.mxu0 %v7056
      %v7142 = vpop.f32.mrf.mxu0
      %v7143 = vadd.f32 0.0, %v7142
      %v7144 = vpop.f32.mrf.mxu0
      %v7145 = vadd.f32 0.0, %v7144
      %7146 = vdwg.mxu0
      %v7147 = vadd.f32 %v6691, %v7068
      %v7148 = vadd.f32 %v6693, %v7070
      %v7149 = vadd.f32 %v6696, %v7073
      %v7150 = vadd.f32 %v6698, %v7075
      %v7151 = vadd.f32 %v6701, %v7078
      %v7152 = vadd.f32 %v6703, %v7080
      %v7153 = vadd.f32 %v6706, %v7083
      %v7154 = vadd.f32 %v6708, %v7085
      %v7155 = vadd.f32 %v6711, %v7088
      %v7156 = vadd.f32 %v6713, %v7090
      %v7157 = vadd.f32 %v6716, %v7093
      %v7158 = vadd.f32 %v6718, %v7095
      %v7159 = vadd.f32 %v6721, %v7098
      %v7160 = vadd.f32 %v6723, %v7100
      %v7161 = vadd.f32 %v6726, %v7103
      %v7162 = vadd.f32 %v6728, %v7105
      %v7163 = vadd.f32 %v6731, %v7108
      %v7164 = vadd.f32 %v6733, %v7110
      %v7165 = vadd.f32 %v6736, %v7113
      %v7166 = vadd.f32 %v6738, %v7115
      %v7167 = vadd.f32 %v6741, %v7118
      %v7168 = vadd.f32 %v6743, %v7120
      %v7169 = vadd.f32 %v6746, %v7123
      %v7170 = vadd.f32 %v6748, %v7125
      %v7171 = vadd.f32 %v6751, %v7128
      %v7172 = vadd.f32 %v6753, %v7130
      %v7173 = vadd.f32 %v6756, %v7133
      %v7174 = vadd.f32 %v6758, %v7135
      %v7175 = vadd.f32 %v6761, %v7138
      %v7176 = vadd.f32 %v6763, %v7140
      %v7177 = vadd.f32 %v6766, %v7143
      %v7178 = vadd.f32 %v6768, %v7145
      %v7179 = vld [vmem:[%s1073] sm:$0xf]
      %v7180 = vld [vmem:[%s1073 + $0x4] sm:$0xf]
      %v7181 = vld [vmem:[%s1073 + $0xc] sm:$0xf]
      %v7182 = vld [vmem:[%s1073 + $0x10] sm:$0xf]
      %v7183 = vld [vmem:[%s1073 + $0x18] sm:$0xf]
      %v7184 = vld [vmem:[%s1073 + $0x1c] sm:$0xf]
      %v7185 = vld [vmem:[%s1073 + $0x24] sm:$0xf]
      %v7186 = vld [vmem:[%s1073 + $0x28] sm:$0xf]
      %v7187 = vld [vmem:[%s1073 + $0x30] sm:$0xf]
      %v7188 = vld [vmem:[%s1073 + $0x34] sm:$0xf]
      %v7189 = vld [vmem:[%s1073 + $0x3c] sm:$0xf]
      %v7190 = vld [vmem:[%s1073 + $0x40] sm:$0xf]
      %v7191 = vld [vmem:[%s1073 + $0x48] sm:$0xf]
      %v7192 = vld [vmem:[%s1073 + $0x4c] sm:$0xf]
      %v7193 = vld [vmem:[%s1073 + $0x54] sm:$0xf]
      %v7194 = vld [vmem:[%s1073 + $0x58] sm:$0xf]
      %v7195 = vld [vmem:[%s1073 + $0x60] sm:$0xf]
      %v7196 = vld [vmem:[%s1073 + $0x64] sm:$0xf]
      %v7197 = vld [vmem:[%s1073 + $0x6c] sm:$0xf]
      %v7198 = vld [vmem:[%s1073 + $0x70] sm:$0xf]
      %v7199 = vld [vmem:[%s1073 + $0x78] sm:$0xf]
      %v7200 = vld [vmem:[%s1073 + $0x7c] sm:$0xf]
      %v7201 = vld [vmem:[%s1073 + $0x84] sm:$0xf]
      %v7202 = vld [vmem:[%s1073 + $0x88] sm:$0xf]
      %v7203 = vld [vmem:[%s1073 + $0x90] sm:$0xf]
      %v7204 = vld [vmem:[%s1073 + $0x94] sm:$0xf]
      %v7205 = vld [vmem:[%s1073 + $0x9c] sm:$0xf]
      %v7206 = vld [vmem:[%s1073 + $0xa0] sm:$0xf]
      %v7207 = vld [vmem:[%s1073 + $0xa8] sm:$0xf]
      %v7208 = vld [vmem:[%s1073 + $0xac] sm:$0xf]
      %v7209 = vld [vmem:[%s1073 + $0xb4] sm:$0xf]
      %v7210 = vld [vmem:[%s1073 + $0xb8] sm:$0xf]
      %v7211 = vld [vmem:[%s3 + $0x60] sm:$0xf]
      %v7212 = vld [vmem:[%s3 + $0x64] sm:$0xf]
      %v7213 = vld [vmem:[%s3 + $0x68] sm:$0xf]
      %v7214 = vld [vmem:[%s3 + $0x6c] sm:$0xf]
      %v7215 = vld [vmem:[%s3 + $0x70] sm:$0xf]
      %v7216 = vld [vmem:[%s3 + $0x74] sm:$0xf]
      %v7217 = vld [vmem:[%s3 + $0x78] sm:$0xf]
      %v7218 = vld [vmem:[%s3 + $0x7c] sm:$0xf]
      %v7251 = vunpack.c.l.b16 %v7179
      %v7252 = vunpack.c.l.b16 %v7180
      %v7253 = vunpack.c.l.b16 %v7181
      %v7254 = vunpack.c.l.b16 %v7182
      %v7255 = vunpack.c.l.b16 %v7183
      %v7256 = vunpack.c.l.b16 %v7184
      %v7257 = vunpack.c.l.b16 %v7185
      %v7258 = vunpack.c.l.b16 %v7186
      %v7259 = vunpack.c.l.b16 %v7187
      %v7260 = vunpack.c.l.b16 %v7188
      %v7261 = vunpack.c.l.b16 %v7189
      %v7262 = vunpack.c.l.b16 %v7190
      %v7263 = vunpack.c.l.b16 %v7191
      %v7264 = vunpack.c.l.b16 %v7192
      %v7265 = vunpack.c.l.b16 %v7193
      %v7266 = vunpack.c.l.b16 %v7194
      %v7267 = vunpack.c.l.b16 %v7195
      %v7268 = vunpack.c.l.b16 %v7196
      %v7269 = vunpack.c.l.b16 %v7197
      %v7270 = vunpack.c.l.b16 %v7198
      %v7271 = vunpack.c.l.b16 %v7199
      %v7272 = vunpack.c.l.b16 %v7200
      %v7273 = vunpack.c.l.b16 %v7201
      %v7274 = vunpack.c.l.b16 %v7202
      %v7275 = vunpack.c.l.b16 %v7203
      %v7276 = vunpack.c.l.b16 %v7204
      %v7277 = vunpack.c.l.b16 %v7205
      %v7278 = vunpack.c.l.b16 %v7206
      %v7279 = vunpack.c.l.b16 %v7207
      %v7280 = vunpack.c.l.b16 %v7208
      %v7281 = vunpack.c.l.b16 %v7209
      %v7282 = vunpack.c.l.b16 %v7210
      %v7283 = vpack.c.b16 %v7252, %v7251
      %v7284 = vpack.c.b16 %v7254, %v7253
      %v7285 = vpack.c.b16 %v7256, %v7255
      %v7286 = vpack.c.b16 %v7258, %v7257
      %v7287 = vpack.c.b16 %v7260, %v7259
      %v7288 = vpack.c.b16 %v7262, %v7261
      %v7289 = vpack.c.b16 %v7264, %v7263
      %v7290 = vpack.c.b16 %v7266, %v7265
      %v7291 = vpack.c.b16 %v7268, %v7267
      %v7292 = vpack.c.b16 %v7270, %v7269
      %v7293 = vpack.c.b16 %v7272, %v7271
      %v7294 = vpack.c.b16 %v7274, %v7273
      %v7295 = vpack.c.b16 %v7276, %v7275
      %v7296 = vpack.c.b16 %v7278, %v7277
      %v7297 = vpack.c.b16 %v7280, %v7279
      %v7298 = vpack.c.b16 %v7282, %v7281
      %v7307 = vunpack.c.l.b16 %v7211
      %v7308 = vunpack.c.l.b16 %v7212
      %v7309 = vunpack.c.l.b16 %v7213
      %v7310 = vunpack.c.l.b16 %v7214
      %v7311 = vunpack.c.l.b16 %v7215
      %v7312 = vunpack.c.l.b16 %v7216
      %v7313 = vunpack.c.l.b16 %v7217
      %v7314 = vunpack.c.l.b16 %v7218
      %v7315 = vpack.c.b16 %v7308, %v7307
      %v7316 = vpack.c.b16 %v7310, %v7309
      %v7317 = vpack.c.b16 %v7312, %v7311
      %v7318 = vpack.c.b16 %v7314, %v7313
      %v7324 = vsel %vm1711, %v7283, 0
      %v7327 = vsel %vm1711, %v7284, 0
      %v7330 = vsel %vm1711, %v7285, 0
      %v7333 = vsel %vm1711, %v7286, 0
      %v7336 = vsel %vm1711, %v7287, 0
      %v7339 = vsel %vm1711, %v7288, 0
      %v7342 = vsel %vm1711, %v7289, 0
      %v7345 = vsel %vm1711, %v7290, 0
      %v7348 = vsel %vm1711, %v7291, 0
      %v7351 = vsel %vm1711, %v7292, 0
      %v7354 = vsel %vm1711, %v7293, 0
      %v7357 = vsel %vm1711, %v7294, 0
      %v7360 = vsel %vm1711, %v7295, 0
      %v7363 = vsel %vm1711, %v7296, 0
      %v7366 = vsel %vm1711, %v7297, 0
      %v7369 = vsel %vm1711, %v7298, 0
      %7371 = vmatpush.bf16.msra.mxu0 0
      %7372 = vmatpush.bf16.msra.mxu0 0
      %7373 = vmatpush.bf16.msra.mxu0 0
      %7374 = vmatpush.bf16.msra.mxu0 0
      %7375 = vmatpush.bf16.msra.mxu0 %v7318
      %7376 = vmatpush.bf16.msra.mxu0 %v7317
      %7377 = vmatpush.bf16.msra.mxu0 %v7316
      %7378 = vmatpush.bf16.msra.mxu0 %v7315
      %7379 = vmatmul.bf16.gmra.mxu0 %v7324
      %v7380 = vpop.f32.mrf.mxu0
      %v7381 = vadd.f32 0.0, %v7380
      %v7382 = vpop.f32.mrf.mxu0
      %v7383 = vadd.f32 0.0, %v7382
      %7384 = vmatmul.bf16.gmra.mxu0 %v7327
      %v7385 = vpop.f32.mrf.mxu0
      %v7386 = vadd.f32 0.0, %v7385
      %v7387 = vpop.f32.mrf.mxu0
      %v7388 = vadd.f32 0.0, %v7387
      %7389 = vmatmul.bf16.gmra.mxu0 %v7330
      %v7390 = vpop.f32.mrf.mxu0
      %v7391 = vadd.f32 0.0, %v7390
      %v7392 = vpop.f32.mrf.mxu0
      %v7393 = vadd.f32 0.0, %v7392
      %7394 = vmatmul.bf16.gmra.mxu0 %v7333
      %v7395 = vpop.f32.mrf.mxu0
      %v7396 = vadd.f32 0.0, %v7395
      %v7397 = vpop.f32.mrf.mxu0
      %v7398 = vadd.f32 0.0, %v7397
      %7399 = vmatmul.bf16.gmra.mxu0 %v7336
      %v7400 = vpop.f32.mrf.mxu0
      %v7401 = vadd.f32 0.0, %v7400
      %v7402 = vpop.f32.mrf.mxu0
      %v7403 = vadd.f32 0.0, %v7402
      %7404 = vmatmul.bf16.gmra.mxu0 %v7339
      %v7405 = vpop.f32.mrf.mxu0
      %v7406 = vadd.f32 0.0, %v7405
      %v7407 = vpop.f32.mrf.mxu0
      %v7408 = vadd.f32 0.0, %v7407
      %7409 = vmatmul.bf16.gmra.mxu0 %v7342
      %v7410 = vpop.f32.mrf.mxu0
      %v7411 = vadd.f32 0.0, %v7410
      %v7412 = vpop.f32.mrf.mxu0
      %v7413 = vadd.f32 0.0, %v7412
      %7414 = vmatmul.bf16.gmra.mxu0 %v7345
      %v7415 = vpop.f32.mrf.mxu0
      %v7416 = vadd.f32 0.0, %v7415
      %v7417 = vpop.f32.mrf.mxu0
      %v7418 = vadd.f32 0.0, %v7417
      %7419 = vmatmul.bf16.gmra.mxu0 %v7348
      %v7420 = vpop.f32.mrf.mxu0
      %v7421 = vadd.f32 0.0, %v7420
      %v7422 = vpop.f32.mrf.mxu0
      %v7423 = vadd.f32 0.0, %v7422
      %7424 = vmatmul.bf16.gmra.mxu0 %v7351
      %v7425 = vpop.f32.mrf.mxu0
      %v7426 = vadd.f32 0.0, %v7425
      %v7427 = vpop.f32.mrf.mxu0
      %v7428 = vadd.f32 0.0, %v7427
      %7429 = vmatmul.bf16.gmra.mxu0 %v7354
      %v7430 = vpop.f32.mrf.mxu0
      %v7431 = vadd.f32 0.0, %v7430
      %v7432 = vpop.f32.mrf.mxu0
      %v7433 = vadd.f32 0.0, %v7432
      %7434 = vmatmul.bf16.gmra.mxu0 %v7357
      %v7435 = vpop.f32.mrf.mxu0
      %v7436 = vadd.f32 0.0, %v7435
      %v7437 = vpop.f32.mrf.mxu0
      %v7438 = vadd.f32 0.0, %v7437
      %7439 = vmatmul.bf16.gmra.mxu0 %v7360
      %v7440 = vpop.f32.mrf.mxu0
      %v7441 = vadd.f32 0.0, %v7440
      %v7442 = vpop.f32.mrf.mxu0
      %v7443 = vadd.f32 0.0, %v7442
      %7444 = vmatmul.bf16.gmra.mxu0 %v7363
      %v7445 = vpop.f32.mrf.mxu0
      %v7446 = vadd.f32 0.0, %v7445
      %v7447 = vpop.f32.mrf.mxu0
      %v7448 = vadd.f32 0.0, %v7447
      %7449 = vmatmul.bf16.gmra.mxu0 %v7366
      %v7450 = vpop.f32.mrf.mxu0
      %v7451 = vadd.f32 0.0, %v7450
      %v7452 = vpop.f32.mrf.mxu0
      %v7453 = vadd.f32 0.0, %v7452
      %7454 = vmatmul.bf16.gmra.mxu0 %v7369
      %v7455 = vpop.f32.mrf.mxu0
      %v7456 = vadd.f32 0.0, %v7455
      %v7457 = vpop.f32.mrf.mxu0
      %v7458 = vadd.f32 0.0, %v7457
      %7459 = vdwg.mxu0
      %v7460 = vadd.f32 %v7147, %v7381
      %v7461 = vadd.f32 %v7148, %v7383
      %v7462 = vadd.f32 %v7149, %v7386
      %v7463 = vadd.f32 %v7150, %v7388
      %v7464 = vadd.f32 %v7151, %v7391
      %v7465 = vadd.f32 %v7152, %v7393
      %v7466 = vadd.f32 %v7153, %v7396
      %v7467 = vadd.f32 %v7154, %v7398
      %v7468 = vadd.f32 %v7155, %v7401
      %v7469 = vadd.f32 %v7156, %v7403
      %v7470 = vadd.f32 %v7157, %v7406
      %v7471 = vadd.f32 %v7158, %v7408
      %v7472 = vadd.f32 %v7159, %v7411
      %v7473 = vadd.f32 %v7160, %v7413
      %v7474 = vadd.f32 %v7161, %v7416
      %v7475 = vadd.f32 %v7162, %v7418
      %v7476 = vadd.f32 %v7163, %v7421
      %v7477 = vadd.f32 %v7164, %v7423
      %v7478 = vadd.f32 %v7165, %v7426
      %v7479 = vadd.f32 %v7166, %v7428
      %v7480 = vadd.f32 %v7167, %v7431
      %v7481 = vadd.f32 %v7168, %v7433
      %v7482 = vadd.f32 %v7169, %v7436
      %v7483 = vadd.f32 %v7170, %v7438
      %v7484 = vadd.f32 %v7171, %v7441
      %v7485 = vadd.f32 %v7172, %v7443
      %v7486 = vadd.f32 %v7173, %v7446
      %v7487 = vadd.f32 %v7174, %v7448
      %v7488 = vadd.f32 %v7175, %v7451
      %v7489 = vadd.f32 %v7176, %v7453
      %v7490 = vadd.f32 %v7177, %v7456
      %v7491 = vadd.f32 %v7178, %v7458
      %v7492 = vld [vmem:[%s1073] sm:$0xf]
      %v7493 = vld [vmem:[%s1073 + $0x4] sm:$0xf]
      %v7494 = vld [vmem:[%s1073 + $0x8] sm:$0x1]
      %v7495 = vld [vmem:[%s1073 + $0xc] sm:$0xf]
      %v7496 = vld [vmem:[%s1073 + $0x10] sm:$0xf]
      %v7497 = vld [vmem:[%s1073 + $0x14] sm:$0x1]
      %v7498 = vld [vmem:[%s1073 + $0x18] sm:$0xf]
      %v7499 = vld [vmem:[%s1073 + $0x1c] sm:$0xf]
      %v7500 = vld [vmem:[%s1073 + $0x20] sm:$0x1]
      %v7501 = vld [vmem:[%s1073 + $0x24] sm:$0xf]
      %v7502 = vld [vmem:[%s1073 + $0x28] sm:$0xf]
      %v7503 = vld [vmem:[%s1073 + $0x2c] sm:$0x1]
      %v7504 = vld [vmem:[%s1073 + $0x30] sm:$0xf]
      %v7505 = vld [vmem:[%s1073 + $0x34] sm:$0xf]
      %v7506 = vld [vmem:[%s1073 + $0x38] sm:$0x1]
      %v7507 = vld [vmem:[%s1073 + $0x3c] sm:$0xf]
      %v7508 = vld [vmem:[%s1073 + $0x40] sm:$0xf]
      %v7509 = vld [vmem:[%s1073 + $0x44] sm:$0x1]
      %v7510 = vld [vmem:[%s1073 + $0x48] sm:$0xf]
      %v7511 = vld [vmem:[%s1073 + $0x4c] sm:$0xf]
      %v7512 = vld [vmem:[%s1073 + $0x50] sm:$0x1]
      %v7513 = vld [vmem:[%s1073 + $0x54] sm:$0xf]
      %v7514 = vld [vmem:[%s1073 + $0x58] sm:$0xf]
      %v7515 = vld [vmem:[%s1073 + $0x5c] sm:$0x1]
      %v7516 = vld [vmem:[%s1073 + $0x60] sm:$0xf]
      %v7517 = vld [vmem:[%s1073 + $0x64] sm:$0xf]
      %v7518 = vld [vmem:[%s1073 + $0x68] sm:$0x1]
      %v7519 = vld [vmem:[%s1073 + $0x6c] sm:$0xf]
      %v7520 = vld [vmem:[%s1073 + $0x70] sm:$0xf]
      %v7521 = vld [vmem:[%s1073 + $0x74] sm:$0x1]
      %v7522 = vld [vmem:[%s1073 + $0x78] sm:$0xf]
      %v7523 = vld [vmem:[%s1073 + $0x7c] sm:$0xf]
      %v7524 = vld [vmem:[%s1073 + $0x80] sm:$0x1]
      %v7525 = vld [vmem:[%s1073 + $0x84] sm:$0xf]
      %v7526 = vld [vmem:[%s1073 + $0x88] sm:$0xf]
      %v7527 = vld [vmem:[%s1073 + $0x8c] sm:$0x1]
      %v7528 = vld [vmem:[%s1073 + $0x90] sm:$0xf]
      %v7529 = vld [vmem:[%s1073 + $0x94] sm:$0xf]
      %v7530 = vld [vmem:[%s1073 + $0x98] sm:$0x1]
      %v7531 = vld [vmem:[%s1073 + $0x9c] sm:$0xf]
      %v7532 = vld [vmem:[%s1073 + $0xa0] sm:$0xf]
      %v7533 = vld [vmem:[%s1073 + $0xa4] sm:$0x1]
      %v7534 = vld [vmem:[%s1073 + $0xa8] sm:$0xf]
      %v7535 = vld [vmem:[%s1073 + $0xac] sm:$0xf]
      %v7536 = vld [vmem:[%s1073 + $0xb0] sm:$0x1]
      %v7537 = vld [vmem:[%s1073 + $0xb4] sm:$0xf]
      %v7538 = vld [vmem:[%s1073 + $0xb8] sm:$0xf]
      %v7539 = vld [vmem:[%s1073 + $0xbc] sm:$0x1]
      %v7541 = vshrl.u32 %v7492, 16
      %v7543 = vrot.slane %v7541, 4
      %v7544 = vshll.u32 %v7492, 16
      %v7546 = vrot.slane %v7544, 5
      %v7547 = vor.u32 %v7543, %v7546
      %v7548 = vrot.slane %v7547, 4
      %v7550 = vshll.u32 %v7493, 16
      %v7552 = vrot.slane %v7550, 5
      %v7553 = vsel %vm1246, %v7548, %v7552
      %v7554 = vshrl.u32 %v7493, 16
      %v7556 = vrot.slane %v7554, 4
      %v7557 = vor.u32 %v7556, %v7552
      %v7558 = vrot.slane %v7557, 4
      %v7560 = vshll.u32 %v7494, 16
      %v7562 = vrot.slane %v7560, 5
      %v7563 = vsel %vm1246, %v7558, %v7562
      %v7565 = vshrl.u32 %v7495, 16
      %v7567 = vrot.slane %v7565, 4
      %v7568 = vshll.u32 %v7495, 16
      %v7570 = vrot.slane %v7568, 5
      %v7571 = vor.u32 %v7567, %v7570
      %v7572 = vrot.slane %v7571, 4
      %v7574 = vshll.u32 %v7496, 16
      %v7576 = vrot.slane %v7574, 5
      %v7577 = vsel %vm1246, %v7572, %v7576
      %v7578 = vshrl.u32 %v7496, 16
      %v7580 = vrot.slane %v7578, 4
      %v7581 = vor.u32 %v7580, %v7576
      %v7582 = vrot.slane %v7581, 4
      %v7584 = vshll.u32 %v7497, 16
      %v7586 = vrot.slane %v7584, 5
      %v7587 = vsel %vm1246, %v7582, %v7586
      %v7589 = vshrl.u32 %v7498, 16
      %v7591 = vrot.slane %v7589, 4
      %v7592 = vshll.u32 %v7498, 16
      %v7594 = vrot.slane %v7592, 5
      %v7595 = vor.u32 %v7591, %v7594
      %v7596 = vrot.slane %v7595, 4
      %v7598 = vshll.u32 %v7499, 16
      %v7600 = vrot.slane %v7598, 5
      %v7601 = vsel %vm1246, %v7596, %v7600
      %v7602 = vshrl.u32 %v7499, 16
      %v7604 = vrot.slane %v7602, 4
      %v7605 = vor.u32 %v7604, %v7600
      %v7606 = vrot.slane %v7605, 4
      %v7608 = vshll.u32 %v7500, 16
      %v7610 = vrot.slane %v7608, 5
      %v7611 = vsel %vm1246, %v7606, %v7610
      %v7613 = vshrl.u32 %v7501, 16
      %v7615 = vrot.slane %v7613, 4
      %v7616 = vshll.u32 %v7501, 16
      %v7618 = vrot.slane %v7616, 5
      %v7619 = vor.u32 %v7615, %v7618
      %v7620 = vrot.slane %v7619, 4
      %v7622 = vshll.u32 %v7502, 16
      %v7624 = vrot.slane %v7622, 5
      %v7625 = vsel %vm1246, %v7620, %v7624
      %v7626 = vshrl.u32 %v7502, 16
      %v7628 = vrot.slane %v7626, 4
      %v7629 = vor.u32 %v7628, %v7624
      %v7630 = vrot.slane %v7629, 4
      %v7632 = vshll.u32 %v7503, 16
      %v7634 = vrot.slane %v7632, 5
      %v7635 = vsel %vm1246, %v7630, %v7634
      %v7637 = vshrl.u32 %v7504, 16
      %v7639 = vrot.slane %v7637, 4
      %v7640 = vshll.u32 %v7504, 16
      %v7642 = vrot.slane %v7640, 5
      %v7643 = vor.u32 %v7639, %v7642
      %v7644 = vrot.slane %v7643, 4
      %v7646 = vshll.u32 %v7505, 16
      %v7648 = vrot.slane %v7646, 5
      %v7649 = vsel %vm1246, %v7644, %v7648
      %v7650 = vshrl.u32 %v7505, 16
      %v7652 = vrot.slane %v7650, 4
      %v7653 = vor.u32 %v7652, %v7648
      %v7654 = vrot.slane %v7653, 4
      %v7656 = vshll.u32 %v7506, 16
      %v7658 = vrot.slane %v7656, 5
      %v7659 = vsel %vm1246, %v7654, %v7658
      %v7661 = vshrl.u32 %v7507, 16
      %v7663 = vrot.slane %v7661, 4
      %v7664 = vshll.u32 %v7507, 16
      %v7666 = vrot.slane %v7664, 5
      %v7667 = vor.u32 %v7663, %v7666
      %v7668 = vrot.slane %v7667, 4
      %v7670 = vshll.u32 %v7508, 16
      %v7672 = vrot.slane %v7670, 5
      %v7673 = vsel %vm1246, %v7668, %v7672
      %v7674 = vshrl.u32 %v7508, 16
      %v7676 = vrot.slane %v7674, 4
      %v7677 = vor.u32 %v7676, %v7672
      %v7678 = vrot.slane %v7677, 4
      %v7680 = vshll.u32 %v7509, 16
      %v7682 = vrot.slane %v7680, 5
      %v7683 = vsel %vm1246, %v7678, %v7682
      %v7685 = vshrl.u32 %v7510, 16
      %v7687 = vrot.slane %v7685, 4
      %v7688 = vshll.u32 %v7510, 16
      %v7690 = vrot.slane %v7688, 5
      %v7691 = vor.u32 %v7687, %v7690
      %v7692 = vrot.slane %v7691, 4
      %v7694 = vshll.u32 %v7511, 16
      %v7696 = vrot.slane %v7694, 5
      %v7697 = vsel %vm1246, %v7692, %v7696
      %v7698 = vshrl.u32 %v7511, 16
      %v7700 = vrot.slane %v7698, 4
      %v7701 = vor.u32 %v7700, %v7696
      %v7702 = vrot.slane %v7701, 4
      %v7704 = vshll.u32 %v7512, 16
      %v7706 = vrot.slane %v7704, 5
      %v7707 = vsel %vm1246, %v7702, %v7706
      %v7709 = vshrl.u32 %v7513, 16
      %v7711 = vrot.slane %v7709, 4
      %v7712 = vshll.u32 %v7513, 16
      %v7714 = vrot.slane %v7712, 5
      %v7715 = vor.u32 %v7711, %v7714
      %v7716 = vrot.slane %v7715, 4
      %v7718 = vshll.u32 %v7514, 16
      %v7720 = vrot.slane %v7718, 5
      %v7721 = vsel %vm1246, %v7716, %v7720
      %v7722 = vshrl.u32 %v7514, 16
      %v7724 = vrot.slane %v7722, 4
      %v7725 = vor.u32 %v7724, %v7720
      %v7726 = vrot.slane %v7725, 4
      %v7728 = vshll.u32 %v7515, 16
      %v7730 = vrot.slane %v7728, 5
      %v7731 = vsel %vm1246, %v7726, %v7730
      %v7733 = vshrl.u32 %v7516, 16
      %v7735 = vrot.slane %v7733, 4
      %v7736 = vshll.u32 %v7516, 16
      %v7738 = vrot.slane %v7736, 5
      %v7739 = vor.u32 %v7735, %v7738
      %v7740 = vrot.slane %v7739, 4
      %v7742 = vshll.u32 %v7517, 16
      %v7744 = vrot.slane %v7742, 5
      %v7745 = vsel %vm1246, %v7740, %v7744
      %v7746 = vshrl.u32 %v7517, 16
      %v7748 = vrot.slane %v7746, 4
      %v7749 = vor.u32 %v7748, %v7744
      %v7750 = vrot.slane %v7749, 4
      %v7752 = vshll.u32 %v7518, 16
      %v7754 = vrot.slane %v7752, 5
      %v7755 = vsel %vm1246, %v7750, %v7754
      %v7757 = vshrl.u32 %v7519, 16
      %v7759 = vrot.slane %v7757, 4
      %v7760 = vshll.u32 %v7519, 16
      %v7762 = vrot.slane %v7760, 5
      %v7763 = vor.u32 %v7759, %v7762
      %v7764 = vrot.slane %v7763, 4
      %v7766 = vshll.u32 %v7520, 16
      %v7768 = vrot.slane %v7766, 5
      %v7769 = vsel %vm1246, %v7764, %v7768
      %v7770 = vshrl.u32 %v7520, 16
      %v7772 = vrot.slane %v7770, 4
      %v7773 = vor.u32 %v7772, %v7768
      %v7774 = vrot.slane %v7773, 4
      %v7776 = vshll.u32 %v7521, 16
      %v7778 = vrot.slane %v7776, 5
      %v7779 = vsel %vm1246, %v7774, %v7778
      %v7781 = vshrl.u32 %v7522, 16
      %v7783 = vrot.slane %v7781, 4
      %v7784 = vshll.u32 %v7522, 16
      %v7786 = vrot.slane %v7784, 5
      %v7787 = vor.u32 %v7783, %v7786
      %v7788 = vrot.slane %v7787, 4
      %v7790 = vshll.u32 %v7523, 16
      %v7792 = vrot.slane %v7790, 5
      %v7793 = vsel %vm1246, %v7788, %v7792
      %v7794 = vshrl.u32 %v7523, 16
      %v7796 = vrot.slane %v7794, 4
      %v7797 = vor.u32 %v7796, %v7792
      %v7798 = vrot.slane %v7797, 4
      %v7800 = vshll.u32 %v7524, 16
      %v7802 = vrot.slane %v7800, 5
      %v7803 = vsel %vm1246, %v7798, %v7802
      %v7805 = vshrl.u32 %v7525, 16
      %v7807 = vrot.slane %v7805, 4
      %v7808 = vshll.u32 %v7525, 16
      %v7810 = vrot.slane %v7808, 5
      %v7811 = vor.u32 %v7807, %v7810
      %v7812 = vrot.slane %v7811, 4
      %v7814 = vshll.u32 %v7526, 16
      %v7816 = vrot.slane %v7814, 5
      %v7817 = vsel %vm1246, %v7812, %v7816
      %v7818 = vshrl.u32 %v7526, 16
      %v7820 = vrot.slane %v7818, 4
      %v7821 = vor.u32 %v7820, %v7816
      %v7822 = vrot.slane %v7821, 4
      %v7824 = vshll.u32 %v7527, 16
      %v7826 = vrot.slane %v7824, 5
      %v7827 = vsel %vm1246, %v7822, %v7826
      %v7829 = vshrl.u32 %v7528, 16
      %v7831 = vrot.slane %v7829, 4
      %v7832 = vshll.u32 %v7528, 16
      %v7834 = vrot.slane %v7832, 5
      %v7835 = vor.u32 %v7831, %v7834
      %v7836 = vrot.slane %v7835, 4
      %v7838 = vshll.u32 %v7529, 16
      %v7840 = vrot.slane %v7838, 5
      %v7841 = vsel %vm1246, %v7836, %v7840
      %v7842 = vshrl.u32 %v7529, 16
      %v7844 = vrot.slane %v7842, 4
      %v7845 = vor.u32 %v7844, %v7840
      %v7846 = vrot.slane %v7845, 4
      %v7848 = vshll.u32 %v7530, 16
      %v7850 = vrot.slane %v7848, 5
      %v7851 = vsel %vm1246, %v7846, %v7850
      %v7853 = vshrl.u32 %v7531, 16
      %v7855 = vrot.slane %v7853, 4
      %v7856 = vshll.u32 %v7531, 16
      %v7858 = vrot.slane %v7856, 5
      %v7859 = vor.u32 %v7855, %v7858
      %v7860 = vrot.slane %v7859, 4
      %v7862 = vshll.u32 %v7532, 16
      %v7864 = vrot.slane %v7862, 5
      %v7865 = vsel %vm1246, %v7860, %v7864
      %v7866 = vshrl.u32 %v7532, 16
      %v7868 = vrot.slane %v7866, 4
      %v7869 = vor.u32 %v7868, %v7864
      %v7870 = vrot.slane %v7869, 4
      %v7872 = vshll.u32 %v7533, 16
      %v7874 = vrot.slane %v7872, 5
      %v7875 = vsel %vm1246, %v7870, %v7874
      %v7877 = vshrl.u32 %v7534, 16
      %v7879 = vrot.slane %v7877, 4
      %v7880 = vshll.u32 %v7534, 16
      %v7882 = vrot.slane %v7880, 5
      %v7883 = vor.u32 %v7879, %v7882
      %v7884 = vrot.slane %v7883, 4
      %v7886 = vshll.u32 %v7535, 16
      %v7888 = vrot.slane %v7886, 5
      %v7889 = vsel %vm1246, %v7884, %v7888
      %v7890 = vshrl.u32 %v7535, 16
      %v7892 = vrot.slane %v7890, 4
      %v7893 = vor.u32 %v7892, %v7888
      %v7894 = vrot.slane %v7893, 4
      %v7896 = vshll.u32 %v7536, 16
      %v7898 = vrot.slane %v7896, 5
      %v7899 = vsel %vm1246, %v7894, %v7898
      %v7901 = vshrl.u32 %v7537, 16
      %v7903 = vrot.slane %v7901, 4
      %v7904 = vshll.u32 %v7537, 16
      %v7906 = vrot.slane %v7904, 5
      %v7907 = vor.u32 %v7903, %v7906
      %v7908 = vrot.slane %v7907, 4
      %v7910 = vshll.u32 %v7538, 16
      %v7912 = vrot.slane %v7910, 5
      %v7913 = vsel %vm1246, %v7908, %v7912
      %v7914 = vshrl.u32 %v7538, 16
      %v7916 = vrot.slane %v7914, 4
      %v7917 = vor.u32 %v7916, %v7912
      %v7918 = vrot.slane %v7917, 4
      %v7920 = vshll.u32 %v7539, 16
      %v7922 = vrot.slane %v7920, 5
      %v7923 = vsel %vm1246, %v7918, %v7922
      %v7924 = vld [vmem:[%s3 + $0x80] sm:$0xf]
      %v7925 = vld [vmem:[%s3 + $0x84] sm:$0xf]
      %v7926 = vld [vmem:[%s3 + $0x88] sm:$0xf]
      %v7927 = vld [vmem:[%s3 + $0x8c] sm:$0xf]
      %v7928 = vld [vmem:[%s3 + $0x90] sm:$0xf]
      %v7929 = vld [vmem:[%s3 + $0x94] sm:$0xf]
      %v7930 = vld [vmem:[%s3 + $0x98] sm:$0xf]
      %v7931 = vld [vmem:[%s3 + $0x9c] sm:$0xf]
      %v7932 = vunpack.c.l.b16 %v7553
      %v7933 = vunpack.c.l.b16 %v7563
      %v7934 = vunpack.c.l.b16 %v7577
      %v7935 = vunpack.c.l.b16 %v7587
      %v7936 = vunpack.c.l.b16 %v7601
      %v7937 = vunpack.c.l.b16 %v7611
      %v7938 = vunpack.c.l.b16 %v7625
      %v7939 = vunpack.c.l.b16 %v7635
      %v7940 = vunpack.c.l.b16 %v7649
      %v7941 = vunpack.c.l.b16 %v7659
      %v7942 = vunpack.c.l.b16 %v7673
      %v7943 = vunpack.c.l.b16 %v7683
      %v7944 = vunpack.c.l.b16 %v7697
      %v7945 = vunpack.c.l.b16 %v7707
      %v7946 = vunpack.c.l.b16 %v7721
      %v7947 = vunpack.c.l.b16 %v7731
      %v7948 = vunpack.c.l.b16 %v7745
      %v7949 = vunpack.c.l.b16 %v7755
      %v7950 = vunpack.c.l.b16 %v7769
      %v7951 = vunpack.c.l.b16 %v7779
      %v7952 = vunpack.c.l.b16 %v7793
      %v7953 = vunpack.c.l.b16 %v7803
      %v7954 = vunpack.c.l.b16 %v7817
      %v7955 = vunpack.c.l.b16 %v7827
      %v7956 = vunpack.c.l.b16 %v7841
      %v7957 = vunpack.c.l.b16 %v7851
      %v7958 = vunpack.c.l.b16 %v7865
      %v7959 = vunpack.c.l.b16 %v7875
      %v7960 = vunpack.c.l.b16 %v7889
      %v7961 = vunpack.c.l.b16 %v7899
      %v7962 = vunpack.c.l.b16 %v7913
      %v7963 = vunpack.c.l.b16 %v7923
      %v7964 = vpack.c.b16 %v7933, %v7932
      %v7965 = vpack.c.b16 %v7935, %v7934
      %v7966 = vpack.c.b16 %v7937, %v7936
      %v7967 = vpack.c.b16 %v7939, %v7938
      %v7968 = vpack.c.b16 %v7941, %v7940
      %v7969 = vpack.c.b16 %v7943, %v7942
      %v7970 = vpack.c.b16 %v7945, %v7944
      %v7971 = vpack.c.b16 %v7947, %v7946
      %v7972 = vpack.c.b16 %v7949, %v7948
      %v7973 = vpack.c.b16 %v7951, %v7950
      %v7974 = vpack.c.b16 %v7953, %v7952
      %v7975 = vpack.c.b16 %v7955, %v7954
      %v7976 = vpack.c.b16 %v7957, %v7956
      %v7977 = vpack.c.b16 %v7959, %v7958
      %v7978 = vpack.c.b16 %v7961, %v7960
      %v7979 = vpack.c.b16 %v7963, %v7962
      %v7988 = vunpack.c.l.b16 %v7924
      %v7989 = vunpack.c.l.b16 %v7925
      %v7990 = vunpack.c.l.b16 %v7926
      %v7991 = vunpack.c.l.b16 %v7927
      %v7992 = vunpack.c.l.b16 %v7928
      %v7993 = vunpack.c.l.b16 %v7929
      %v7994 = vunpack.c.l.b16 %v7930
      %v7995 = vunpack.c.l.b16 %v7931
      %v7996 = vpack.c.b16 %v7989, %v7988
      %v7997 = vpack.c.b16 %v7991, %v7990
      %v7998 = vpack.c.b16 %v7993, %v7992
      %v7999 = vpack.c.b16 %v7995, %v7994
      %v8005 = vsel %vm1711, %v7964, 0
      %v8008 = vsel %vm1711, %v7965, 0
      %v8011 = vsel %vm1711, %v7966, 0
      %v8014 = vsel %vm1711, %v7967, 0
      %v8017 = vsel %vm1711, %v7968, 0
      %v8020 = vsel %vm1711, %v7969, 0
      %v8023 = vsel %vm1711, %v7970, 0
      %v8026 = vsel %vm1711, %v7971, 0
      %v8029 = vsel %vm1711, %v7972, 0
      %v8032 = vsel %vm1711, %v7973, 0
      %v8035 = vsel %vm1711, %v7974, 0
      %v8038 = vsel %vm1711, %v7975, 0
      %v8041 = vsel %vm1711, %v7976, 0
      %v8044 = vsel %vm1711, %v7977, 0
      %v8047 = vsel %vm1711, %v7978, 0
      %v8050 = vsel %vm1711, %v7979, 0
      %8052 = vmatpush.bf16.msra.mxu0 0
      %8053 = vmatpush.bf16.msra.mxu0 0
      %8054 = vmatpush.bf16.msra.mxu0 0
      %8055 = vmatpush.bf16.msra.mxu0 0
      %8056 = vmatpush.bf16.msra.mxu0 %v7999
      %8057 = vmatpush.bf16.msra.mxu0 %v7998
      %8058 = vmatpush.bf16.msra.mxu0 %v7997
      %8059 = vmatpush.bf16.msra.mxu0 %v7996
      %8060 = vmatmul.bf16.gmra.mxu0 %v8005
      %v8061 = vpop.f32.mrf.mxu0
      %v8062 = vadd.f32 0.0, %v8061
      %v8063 = vpop.f32.mrf.mxu0
      %v8064 = vadd.f32 0.0, %v8063
      %8065 = vmatmul.bf16.gmra.mxu0 %v8008
      %v8066 = vpop.f32.mrf.mxu0
      %v8067 = vadd.f32 0.0, %v8066
      %v8068 = vpop.f32.mrf.mxu0
      %v8069 = vadd.f32 0.0, %v8068
      %8070 = vmatmul.bf16.gmra.mxu0 %v8011
      %v8071 = vpop.f32.mrf.mxu0
      %v8072 = vadd.f32 0.0, %v8071
      %v8073 = vpop.f32.mrf.mxu0
      %v8074 = vadd.f32 0.0, %v8073
      %8075 = vmatmul.bf16.gmra.mxu0 %v8014
      %v8076 = vpop.f32.mrf.mxu0
      %v8077 = vadd.f32 0.0, %v8076
      %v8078 = vpop.f32.mrf.mxu0
      %v8079 = vadd.f32 0.0, %v8078
      %8080 = vmatmul.bf16.gmra.mxu0 %v8017
      %v8081 = vpop.f32.mrf.mxu0
      %v8082 = vadd.f32 0.0, %v8081
      %v8083 = vpop.f32.mrf.mxu0
      %v8084 = vadd.f32 0.0, %v8083
      %8085 = vmatmul.bf16.gmra.mxu0 %v8020
      %v8086 = vpop.f32.mrf.mxu0
      %v8087 = vadd.f32 0.0, %v8086
      %v8088 = vpop.f32.mrf.mxu0
      %v8089 = vadd.f32 0.0, %v8088
      %8090 = vmatmul.bf16.gmra.mxu0 %v8023
      %v8091 = vpop.f32.mrf.mxu0
      %v8092 = vadd.f32 0.0, %v8091
      %v8093 = vpop.f32.mrf.mxu0
      %v8094 = vadd.f32 0.0, %v8093
      %8095 = vmatmul.bf16.gmra.mxu0 %v8026
      %v8096 = vpop.f32.mrf.mxu0
      %v8097 = vadd.f32 0.0, %v8096
      %v8098 = vpop.f32.mrf.mxu0
      %v8099 = vadd.f32 0.0, %v8098
      %8100 = vmatmul.bf16.gmra.mxu0 %v8029
      %v8101 = vpop.f32.mrf.mxu0
      %v8102 = vadd.f32 0.0, %v8101
      %v8103 = vpop.f32.mrf.mxu0
      %v8104 = vadd.f32 0.0, %v8103
      %8105 = vmatmul.bf16.gmra.mxu0 %v8032
      %v8106 = vpop.f32.mrf.mxu0
      %v8107 = vadd.f32 0.0, %v8106
      %v8108 = vpop.f32.mrf.mxu0
      %v8109 = vadd.f32 0.0, %v8108
      %8110 = vmatmul.bf16.gmra.mxu0 %v8035
      %v8111 = vpop.f32.mrf.mxu0
      %v8112 = vadd.f32 0.0, %v8111
      %v8113 = vpop.f32.mrf.mxu0
      %v8114 = vadd.f32 0.0, %v8113
      %8115 = vmatmul.bf16.gmra.mxu0 %v8038
      %v8116 = vpop.f32.mrf.mxu0
      %v8117 = vadd.f32 0.0, %v8116
      %v8118 = vpop.f32.mrf.mxu0
      %v8119 = vadd.f32 0.0, %v8118
      %8120 = vmatmul.bf16.gmra.mxu0 %v8041
      %v8121 = vpop.f32.mrf.mxu0
      %v8122 = vadd.f32 0.0, %v8121
      %v8123 = vpop.f32.mrf.mxu0
      %v8124 = vadd.f32 0.0, %v8123
      %8125 = vmatmul.bf16.gmra.mxu0 %v8044
      %v8126 = vpop.f32.mrf.mxu0
      %v8127 = vadd.f32 0.0, %v8126
      %v8128 = vpop.f32.mrf.mxu0
      %v8129 = vadd.f32 0.0, %v8128
      %8130 = vmatmul.bf16.gmra.mxu0 %v8047
      %v8131 = vpop.f32.mrf.mxu0
      %v8132 = vadd.f32 0.0, %v8131
      %v8133 = vpop.f32.mrf.mxu0
      %v8134 = vadd.f32 0.0, %v8133
      %8135 = vmatmul.bf16.gmra.mxu0 %v8050
      %v8136 = vpop.f32.mrf.mxu0
      %v8137 = vadd.f32 0.0, %v8136
      %v8138 = vpop.f32.mrf.mxu0
      %v8139 = vadd.f32 0.0, %v8138
      %8140 = vdwg.mxu0
      %v8141 = vadd.f32 %v7460, %v8062
      %v8142 = vadd.f32 %v7461, %v8064
      %v8143 = vadd.f32 %v7462, %v8067
      %v8144 = vadd.f32 %v7463, %v8069
      %v8145 = vadd.f32 %v7464, %v8072
      %v8146 = vadd.f32 %v7465, %v8074
      %v8147 = vadd.f32 %v7466, %v8077
      %v8148 = vadd.f32 %v7467, %v8079
      %v8149 = vadd.f32 %v7468, %v8082
      %v8150 = vadd.f32 %v7469, %v8084
      %v8151 = vadd.f32 %v7470, %v8087
      %v8152 = vadd.f32 %v7471, %v8089
      %v8153 = vadd.f32 %v7472, %v8092
      %v8154 = vadd.f32 %v7473, %v8094
      %v8155 = vadd.f32 %v7474, %v8097
      %v8156 = vadd.f32 %v7475, %v8099
      %v8157 = vadd.f32 %v7476, %v8102
      %v8158 = vadd.f32 %v7477, %v8104
      %v8159 = vadd.f32 %v7478, %v8107
      %v8160 = vadd.f32 %v7479, %v8109
      %v8161 = vadd.f32 %v7480, %v8112
      %v8162 = vadd.f32 %v7481, %v8114
      %v8163 = vadd.f32 %v7482, %v8117
      %v8164 = vadd.f32 %v7483, %v8119
      %v8165 = vadd.f32 %v7484, %v8122
      %v8166 = vadd.f32 %v7485, %v8124
      %v8167 = vadd.f32 %v7486, %v8127
      %v8168 = vadd.f32 %v7487, %v8129
      %v8169 = vadd.f32 %v7488, %v8132
      %v8170 = vadd.f32 %v7489, %v8134
      %v8171 = vadd.f32 %v7490, %v8137
      %v8172 = vadd.f32 %v7491, %v8139
      %v8173 = vld [vmem:[%s1073] sm:$0xe]
      %v8174 = vld [vmem:[%s1073 + $0xc] sm:$0xe]
      %v8175 = vld [vmem:[%s1073 + $0x18] sm:$0xe]
      %v8176 = vld [vmem:[%s1073 + $0x24] sm:$0xe]
      %v8177 = vld [vmem:[%s1073 + $0x30] sm:$0xe]
      %v8178 = vld [vmem:[%s1073 + $0x3c] sm:$0xe]
      %v8179 = vld [vmem:[%s1073 + $0x48] sm:$0xe]
      %v8180 = vld [vmem:[%s1073 + $0x54] sm:$0xe]
      %v8181 = vld [vmem:[%s1073 + $0x60] sm:$0xe]
      %v8182 = vld [vmem:[%s1073 + $0x6c] sm:$0xe]
      %v8183 = vld [vmem:[%s1073 + $0x78] sm:$0xe]
      %v8184 = vld [vmem:[%s1073 + $0x84] sm:$0xe]
      %v8185 = vld [vmem:[%s1073 + $0x90] sm:$0xe]
      %v8186 = vld [vmem:[%s1073 + $0x9c] sm:$0xe]
      %v8187 = vld [vmem:[%s1073 + $0xa8] sm:$0xe]
      %v8188 = vld [vmem:[%s1073 + $0xb4] sm:$0xe]
      %v8237 = vrot.slane %v8173, 5
      %v8238 = vrot.slane %v8237, 4
      %v8239 = vrot.slane %v7493, 5
      %v8240 = vsel %vm2140, %v8238, %v8239
      %v8241 = vrot.slane %v8239, 4
      %v8242 = vrot.slane %v7494, 5
      %v8243 = vsel %vm2140, %v8241, %v8242
      %v8244 = vrot.slane %v8174, 5
      %v8245 = vrot.slane %v8244, 4
      %v8246 = vrot.slane %v7496, 5
      %v8247 = vsel %vm2140, %v8245, %v8246
      %v8248 = vrot.slane %v8246, 4
      %v8249 = vrot.slane %v7497, 5
      %v8250 = vsel %vm2140, %v8248, %v8249
      %v8251 = vrot.slane %v8175, 5
      %v8252 = vrot.slane %v8251, 4
      %v8253 = vrot.slane %v7499, 5
      %v8254 = vsel %vm2140, %v8252, %v8253
      %v8255 = vrot.slane %v8253, 4
      %v8256 = vrot.slane %v7500, 5
      %v8257 = vsel %vm2140, %v8255, %v8256
      %v8258 = vrot.slane %v8176, 5
      %v8259 = vrot.slane %v8258, 4
      %v8260 = vrot.slane %v7502, 5
      %v8261 = vsel %vm2140, %v8259, %v8260
      %v8262 = vrot.slane %v8260, 4
      %v8263 = vrot.slane %v7503, 5
      %v8264 = vsel %vm2140, %v8262, %v8263
      %v8265 = vrot.slane %v8177, 5
      %v8266 = vrot.slane %v8265, 4
      %v8267 = vrot.slane %v7505, 5
      %v8268 = vsel %vm2140, %v8266, %v8267
      %v8269 = vrot.slane %v8267, 4
      %v8270 = vrot.slane %v7506, 5
      %v8271 = vsel %vm2140, %v8269, %v8270
      %v8272 = vrot.slane %v8178, 5
      %v8273 = vrot.slane %v8272, 4
      %v8274 = vrot.slane %v7508, 5
      %v8275 = vsel %vm2140, %v8273, %v8274
      %v8276 = vrot.slane %v8274, 4
      %v8277 = vrot.slane %v7509, 5
      %v8278 = vsel %vm2140, %v8276, %v8277
      %v8279 = vrot.slane %v8179, 5
      %v8280 = vrot.slane %v8279, 4
      %v8281 = vrot.slane %v7511, 5
      %v8282 = vsel %vm2140, %v8280, %v8281
      %v8283 = vrot.slane %v8281, 4
      %v8284 = vrot.slane %v7512, 5
      %v8285 = vsel %vm2140, %v8283, %v8284
      %v8286 = vrot.slane %v8180, 5
      %v8287 = vrot.slane %v8286, 4
      %v8288 = vrot.slane %v7514, 5
      %v8289 = vsel %vm2140, %v8287, %v8288
      %v8290 = vrot.slane %v8288, 4
      %v8291 = vrot.slane %v7515, 5
      %v8292 = vsel %vm2140, %v8290, %v8291
      %v8293 = vrot.slane %v8181, 5
      %v8294 = vrot.slane %v8293, 4
      %v8295 = vrot.slane %v7517, 5
      %v8296 = vsel %vm2140, %v8294, %v8295
      %v8297 = vrot.slane %v8295, 4
      %v8298 = vrot.slane %v7518, 5
      %v8299 = vsel %vm2140, %v8297, %v8298
      %v8300 = vrot.slane %v8182, 5
      %v8301 = vrot.slane %v8300, 4
      %v8302 = vrot.slane %v7520, 5
      %v8303 = vsel %vm2140, %v8301, %v8302
      %v8304 = vrot.slane %v8302, 4
      %v8305 = vrot.slane %v7521, 5
      %v8306 = vsel %vm2140, %v8304, %v8305
      %v8307 = vrot.slane %v8183, 5
      %v8308 = vrot.slane %v8307, 4
      %v8309 = vrot.slane %v7523, 5
      %v8310 = vsel %vm2140, %v8308, %v8309
      %v8311 = vrot.slane %v8309, 4
      %v8312 = vrot.slane %v7524, 5
      %v8313 = vsel %vm2140, %v8311, %v8312
      %v8314 = vrot.slane %v8184, 5
      %v8315 = vrot.slane %v8314, 4
      %v8316 = vrot.slane %v7526, 5
      %v8317 = vsel %vm2140, %v8315, %v8316
      %v8318 = vrot.slane %v8316, 4
      %v8319 = vrot.slane %v7527, 5
      %v8320 = vsel %vm2140, %v8318, %v8319
      %v8321 = vrot.slane %v8185, 5
      %v8322 = vrot.slane %v8321, 4
      %v8323 = vrot.slane %v7529, 5
      %v8324 = vsel %vm2140, %v8322, %v8323
      %v8325 = vrot.slane %v8323, 4
      %v8326 = vrot.slane %v7530, 5
      %v8327 = vsel %vm2140, %v8325, %v8326
      %v8328 = vrot.slane %v8186, 5
      %v8329 = vrot.slane %v8328, 4
      %v8330 = vrot.slane %v7532, 5
      %v8331 = vsel %vm2140, %v8329, %v8330
      %v8332 = vrot.slane %v8330, 4
      %v8333 = vrot.slane %v7533, 5
      %v8334 = vsel %vm2140, %v8332, %v8333
      %v8335 = vrot.slane %v8187, 5
      %v8336 = vrot.slane %v8335, 4
      %v8337 = vrot.slane %v7535, 5
      %v8338 = vsel %vm2140, %v8336, %v8337
      %v8339 = vrot.slane %v8337, 4
      %v8340 = vrot.slane %v7536, 5
      %v8341 = vsel %vm2140, %v8339, %v8340
      %v8342 = vrot.slane %v8188, 5
      %v8343 = vrot.slane %v8342, 4
      %v8344 = vrot.slane %v7538, 5
      %v8345 = vsel %vm2140, %v8343, %v8344
      %v8346 = vrot.slane %v8344, 4
      %v8347 = vrot.slane %v7539, 5
      %v8348 = vsel %vm2140, %v8346, %v8347
      %v8349 = vld [vmem:[%s3 + $0xa0] sm:$0xf]
      %v8350 = vld [vmem:[%s3 + $0xa4] sm:$0xf]
      %v8351 = vld [vmem:[%s3 + $0xa8] sm:$0xf]
      %v8352 = vld [vmem:[%s3 + $0xac] sm:$0xf]
      %v8353 = vld [vmem:[%s3 + $0xb0] sm:$0xf]
      %v8354 = vld [vmem:[%s3 + $0xb4] sm:$0xf]
      %v8355 = vld [vmem:[%s3 + $0xb8] sm:$0xf]
      %v8356 = vld [vmem:[%s3 + $0xbc] sm:$0xf]
      %v8357 = vunpack.c.l.b16 %v8240
      %v8358 = vunpack.c.l.b16 %v8243
      %v8359 = vunpack.c.l.b16 %v8247
      %v8360 = vunpack.c.l.b16 %v8250
      %v8361 = vunpack.c.l.b16 %v8254
      %v8362 = vunpack.c.l.b16 %v8257
      %v8363 = vunpack.c.l.b16 %v8261
      %v8364 = vunpack.c.l.b16 %v8264
      %v8365 = vunpack.c.l.b16 %v8268
      %v8366 = vunpack.c.l.b16 %v8271
      %v8367 = vunpack.c.l.b16 %v8275
      %v8368 = vunpack.c.l.b16 %v8278
      %v8369 = vunpack.c.l.b16 %v8282
      %v8370 = vunpack.c.l.b16 %v8285
      %v8371 = vunpack.c.l.b16 %v8289
      %v8372 = vunpack.c.l.b16 %v8292
      %v8373 = vunpack.c.l.b16 %v8296
      %v8374 = vunpack.c.l.b16 %v8299
      %v8375 = vunpack.c.l.b16 %v8303
      %v8376 = vunpack.c.l.b16 %v8306
      %v8377 = vunpack.c.l.b16 %v8310
      %v8378 = vunpack.c.l.b16 %v8313
      %v8379 = vunpack.c.l.b16 %v8317
      %v8380 = vunpack.c.l.b16 %v8320
      %v8381 = vunpack.c.l.b16 %v8324
      %v8382 = vunpack.c.l.b16 %v8327
      %v8383 = vunpack.c.l.b16 %v8331
      %v8384 = vunpack.c.l.b16 %v8334
      %v8385 = vunpack.c.l.b16 %v8338
      %v8386 = vunpack.c.l.b16 %v8341
      %v8387 = vunpack.c.l.b16 %v8345
      %v8388 = vunpack.c.l.b16 %v8348
      %v8389 = vpack.c.b16 %v8358, %v8357
      %v8390 = vpack.c.b16 %v8360, %v8359
      %v8391 = vpack.c.b16 %v8362, %v8361
      %v8392 = vpack.c.b16 %v8364, %v8363
      %v8393 = vpack.c.b16 %v8366, %v8365
      %v8394 = vpack.c.b16 %v8368, %v8367
      %v8395 = vpack.c.b16 %v8370, %v8369
      %v8396 = vpack.c.b16 %v8372, %v8371
      %v8397 = vpack.c.b16 %v8374, %v8373
      %v8398 = vpack.c.b16 %v8376, %v8375
      %v8399 = vpack.c.b16 %v8378, %v8377
      %v8400 = vpack.c.b16 %v8380, %v8379
      %v8401 = vpack.c.b16 %v8382, %v8381
      %v8402 = vpack.c.b16 %v8384, %v8383
      %v8403 = vpack.c.b16 %v8386, %v8385
      %v8404 = vpack.c.b16 %v8388, %v8387
      %v8413 = vunpack.c.l.b16 %v8349
      %v8414 = vunpack.c.l.b16 %v8350
      %v8415 = vunpack.c.l.b16 %v8351
      %v8416 = vunpack.c.l.b16 %v8352
      %v8417 = vunpack.c.l.b16 %v8353
      %v8418 = vunpack.c.l.b16 %v8354
      %v8419 = vunpack.c.l.b16 %v8355
      %v8420 = vunpack.c.l.b16 %v8356
      %v8421 = vpack.c.b16 %v8414, %v8413
      %v8422 = vpack.c.b16 %v8416, %v8415
      %v8423 = vpack.c.b16 %v8418, %v8417
      %v8424 = vpack.c.b16 %v8420, %v8419
      %v8430 = vsel %vm1711, %v8389, 0
      %v8433 = vsel %vm1711, %v8390, 0
      %v8436 = vsel %vm1711, %v8391, 0
      %v8439 = vsel %vm1711, %v8392, 0
      %v8442 = vsel %vm1711, %v8393, 0
      %v8445 = vsel %vm1711, %v8394, 0
      %v8448 = vsel %vm1711, %v8395, 0
      %v8451 = vsel %vm1711, %v8396, 0
      %v8454 = vsel %vm1711, %v8397, 0
      %v8457 = vsel %vm1711, %v8398, 0
      %v8460 = vsel %vm1711, %v8399, 0
      %v8463 = vsel %vm1711, %v8400, 0
      %v8466 = vsel %vm1711, %v8401, 0
      %v8469 = vsel %vm1711, %v8402, 0
      %v8472 = vsel %vm1711, %v8403, 0
      %v8475 = vsel %vm1711, %v8404, 0
      %8477 = vmatpush.bf16.msra.mxu0 0
      %8478 = vmatpush.bf16.msra.mxu0 0
      %8479 = vmatpush.bf16.msra.mxu0 0
      %8480 = vmatpush.bf16.msra.mxu0 0
      %8481 = vmatpush.bf16.msra.mxu0 %v8424
      %8482 = vmatpush.bf16.msra.mxu0 %v8423
      %8483 = vmatpush.bf16.msra.mxu0 %v8422
      %8484 = vmatpush.bf16.msra.mxu0 %v8421
      %8485 = vmatmul.bf16.gmra.mxu0 %v8430
      %v8486 = vpop.f32.mrf.mxu0
      %v8487 = vadd.f32 0.0, %v8486
      %v8488 = vpop.f32.mrf.mxu0
      %v8489 = vadd.f32 0.0, %v8488
      %8490 = vmatmul.bf16.gmra.mxu0 %v8433
      %v8491 = vpop.f32.mrf.mxu0
      %v8492 = vadd.f32 0.0, %v8491
      %v8493 = vpop.f32.mrf.mxu0
      %v8494 = vadd.f32 0.0, %v8493
      %8495 = vmatmul.bf16.gmra.mxu0 %v8436
      %v8496 = vpop.f32.mrf.mxu0
      %v8497 = vadd.f32 0.0, %v8496
      %v8498 = vpop.f32.mrf.mxu0
      %v8499 = vadd.f32 0.0, %v8498
      %8500 = vmatmul.bf16.gmra.mxu0 %v8439
      %v8501 = vpop.f32.mrf.mxu0
      %v8502 = vadd.f32 0.0, %v8501
      %v8503 = vpop.f32.mrf.mxu0
      %v8504 = vadd.f32 0.0, %v8503
      %8505 = vmatmul.bf16.gmra.mxu0 %v8442
      %v8506 = vpop.f32.mrf.mxu0
      %v8507 = vadd.f32 0.0, %v8506
      %v8508 = vpop.f32.mrf.mxu0
      %v8509 = vadd.f32 0.0, %v8508
      %8510 = vmatmul.bf16.gmra.mxu0 %v8445
      %v8511 = vpop.f32.mrf.mxu0
      %v8512 = vadd.f32 0.0, %v8511
      %v8513 = vpop.f32.mrf.mxu0
      %v8514 = vadd.f32 0.0, %v8513
      %8515 = vmatmul.bf16.gmra.mxu0 %v8448
      %v8516 = vpop.f32.mrf.mxu0
      %v8517 = vadd.f32 0.0, %v8516
      %v8518 = vpop.f32.mrf.mxu0
      %v8519 = vadd.f32 0.0, %v8518
      %8520 = vmatmul.bf16.gmra.mxu0 %v8451
      %v8521 = vpop.f32.mrf.mxu0
      %v8522 = vadd.f32 0.0, %v8521
      %v8523 = vpop.f32.mrf.mxu0
      %v8524 = vadd.f32 0.0, %v8523
      %8525 = vmatmul.bf16.gmra.mxu0 %v8454
      %v8526 = vpop.f32.mrf.mxu0
      %v8527 = vadd.f32 0.0, %v8526
      %v8528 = vpop.f32.mrf.mxu0
      %v8529 = vadd.f32 0.0, %v8528
      %8530 = vmatmul.bf16.gmra.mxu0 %v8457
      %v8531 = vpop.f32.mrf.mxu0
      %v8532 = vadd.f32 0.0, %v8531
      %v8533 = vpop.f32.mrf.mxu0
      %v8534 = vadd.f32 0.0, %v8533
      %8535 = vmatmul.bf16.gmra.mxu0 %v8460
      %v8536 = vpop.f32.mrf.mxu0
      %v8537 = vadd.f32 0.0, %v8536
      %v8538 = vpop.f32.mrf.mxu0
      %v8539 = vadd.f32 0.0, %v8538
      %8540 = vmatmul.bf16.gmra.mxu0 %v8463
      %v8541 = vpop.f32.mrf.mxu0
      %v8542 = vadd.f32 0.0, %v8541
      %v8543 = vpop.f32.mrf.mxu0
      %v8544 = vadd.f32 0.0, %v8543
      %8545 = vmatmul.bf16.gmra.mxu0 %v8466
      %v8546 = vpop.f32.mrf.mxu0
      %v8547 = vadd.f32 0.0, %v8546
      %v8548 = vpop.f32.mrf.mxu0
      %v8549 = vadd.f32 0.0, %v8548
      %8550 = vmatmul.bf16.gmra.mxu0 %v8469
      %v8551 = vpop.f32.mrf.mxu0
      %v8552 = vadd.f32 0.0, %v8551
      %v8553 = vpop.f32.mrf.mxu0
      %v8554 = vadd.f32 0.0, %v8553
      %8555 = vmatmul.bf16.gmra.mxu0 %v8472
      %v8556 = vpop.f32.mrf.mxu0
      %v8557 = vadd.f32 0.0, %v8556
      %v8558 = vpop.f32.mrf.mxu0
      %v8559 = vadd.f32 0.0, %v8558
      %8560 = vmatmul.bf16.gmra.mxu0 %v8475
      %v8561 = vpop.f32.mrf.mxu0
      %v8562 = vadd.f32 0.0, %v8561
      %v8563 = vpop.f32.mrf.mxu0
      %v8564 = vadd.f32 0.0, %v8563
      %8565 = vdwg.mxu0
      %v8566 = vadd.f32 %v8141, %v8487
      %v8567 = vadd.f32 %v8142, %v8489
      %v8568 = vadd.f32 %v8143, %v8492
      %v8569 = vadd.f32 %v8144, %v8494
      %v8570 = vadd.f32 %v8145, %v8497
      %v8571 = vadd.f32 %v8146, %v8499
      %v8572 = vadd.f32 %v8147, %v8502
      %v8573 = vadd.f32 %v8148, %v8504
      %v8574 = vadd.f32 %v8149, %v8507
      %v8575 = vadd.f32 %v8150, %v8509
      %v8576 = vadd.f32 %v8151, %v8512
      %v8577 = vadd.f32 %v8152, %v8514
      %v8578 = vadd.f32 %v8153, %v8517
      %v8579 = vadd.f32 %v8154, %v8519
      %v8580 = vadd.f32 %v8155, %v8522
      %v8581 = vadd.f32 %v8156, %v8524
      %v8582 = vadd.f32 %v8157, %v8527
      %v8583 = vadd.f32 %v8158, %v8529
      %v8584 = vadd.f32 %v8159, %v8532
      %v8585 = vadd.f32 %v8160, %v8534
      %v8586 = vadd.f32 %v8161, %v8537
      %v8587 = vadd.f32 %v8162, %v8539
      %v8588 = vadd.f32 %v8163, %v8542
      %v8589 = vadd.f32 %v8164, %v8544
      %v8590 = vadd.f32 %v8165, %v8547
      %v8591 = vadd.f32 %v8166, %v8549
      %v8592 = vadd.f32 %v8167, %v8552
      %v8593 = vadd.f32 %v8168, %v8554
      %v8594 = vadd.f32 %v8169, %v8557
      %v8595 = vadd.f32 %v8170, %v8559
      %v8596 = vadd.f32 %v8171, %v8562
      %v8597 = vadd.f32 %v8172, %v8564
      %v8598 = vld [vmem:[%s3921] sm:$0xf]
      %v8599 = vld [vmem:[%s3921 + $0x4] sm:$0xf]
      %v8600 = vld [vmem:[%s3921 + $0xc] sm:$0xf]
      %v8601 = vld [vmem:[%s3921 + $0x10] sm:$0xf]
      %v8602 = vld [vmem:[%s3921 + $0x18] sm:$0xf]
      %v8603 = vld [vmem:[%s3921 + $0x1c] sm:$0xf]
      %v8604 = vld [vmem:[%s3921 + $0x24] sm:$0xf]
      %v8605 = vld [vmem:[%s3921 + $0x28] sm:$0xf]
      %v8606 = vld [vmem:[%s3921 + $0x30] sm:$0xf]
      %v8607 = vld [vmem:[%s3921 + $0x34] sm:$0xf]
      %v8608 = vld [vmem:[%s3921 + $0x3c] sm:$0xf]
      %v8609 = vld [vmem:[%s3921 + $0x40] sm:$0xf]
      %v8610 = vld [vmem:[%s3921 + $0x48] sm:$0xf]
      %v8611 = vld [vmem:[%s3921 + $0x4c] sm:$0xf]
      %v8612 = vld [vmem:[%s3921 + $0x54] sm:$0xf]
      %v8613 = vld [vmem:[%s3921 + $0x58] sm:$0xf]
      %v8614 = vld [vmem:[%s3921 + $0x60] sm:$0xf]
      %v8615 = vld [vmem:[%s3921 + $0x64] sm:$0xf]
      %v8616 = vld [vmem:[%s3921 + $0x6c] sm:$0xf]
      %v8617 = vld [vmem:[%s3921 + $0x70] sm:$0xf]
      %v8618 = vld [vmem:[%s3921 + $0x78] sm:$0xf]
      %v8619 = vld [vmem:[%s3921 + $0x7c] sm:$0xf]
      %v8620 = vld [vmem:[%s3921 + $0x84] sm:$0xf]
      %v8621 = vld [vmem:[%s3921 + $0x88] sm:$0xf]
      %v8622 = vld [vmem:[%s3921 + $0x90] sm:$0xf]
      %v8623 = vld [vmem:[%s3921 + $0x94] sm:$0xf]
      %v8624 = vld [vmem:[%s3921 + $0x9c] sm:$0xf]
      %v8625 = vld [vmem:[%s3921 + $0xa0] sm:$0xf]
      %v8626 = vld [vmem:[%s3921 + $0xa8] sm:$0xf]
      %v8627 = vld [vmem:[%s3921 + $0xac] sm:$0xf]
      %v8628 = vld [vmem:[%s3921 + $0xb4] sm:$0xf]
      %v8629 = vld [vmem:[%s3921 + $0xb8] sm:$0xf]
      %v8630 = vld [vmem:[%s3 + $0xc0] sm:$0xf]
      %v8631 = vld [vmem:[%s3 + $0xc4] sm:$0xf]
      %v8632 = vld [vmem:[%s3 + $0xc8] sm:$0xf]
      %v8633 = vld [vmem:[%s3 + $0xcc] sm:$0xf]
      %v8634 = vld [vmem:[%s3 + $0xd0] sm:$0xf]
      %v8635 = vld [vmem:[%s3 + $0xd4] sm:$0xf]
      %v8636 = vld [vmem:[%s3 + $0xd8] sm:$0xf]
      %v8637 = vld [vmem:[%s3 + $0xdc] sm:$0xf]
      %v8670 = vunpack.c.l.b16 %v8598
      %v8671 = vunpack.c.l.b16 %v8599
      %v8672 = vunpack.c.l.b16 %v8600
      %v8673 = vunpack.c.l.b16 %v8601
      %v8674 = vunpack.c.l.b16 %v8602
      %v8675 = vunpack.c.l.b16 %v8603
      %v8676 = vunpack.c.l.b16 %v8604
      %v8677 = vunpack.c.l.b16 %v8605
      %v8678 = vunpack.c.l.b16 %v8606
      %v8679 = vunpack.c.l.b16 %v8607
      %v8680 = vunpack.c.l.b16 %v8608
      %v8681 = vunpack.c.l.b16 %v8609
      %v8682 = vunpack.c.l.b16 %v8610
      %v8683 = vunpack.c.l.b16 %v8611
      %v8684 = vunpack.c.l.b16 %v8612
      %v8685 = vunpack.c.l.b16 %v8613
      %v8686 = vunpack.c.l.b16 %v8614
      %v8687 = vunpack.c.l.b16 %v8615
      %v8688 = vunpack.c.l.b16 %v8616
      %v8689 = vunpack.c.l.b16 %v8617
      %v8690 = vunpack.c.l.b16 %v8618
      %v8691 = vunpack.c.l.b16 %v8619
      %v8692 = vunpack.c.l.b16 %v8620
      %v8693 = vunpack.c.l.b16 %v8621
      %v8694 = vunpack.c.l.b16 %v8622
      %v8695 = vunpack.c.l.b16 %v8623
      %v8696 = vunpack.c.l.b16 %v8624
      %v8697 = vunpack.c.l.b16 %v8625
      %v8698 = vunpack.c.l.b16 %v8626
      %v8699 = vunpack.c.l.b16 %v8627
      %v8700 = vunpack.c.l.b16 %v8628
      %v8701 = vunpack.c.l.b16 %v8629
      %v8702 = vpack.c.b16 %v8671, %v8670
      %v8703 = vpack.c.b16 %v8673, %v8672
      %v8704 = vpack.c.b16 %v8675, %v8674
      %v8705 = vpack.c.b16 %v8677, %v8676
      %v8706 = vpack.c.b16 %v8679, %v8678
      %v8707 = vpack.c.b16 %v8681, %v8680
      %v8708 = vpack.c.b16 %v8683, %v8682
      %v8709 = vpack.c.b16 %v8685, %v8684
      %v8710 = vpack.c.b16 %v8687, %v8686
      %v8711 = vpack.c.b16 %v8689, %v8688
      %v8712 = vpack.c.b16 %v8691, %v8690
      %v8713 = vpack.c.b16 %v8693, %v8692
      %v8714 = vpack.c.b16 %v8695, %v8694
      %v8715 = vpack.c.b16 %v8697, %v8696
      %v8716 = vpack.c.b16 %v8699, %v8698
      %v8717 = vpack.c.b16 %v8701, %v8700
      %v8726 = vunpack.c.l.b16 %v8630
      %v8727 = vunpack.c.l.b16 %v8631
      %v8728 = vunpack.c.l.b16 %v8632
      %v8729 = vunpack.c.l.b16 %v8633
      %v8730 = vunpack.c.l.b16 %v8634
      %v8731 = vunpack.c.l.b16 %v8635
      %v8732 = vunpack.c.l.b16 %v8636
      %v8733 = vunpack.c.l.b16 %v8637
      %v8734 = vpack.c.b16 %v8727, %v8726
      %v8735 = vpack.c.b16 %v8729, %v8728
      %v8736 = vpack.c.b16 %v8731, %v8730
      %v8737 = vpack.c.b16 %v8733, %v8732
      %v8743 = vsel %vm1711, %v8702, 0
      %v8746 = vsel %vm1711, %v8703, 0
      %v8749 = vsel %vm1711, %v8704, 0
      %v8752 = vsel %vm1711, %v8705, 0
      %v8755 = vsel %vm1711, %v8706, 0
      %v8758 = vsel %vm1711, %v8707, 0
      %v8761 = vsel %vm1711, %v8708, 0
      %v8764 = vsel %vm1711, %v8709, 0
      %v8767 = vsel %vm1711, %v8710, 0
      %v8770 = vsel %vm1711, %v8711, 0
      %v8773 = vsel %vm1711, %v8712, 0
      %v8776 = vsel %vm1711, %v8713, 0
      %v8779 = vsel %vm1711, %v8714, 0
      %v8782 = vsel %vm1711, %v8715, 0
      %v8785 = vsel %vm1711, %v8716, 0
      %v8788 = vsel %vm1711, %v8717, 0
      %8790 = vmatpush.bf16.msra.mxu0 0
      %8791 = vmatpush.bf16.msra.mxu0 0
      %8792 = vmatpush.bf16.msra.mxu0 0
      %8793 = vmatpush.bf16.msra.mxu0 0
      %8794 = vmatpush.bf16.msra.mxu0 %v8737
      %8795 = vmatpush.bf16.msra.mxu0 %v8736
      %8796 = vmatpush.bf16.msra.mxu0 %v8735
      %8797 = vmatpush.bf16.msra.mxu0 %v8734
      %8798 = vmatmul.bf16.gmra.mxu0 %v8743
      %v8799 = vpop.f32.mrf.mxu0
      %v8800 = vadd.f32 0.0, %v8799
      %v8801 = vpop.f32.mrf.mxu0
      %v8802 = vadd.f32 0.0, %v8801
      %8803 = vmatmul.bf16.gmra.mxu0 %v8746
      %v8804 = vpop.f32.mrf.mxu0
      %v8805 = vadd.f32 0.0, %v8804
      %v8806 = vpop.f32.mrf.mxu0
      %v8807 = vadd.f32 0.0, %v8806
      %8808 = vmatmul.bf16.gmra.mxu0 %v8749
      %v8809 = vpop.f32.mrf.mxu0
      %v8810 = vadd.f32 0.0, %v8809
      %v8811 = vpop.f32.mrf.mxu0
      %v8812 = vadd.f32 0.0, %v8811
      %8813 = vmatmul.bf16.gmra.mxu0 %v8752
      %v8814 = vpop.f32.mrf.mxu0
      %v8815 = vadd.f32 0.0, %v8814
      %v8816 = vpop.f32.mrf.mxu0
      %v8817 = vadd.f32 0.0, %v8816
      %8818 = vmatmul.bf16.gmra.mxu0 %v8755
      %v8819 = vpop.f32.mrf.mxu0
      %v8820 = vadd.f32 0.0, %v8819
      %v8821 = vpop.f32.mrf.mxu0
      %v8822 = vadd.f32 0.0, %v8821
      %8823 = vmatmul.bf16.gmra.mxu0 %v8758
      %v8824 = vpop.f32.mrf.mxu0
      %v8825 = vadd.f32 0.0, %v8824
      %v8826 = vpop.f32.mrf.mxu0
      %v8827 = vadd.f32 0.0, %v8826
      %8828 = vmatmul.bf16.gmra.mxu0 %v8761
      %v8829 = vpop.f32.mrf.mxu0
      %v8830 = vadd.f32 0.0, %v8829
      %v8831 = vpop.f32.mrf.mxu0
      %v8832 = vadd.f32 0.0, %v8831
      %8833 = vmatmul.bf16.gmra.mxu0 %v8764
      %v8834 = vpop.f32.mrf.mxu0
      %v8835 = vadd.f32 0.0, %v8834
      %v8836 = vpop.f32.mrf.mxu0
      %v8837 = vadd.f32 0.0, %v8836
      %8838 = vmatmul.bf16.gmra.mxu0 %v8767
      %v8839 = vpop.f32.mrf.mxu0
      %v8840 = vadd.f32 0.0, %v8839
      %v8841 = vpop.f32.mrf.mxu0
      %v8842 = vadd.f32 0.0, %v8841
      %8843 = vmatmul.bf16.gmra.mxu0 %v8770
      %v8844 = vpop.f32.mrf.mxu0
      %v8845 = vadd.f32 0.0, %v8844
      %v8846 = vpop.f32.mrf.mxu0
      %v8847 = vadd.f32 0.0, %v8846
      %8848 = vmatmul.bf16.gmra.mxu0 %v8773
      %v8849 = vpop.f32.mrf.mxu0
      %v8850 = vadd.f32 0.0, %v8849
      %v8851 = vpop.f32.mrf.mxu0
      %v8852 = vadd.f32 0.0, %v8851
      %8853 = vmatmul.bf16.gmra.mxu0 %v8776
      %v8854 = vpop.f32.mrf.mxu0
      %v8855 = vadd.f32 0.0, %v8854
      %v8856 = vpop.f32.mrf.mxu0
      %v8857 = vadd.f32 0.0, %v8856
      %8858 = vmatmul.bf16.gmra.mxu0 %v8779
      %v8859 = vpop.f32.mrf.mxu0
      %v8860 = vadd.f32 0.0, %v8859
      %v8861 = vpop.f32.mrf.mxu0
      %v8862 = vadd.f32 0.0, %v8861
      %8863 = vmatmul.bf16.gmra.mxu0 %v8782
      %v8864 = vpop.f32.mrf.mxu0
      %v8865 = vadd.f32 0.0, %v8864
      %v8866 = vpop.f32.mrf.mxu0
      %v8867 = vadd.f32 0.0, %v8866
      %8868 = vmatmul.bf16.gmra.mxu0 %v8785
      %v8869 = vpop.f32.mrf.mxu0
      %v8870 = vadd.f32 0.0, %v8869
      %v8871 = vpop.f32.mrf.mxu0
      %v8872 = vadd.f32 0.0, %v8871
      %8873 = vmatmul.bf16.gmra.mxu0 %v8788
      %v8874 = vpop.f32.mrf.mxu0
      %v8875 = vadd.f32 0.0, %v8874
      %v8876 = vpop.f32.mrf.mxu0
      %v8877 = vadd.f32 0.0, %v8876
      %8878 = vdwg.mxu0
      %v8879 = vadd.f32 %v8566, %v8800
      %v8880 = vadd.f32 %v8567, %v8802
      %v8881 = vadd.f32 %v8568, %v8805
      %v8882 = vadd.f32 %v8569, %v8807
      %v8883 = vadd.f32 %v8570, %v8810
      %v8884 = vadd.f32 %v8571, %v8812
      %v8885 = vadd.f32 %v8572, %v8815
      %v8886 = vadd.f32 %v8573, %v8817
      %v8887 = vadd.f32 %v8574, %v8820
      %v8888 = vadd.f32 %v8575, %v8822
      %v8889 = vadd.f32 %v8576, %v8825
      %v8890 = vadd.f32 %v8577, %v8827
      %v8891 = vadd.f32 %v8578, %v8830
      %v8892 = vadd.f32 %v8579, %v8832
      %v8893 = vadd.f32 %v8580, %v8835
      %v8894 = vadd.f32 %v8581, %v8837
      %v8895 = vadd.f32 %v8582, %v8840
      %v8896 = vadd.f32 %v8583, %v8842
      %v8897 = vadd.f32 %v8584, %v8845
      %v8898 = vadd.f32 %v8585, %v8847
      %v8899 = vadd.f32 %v8586, %v8850
      %v8900 = vadd.f32 %v8587, %v8852
      %v8901 = vadd.f32 %v8588, %v8855
      %v8902 = vadd.f32 %v8589, %v8857
      %v8903 = vadd.f32 %v8590, %v8860
      %v8904 = vadd.f32 %v8591, %v8862
      %v8905 = vadd.f32 %v8592, %v8865
      %v8906 = vadd.f32 %v8593, %v8867
      %v8907 = vadd.f32 %v8594, %v8870
      %v8908 = vadd.f32 %v8595, %v8872
      %v8909 = vadd.f32 %v8596, %v8875
      %v8910 = vadd.f32 %v8597, %v8877
      %v8911 = vld [vmem:[%s3921] sm:$0xf]
      %v8912 = vld [vmem:[%s3921 + $0x4] sm:$0xf]
      %v8913 = vld [vmem:[%s3921 + $0x8] sm:$0x1]
      %v8914 = vld [vmem:[%s3921 + $0xc] sm:$0xf]
      %v8915 = vld [vmem:[%s3921 + $0x10] sm:$0xf]
      %v8916 = vld [vmem:[%s3921 + $0x14] sm:$0x1]
      %v8917 = vld [vmem:[%s3921 + $0x18] sm:$0xf]
      %v8918 = vld [vmem:[%s3921 + $0x1c] sm:$0xf]
      %v8919 = vld [vmem:[%s3921 + $0x20] sm:$0x1]
      %v8920 = vld [vmem:[%s3921 + $0x24] sm:$0xf]
      %v8921 = vld [vmem:[%s3921 + $0x28] sm:$0xf]
      %v8922 = vld [vmem:[%s3921 + $0x2c] sm:$0x1]
      %v8923 = vld [vmem:[%s3921 + $0x30] sm:$0xf]
      %v8924 = vld [vmem:[%s3921 + $0x34] sm:$0xf]
      %v8925 = vld [vmem:[%s3921 + $0x38] sm:$0x1]
      %v8926 = vld [vmem:[%s3921 + $0x3c] sm:$0xf]
      %v8927 = vld [vmem:[%s3921 + $0x40] sm:$0xf]
      %v8928 = vld [vmem:[%s3921 + $0x44] sm:$0x1]
      %v8929 = vld [vmem:[%s3921 + $0x48] sm:$0xf]
      %v8930 = vld [vmem:[%s3921 + $0x4c] sm:$0xf]
      %v8931 = vld [vmem:[%s3921 + $0x50] sm:$0x1]
      %v8932 = vld [vmem:[%s3921 + $0x54] sm:$0xf]
      %v8933 = vld [vmem:[%s3921 + $0x58] sm:$0xf]
      %v8934 = vld [vmem:[%s3921 + $0x5c] sm:$0x1]
      %v8935 = vld [vmem:[%s3921 + $0x60] sm:$0xf]
      %v8936 = vld [vmem:[%s3921 + $0x64] sm:$0xf]
      %v8937 = vld [vmem:[%s3921 + $0x68] sm:$0x1]
      %v8938 = vld [vmem:[%s3921 + $0x6c] sm:$0xf]
      %v8939 = vld [vmem:[%s3921 + $0x70] sm:$0xf]
      %v8940 = vld [vmem:[%s3921 + $0x74] sm:$0x1]
      %v8941 = vld [vmem:[%s3921 + $0x78] sm:$0xf]
      %v8942 = vld [vmem:[%s3921 + $0x7c] sm:$0xf]
      %v8943 = vld [vmem:[%s3921 + $0x80] sm:$0x1]
      %v8944 = vld [vmem:[%s3921 + $0x84] sm:$0xf]
      %v8945 = vld [vmem:[%s3921 + $0x88] sm:$0xf]
      %v8946 = vld [vmem:[%s3921 + $0x8c] sm:$0x1]
      %v8947 = vld [vmem:[%s3921 + $0x90] sm:$0xf]
      %v8948 = vld [vmem:[%s3921 + $0x94] sm:$0xf]
      %v8949 = vld [vmem:[%s3921 + $0x98] sm:$0x1]
      %v8950 = vld [vmem:[%s3921 + $0x9c] sm:$0xf]
      %v8951 = vld [vmem:[%s3921 + $0xa0] sm:$0xf]
      %v8952 = vld [vmem:[%s3921 + $0xa4] sm:$0x1]
      %v8953 = vld [vmem:[%s3921 + $0xa8] sm:$0xf]
      %v8954 = vld [vmem:[%s3921 + $0xac] sm:$0xf]
      %v8955 = vld [vmem:[%s3921 + $0xb0] sm:$0x1]
      %v8956 = vld [vmem:[%s3921 + $0xb4] sm:$0xf]
      %v8957 = vld [vmem:[%s3921 + $0xb8] sm:$0xf]
      %v8958 = vld [vmem:[%s3921 + $0xbc] sm:$0x1]
      %v8960 = vshrl.u32 %v8911, 16
      %v8962 = vrot.slane %v8960, 4
      %v8963 = vshll.u32 %v8911, 16
      %v8965 = vrot.slane %v8963, 5
      %v8966 = vor.u32 %v8962, %v8965
      %v8967 = vrot.slane %v8966, 4
      %v8969 = vshll.u32 %v8912, 16
      %v8971 = vrot.slane %v8969, 5
      %v8972 = vsel %vm1246, %v8967, %v8971
      %v8973 = vshrl.u32 %v8912, 16
      %v8975 = vrot.slane %v8973, 4
      %v8976 = vor.u32 %v8975, %v8971
      %v8977 = vrot.slane %v8976, 4
      %v8979 = vshll.u32 %v8913, 16
      %v8981 = vrot.slane %v8979, 5
      %v8982 = vsel %vm1246, %v8977, %v8981
      %v8984 = vshrl.u32 %v8914, 16
      %v8986 = vrot.slane %v8984, 4
      %v8987 = vshll.u32 %v8914, 16
      %v8989 = vrot.slane %v8987, 5
      %v8990 = vor.u32 %v8986, %v8989
      %v8991 = vrot.slane %v8990, 4
      %v8993 = vshll.u32 %v8915, 16
      %v8995 = vrot.slane %v8993, 5
      %v8996 = vsel %vm1246, %v8991, %v8995
      %v8997 = vshrl.u32 %v8915, 16
      %v8999 = vrot.slane %v8997, 4
      %v9000 = vor.u32 %v8999, %v8995
      %v9001 = vrot.slane %v9000, 4
      %v9003 = vshll.u32 %v8916, 16
      %v9005 = vrot.slane %v9003, 5
      %v9006 = vsel %vm1246, %v9001, %v9005
      %v9008 = vshrl.u32 %v8917, 16
      %v9010 = vrot.slane %v9008, 4
      %v9011 = vshll.u32 %v8917, 16
      %v9013 = vrot.slane %v9011, 5
      %v9014 = vor.u32 %v9010, %v9013
      %v9015 = vrot.slane %v9014, 4
      %v9017 = vshll.u32 %v8918, 16
      %v9019 = vrot.slane %v9017, 5
      %v9020 = vsel %vm1246, %v9015, %v9019
      %v9021 = vshrl.u32 %v8918, 16
      %v9023 = vrot.slane %v9021, 4
      %v9024 = vor.u32 %v9023, %v9019
      %v9025 = vrot.slane %v9024, 4
      %v9027 = vshll.u32 %v8919, 16
      %v9029 = vrot.slane %v9027, 5
      %v9030 = vsel %vm1246, %v9025, %v9029
      %v9032 = vshrl.u32 %v8920, 16
      %v9034 = vrot.slane %v9032, 4
      %v9035 = vshll.u32 %v8920, 16
      %v9037 = vrot.slane %v9035, 5
      %v9038 = vor.u32 %v9034, %v9037
      %v9039 = vrot.slane %v9038, 4
      %v9041 = vshll.u32 %v8921, 16
      %v9043 = vrot.slane %v9041, 5
      %v9044 = vsel %vm1246, %v9039, %v9043
      %v9045 = vshrl.u32 %v8921, 16
      %v9047 = vrot.slane %v9045, 4
      %v9048 = vor.u32 %v9047, %v9043
      %v9049 = vrot.slane %v9048, 4
      %v9051 = vshll.u32 %v8922, 16
      %v9053 = vrot.slane %v9051, 5
      %v9054 = vsel %vm1246, %v9049, %v9053
      %v9056 = vshrl.u32 %v8923, 16
      %v9058 = vrot.slane %v9056, 4
      %v9059 = vshll.u32 %v8923, 16
      %v9061 = vrot.slane %v9059, 5
      %v9062 = vor.u32 %v9058, %v9061
      %v9063 = vrot.slane %v9062, 4
      %v9065 = vshll.u32 %v8924, 16
      %v9067 = vrot.slane %v9065, 5
      %v9068 = vsel %vm1246, %v9063, %v9067
      %v9069 = vshrl.u32 %v8924, 16
      %v9071 = vrot.slane %v9069, 4
      %v9072 = vor.u32 %v9071, %v9067
      %v9073 = vrot.slane %v9072, 4
      %v9075 = vshll.u32 %v8925, 16
      %v9077 = vrot.slane %v9075, 5
      %v9078 = vsel %vm1246, %v9073, %v9077
      %v9080 = vshrl.u32 %v8926, 16
      %v9082 = vrot.slane %v9080, 4
      %v9083 = vshll.u32 %v8926, 16
      %v9085 = vrot.slane %v9083, 5
      %v9086 = vor.u32 %v9082, %v9085
      %v9087 = vrot.slane %v9086, 4
      %v9089 = vshll.u32 %v8927, 16
      %v9091 = vrot.slane %v9089, 5
      %v9092 = vsel %vm1246, %v9087, %v9091
      %v9093 = vshrl.u32 %v8927, 16
      %v9095 = vrot.slane %v9093, 4
      %v9096 = vor.u32 %v9095, %v9091
      %v9097 = vrot.slane %v9096, 4
      %v9099 = vshll.u32 %v8928, 16
      %v9101 = vrot.slane %v9099, 5
      %v9102 = vsel %vm1246, %v9097, %v9101
      %v9104 = vshrl.u32 %v8929, 16
      %v9106 = vrot.slane %v9104, 4
      %v9107 = vshll.u32 %v8929, 16
      %v9109 = vrot.slane %v9107, 5
      %v9110 = vor.u32 %v9106, %v9109
      %v9111 = vrot.slane %v9110, 4
      %v9113 = vshll.u32 %v8930, 16
      %v9115 = vrot.slane %v9113, 5
      %v9116 = vsel %vm1246, %v9111, %v9115
      %v9117 = vshrl.u32 %v8930, 16
      %v9119 = vrot.slane %v9117, 4
      %v9120 = vor.u32 %v9119, %v9115
      %v9121 = vrot.slane %v9120, 4
      %v9123 = vshll.u32 %v8931, 16
      %v9125 = vrot.slane %v9123, 5
      %v9126 = vsel %vm1246, %v9121, %v9125
      %v9128 = vshrl.u32 %v8932, 16
      %v9130 = vrot.slane %v9128, 4
      %v9131 = vshll.u32 %v8932, 16
      %v9133 = vrot.slane %v9131, 5
      %v9134 = vor.u32 %v9130, %v9133
      %v9135 = vrot.slane %v9134, 4
      %v9137 = vshll.u32 %v8933, 16
      %v9139 = vrot.slane %v9137, 5
      %v9140 = vsel %vm1246, %v9135, %v9139
      %v9141 = vshrl.u32 %v8933, 16
      %v9143 = vrot.slane %v9141, 4
      %v9144 = vor.u32 %v9143, %v9139
      %v9145 = vrot.slane %v9144, 4
      %v9147 = vshll.u32 %v8934, 16
      %v9149 = vrot.slane %v9147, 5
      %v9150 = vsel %vm1246, %v9145, %v9149
      %v9152 = vshrl.u32 %v8935, 16
      %v9154 = vrot.slane %v9152, 4
      %v9155 = vshll.u32 %v8935, 16
      %v9157 = vrot.slane %v9155, 5
      %v9158 = vor.u32 %v9154, %v9157
      %v9159 = vrot.slane %v9158, 4
      %v9161 = vshll.u32 %v8936, 16
      %v9163 = vrot.slane %v9161, 5
      %v9164 = vsel %vm1246, %v9159, %v9163
      %v9165 = vshrl.u32 %v8936, 16
      %v9167 = vrot.slane %v9165, 4
      %v9168 = vor.u32 %v9167, %v9163
      %v9169 = vrot.slane %v9168, 4
      %v9171 = vshll.u32 %v8937, 16
      %v9173 = vrot.slane %v9171, 5
      %v9174 = vsel %vm1246, %v9169, %v9173
      %v9176 = vshrl.u32 %v8938, 16
      %v9178 = vrot.slane %v9176, 4
      %v9179 = vshll.u32 %v8938, 16
      %v9181 = vrot.slane %v9179, 5
      %v9182 = vor.u32 %v9178, %v9181
      %v9183 = vrot.slane %v9182, 4
      %v9185 = vshll.u32 %v8939, 16
      %v9187 = vrot.slane %v9185, 5
      %v9188 = vsel %vm1246, %v9183, %v9187
      %v9189 = vshrl.u32 %v8939, 16
      %v9191 = vrot.slane %v9189, 4
      %v9192 = vor.u32 %v9191, %v9187
      %v9193 = vrot.slane %v9192, 4
      %v9195 = vshll.u32 %v8940, 16
      %v9197 = vrot.slane %v9195, 5
      %v9198 = vsel %vm1246, %v9193, %v9197
      %v9200 = vshrl.u32 %v8941, 16
      %v9202 = vrot.slane %v9200, 4
      %v9203 = vshll.u32 %v8941, 16
      %v9205 = vrot.slane %v9203, 5
      %v9206 = vor.u32 %v9202, %v9205
      %v9207 = vrot.slane %v9206, 4
      %v9209 = vshll.u32 %v8942, 16
      %v9211 = vrot.slane %v9209, 5
      %v9212 = vsel %vm1246, %v9207, %v9211
      %v9213 = vshrl.u32 %v8942, 16
      %v9215 = vrot.slane %v9213, 4
      %v9216 = vor.u32 %v9215, %v9211
      %v9217 = vrot.slane %v9216, 4
      %v9219 = vshll.u32 %v8943, 16
      %v9221 = vrot.slane %v9219, 5
      %v9222 = vsel %vm1246, %v9217, %v9221
      %v9224 = vshrl.u32 %v8944, 16
      %v9226 = vrot.slane %v9224, 4
      %v9227 = vshll.u32 %v8944, 16
      %v9229 = vrot.slane %v9227, 5
      %v9230 = vor.u32 %v9226, %v9229
      %v9231 = vrot.slane %v9230, 4
      %v9233 = vshll.u32 %v8945, 16
      %v9235 = vrot.slane %v9233, 5
      %v9236 = vsel %vm1246, %v9231, %v9235
      %v9237 = vshrl.u32 %v8945, 16
      %v9239 = vrot.slane %v9237, 4
      %v9240 = vor.u32 %v9239, %v9235
      %v9241 = vrot.slane %v9240, 4
      %v9243 = vshll.u32 %v8946, 16
      %v9245 = vrot.slane %v9243, 5
      %v9246 = vsel %vm1246, %v9241, %v9245
      %v9248 = vshrl.u32 %v8947, 16
      %v9250 = vrot.slane %v9248, 4
      %v9251 = vshll.u32 %v8947, 16
      %v9253 = vrot.slane %v9251, 5
      %v9254 = vor.u32 %v9250, %v9253
      %v9255 = vrot.slane %v9254, 4
      %v9257 = vshll.u32 %v8948, 16
      %v9259 = vrot.slane %v9257, 5
      %v9260 = vsel %vm1246, %v9255, %v9259
      %v9261 = vshrl.u32 %v8948, 16
      %v9263 = vrot.slane %v9261, 4
      %v9264 = vor.u32 %v9263, %v9259
      %v9265 = vrot.slane %v9264, 4
      %v9267 = vshll.u32 %v8949, 16
      %v9269 = vrot.slane %v9267, 5
      %v9270 = vsel %vm1246, %v9265, %v9269
      %v9272 = vshrl.u32 %v8950, 16
      %v9274 = vrot.slane %v9272, 4
      %v9275 = vshll.u32 %v8950, 16
      %v9277 = vrot.slane %v9275, 5
      %v9278 = vor.u32 %v9274, %v9277
      %v9279 = vrot.slane %v9278, 4
      %v9281 = vshll.u32 %v8951, 16
      %v9283 = vrot.slane %v9281, 5
      %v9284 = vsel %vm1246, %v9279, %v9283
      %v9285 = vshrl.u32 %v8951, 16
      %v9287 = vrot.slane %v9285, 4
      %v9288 = vor.u32 %v9287, %v9283
      %v9289 = vrot.slane %v9288, 4
      %v9291 = vshll.u32 %v8952, 16
      %v9293 = vrot.slane %v9291, 5
      %v9294 = vsel %vm1246, %v9289, %v9293
      %v9296 = vshrl.u32 %v8953, 16
      %v9298 = vrot.slane %v9296, 4
      %v9299 = vshll.u32 %v8953, 16
      %v9301 = vrot.slane %v9299, 5
      %v9302 = vor.u32 %v9298, %v9301
      %v9303 = vrot.slane %v9302, 4
      %v9305 = vshll.u32 %v8954, 16
      %v9307 = vrot.slane %v9305, 5
      %v9308 = vsel %vm1246, %v9303, %v9307
      %v9309 = vshrl.u32 %v8954, 16
      %v9311 = vrot.slane %v9309, 4
      %v9312 = vor.u32 %v9311, %v9307
      %v9313 = vrot.slane %v9312, 4
      %v9315 = vshll.u32 %v8955, 16
      %v9317 = vrot.slane %v9315, 5
      %v9318 = vsel %vm1246, %v9313, %v9317
      %v9320 = vshrl.u32 %v8956, 16
      %v9322 = vrot.slane %v9320, 4
      %v9323 = vshll.u32 %v8956, 16
      %v9325 = vrot.slane %v9323, 5
      %v9326 = vor.u32 %v9322, %v9325
      %v9327 = vrot.slane %v9326, 4
      %v9329 = vshll.u32 %v8957, 16
      %v9331 = vrot.slane %v9329, 5
      %v9332 = vsel %vm1246, %v9327, %v9331
      %v9333 = vshrl.u32 %v8957, 16
      %v9335 = vrot.slane %v9333, 4
      %v9336 = vor.u32 %v9335, %v9331
      %v9337 = vrot.slane %v9336, 4
      %v9339 = vshll.u32 %v8958, 16
      %v9341 = vrot.slane %v9339, 5
      %v9342 = vsel %vm1246, %v9337, %v9341
      %v9343 = vld [vmem:[%s3 + $0xe0] sm:$0xf]
      %v9344 = vld [vmem:[%s3 + $0xe4] sm:$0xf]
      %v9345 = vld [vmem:[%s3 + $0xe8] sm:$0xf]
      %v9346 = vld [vmem:[%s3 + $0xec] sm:$0xf]
      %v9347 = vld [vmem:[%s3 + $0xf0] sm:$0xf]
      %v9348 = vld [vmem:[%s3 + $0xf4] sm:$0xf]
      %v9349 = vld [vmem:[%s3 + $0xf8] sm:$0xf]
      %v9350 = vld [vmem:[%s3 + $0xfc] sm:$0xf]
      %v9351 = vunpack.c.l.b16 %v8972
      %v9352 = vunpack.c.l.b16 %v8982
      %v9353 = vunpack.c.l.b16 %v8996
      %v9354 = vunpack.c.l.b16 %v9006
      %v9355 = vunpack.c.l.b16 %v9020
      %v9356 = vunpack.c.l.b16 %v9030
      %v9357 = vunpack.c.l.b16 %v9044
      %v9358 = vunpack.c.l.b16 %v9054
      %v9359 = vunpack.c.l.b16 %v9068
      %v9360 = vunpack.c.l.b16 %v9078
      %v9361 = vunpack.c.l.b16 %v9092
      %v9362 = vunpack.c.l.b16 %v9102
      %v9363 = vunpack.c.l.b16 %v9116
      %v9364 = vunpack.c.l.b16 %v9126
      %v9365 = vunpack.c.l.b16 %v9140
      %v9366 = vunpack.c.l.b16 %v9150
      %v9367 = vunpack.c.l.b16 %v9164
      %v9368 = vunpack.c.l.b16 %v9174
      %v9369 = vunpack.c.l.b16 %v9188
      %v9370 = vunpack.c.l.b16 %v9198
      %v9371 = vunpack.c.l.b16 %v9212
      %v9372 = vunpack.c.l.b16 %v9222
      %v9373 = vunpack.c.l.b16 %v9236
      %v9374 = vunpack.c.l.b16 %v9246
      %v9375 = vunpack.c.l.b16 %v9260
      %v9376 = vunpack.c.l.b16 %v9270
      %v9377 = vunpack.c.l.b16 %v9284
      %v9378 = vunpack.c.l.b16 %v9294
      %v9379 = vunpack.c.l.b16 %v9308
      %v9380 = vunpack.c.l.b16 %v9318
      %v9381 = vunpack.c.l.b16 %v9332
      %v9382 = vunpack.c.l.b16 %v9342
      %v9383 = vpack.c.b16 %v9352, %v9351
      %v9384 = vpack.c.b16 %v9354, %v9353
      %v9385 = vpack.c.b16 %v9356, %v9355
      %v9386 = vpack.c.b16 %v9358, %v9357
      %v9387 = vpack.c.b16 %v9360, %v9359
      %v9388 = vpack.c.b16 %v9362, %v9361
      %v9389 = vpack.c.b16 %v9364, %v9363
      %v9390 = vpack.c.b16 %v9366, %v9365
      %v9391 = vpack.c.b16 %v9368, %v9367
      %v9392 = vpack.c.b16 %v9370, %v9369
      %v9393 = vpack.c.b16 %v9372, %v9371
      %v9394 = vpack.c.b16 %v9374, %v9373
      %v9395 = vpack.c.b16 %v9376, %v9375
      %v9396 = vpack.c.b16 %v9378, %v9377
      %v9397 = vpack.c.b16 %v9380, %v9379
      %v9398 = vpack.c.b16 %v9382, %v9381
      %v9407 = vunpack.c.l.b16 %v9343
      %v9408 = vunpack.c.l.b16 %v9344
      %v9409 = vunpack.c.l.b16 %v9345
      %v9410 = vunpack.c.l.b16 %v9346
      %v9411 = vunpack.c.l.b16 %v9347
      %v9412 = vunpack.c.l.b16 %v9348
      %v9413 = vunpack.c.l.b16 %v9349
      %v9414 = vunpack.c.l.b16 %v9350
      %v9415 = vpack.c.b16 %v9408, %v9407
      %v9416 = vpack.c.b16 %v9410, %v9409
      %v9417 = vpack.c.b16 %v9412, %v9411
      %v9418 = vpack.c.b16 %v9414, %v9413
      %v9424 = vsel %vm1711, %v9383, 0
      %v9427 = vsel %vm1711, %v9384, 0
      %v9430 = vsel %vm1711, %v9385, 0
      %v9433 = vsel %vm1711, %v9386, 0
      %v9436 = vsel %vm1711, %v9387, 0
      %v9439 = vsel %vm1711, %v9388, 0
      %v9442 = vsel %vm1711, %v9389, 0
      %v9445 = vsel %vm1711, %v9390, 0
      %v9448 = vsel %vm1711, %v9391, 0
      %v9451 = vsel %vm1711, %v9392, 0
      %v9454 = vsel %vm1711, %v9393, 0
      %v9457 = vsel %vm1711, %v9394, 0
      %v9460 = vsel %vm1711, %v9395, 0
      %v9463 = vsel %vm1711, %v9396, 0
      %v9466 = vsel %vm1711, %v9397, 0
      %v9469 = vsel %vm1711, %v9398, 0
      %9471 = vmatpush.bf16.msra.mxu0 0
      %9472 = vmatpush.bf16.msra.mxu0 0
      %9473 = vmatpush.bf16.msra.mxu0 0
      %9474 = vmatpush.bf16.msra.mxu0 0
      %9475 = vmatpush.bf16.msra.mxu0 %v9418
      %9476 = vmatpush.bf16.msra.mxu0 %v9417
      %9477 = vmatpush.bf16.msra.mxu0 %v9416
      %9478 = vmatpush.bf16.msra.mxu0 %v9415
      %9479 = vmatmul.bf16.gmra.mxu0 %v9424
      %v9480 = vpop.f32.mrf.mxu0
      %v9481 = vadd.f32 0.0, %v9480
      %v9482 = vpop.f32.mrf.mxu0
      %v9483 = vadd.f32 0.0, %v9482
      %9484 = vmatmul.bf16.gmra.mxu0 %v9427
      %v9485 = vpop.f32.mrf.mxu0
      %v9486 = vadd.f32 0.0, %v9485
      %v9487 = vpop.f32.mrf.mxu0
      %v9488 = vadd.f32 0.0, %v9487
      %9489 = vmatmul.bf16.gmra.mxu0 %v9430
      %v9490 = vpop.f32.mrf.mxu0
      %v9491 = vadd.f32 0.0, %v9490
      %v9492 = vpop.f32.mrf.mxu0
      %v9493 = vadd.f32 0.0, %v9492
      %9494 = vmatmul.bf16.gmra.mxu0 %v9433
      %v9495 = vpop.f32.mrf.mxu0
      %v9496 = vadd.f32 0.0, %v9495
      %v9497 = vpop.f32.mrf.mxu0
      %v9498 = vadd.f32 0.0, %v9497
      %9499 = vmatmul.bf16.gmra.mxu0 %v9436
      %v9500 = vpop.f32.mrf.mxu0
      %v9501 = vadd.f32 0.0, %v9500
      %v9502 = vpop.f32.mrf.mxu0
      %v9503 = vadd.f32 0.0, %v9502
      %9504 = vmatmul.bf16.gmra.mxu0 %v9439
      %v9505 = vpop.f32.mrf.mxu0
      %v9506 = vadd.f32 0.0, %v9505
      %v9507 = vpop.f32.mrf.mxu0
      %v9508 = vadd.f32 0.0, %v9507
      %9509 = vmatmul.bf16.gmra.mxu0 %v9442
      %v9510 = vpop.f32.mrf.mxu0
      %v9511 = vadd.f32 0.0, %v9510
      %v9512 = vpop.f32.mrf.mxu0
      %v9513 = vadd.f32 0.0, %v9512
      %9514 = vmatmul.bf16.gmra.mxu0 %v9445
      %v9515 = vpop.f32.mrf.mxu0
      %v9516 = vadd.f32 0.0, %v9515
      %v9517 = vpop.f32.mrf.mxu0
      %v9518 = vadd.f32 0.0, %v9517
      %9519 = vmatmul.bf16.gmra.mxu0 %v9448
      %v9520 = vpop.f32.mrf.mxu0
      %v9521 = vadd.f32 0.0, %v9520
      %v9522 = vpop.f32.mrf.mxu0
      %v9523 = vadd.f32 0.0, %v9522
      %9524 = vmatmul.bf16.gmra.mxu0 %v9451
      %v9525 = vpop.f32.mrf.mxu0
      %v9526 = vadd.f32 0.0, %v9525
      %v9527 = vpop.f32.mrf.mxu0
      %v9528 = vadd.f32 0.0, %v9527
      %9529 = vmatmul.bf16.gmra.mxu0 %v9454
      %v9530 = vpop.f32.mrf.mxu0
      %v9531 = vadd.f32 0.0, %v9530
      %v9532 = vpop.f32.mrf.mxu0
      %v9533 = vadd.f32 0.0, %v9532
      %9534 = vmatmul.bf16.gmra.mxu0 %v9457
      %v9535 = vpop.f32.mrf.mxu0
      %v9536 = vadd.f32 0.0, %v9535
      %v9537 = vpop.f32.mrf.mxu0
      %v9538 = vadd.f32 0.0, %v9537
      %9539 = vmatmul.bf16.gmra.mxu0 %v9460
      %v9540 = vpop.f32.mrf.mxu0
      %v9541 = vadd.f32 0.0, %v9540
      %v9542 = vpop.f32.mrf.mxu0
      %v9543 = vadd.f32 0.0, %v9542
      %9544 = vmatmul.bf16.gmra.mxu0 %v9463
      %v9545 = vpop.f32.mrf.mxu0
      %v9546 = vadd.f32 0.0, %v9545
      %v9547 = vpop.f32.mrf.mxu0
      %v9548 = vadd.f32 0.0, %v9547
      %9549 = vmatmul.bf16.gmra.mxu0 %v9466
      %v9550 = vpop.f32.mrf.mxu0
      %v9551 = vadd.f32 0.0, %v9550
      %v9552 = vpop.f32.mrf.mxu0
      %v9553 = vadd.f32 0.0, %v9552
      %9554 = vmatmul.bf16.gmra.mxu0 %v9469
      %v9555 = vpop.f32.mrf.mxu0
      %v9556 = vadd.f32 0.0, %v9555
      %v9557 = vpop.f32.mrf.mxu0
      %v9558 = vadd.f32 0.0, %v9557
      %9559 = vdwg.mxu0
      %v9560 = vadd.f32 %v8879, %v9481
      %v9561 = vadd.f32 %v8880, %v9483
      %v9562 = vadd.f32 %v8881, %v9486
      %v9563 = vadd.f32 %v8882, %v9488
      %v9564 = vadd.f32 %v8883, %v9491
      %v9565 = vadd.f32 %v8884, %v9493
      %v9566 = vadd.f32 %v8885, %v9496
      %v9567 = vadd.f32 %v8886, %v9498
      %v9568 = vadd.f32 %v8887, %v9501
      %v9569 = vadd.f32 %v8888, %v9503
      %v9570 = vadd.f32 %v8889, %v9506
      %v9571 = vadd.f32 %v8890, %v9508
      %v9572 = vadd.f32 %v8891, %v9511
      %v9573 = vadd.f32 %v8892, %v9513
      %v9574 = vadd.f32 %v8893, %v9516
      %v9575 = vadd.f32 %v8894, %v9518
      %v9576 = vadd.f32 %v8895, %v9521
      %v9577 = vadd.f32 %v8896, %v9523
      %v9578 = vadd.f32 %v8897, %v9526
      %v9579 = vadd.f32 %v8898, %v9528
      %v9580 = vadd.f32 %v8899, %v9531
      %v9581 = vadd.f32 %v8900, %v9533
      %v9582 = vadd.f32 %v8901, %v9536
      %v9583 = vadd.f32 %v8902, %v9538
      %v9584 = vadd.f32 %v8903, %v9541
      %v9585 = vadd.f32 %v8904, %v9543
      %v9586 = vadd.f32 %v8905, %v9546
      %v9587 = vadd.f32 %v8906, %v9548
      %v9588 = vadd.f32 %v8907, %v9551
      %v9589 = vadd.f32 %v8908, %v9553
      %v9590 = vadd.f32 %v8909, %v9556
      %v9591 = vadd.f32 %v8910, %v9558
      %v9592 = vld [vmem:[%s3921] sm:$0xe]
      %v9593 = vld [vmem:[%s3921 + $0xc] sm:$0xe]
      %v9594 = vld [vmem:[%s3921 + $0x18] sm:$0xe]
      %v9595 = vld [vmem:[%s3921 + $0x24] sm:$0xe]
      %v9596 = vld [vmem:[%s3921 + $0x30] sm:$0xe]
      %v9597 = vld [vmem:[%s3921 + $0x3c] sm:$0xe]
      %v9598 = vld [vmem:[%s3921 + $0x48] sm:$0xe]
      %v9599 = vld [vmem:[%s3921 + $0x54] sm:$0xe]
      %v9600 = vld [vmem:[%s3921 + $0x60] sm:$0xe]
      %v9601 = vld [vmem:[%s3921 + $0x6c] sm:$0xe]
      %v9602 = vld [vmem:[%s3921 + $0x78] sm:$0xe]
      %v9603 = vld [vmem:[%s3921 + $0x84] sm:$0xe]
      %v9604 = vld [vmem:[%s3921 + $0x90] sm:$0xe]
      %v9605 = vld [vmem:[%s3921 + $0x9c] sm:$0xe]
      %v9606 = vld [vmem:[%s3921 + $0xa8] sm:$0xe]
      %v9607 = vld [vmem:[%s3921 + $0xb4] sm:$0xe]
      %v9656 = vrot.slane %v9592, 5
      %v9657 = vrot.slane %v9656, 4
      %v9658 = vrot.slane %v8912, 5
      %v9659 = vsel %vm2140, %v9657, %v9658
      %v9660 = vrot.slane %v9658, 4
      %v9661 = vrot.slane %v8913, 5
      %v9662 = vsel %vm2140, %v9660, %v9661
      %v9663 = vrot.slane %v9593, 5
      %v9664 = vrot.slane %v9663, 4
      %v9665 = vrot.slane %v8915, 5
      %v9666 = vsel %vm2140, %v9664, %v9665
      %v9667 = vrot.slane %v9665, 4
      %v9668 = vrot.slane %v8916, 5
      %v9669 = vsel %vm2140, %v9667, %v9668
      %v9670 = vrot.slane %v9594, 5
      %v9671 = vrot.slane %v9670, 4
      %v9672 = vrot.slane %v8918, 5
      %v9673 = vsel %vm2140, %v9671, %v9672
      %v9674 = vrot.slane %v9672, 4
      %v9675 = vrot.slane %v8919, 5
      %v9676 = vsel %vm2140, %v9674, %v9675
      %v9677 = vrot.slane %v9595, 5
      %v9678 = vrot.slane %v9677, 4
      %v9679 = vrot.slane %v8921, 5
      %v9680 = vsel %vm2140, %v9678, %v9679
      %v9681 = vrot.slane %v9679, 4
      %v9682 = vrot.slane %v8922, 5
      %v9683 = vsel %vm2140, %v9681, %v9682
      %v9684 = vrot.slane %v9596, 5
      %v9685 = vrot.slane %v9684, 4
      %v9686 = vrot.slane %v8924, 5
      %v9687 = vsel %vm2140, %v9685, %v9686
      %v9688 = vrot.slane %v9686, 4
      %v9689 = vrot.slane %v8925, 5
      %v9690 = vsel %vm2140, %v9688, %v9689
      %v9691 = vrot.slane %v9597, 5
      %v9692 = vrot.slane %v9691, 4
      %v9693 = vrot.slane %v8927, 5
      %v9694 = vsel %vm2140, %v9692, %v9693
      %v9695 = vrot.slane %v9693, 4
      %v9696 = vrot.slane %v8928, 5
      %v9697 = vsel %vm2140, %v9695, %v9696
      %v9698 = vrot.slane %v9598, 5
      %v9699 = vrot.slane %v9698, 4
      %v9700 = vrot.slane %v8930, 5
      %v9701 = vsel %vm2140, %v9699, %v9700
      %v9702 = vrot.slane %v9700, 4
      %v9703 = vrot.slane %v8931, 5
      %v9704 = vsel %vm2140, %v9702, %v9703
      %v9705 = vrot.slane %v9599, 5
      %v9706 = vrot.slane %v9705, 4
      %v9707 = vrot.slane %v8933, 5
      %v9708 = vsel %vm2140, %v9706, %v9707
      %v9709 = vrot.slane %v9707, 4
      %v9710 = vrot.slane %v8934, 5
      %v9711 = vsel %vm2140, %v9709, %v9710
      %v9712 = vrot.slane %v9600, 5
      %v9713 = vrot.slane %v9712, 4
      %v9714 = vrot.slane %v8936, 5
      %v9715 = vsel %vm2140, %v9713, %v9714
      %v9716 = vrot.slane %v9714, 4
      %v9717 = vrot.slane %v8937, 5
      %v9718 = vsel %vm2140, %v9716, %v9717
      %v9719 = vrot.slane %v9601, 5
      %v9720 = vrot.slane %v9719, 4
      %v9721 = vrot.slane %v8939, 5
      %v9722 = vsel %vm2140, %v9720, %v9721
      %v9723 = vrot.slane %v9721, 4
      %v9724 = vrot.slane %v8940, 5
      %v9725 = vsel %vm2140, %v9723, %v9724
      %v9726 = vrot.slane %v9602, 5
      %v9727 = vrot.slane %v9726, 4
      %v9728 = vrot.slane %v8942, 5
      %v9729 = vsel %vm2140, %v9727, %v9728
      %v9730 = vrot.slane %v9728, 4
      %v9731 = vrot.slane %v8943, 5
      %v9732 = vsel %vm2140, %v9730, %v9731
      %v9733 = vrot.slane %v9603, 5
      %v9734 = vrot.slane %v9733, 4
      %v9735 = vrot.slane %v8945, 5
      %v9736 = vsel %vm2140, %v9734, %v9735
      %v9737 = vrot.slane %v9735, 4
      %v9738 = vrot.slane %v8946, 5
      %v9739 = vsel %vm2140, %v9737, %v9738
      %v9740 = vrot.slane %v9604, 5
      %v9741 = vrot.slane %v9740, 4
      %v9742 = vrot.slane %v8948, 5
      %v9743 = vsel %vm2140, %v9741, %v9742
      %v9744 = vrot.slane %v9742, 4
      %v9745 = vrot.slane %v8949, 5
      %v9746 = vsel %vm2140, %v9744, %v9745
      %v9747 = vrot.slane %v9605, 5
      %v9748 = vrot.slane %v9747, 4
      %v9749 = vrot.slane %v8951, 5
      %v9750 = vsel %vm2140, %v9748, %v9749
      %v9751 = vrot.slane %v9749, 4
      %v9752 = vrot.slane %v8952, 5
      %v9753 = vsel %vm2140, %v9751, %v9752
      %v9754 = vrot.slane %v9606, 5
      %v9755 = vrot.slane %v9754, 4
      %v9756 = vrot.slane %v8954, 5
      %v9757 = vsel %vm2140, %v9755, %v9756
      %v9758 = vrot.slane %v9756, 4
      %v9759 = vrot.slane %v8955, 5
      %v9760 = vsel %vm2140, %v9758, %v9759
      %v9761 = vrot.slane %v9607, 5
      %v9762 = vrot.slane %v9761, 4
      %v9763 = vrot.slane %v8957, 5
      %v9764 = vsel %vm2140, %v9762, %v9763
      %v9765 = vrot.slane %v9763, 4
      %v9766 = vrot.slane %v8958, 5
      %v9767 = vsel %vm2140, %v9765, %v9766
      %v9768 = vld [vmem:[%s3 + $0x100] sm:$0xf]
      %v9769 = vld [vmem:[%s3 + $0x104] sm:$0xf]
      %v9770 = vld [vmem:[%s3 + $0x108] sm:$0xf]
      %v9771 = vld [vmem:[%s3 + $0x10c] sm:$0xf]
      %v9772 = vld [vmem:[%s3 + $0x110] sm:$0xf]
      %v9773 = vld [vmem:[%s3 + $0x114] sm:$0xf]
      %v9774 = vld [vmem:[%s3 + $0x118] sm:$0xf]
      %v9775 = vld [vmem:[%s3 + $0x11c] sm:$0xf]
      %v9776 = vunpack.c.l.b16 %v9659
      %v9777 = vunpack.c.l.b16 %v9662
      %v9778 = vunpack.c.l.b16 %v9666
      %v9779 = vunpack.c.l.b16 %v9669
      %v9780 = vunpack.c.l.b16 %v9673
      %v9781 = vunpack.c.l.b16 %v9676
      %v9782 = vunpack.c.l.b16 %v9680
      %v9783 = vunpack.c.l.b16 %v9683
      %v9784 = vunpack.c.l.b16 %v9687
      %v9785 = vunpack.c.l.b16 %v9690
      %v9786 = vunpack.c.l.b16 %v9694
      %v9787 = vunpack.c.l.b16 %v9697
      %v9788 = vunpack.c.l.b16 %v9701
      %v9789 = vunpack.c.l.b16 %v9704
      %v9790 = vunpack.c.l.b16 %v9708
      %v9791 = vunpack.c.l.b16 %v9711
      %v9792 = vunpack.c.l.b16 %v9715
      %v9793 = vunpack.c.l.b16 %v9718
      %v9794 = vunpack.c.l.b16 %v9722
      %v9795 = vunpack.c.l.b16 %v9725
      %v9796 = vunpack.c.l.b16 %v9729
      %v9797 = vunpack.c.l.b16 %v9732
      %v9798 = vunpack.c.l.b16 %v9736
      %v9799 = vunpack.c.l.b16 %v9739
      %v9800 = vunpack.c.l.b16 %v9743
      %v9801 = vunpack.c.l.b16 %v9746
      %v9802 = vunpack.c.l.b16 %v9750
      %v9803 = vunpack.c.l.b16 %v9753
      %v9804 = vunpack.c.l.b16 %v9757
      %v9805 = vunpack.c.l.b16 %v9760
      %v9806 = vunpack.c.l.b16 %v9764
      %v9807 = vunpack.c.l.b16 %v9767
      %v9808 = vpack.c.b16 %v9777, %v9776
      %v9809 = vpack.c.b16 %v9779, %v9778
      %v9810 = vpack.c.b16 %v9781, %v9780
      %v9811 = vpack.c.b16 %v9783, %v9782
      %v9812 = vpack.c.b16 %v9785, %v9784
      %v9813 = vpack.c.b16 %v9787, %v9786
      %v9814 = vpack.c.b16 %v9789, %v9788
      %v9815 = vpack.c.b16 %v9791, %v9790
      %v9816 = vpack.c.b16 %v9793, %v9792
      %v9817 = vpack.c.b16 %v9795, %v9794
      %v9818 = vpack.c.b16 %v9797, %v9796
      %v9819 = vpack.c.b16 %v9799, %v9798
      %v9820 = vpack.c.b16 %v9801, %v9800
      %v9821 = vpack.c.b16 %v9803, %v9802
      %v9822 = vpack.c.b16 %v9805, %v9804
      %v9823 = vpack.c.b16 %v9807, %v9806
      %v9832 = vunpack.c.l.b16 %v9768
      %v9833 = vunpack.c.l.b16 %v9769
      %v9834 = vunpack.c.l.b16 %v9770
      %v9835 = vunpack.c.l.b16 %v9771
      %v9836 = vunpack.c.l.b16 %v9772
      %v9837 = vunpack.c.l.b16 %v9773
      %v9838 = vunpack.c.l.b16 %v9774
      %v9839 = vunpack.c.l.b16 %v9775
      %v9840 = vpack.c.b16 %v9833, %v9832
      %v9841 = vpack.c.b16 %v9835, %v9834
      %v9842 = vpack.c.b16 %v9837, %v9836
      %v9843 = vpack.c.b16 %v9839, %v9838
      %v9849 = vsel %vm1711, %v9808, 0
      %v9852 = vsel %vm1711, %v9809, 0
      %v9855 = vsel %vm1711, %v9810, 0
      %v9858 = vsel %vm1711, %v9811, 0
      %v9861 = vsel %vm1711, %v9812, 0
      %v9864 = vsel %vm1711, %v9813, 0
      %v9867 = vsel %vm1711, %v9814, 0
      %v9870 = vsel %vm1711, %v9815, 0
      %v9873 = vsel %vm1711, %v9816, 0
      %v9876 = vsel %vm1711, %v9817, 0
      %v9879 = vsel %vm1711, %v9818, 0
      %v9882 = vsel %vm1711, %v9819, 0
      %v9885 = vsel %vm1711, %v9820, 0
      %v9888 = vsel %vm1711, %v9821, 0
      %v9891 = vsel %vm1711, %v9822, 0
      %v9894 = vsel %vm1711, %v9823, 0
      %9896 = vmatpush.bf16.msra.mxu0 0
      %9897 = vmatpush.bf16.msra.mxu0 0
      %9898 = vmatpush.bf16.msra.mxu0 0
      %9899 = vmatpush.bf16.msra.mxu0 0
      %9900 = vmatpush.bf16.msra.mxu0 %v9843
      %9901 = vmatpush.bf16.msra.mxu0 %v9842
      %9902 = vmatpush.bf16.msra.mxu0 %v9841
      %9903 = vmatpush.bf16.msra.mxu0 %v9840
      %9904 = vmatmul.bf16.gmra.mxu0 %v9849
      %v9905 = vpop.f32.mrf.mxu0
      %v9906 = vadd.f32 0.0, %v9905
      %v9907 = vpop.f32.mrf.mxu0
      %v9908 = vadd.f32 0.0, %v9907
      %9909 = vmatmul.bf16.gmra.mxu0 %v9852
      %v9910 = vpop.f32.mrf.mxu0
      %v9911 = vadd.f32 0.0, %v9910
      %v9912 = vpop.f32.mrf.mxu0
      %v9913 = vadd.f32 0.0, %v9912
      %9914 = vmatmul.bf16.gmra.mxu0 %v9855
      %v9915 = vpop.f32.mrf.mxu0
      %v9916 = vadd.f32 0.0, %v9915
      %v9917 = vpop.f32.mrf.mxu0
      %v9918 = vadd.f32 0.0, %v9917
      %9919 = vmatmul.bf16.gmra.mxu0 %v9858
      %v9920 = vpop.f32.mrf.mxu0
      %v9921 = vadd.f32 0.0, %v9920
      %v9922 = vpop.f32.mrf.mxu0
      %v9923 = vadd.f32 0.0, %v9922
      %9924 = vmatmul.bf16.gmra.mxu0 %v9861
      %v9925 = vpop.f32.mrf.mxu0
      %v9926 = vadd.f32 0.0, %v9925
      %v9927 = vpop.f32.mrf.mxu0
      %v9928 = vadd.f32 0.0, %v9927
      %9929 = vmatmul.bf16.gmra.mxu0 %v9864
      %v9930 = vpop.f32.mrf.mxu0
      %v9931 = vadd.f32 0.0, %v9930
      %v9932 = vpop.f32.mrf.mxu0
      %v9933 = vadd.f32 0.0, %v9932
      %9934 = vmatmul.bf16.gmra.mxu0 %v9867
      %v9935 = vpop.f32.mrf.mxu0
      %v9936 = vadd.f32 0.0, %v9935
      %v9937 = vpop.f32.mrf.mxu0
      %v9938 = vadd.f32 0.0, %v9937
      %9939 = vmatmul.bf16.gmra.mxu0 %v9870
      %v9940 = vpop.f32.mrf.mxu0
      %v9941 = vadd.f32 0.0, %v9940
      %v9942 = vpop.f32.mrf.mxu0
      %v9943 = vadd.f32 0.0, %v9942
      %9944 = vmatmul.bf16.gmra.mxu0 %v9873
      %v9945 = vpop.f32.mrf.mxu0
      %v9946 = vadd.f32 0.0, %v9945
      %v9947 = vpop.f32.mrf.mxu0
      %v9948 = vadd.f32 0.0, %v9947
      %9949 = vmatmul.bf16.gmra.mxu0 %v9876
      %v9950 = vpop.f32.mrf.mxu0
      %v9951 = vadd.f32 0.0, %v9950
      %v9952 = vpop.f32.mrf.mxu0
      %v9953 = vadd.f32 0.0, %v9952
      %9954 = vmatmul.bf16.gmra.mxu0 %v9879
      %v9955 = vpop.f32.mrf.mxu0
      %v9956 = vadd.f32 0.0, %v9955
      %v9957 = vpop.f32.mrf.mxu0
      %v9958 = vadd.f32 0.0, %v9957
      %9959 = vmatmul.bf16.gmra.mxu0 %v9882
      %v9960 = vpop.f32.mrf.mxu0
      %v9961 = vadd.f32 0.0, %v9960
      %v9962 = vpop.f32.mrf.mxu0
      %v9963 = vadd.f32 0.0, %v9962
      %9964 = vmatmul.bf16.gmra.mxu0 %v9885
      %v9965 = vpop.f32.mrf.mxu0
      %v9966 = vadd.f32 0.0, %v9965
      %v9967 = vpop.f32.mrf.mxu0
      %v9968 = vadd.f32 0.0, %v9967
      %9969 = vmatmul.bf16.gmra.mxu0 %v9888
      %v9970 = vpop.f32.mrf.mxu0
      %v9971 = vadd.f32 0.0, %v9970
      %v9972 = vpop.f32.mrf.mxu0
      %v9973 = vadd.f32 0.0, %v9972
      %9974 = vmatmul.bf16.gmra.mxu0 %v9891
      %v9975 = vpop.f32.mrf.mxu0
      %v9976 = vadd.f32 0.0, %v9975
      %v9977 = vpop.f32.mrf.mxu0
      %v9978 = vadd.f32 0.0, %v9977
      %9979 = vmatmul.bf16.gmra.mxu0 %v9894
      %v9980 = vpop.f32.mrf.mxu0
      %v9981 = vadd.f32 0.0, %v9980
      %v9982 = vpop.f32.mrf.mxu0
      %v9983 = vadd.f32 0.0, %v9982
      %9984 = vdwg.mxu0
      %v9985 = vadd.f32 %v9560, %v9906
      %v9986 = vadd.f32 %v9561, %v9908
      %v9987 = vadd.f32 %v9562, %v9911
      %v9988 = vadd.f32 %v9563, %v9913
      %v9989 = vadd.f32 %v9564, %v9916
      %v9990 = vadd.f32 %v9565, %v9918
      %v9991 = vadd.f32 %v9566, %v9921
      %v9992 = vadd.f32 %v9567, %v9923
      %v9993 = vadd.f32 %v9568, %v9926
      %v9994 = vadd.f32 %v9569, %v9928
      %v9995 = vadd.f32 %v9570, %v9931
      %v9996 = vadd.f32 %v9571, %v9933
      %v9997 = vadd.f32 %v9572, %v9936
      %v9998 = vadd.f32 %v9573, %v9938
      %v9999 = vadd.f32 %v9574, %v9941
      %v10000 = vadd.f32 %v9575, %v9943
      %v10001 = vadd.f32 %v9576, %v9946
      %v10002 = vadd.f32 %v9577, %v9948
      %v10003 = vadd.f32 %v9578, %v9951
      %v10004 = vadd.f32 %v9579, %v9953
      %v10005 = vadd.f32 %v9580, %v9956
      %v10006 = vadd.f32 %v9581, %v9958
      %v10007 = vadd.f32 %v9582, %v9961
      %v10008 = vadd.f32 %v9583, %v9963
      %v10009 = vadd.f32 %v9584, %v9966
      %v10010 = vadd.f32 %v9585, %v9968
      %v10011 = vadd.f32 %v9586, %v9971
      %v10012 = vadd.f32 %v9587, %v9973
      %v10013 = vadd.f32 %v9588, %v9976
      %v10014 = vadd.f32 %v9589, %v9978
      %v10015 = vadd.f32 %v9590, %v9981
      %v10016 = vadd.f32 %v9591, %v9983
      %v10017 = vld [vmem:[%s6] sm:$0x1]
      %v10019 = vperm.slane %v10017, 0
      %v10021 = vadd.f32 %v9985, %v10019
      %v10022 = vadd.f32 %v9986, %v10019
      %v10023 = vadd.f32 %v9987, %v10019
      %v10024 = vadd.f32 %v9988, %v10019
      %v10025 = vadd.f32 %v9989, %v10019
      %v10026 = vadd.f32 %v9990, %v10019
      %v10027 = vadd.f32 %v9991, %v10019
      %v10028 = vadd.f32 %v9992, %v10019
      %v10029 = vadd.f32 %v9993, %v10019
      %v10030 = vadd.f32 %v9994, %v10019
      %v10031 = vadd.f32 %v9995, %v10019
      %v10032 = vadd.f32 %v9996, %v10019
      %v10033 = vadd.f32 %v9997, %v10019
      %v10034 = vadd.f32 %v9998, %v10019
      %v10035 = vadd.f32 %v9999, %v10019
      %v10036 = vadd.f32 %v10000, %v10019
      %v10037 = vadd.f32 %v10001, %v10019
      %v10038 = vadd.f32 %v10002, %v10019
      %v10039 = vadd.f32 %v10003, %v10019
      %v10040 = vadd.f32 %v10004, %v10019
      %v10041 = vadd.f32 %v10005, %v10019
      %v10042 = vadd.f32 %v10006, %v10019
      %v10043 = vadd.f32 %v10007, %v10019
      %v10044 = vadd.f32 %v10008, %v10019
      %v10045 = vadd.f32 %v10009, %v10019
      %v10046 = vadd.f32 %v10010, %v10019
      %v10047 = vadd.f32 %v10011, %v10019
      %v10048 = vadd.f32 %v10012, %v10019
      %v10049 = vadd.f32 %v10013, %v10019
      %v10050 = vadd.f32 %v10014, %v10019
      %v10051 = vadd.f32 %v10015, %v10019
      %v10052 = vadd.f32 %v10016, %v10019
      %10053 = vst [vmem:[%s278] sm:$0xff] %v10021
      %10054 = vst [vmem:[%s278 + $0x8] sm:$0xff] %v10022
      %10055 = vst [vmem:[%s278 + $0x10] sm:$0xff] %v10023
      %10056 = vst [vmem:[%s278 + $0x18] sm:$0xff] %v10024
      %10057 = vst [vmem:[%s278 + $0x20] sm:$0xff] %v10025
      %10058 = vst [vmem:[%s278 + $0x28] sm:$0xff] %v10026
      %10059 = vst [vmem:[%s278 + $0x30] sm:$0xff] %v10027
      %10060 = vst [vmem:[%s278 + $0x38] sm:$0xff] %v10028
      %10061 = vst [vmem:[%s278 + $0x40] sm:$0xff] %v10029
      %10062 = vst [vmem:[%s278 + $0x48] sm:$0xff] %v10030
      %10063 = vst [vmem:[%s278 + $0x50] sm:$0xff] %v10031
      %10064 = vst [vmem:[%s278 + $0x58] sm:$0xff] %v10032
      %10065 = vst [vmem:[%s278 + $0x60] sm:$0xff] %v10033
      %10066 = vst [vmem:[%s278 + $0x68] sm:$0xff] %v10034
      %10067 = vst [vmem:[%s278 + $0x70] sm:$0xff] %v10035
      %10068 = vst [vmem:[%s278 + $0x78] sm:$0xff] %v10036
      %10069 = vst [vmem:[%s278 + $0x80] sm:$0xff] %v10037
      %10070 = vst [vmem:[%s278 + $0x88] sm:$0xff] %v10038
      %10071 = vst [vmem:[%s278 + $0x90] sm:$0xff] %v10039
      %10072 = vst [vmem:[%s278 + $0x98] sm:$0xff] %v10040
      %10073 = vst [vmem:[%s278 + $0xa0] sm:$0xff] %v10041
      %10074 = vst [vmem:[%s278 + $0xa8] sm:$0xff] %v10042
      %10075 = vst [vmem:[%s278 + $0xb0] sm:$0xff] %v10043
      %10076 = vst [vmem:[%s278 + $0xb8] sm:$0xff] %v10044
      %10077 = vst [vmem:[%s278 + $0xc0] sm:$0xff] %v10045
      %10078 = vst [vmem:[%s278 + $0xc8] sm:$0xff] %v10046
      %10079 = vst [vmem:[%s278 + $0xd0] sm:$0xff] %v10047
      %10080 = vst [vmem:[%s278 + $0xd8] sm:$0xff] %v10048
      %10081 = vst [vmem:[%s278 + $0xe0] sm:$0xff] %v10049
      %10082 = vst [vmem:[%s278 + $0xe8] sm:$0xff] %v10050
      %10083 = vst [vmem:[%s278 + $0xf0] sm:$0xff] %v10051
      %10084 = vst [vmem:[%s278 + $0xf8] sm:$0xff] %v10052
      %p10085 = scmp.lt.s32.totalorder %s18, 1
      %s10086 = scalar_select %p10085, %s18, 1
      %s10087 = smul.addr %s10086, 32
      %s10088 = smul.addr %s10087, 8
      %s10089 = scalar_lea.vmem %s7, %s10088
      // Predicated region
      $region49: #{cnn_upsampler_forward.1} parent=47 // pred_check
        %p10090 = pneg %p188
      $region50: #{cnn_upsampler_forward.1} parent=47 // pred_check_branch
        %10092 = sbr.rel (%p10090) target = $region52
      $region51: #{cnn_upsampler_forward.1} parent=47 // pred_region
        _
      $region52: #{cnn_upsampler_forward.1} parent=47 // pred_fallthru
        _
    $region48: #{cnn_upsampler_forward.1} parent=5 // pred_fallthru
      _
    %p10093 = scmp.le.s32.totalorder 2, %s13
    // Predicated region
    $region53: #{cnn_upsampler_forward.1} parent=5 // pred_check
      %p10094 = pneg %p10093
    $region54: #{cnn_upsampler_forward.1} parent=5 // pred_check_branch
      %10096 = sbr.rel (%p10094) target = $region56
    $region55: #{cnn_upsampler_forward.1} parent=5 // pred_region
      %s10097 = ssub.s32 %s13, 2
      // Predicated region
      $region57: #{cnn_upsampler_forward.1} parent=55 // pred_check
        %p10098 = pneg %p194
      $region58: #{cnn_upsampler_forward.1} parent=55 // pred_check_branch
        %10100 = sbr.rel (%p10098) target = $region60
      $region59: #{cnn_upsampler_forward.1} parent=55 // pred_region
        %p10101 = scmp.lt.s32.totalorder %s19, 1
        %s10102 = scalar_select %p10101, %s19, 1
        %s10103 = smul.addr %s10102, 32
        %s10104 = smul.addr %s10103, 8
        %s10105 = scalar_lea.vmem %s7, %s10104
      $region60: #{cnn_upsampler_forward.1} parent=55 // pred_fallthru
        _
    $region56: #{cnn_upsampler_forward.1} parent=5 // pred_fallthru
      _
  $region6: #{cnn_upsampler_forward.1} parent=0 // loop_footer
    %s17 = sadd.s32 1, %s13
  $region7: #{cnn_upsampler_forward.1} parent=0 // loop_footer_branch
    %12 = sbr.rel target = $region3
  $region8: #{cnn_upsampler_forward.1} parent=0 // loop_exit
    _

</llo_original>
